<compile_context>
chip_gen: v7x
topology: tpu7x:2x2x1
jax: 0.10.0
libtpu: 0.0.40
codegen_flags: <defaults>
</compile_context>

<pallas_src>
import functools

import jax
import jax.numpy as jnp
from jax import lax
from jax.experimental import pallas as pl
from jax.experimental.pallas import tpu as pltpu

C = 512          # fixed by the module definition (Conv2d(512, 512, ...))
KH = KW = 3
EPS = 1e-5


def _conv_stats_kernel(x_ref, w_ref, b_ref, cm_ref, y_ref, sum_ref, sq_ref,
                       xe_ref, acc_ref, *, H, W, pad):
    """3x3 'same' conv (+bias) for one image + per-image channel sums.

    x_ref   : (1, H*W, C)        f32   one image, spatial flattened, C on lanes
    w_ref   : (3, 3*C, C)        bf16  weights; w_ref[kw] = concat_kh W[kh, kw]
    b_ref   : (1, C)             f32   conv bias
    cm_ref  : (2, H*W, 1)        f32   column masks [j > 0, j < W-1]
    y_ref   : (1, H*W, C)        bf16  conv output (pre-BN)
    sum_ref : (1, 1, C)          f32   per-image channel sum of y
    sq_ref  : (1, 1, C)          f32   per-image channel sum of y*y
    xe_ref  : (H*W + 2*pad, C)   f32   scratch: zero row-halo'd image
    acc_ref : (H*W, C)           f32   scratch: f32 accumulator
    """
    M = H * W

    # Stage the image with a zero row-halo so every (dh, dw) tap becomes a
    # plain row-offset slice of a flat (rows, C) buffer -- no 2D-window slice
    # + reshape relayout, and rows that fall off the top/bottom read zeros.
    xe_ref[0:pad, :] = jnp.zeros((pad, C), jnp.float32)
    xe_ref[pad + M:pad + M + pad, :] = jnp.zeros((pad, C), jnp.float32)
    xe_ref[pad:pad + M, :] = x_ref[0]

    left = cm_ref[0]     # (M, 1): 0 where j == 0      (kills dw = -1 wrap)
    right = cm_ref[1]    # (M, 1): 0 where j == W - 1  (kills dw = +1 wrap)

    # 3 fat MXU matmuls: for each kw, the three kh taps are concatenated along
    # the contraction (lane) dimension.  bf16 operands, f32 accumulation.
    for kw in range(KW):
        dw = kw - 1
        pieces = []
        for kh in range(KH):
            dh = kh - 1
            off = pad + dh * W + dw
            p = xe_ref[off:off + M, :]          # (M, C) f32, static row offset
            if dw == -1:
                p = p * left
            elif dw == 1:
                p = p * right
            pieces.append(p.astype(jnp.bfloat16))
        patch = jnp.concatenate(pieces, axis=-1)            # (M, 3C) bf16
        contrib = jnp.dot(patch, w_ref[kw],
                          preferred_element_type=jnp.float32)
        if kw == 0:
            acc_ref[...] = contrib
        else:
            acc_ref[...] += contrib

    yv = acc_ref[...] + b_ref[...]                          # (M, C) f32
    y_ref[0] = yv.astype(jnp.bfloat16)
    # Per-image partial sums; the cross-image reduction happens in JAX glue so
    # the batch grid axis can stay "parallel" (v7x megacore-safe).
    sum_ref[0] = jnp.sum(yv, axis=0, keepdims=True)
    sq_ref[0] = jnp.sum(yv * yv, axis=0, keepdims=True)


def _bn_apply_kernel(y_ref, s_ref, t_ref, o_ref):
    """Elementwise y * scale + shift (folded batch-norm affine)."""
    o_ref[...] = y_ref[...].astype(jnp.float32) * s_ref[...] + t_ref[...]


def _row_tile(rows, cap=1024):
    """Largest row tile <= cap that evenly divides `rows` (lane-dense blocks)."""
    if rows <= cap:
        return rows
    for t in range(cap, 7, -8):
        if rows % t == 0:
            return t
    return rows   # fallback: single block


def _conv3x3_with_stats(x_rows, w_hwio, bias, H, W):
    """x_rows: (N, H*W, C) f32.  Returns conv output (bf16) + per-image sums."""
    N, M, _ = x_rows.shape

    # Weights: HWIO (3,3,C,C) -> per-kw K-concatenated (3, 3C, C), bf16.
    wcat = jnp.transpose(w_hwio, (1, 0, 2, 3)).reshape(KW, KH * C, C)
    wcat = wcat.astype(jnp.bfloat16)
    b = bias.reshape(1, C).astype(jnp.float32)

    # Column-validity masks for the W-shifted taps (dw = -1 / +1).
    j = jnp.arange(M, dtype=jnp.int32) % W
    cm = jnp.stack([(j > 0), (j < W - 1)]).astype(jnp.float32).reshape(2, M, 1)

    pad = ((W + 1 + 7) // 8) * 8          # zero halo rows above/below image

    kernel = functools.partial(_conv_stats_kernel, H=H, W=W, pad=pad)
    y, ch_sum, ch_sq = pl.pallas_call(
        kernel,
        grid=(N,),
        in_specs=[
            pl.BlockSpec((1, M, C), lambda n: (n, 0, 0)),
            pl.BlockSpec((KW, KH * C, C), lambda n: (0, 0, 0)),
            pl.BlockSpec((1, C), lambda n: (0, 0)),
            pl.BlockSpec((2, M, 1), lambda n: (0, 0, 0)),
        ],
        out_specs=(
            pl.BlockSpec((1, M, C), lambda n: (n, 0, 0)),
            pl.BlockSpec((1, 1, C), lambda n: (n, 0, 0)),
            pl.BlockSpec((1, 1, C), lambda n: (n, 0, 0)),
        ),
        out_shape=(
            jax.ShapeDtypeStruct((N, M, C), jnp.bfloat16),
            jax.ShapeDtypeStruct((N, 1, C), jnp.float32),
            jax.ShapeDtypeStruct((N, 1, C), jnp.float32),
        ),
        scratch_shapes=[
            pltpu.VMEM((M + 2 * pad, C), jnp.float32),
            pltpu.VMEM((M, C), jnp.float32),
        ],
        compiler_params=pltpu.CompilerParams(
            dimension_semantics=("parallel",),          # no cross-step state
            vmem_limit_bytes=32 * 1024 * 1024,          # v7x-safe (<= 64 MiB/TC)
        ),
    )(x_rows, wcat, b, cm)
    return y, ch_sum, ch_sq


def convs1_forward(x_nchw, params):
    """x_nchw: (N, 512, H, W) float32 -> (N, 512, H, W) float32."""
    N, _, H, W = x_nchw.shape
    M = H * W
    R = N * M

    # TODO(synk): the NCHW<->NHWC transposes are XLA glue; if the surrounding
    # model carried NHWC activations they would disappear entirely.
    x_rows = jnp.transpose(x_nchw, (0, 2, 3, 1)).reshape(N, M, C)

    # conv + per-image channel statistics (hot path, in Pallas)
    y, ch_sum, ch_sq = _conv3x3_with_stats(x_rows, params["w"], params["b"], H, W)

    # tiny per-channel glue: reduce per-image partial sums and fold BN into a
    # single scale/shift  (training-mode batch statistics, biased variance)
    count = float(N * H * W)
    s = jnp.sum(ch_sum, axis=(0, 1))                     # (C,)
    sq = jnp.sum(ch_sq, axis=(0, 1))                     # (C,)
    mean = s / count
    var = jnp.maximum(sq / count - mean * mean, 0.0)
    inv_std = lax.rsqrt(var + EPS)
    scale = (params["gamma"] * inv_std).reshape(1, C).astype(jnp.float32)
    shift = (params["beta"] - mean * params["gamma"] * inv_std).reshape(1, C)
    shift = shift.astype(jnp.float32)
    # TODO(synk): running_mean / running_var state updates (BN side effect) are
    # not reproduced; only the returned tensor is.

    # elementwise BN application on fat lane-dense (rows, 512) blocks
    y_flat = y.reshape(R, C)
    tr = _row_tile(R)
    out = pl.pallas_call(
        _bn_apply_kernel,
        grid=(R // tr,),
        in_specs=[
            pl.BlockSpec((tr, C), lambda r: (r, 0)),
            pl.BlockSpec((1, C), lambda r: (0, 0)),
            pl.BlockSpec((1, C), lambda r: (0, 0)),
        ],
        out_specs=pl.BlockSpec((tr, C), lambda r: (r, 0)),
        out_shape=jax.ShapeDtypeStruct((R, C), jnp.float32),
        compiler_params=pltpu.CompilerParams(
            dimension_semantics=("parallel",)),
    )(y_flat, scale, shift)

    out = out.reshape(N, H, W, C)
    return jnp.transpose(out, (0, 3, 1, 2))   # back to NCHW


def init_params(key):
    # Shapes follow the module's __init__: Conv2d(512,512,3) weight/bias and
    # BatchNorm2d(512) gamma/beta.
    # Note: the original module zero-inits the conv weight (nn.init.constant),
    # which makes the output degenerate (all zeros after BN); we use a small
    # deterministic random init instead so the numerics are non-trivial.
    kw_, kb_ = jax.random.split(key)
    w_hwio = 0.05 * jax.random.normal(kw_, (KH, KW, C, C), jnp.float32)
    b = 0.1 * jax.random.normal(kb_, (C,), jnp.float32)
    gamma = jnp.ones((C,), jnp.float32)   # BatchNorm2d default affine init
    beta = jnp.zeros((C,), jnp.float32)
    return {"w": w_hwio, "b": b, "gamma": gamma, "beta": beta}


def reference_forward(x_nchw, params):
    y = lax.conv_general_dilated(
        x_nchw, params["w"], window_strides=(1, 1), padding="SAME",
        dimension_numbers=("NCHW", "HWIO", "NCHW"))
    y = y + params["b"].reshape(1, C, 1, 1)
    mean = jnp.mean(y, axis=(0, 2, 3), keepdims=True)
    var = jnp.mean((y - mean) ** 2, axis=(0, 2, 3), keepdims=True)
    yhat = (y - mean) * lax.rsqrt(var + EPS)
    return (yhat * params["gamma"].reshape(1, C, 1, 1)
            + params["beta"].reshape(1, C, 1, 1))


if __name__ == "__main__":
    key = jax.random.PRNGKey(0)
    kx, kp = jax.random.split(key)

    N, H, W = 2, 8, 8                       # small spatial/batch; C fixed at 512
    x = jax.random.normal(kx, (N, C, H, W), jnp.float32)
    params = init_params(kp)

    out = jax.block_until_ready(convs1_forward(x, params))
    ref = jax.block_until_ready(reference_forward(x, params))

    assert out.shape == (N, C, H, W)
    # bf16 MXU operands + bf16 conv intermediate vs. a pure-f32 reference:
    # observed error is ~1e-2 level on unit-variance normalized outputs.
    max_err = float(jnp.max(jnp.abs(out - ref)))
    assert max_err < 5e-2, f"mismatch vs reference, max abs err {max_err}"

    print("KERNEL_OK")
</pallas_src>

<mosaic_0001>
module attributes {stable_mosaic.version = 11 : i64} {
  func.func @_conv_stats_kernel(%arg0: i32, %arg1: memref<1x64x512xf32, #tpu.memory_space<vmem>>, %arg2: memref<3x1536x512xbf16, #tpu.memory_space<vmem>>, %arg3: memref<1x512xf32, #tpu.memory_space<vmem>>, %arg4: memref<2x64x1xf32, #tpu.memory_space<vmem>>, %arg5: memref<1x64x512xbf16, #tpu.memory_space<vmem>>, %arg6: memref<1x1x512xf32, #tpu.memory_space<vmem>>, %arg7: memref<1x1x512xf32, #tpu.memory_space<vmem>>, %arg8: memref<96x512xf32, #tpu.memory_space<vmem>>, %arg9: memref<64x512xf32, #tpu.memory_space<vmem>>) attributes {dimension_semantics = [#tpu.dimension_semantics<parallel>], iteration_bounds = array<i64: 2>, scalar_prefetch = 0 : i64, scratch_operands = 2 : i64, tpu.core_type = #tpu.core_type<tc>, window_params = [{transform_indices = @transform_0, window_bounds = array<i64: 1, 64, 512>}, {pipeline_mode = #tpu.pipeline_mode<synchronous>, transform_indices = @transform_1, window_bounds = array<i64: 3, 1536, 512>}, {pipeline_mode = #tpu.pipeline_mode<synchronous>, transform_indices = @transform_2, window_bounds = array<i64: 1, 512>}, {pipeline_mode = #tpu.pipeline_mode<synchronous>, transform_indices = @transform_3, window_bounds = array<i64: 2, 64, 1>}, {transform_indices = @transform_4, window_bounds = array<i64: 1, 64, 512>}, {transform_indices = @transform_5, window_bounds = array<i64: 1, 1, 512>}, {transform_indices = @transform_6, window_bounds = array<i64: 1, 1, 512>}]} {
    %cst = arith.constant 0.000000e+00 : f32
    %0 = vector.broadcast %cst : f32 to vector<16x512xf32>
    %c0 = arith.constant 0 : index
    %c0_0 = arith.constant 0 : index
    %1 = vector.load %arg8[%c0, %c0_0] : memref<96x512xf32, #tpu.memory_space<vmem>>, vector<16x512xf32>
    tpu.vector_store %arg8[%c0, %c0_0], %0 {strides = array<i32>} : memref<96x512xf32, #tpu.memory_space<vmem>>, vector<16x512xf32>,
    %cst_1 = arith.constant 0.000000e+00 : f32
    %2 = vector.broadcast %cst_1 : f32 to vector<16x512xf32>
    %c80 = arith.constant 80 : index
    %c0_2 = arith.constant 0 : index
    %3 = vector.load %arg8[%c80, %c0_2] : memref<96x512xf32, #tpu.memory_space<vmem>>, vector<16x512xf32>
    tpu.vector_store %arg8[%c80, %c0_2], %2 {strides = array<i32>} : memref<96x512xf32, #tpu.memory_space<vmem>>, vector<16x512xf32>,
    %c0_3 = arith.constant 0 : index
    %c0_4 = arith.constant 0 : index
    %c0_5 = arith.constant 0 : index
    %4 = vector.load %arg1[%c0_3, %c0_4, %c0_5] : memref<1x64x512xf32, #tpu.memory_space<vmem>>, vector<1x64x512xf32>
    %5 = vector.shape_cast %4 : vector<1x64x512xf32> to vector<64x512xf32>
    %c16 = arith.constant 16 : index
    %c0_6 = arith.constant 0 : index
    %6 = vector.load %arg8[%c16, %c0_6] : memref<96x512xf32, #tpu.memory_space<vmem>>, vector<64x512xf32>
    tpu.vector_store %arg8[%c16, %c0_6], %5 {strides = array<i32>} : memref<96x512xf32, #tpu.memory_space<vmem>>, vector<64x512xf32>,
    %c0_7 = arith.constant 0 : index
    %c0_8 = arith.constant 0 : index
    %c0_9 = arith.constant 0 : index
    %7 = vector.load %arg4[%c0_7, %c0_8, %c0_9] : memref<2x64x1xf32, #tpu.memory_space<vmem>>, vector<1x64x1xf32>
    %8 = vector.shape_cast %7 : vector<1x64x1xf32> to vector<64x1xf32>
    %c1 = arith.constant 1 : index
    %c0_10 = arith.constant 0 : index
    %c0_11 = arith.constant 0 : index
    %9 = vector.load %arg4[%c1, %c0_10, %c0_11] : memref<2x64x1xf32, #tpu.memory_space<vmem>>, vector<1x64x1xf32>
    %10 = vector.shape_cast %9 : vector<1x64x1xf32> to vector<64x1xf32>
    %c7 = arith.constant 7 : index
    %c0_12 = arith.constant 0 : index
    %11 = vector.load %arg8[%c7, %c0_12] : memref<96x512xf32, #tpu.memory_space<vmem>>, vector<64x512xf32>
    %12 = vector.broadcast %8 : vector<64x1xf32> to vector<64x512xf32>
    %13 = arith.mulf %11, %12 : vector<64x512xf32>
    %14 = arith.truncf %13 : vector<64x512xf32> to vector<64x512xbf16>
    %c15 = arith.constant 15 : index
    %c0_13 = arith.constant 0 : index
    %15 = vector.load %arg8[%c15, %c0_13] : memref<96x512xf32, #tpu.memory_space<vmem>>, vector<64x512xf32>
    %16 = vector.broadcast %8 : vector<64x1xf32> to vector<64x512xf32>
    %17 = arith.mulf %15, %16 : vector<64x512xf32>
    %18 = arith.truncf %17 : vector<64x512xf32> to vector<64x512xbf16>
    %c23 = arith.constant 23 : index
    %c0_14 = arith.constant 0 : index
    %19 = vector.load %arg8[%c23, %c0_14] : memref<96x512xf32, #tpu.memory_space<vmem>>, vector<64x512xf32>
    %20 = vector.broadcast %8 : vector<64x1xf32> to vector<64x512xf32>
    %21 = arith.mulf %19, %20 : vector<64x512xf32>
    %22 = arith.truncf %21 : vector<64x512xf32> to vector<64x512xbf16>
    %23 = tpu.concatenate %14, %18, %22 in 1 : vector<64x512xbf16>, vector<64x512xbf16>, vector<64x512xbf16> -> vector<64x1536xbf16>
    %c0_15 = arith.constant 0 : index
    %c0_16 = arith.constant 0 : index
    %c0_17 = arith.constant 0 : index
    %24 = vector.load %arg2[%c0_15, %c0_16, %c0_17] : memref<3x1536x512xbf16, #tpu.memory_space<vmem>>, vector<1x1536x512xbf16>
    %25 = vector.shape_cast %24 : vector<1x1536x512xbf16> to vector<1536x512xbf16>
    %cst_18 = arith.constant dense<0.000000e+00> : vector<64x512xf32>
    %26 = tpu.matmul %23, %25, %cst_18 {dimension_numbers = #tpu.dot_dimension_numbers<[1], [0], [0], [1], [0, 0, 1, 1], [], []>} : vector<64x1536xbf16>, vector<1536x512xbf16>, vector<64x512xf32> -> vector<64x512xf32>
    %c0_19 = arith.constant 0 : index
    %c0_20 = arith.constant 0 : index
    %27 = vector.load %arg9[%c0_19, %c0_20] : memref<64x512xf32, #tpu.memory_space<vmem>>, vector<64x512xf32>
    tpu.vector_store %arg9[%c0_19, %c0_20], %26 {strides = array<i32>} : memref<64x512xf32, #tpu.memory_space<vmem>>, vector<64x512xf32>,
    %c8 = arith.constant 8 : index
    %c0_21 = arith.constant 0 : index
    %28 = vector.load %arg8[%c8, %c0_21] : memref<96x512xf32, #tpu.memory_space<vmem>>, vector<64x512xf32>
    %29 = arith.truncf %28 : vector<64x512xf32> to vector<64x512xbf16>
    %c16_22 = arith.constant 16 : index
    %c0_23 = arith.constant 0 : index
    %30 = vector.load %arg8[%c16_22, %c0_23] : memref<96x512xf32, #tpu.memory_space<vmem>>, vector<64x512xf32>
    %31 = arith.truncf %30 : vector<64x512xf32> to vector<64x512xbf16>
    %c24 = arith.constant 24 : index
    %c0_24 = arith.constant 0 : index
    %32 = vector.load %arg8[%c24, %c0_24] : memref<96x512xf32, #tpu.memory_space<vmem>>, vector<64x512xf32>
    %33 = arith.truncf %32 : vector<64x512xf32> to vector<64x512xbf16>
    %34 = tpu.concatenate %29, %31, %33 in 1 : vector<64x512xbf16>, vector<64x512xbf16>, vector<64x512xbf16> -> vector<64x1536xbf16>
    %c1_25 = arith.constant 1 : index
    %c0_26 = arith.constant 0 : index
    %c0_27 = arith.constant 0 : index
    %35 = vector.load %arg2[%c1_25, %c0_26, %c0_27] : memref<3x1536x512xbf16, #tpu.memory_space<vmem>>, vector<1x1536x512xbf16>
    %36 = vector.shape_cast %35 : vector<1x1536x512xbf16> to vector<1536x512xbf16>
    %cst_28 = arith.constant dense<0.000000e+00> : vector<64x512xf32>
    %37 = tpu.matmul %34, %36, %cst_28 {dimension_numbers = #tpu.dot_dimension_numbers<[1], [0], [0], [1], [0, 0, 1, 1], [], []>} : vector<64x1536xbf16>, vector<1536x512xbf16>, vector<64x512xf32> -> vector<64x512xf32>
    %c0_29 = arith.constant 0 : index
    %c0_30 = arith.constant 0 : index
    %38 = vector.load %arg9[%c0_29, %c0_30] : memref<64x512xf32, #tpu.memory_space<vmem>>, vector<64x512xf32>
    %39 = arith.addf %38, %37 : vector<64x512xf32>
    %c0_31 = arith.constant 0 : index
    %c0_32 = arith.constant 0 : index
    %40 = vector.load %arg9[%c0_31, %c0_32] : memref<64x512xf32, #tpu.memory_space<vmem>>, vector<64x512xf32>
    tpu.vector_store %arg9[%c0_31, %c0_32], %39 {strides = array<i32>} : memref<64x512xf32, #tpu.memory_space<vmem>>, vector<64x512xf32>,
    %c9 = arith.constant 9 : index
    %c0_33 = arith.constant 0 : index
    %41 = vector.load %arg8[%c9, %c0_33] : memref<96x512xf32, #tpu.memory_space<vmem>>, vector<64x512xf32>
    %42 = vector.broadcast %10 : vector<64x1xf32> to vector<64x512xf32>
    %43 = arith.mulf %41, %42 : vector<64x512xf32>
    %44 = arith.truncf %43 : vector<64x512xf32> to vector<64x512xbf16>
    %c17 = arith.constant 17 : index
    %c0_34 = arith.constant 0 : index
    %45 = vector.load %arg8[%c17, %c0_34] : memref<96x512xf32, #tpu.memory_space<vmem>>, vector<64x512xf32>
    %46 = vector.broadcast %10 : vector<64x1xf32> to vector<64x512xf32>
    %47 = arith.mulf %45, %46 : vector<64x512xf32>
    %48 = arith.truncf %47 : vector<64x512xf32> to vector<64x512xbf16>
    %c25 = arith.constant 25 : index
    %c0_35 = arith.constant 0 : index
    %49 = vector.load %arg8[%c25, %c0_35] : memref<96x512xf32, #tpu.memory_space<vmem>>, vector<64x512xf32>
    %50 = vector.broadcast %10 : vector<64x1xf32> to vector<64x512xf32>
    %51 = arith.mulf %49, %50 : vector<64x512xf32>
    %52 = arith.truncf %51 : vector<64x512xf32> to vector<64x512xbf16>
    %53 = tpu.concatenate %44, %48, %52 in 1 : vector<64x512xbf16>, vector<64x512xbf16>, vector<64x512xbf16> -> vector<64x1536xbf16>
    %c2 = arith.constant 2 : index
    %c0_36 = arith.constant 0 : index
    %c0_37 = arith.constant 0 : index
    %54 = vector.load %arg2[%c2, %c0_36, %c0_37] : memref<3x1536x512xbf16, #tpu.memory_space<vmem>>, vector<1x1536x512xbf16>
    %55 = vector.shape_cast %54 : vector<1x1536x512xbf16> to vector<1536x512xbf16>
    %cst_38 = arith.constant dense<0.000000e+00> : vector<64x512xf32>
    %56 = tpu.matmul %53, %55, %cst_38 {dimension_numbers = #tpu.dot_dimension_numbers<[1], [0], [0], [1], [0, 0, 1, 1], [], []>} : vector<64x1536xbf16>, vector<1536x512xbf16>, vector<64x512xf32> -> vector<64x512xf32>
    %c0_39 = arith.constant 0 : index
    %c0_40 = arith.constant 0 : index
    %57 = vector.load %arg9[%c0_39, %c0_40] : memref<64x512xf32, #tpu.memory_space<vmem>>, vector<64x512xf32>
    %58 = arith.addf %57, %56 : vector<64x512xf32>
    %c0_41 = arith.constant 0 : index
    %c0_42 = arith.constant 0 : index
    %59 = vector.load %arg9[%c0_41, %c0_42] : memref<64x512xf32, #tpu.memory_space<vmem>>, vector<64x512xf32>
    tpu.vector_store %arg9[%c0_41, %c0_42], %58 {strides = array<i32>} : memref<64x512xf32, #tpu.memory_space<vmem>>, vector<64x512xf32>,
    %c0_43 = arith.constant 0 : index
    %c0_44 = arith.constant 0 : index
    %60 = vector.load %arg9[%c0_43, %c0_44] : memref<64x512xf32, #tpu.memory_space<vmem>>, vector<64x512xf32>
    %c0_45 = arith.constant 0 : index
    %c0_46 = arith.constant 0 : index
    %61 = vector.load %arg3[%c0_45, %c0_46] : memref<1x512xf32, #tpu.memory_space<vmem>>, vector<1x512xf32>
    %62 = vector.broadcast %61 : vector<1x512xf32> to vector<64x512xf32>
    %63 = arith.addf %60, %62 : vector<64x512xf32>
    %64 = arith.truncf %63 : vector<64x512xf32> to vector<64x512xbf16>
    %c0_47 = arith.constant 0 : index
    %c0_48 = arith.constant 0 : index
    %c0_49 = arith.constant 0 : index
    %65 = vector.load %arg5[%c0_47, %c0_48, %c0_49] : memref<1x64x512xbf16, #tpu.memory_space<vmem>>, vector<1x64x512xbf16>
    %66 = vector.shape_cast %65 : vector<1x64x512xbf16> to vector<64x512xbf16>
    %67 = vector.shape_cast %64 : vector<64x512xbf16> to vector<1x64x512xbf16>
    tpu.vector_store %arg5[%c0_47, %c0_48, %c0_49], %67 {strides = array<i32>} : memref<1x64x512xbf16, #tpu.memory_space<vmem>>, vector<1x64x512xbf16>,
    %cst_50 = arith.constant dense<0.000000e+00> : vector<512xf32>
    %68 = vector.multi_reduction <add>, %63, %cst_50 [0] : vector<64x512xf32> to vector<512xf32>
    %69 = vector.shape_cast %68 : vector<512xf32> to vector<1x512xf32>
    %c0_51 = arith.constant 0 : index
    %c0_52 = arith.constant 0 : index
    %c0_53 = arith.constant 0 : index
    %70 = vector.load %arg6[%c0_51, %c0_52, %c0_53] : memref<1x1x512xf32, #tpu.memory_space<vmem>>, vector<1x1x512xf32>
    %71 = vector.shape_cast %70 : vector<1x1x512xf32> to vector<1x512xf32>
    %72 = vector.shape_cast %69 : vector<1x512xf32> to vector<1x1x512xf32>
    tpu.vector_store %arg6[%c0_51, %c0_52, %c0_53], %72 {strides = array<i32>} : memref<1x1x512xf32, #tpu.memory_space<vmem>>, vector<1x1x512xf32>,
    %73 = arith.mulf %63, %63 : vector<64x512xf32>
    %cst_54 = arith.constant dense<0.000000e+00> : vector<512xf32>
    %74 = vector.multi_reduction <add>, %73, %cst_54 [0] : vector<64x512xf32> to vector<512xf32>
    %75 = vector.shape_cast %74 : vector<512xf32> to vector<1x512xf32>
    %c0_55 = arith.constant 0 : index
    %c0_56 = arith.constant 0 : index
    %c0_57 = arith.constant 0 : index
    %76 = vector.load %arg7[%c0_55, %c0_56, %c0_57] : memref<1x1x512xf32, #tpu.memory_space<vmem>>, vector<1x1x512xf32>
    %77 = vector.shape_cast %76 : vector<1x1x512xf32> to vector<1x512xf32>
    %78 = vector.shape_cast %75 : vector<1x512xf32> to vector<1x1x512xf32>
    tpu.vector_store %arg7[%c0_55, %c0_56, %c0_57], %78 {strides = array<i32>} : memref<1x1x512xf32, #tpu.memory_space<vmem>>, vector<1x1x512xf32>,
    return
  }
  func.func @transform_0(%arg0: i32) -> (i32, i32, i32) {
    %c0_i32 = arith.constant 0 : i32
    %c0_i32_0 = arith.constant 0 : i32
    %c0_i32_1 = arith.constant 0 : i32
    return %arg0, %c0_i32, %c0_i32_0 : i32, i32, i32
  }
  func.func @transform_1(%arg0: i32) -> (i32, i32, i32) {
    %c0_i32 = arith.constant 0 : i32
    %c0_i32_0 = arith.constant 0 : i32
    %c0_i32_1 = arith.constant 0 : i32
    %c0_i32_2 = arith.constant 0 : i32
    return %c0_i32, %c0_i32_0, %c0_i32_1 : i32, i32, i32
  }
  func.func @transform_2(%arg0: i32) -> (i32, i32) {
    %c0_i32 = arith.constant 0 : i32
    %c0_i32_0 = arith.constant 0 : i32
    %c0_i32_1 = arith.constant 0 : i32
    return %c0_i32, %c0_i32_0 : i32, i32
  }
  func.func @transform_3(%arg0: i32) -> (i32, i32, i32) {
    %c0_i32 = arith.constant 0 : i32
    %c0_i32_0 = arith.constant 0 : i32
    %c0_i32_1 = arith.constant 0 : i32
    %c0_i32_2 = arith.constant 0 : i32
    return %c0_i32, %c0_i32_0, %c0_i32_1 : i32, i32, i32
  }
  func.func @transform_4(%arg0: i32) -> (i32, i32, i32) {
    %c0_i32 = arith.constant 0 : i32
    %c0_i32_0 = arith.constant 0 : i32
    %c0_i32_1 = arith.constant 0 : i32
    return %arg0, %c0_i32, %c0_i32_0 : i32, i32, i32
  }
  func.func @transform_5(%arg0: i32) -> (i32, i32, i32) {
    %c0_i32 = arith.constant 0 : i32
    %c0_i32_0 = arith.constant 0 : i32
    %c0_i32_1 = arith.constant 0 : i32
    return %arg0, %c0_i32, %c0_i32_0 : i32, i32, i32
  }
  func.func @transform_6(%arg0: i32) -> (i32, i32, i32) {
    %c0_i32 = arith.constant 0 : i32
    %c0_i32_0 = arith.constant 0 : i32
    %c0_i32_1 = arith.constant 0 : i32
    return %arg0, %c0_i32, %c0_i32_0 : i32, i32, i32
  }
}

</mosaic_0001>

<llo_original>
// kernel: tpu_custom_call.1
$region0: #{tpu_custom_call.1}
  #allocation0 [shape = 'u32[]', space=smem, size = 0x4, offset = 0x4, fixed_abs, tag = 'smem constant byte address 0x4 - core index']
  #allocation1 [shape = 'u32[144,128]{1,0:T(1,128)}', space=vmem, size = 0x12000, scoped, tag = 'internal scratch']
  #allocation2 [shape = 'f32[96,512]{1,0:T(8,128)}', space=vmem, size = 0x30000, scoped, tag = 'scratch operand']
  #allocation3 [shape = 'f32[64,512]{1,0:T(8,128)}', space=vmem, size = 0x20000, scoped, tag = 'scratch operand']
  %s0 = inlined_call_operand.hbm [shape: f32[2,64,512], index: 0, kind: input, shape index: {}]
  %s1 = inlined_call_operand.hbm [shape: bf16[3,1536,512], index: 1, kind: input, shape index: {}]
  %s2 = inlined_call_operand.hbm [shape: f32[1,512], index: 2, kind: input, shape index: {}]
  %s3 = inlined_call_operand.vmem [shape: f32[2,64,1], index: 3, kind: input, shape index: {}]
  %s4 = inlined_call_operand.hbm [shape: bf16[2,64,512], index: 4, kind: output, shape index: {0}]
  %s5 = inlined_call_operand.hbm [shape: f32[2,1,512], index: 5, kind: output, shape index: {1}]
  %s6 = inlined_call_operand.hbm [shape: f32[2,1,512], index: 6, kind: output, shape index: {2}]
  %7 = xla_tuple %s4, %s5, %s6
  %s8 = sld [smem:[#allocation0]]
  $region77: #{tpu_custom_call.1} parent=0
    _
  %s10 = ssub.s32 1, %s8
  %s11 = scalar_select 0, %s10, %s8
  $region1: #{tpu_custom_call.1} parent=0
    #allocation4 [shape = 'u8[262144]{0}', space=vmem, size = 0x40000, scoped, tag = 'input window, operand 0']
    #allocation5 [shape = 's32[2]{0}', space=sflag, size = 0x8, scoped, tag = 'scoped memory for tpu_custom_call.1']
    #allocation6 [shape = 's32[2]{0}', space=sflag, size = 0x8, scoped, tag = 'scoped memory for tpu_custom_call.1']
    #allocation7 [shape = 'u8[4718592]{0}', space=vmem, size = 0x480000, scoped, tag = 'input window, operand 1, single buffered']
    #allocation8 [shape = 's32[1]{0}', space=sflag, size = 0x4, scoped, tag = 'scoped memory for tpu_custom_call.1']
    #allocation9 [shape = 'u8[2048]{0}', space=vmem, size = 0x800, scoped, tag = 'input window, operand 2, single buffered']
    #allocation10 [shape = 'u8[131072]{0}', space=vmem, size = 0x20000, scoped, tag = 'output window, operand 0']
    #allocation11 [shape = 'u8[4096]{0}', space=vmem, size = 0x1000, scoped, tag = 'output window, operand 1']
    #allocation12 [shape = 's32[2]{0}', space=sflag, size = 0x8, scoped, tag = 'scoped memory for tpu_custom_call.1']
    #allocation13 [shape = 'u8[4096]{0}', space=vmem, size = 0x1000, scoped, tag = 'output window, operand 2']
    %12 = vsyncpa [#allocation5], 0
    %s13 = scalar_lea.sflag [#allocation5], 1
    %14 = vsyncpa %s13, 0
    %15 = vsyncpa [#allocation8], 0
    %16 = vsyncpa [#allocation6], 0
    %s17 = scalar_lea.sflag [#allocation6], 1
    %18 = vsyncpa %s17, 0
    %19 = vsyncpa [#allocation12], 0
    %s20 = scalar_lea.sflag [#allocation12], 1
    %21 = vsyncpa %s20, 0
    loop: start=0, step=1, limit=4
    $region2: #{tpu_custom_call.1} parent=1 // loop_pre_header
      _
    $region3: #{tpu_custom_call.1} parent=1 // loop_header
      %s23 = sphi 0, %s27
      %p24 = scmp.ge.s32.totalorder %s23, 4
      %s33 = sphi 0, %s35
      %s36 = sphi 0, %s33
      %s37 = sphi 0, %s36
      %s53 = sphi 0, %s37
      %s57 = sphi 0, %s57
      %s59 = sphi 0, %s57
      %s60 = sphi 0, %s59
      %s74 = sphi 0, %s60
      %s78 = sphi 0, %s78
      %s80 = sphi 0, %s78
      %s81 = sphi 0, %s80
      %s95 = sphi 0, %s81
      %s99 = sphi 0, %s99
      %s101 = sphi 0, %s99
      %s102 = sphi 0, %s101
      %s116 = sphi 0, %s102
      %s122 = sphi 0, %s124
      %s125 = sphi 0, %s122
      %s126 = sphi 0, %s125
      %s142 = sphi 0, %s126
      %s148 = sphi 0, %s150
      %s151 = sphi 0, %s148
      %s152 = sphi 0, %s151
      %s168 = sphi 0, %s152
      %s174 = sphi 0, %s176
      %s177 = sphi 0, %s174
      %s178 = sphi 0, %s177
      %s194 = sphi 0, %s178
    $region4: #{tpu_custom_call.1} parent=1 // loop_header_branch
      %26 = sbr.rel (%p24) target = $region8
    $region5: #{tpu_custom_call.1} parent=1 // loop_body
      %s28 = ssub.s32 %s23, 1
      %s29 = ssub.s32 %s23, 2
      %s30 = sadd.s32 %s23, 1
      %s31 = ssub.s32 %s23, %s30
      %p32 = scmp.eq.s32.totalorder %s31, 0
      %s34 = sadd.s32 %s33, 1
      %s35 = scalar_select %p32, %s33, %s34
      %p38 = pneg %p32
      %p39 = scmp.eq.s32.totalorder %s23, 1
      %p40 = por %p38, %p39
      %p41 = scmp.ne.s32.totalorder %s33, %s36
      %p42 = scmp.eq.s32.totalorder %s23, 0
      %p43 = por %p41, %p42
      %p44 = scmp.ne.s32.totalorder %s33, %s36
      %p45 = scmp.eq.s32.totalorder %s28, 1
      %p46 = por %p44, %p45
      %p47 = scmp.ne.s32.totalorder %s36, %s37
      %p48 = scmp.eq.s32.totalorder %s28, 0
      %p49 = por %p47, %p48
      %p50 = scmp.ne.s32.totalorder %s36, %s37
      %p51 = scmp.eq.s32.totalorder %s29, 1
      %p52 = por %p50, %p51
      %p54 = scmp.ne.s32.totalorder %s37, %s53
      %p55 = scmp.eq.s32.totalorder %s29, 0
      %p56 = por %p54, %p55
      %s58 = sadd.s32 %s57, 1
      %p61 = scmp.eq.s32.totalorder %s23, 1
      %p62 = scmp.ne.s32.totalorder %s57, %s59
      %p63 = scmp.eq.s32.totalorder %s23, 0
      %p64 = por %p62, %p63
      %p65 = scmp.ne.s32.totalorder %s57, %s59
      %p66 = scmp.eq.s32.totalorder %s28, 1
      %p67 = por %p65, %p66
      %p68 = scmp.ne.s32.totalorder %s59, %s60
      %p69 = scmp.eq.s32.totalorder %s28, 0
      %p70 = por %p68, %p69
      %p71 = scmp.ne.s32.totalorder %s59, %s60
      %p72 = scmp.eq.s32.totalorder %s29, 1
      %p73 = por %p71, %p72
      %p75 = scmp.ne.s32.totalorder %s60, %s74
      %p76 = scmp.eq.s32.totalorder %s29, 0
      %p77 = por %p75, %p76
      %s79 = sadd.s32 %s78, 1
      %p82 = scmp.eq.s32.totalorder %s23, 1
      %p83 = scmp.ne.s32.totalorder %s78, %s80
      %p84 = scmp.eq.s32.totalorder %s23, 0
      %p85 = por %p83, %p84
      %p86 = scmp.ne.s32.totalorder %s78, %s80
      %p87 = scmp.eq.s32.totalorder %s28, 1
      %p88 = por %p86, %p87
      %p89 = scmp.ne.s32.totalorder %s80, %s81
      %p90 = scmp.eq.s32.totalorder %s28, 0
      %p91 = por %p89, %p90
      %p92 = scmp.ne.s32.totalorder %s80, %s81
      %p93 = scmp.eq.s32.totalorder %s29, 1
      %p94 = por %p92, %p93
      %p96 = scmp.ne.s32.totalorder %s81, %s95
      %p97 = scmp.eq.s32.totalorder %s29, 0
      %p98 = por %p96, %p97
      %s100 = sadd.s32 %s99, 1
      %p103 = scmp.eq.s32.totalorder %s23, 1
      %p104 = scmp.ne.s32.totalorder %s99, %s101
      %p105 = scmp.eq.s32.totalorder %s23, 0
      %p106 = por %p104, %p105
      %p107 = scmp.ne.s32.totalorder %s99, %s101
      %p108 = scmp.eq.s32.totalorder %s28, 1
      %p109 = por %p107, %p108
      %p110 = scmp.ne.s32.totalorder %s101, %s102
      %p111 = scmp.eq.s32.totalorder %s28, 0
      %p112 = por %p110, %p111
      %p113 = scmp.ne.s32.totalorder %s101, %s102
      %p114 = scmp.eq.s32.totalorder %s29, 1
      %p115 = por %p113, %p114
      %p117 = scmp.ne.s32.totalorder %s102, %s116
      %p118 = scmp.eq.s32.totalorder %s29, 0
      %p119 = por %p117, %p118
      %s120 = ssub.s32 %s23, %s30
      %p121 = scmp.eq.s32.totalorder %s120, 0
      %s123 = sadd.s32 %s122, 1
      %s124 = scalar_select %p121, %s122, %s123
      %p127 = pneg %p121
      %p128 = scmp.eq.s32.totalorder %s23, 1
      %p129 = por %p127, %p128
      %p130 = scmp.ne.s32.totalorder %s122, %s125
      %p131 = scmp.eq.s32.totalorder %s23, 0
      %p132 = por %p130, %p131
      %p133 = scmp.ne.s32.totalorder %s122, %s125
      %p134 = scmp.eq.s32.totalorder %s28, 1
      %p135 = por %p133, %p134
      %p136 = scmp.ne.s32.totalorder %s125, %s126
      %p137 = scmp.eq.s32.totalorder %s28, 0
      %p138 = por %p136, %p137
      %p139 = scmp.ne.s32.totalorder %s125, %s126
      %p140 = scmp.eq.s32.totalorder %s29, 1
      %p141 = por %p139, %p140
      %p143 = scmp.ne.s32.totalorder %s126, %s142
      %p144 = scmp.eq.s32.totalorder %s29, 0
      %p145 = por %p143, %p144
      %s146 = ssub.s32 %s23, %s30
      %p147 = scmp.eq.s32.totalorder %s146, 0
      %s149 = sadd.s32 %s148, 1
      %s150 = scalar_select %p147, %s148, %s149
      %p153 = pneg %p147
      %p154 = scmp.eq.s32.totalorder %s23, 1
      %p155 = por %p153, %p154
      %p156 = scmp.ne.s32.totalorder %s148, %s151
      %p157 = scmp.eq.s32.totalorder %s23, 0
      %p158 = por %p156, %p157
      %p159 = scmp.ne.s32.totalorder %s148, %s151
      %p160 = scmp.eq.s32.totalorder %s28, 1
      %p161 = por %p159, %p160
      %p162 = scmp.ne.s32.totalorder %s151, %s152
      %p163 = scmp.eq.s32.totalorder %s28, 0
      %p164 = por %p162, %p163
      %p165 = scmp.ne.s32.totalorder %s151, %s152
      %p166 = scmp.eq.s32.totalorder %s29, 1
      %p167 = por %p165, %p166
      %p169 = scmp.ne.s32.totalorder %s152, %s168
      %p170 = scmp.eq.s32.totalorder %s29, 0
      %p171 = por %p169, %p170
      %s172 = ssub.s32 %s23, %s30
      %p173 = scmp.eq.s32.totalorder %s172, 0
      %s175 = sadd.s32 %s174, 1
      %s176 = scalar_select %p173, %s174, %s175
      %p179 = pneg %p173
      %p180 = scmp.eq.s32.totalorder %s23, 1
      %p181 = por %p179, %p180
      %p182 = scmp.ne.s32.totalorder %s174, %s177
      %p183 = scmp.eq.s32.totalorder %s23, 0
      %p184 = por %p182, %p183
      %p185 = scmp.ne.s32.totalorder %s174, %s177
      %p186 = scmp.eq.s32.totalorder %s28, 1
      %p187 = por %p185, %p186
      %p188 = scmp.ne.s32.totalorder %s177, %s178
      %p189 = scmp.eq.s32.totalorder %s28, 0
      %p190 = por %p188, %p189
      %p191 = scmp.ne.s32.totalorder %s177, %s178
      %p192 = scmp.eq.s32.totalorder %s29, 1
      %p193 = por %p191, %p192
      %p195 = scmp.ne.s32.totalorder %s178, %s194
      %p196 = scmp.eq.s32.totalorder %s29, 0
      %p197 = por %p195, %p196
      %p198 = scmp.le.s32.totalorder 1, %s23
      %p199 = scmp.lt.s32.totalorder %s23, 3
      %p200 = pnand %p198, %p199
      %p201 = pneg %p200
      // Predicated region
      $region9: #{tpu_custom_call.1} parent=5 // pred_check
        _
      $region10: #{tpu_custom_call.1} parent=5 // pred_check_branch
        %203 = sbr.rel (%p200) target = $region12
      $region11: #{tpu_custom_call.1} parent=5 // pred_region
        %s204 = ssub.s32 %s23, 1
        // Predicated region
        $region13: #{tpu_custom_call.1} parent=11 // pred_check
          %p205 = pneg %p70
        $region14: #{tpu_custom_call.1} parent=11 // pred_check_branch
          %207 = sbr.rel (%p205) target = $region16
        $region15: #{tpu_custom_call.1} parent=11 // pred_region
          %s209 = ssub.s32 147456, 147456
          %210 = vsyncadd [#allocation8], %s209
          %s211 = sshll.u32 [#allocation7], 4
          %s212 = int_to_ptr.vmem [resolvable:$true] %s211
          %217 = dma.hbm_to_vmem [thread:$0]  %s1, 147456, %s212, [#allocation8], 256, 256, 16
        $region16: #{tpu_custom_call.1} parent=11 // pred_fallthru
          _
        // Predicated region
        $region17: #{tpu_custom_call.1} parent=11 // pred_check
          %p218 = pneg %p91
        $region18: #{tpu_custom_call.1} parent=11 // pred_check_branch
          %220 = sbr.rel (%p218) target = $region20
        $region19: #{tpu_custom_call.1} parent=11 // pred_region
          %s222 = ssub.s32 64, 64
          %223 = vsyncadd [#allocation8], %s222
          %s225 = sshll.u32 [#allocation9], 4
          %s226 = int_to_ptr.vmem [resolvable:$true] %s225
          %228 = dma.hbm_to_vmem [thread:$0]  %s2, 64, %s226, [#allocation8]
        $region20: #{tpu_custom_call.1} parent=11 // pred_fallthru
          _
        // Predicated region
        $region21: #{tpu_custom_call.1} parent=11 // pred_check
          %p229 = pneg %p112
        $region22: #{tpu_custom_call.1} parent=11 // pred_check_branch
          %231 = sbr.rel (%p229) target = $region24
        $region23: #{tpu_custom_call.1} parent=11 // pred_region
          _
        $region24: #{tpu_custom_call.1} parent=11 // pred_fallthru
          _
      $region12: #{tpu_custom_call.1} parent=5 // pred_fallthru
        _
      %p232 = scmp.lt.s32.totalorder %s23, 2
      // Predicated region
      $region25: #{tpu_custom_call.1} parent=5 // pred_check
        %p233 = pneg %p232
      $region26: #{tpu_custom_call.1} parent=5 // pred_check_branch
        %235 = sbr.rel (%p233) target = $region28
      $region27: #{tpu_custom_call.1} parent=5 // pred_region
        // Predicated region
        $region29: #{tpu_custom_call.1} parent=27 // pred_check
          %p236 = pneg %p43
        $region30: #{tpu_custom_call.1} parent=27 // pred_check_branch
          %238 = sbr.rel (%p236) target = $region32
        $region31: #{tpu_custom_call.1} parent=27 // pred_region
          %s239 = sand.u32 %s33, 1
          %s240 = scalar_lea.sflag [#allocation5], %s239
          %s241 = sand.u32 %s33, 1
          %s242 = smul.addr %s241, 256
          %s243 = scalar_lea.vmem [#allocation4], %s242
          %s245 = ssub.s32 4096, 4096
          %246 = vsyncadd %s240, %s245
          %s247 = smul.addr %s23, 32
          %s248 = smul.addr %s247, 128
          %s249 = scalar_lea.hbm %s0, %s248
          %s250 = sshll.u32 %s243, 4
          %s251 = int_to_ptr.vmem [resolvable:$true] %s250
          %256 = dma.hbm_to_vmem [thread:$0]  %s249, 4096, %s251, %s240, 512, 512, 32
        $region32: #{tpu_custom_call.1} parent=27 // pred_fallthru
          _
      $region28: #{tpu_custom_call.1} parent=5 // pred_fallthru
        _
      %p257 = scmp.le.s32.totalorder 1, %s23
      %p258 = scmp.lt.s32.totalorder %s23, 3
      %p259 = pnand %p257, %p258
      %p260 = pneg %p259
      // Predicated region
      $region33: #{tpu_custom_call.1} parent=5 // pred_check
        _
      $region34: #{tpu_custom_call.1} parent=5 // pred_check_branch
        %262 = sbr.rel (%p259) target = $region36
      $region35: #{tpu_custom_call.1} parent=5 // pred_region
        %s263 = ssub.s32 %s23, 1
        %s264 = sand.u32 %s36, 1
        %s265 = scalar_lea.sflag [#allocation5], %s264
        %s266 = sand.u32 %s36, 1
        %s267 = smul.addr %s266, 256
        %s268 = scalar_lea.vmem [#allocation4], %s267
        // Predicated region
        $region37: #{tpu_custom_call.1} parent=35 // pred_check
          %p269 = pneg %p49
        $region38: #{tpu_custom_call.1} parent=35 // pred_check_branch
          %271 = sbr.rel (%p269) target = $region40
        $region39: #{tpu_custom_call.1} parent=35 // pred_region
          %272 = dma.done %s265, 4096
        $region40: #{tpu_custom_call.1} parent=35 // pred_fallthru
          _
        // Predicated region
        $region41: #{tpu_custom_call.1} parent=35 // pred_check
          %p273 = pneg %p70
        $region42: #{tpu_custom_call.1} parent=35 // pred_check_branch
          %275 = sbr.rel (%p273) target = $region44
        $region43: #{tpu_custom_call.1} parent=35 // pred_region
          %276 = dma.done [#allocation8], 147456
        $region44: #{tpu_custom_call.1} parent=35 // pred_fallthru
          _
        // Predicated region
        $region45: #{tpu_custom_call.1} parent=35 // pred_check
          %p277 = pneg %p91
        $region46: #{tpu_custom_call.1} parent=35 // pred_check_branch
          %279 = sbr.rel (%p277) target = $region48
        $region47: #{tpu_custom_call.1} parent=35 // pred_region
          %280 = dma.done [#allocation8], 64
        $region48: #{tpu_custom_call.1} parent=35 // pred_fallthru
          _
        %s281 = sand.u32 %s36, 1
        %s282 = scalar_lea.sflag [#allocation5], %s281
        %s283 = sand.u32 %s36, 1
        %s284 = smul.addr %s283, 256
        %s285 = scalar_lea.vmem [#allocation4], %s284
        %p286 = pneg %p49
        %p287 = pneg %p46
        %p288 = pneg %p70
        %p289 = pneg %p67
        %p290 = pneg %p91
        %p291 = pneg %p88
        %p292 = pneg %p112
        %p293 = pneg %p109
        %p294 = pneg %p138
        %p295 = pneg %p135
        %s296 = sand.u32 %s125, 1
        %s297 = scalar_lea.sflag [#allocation6], %s296
        %s298 = sand.u32 %s125, 1
        %s299 = smul.addr %s298, 128
        %s300 = scalar_lea.vmem [#allocation10], %s299
        %p301 = pneg %p164
        %p302 = pneg %p161
        %s303 = sand.u32 %s28, 1
        %s304 = scalar_lea.sflag [#allocation12], %s303
        %s305 = sand.u32 %s151, 1
        %s306 = smul.addr %s305, 4
        %s307 = scalar_lea.vmem [#allocation11], %s306
        %p308 = pneg %p190
        %p309 = pneg %p187
        %s310 = sand.u32 %s28, 1
        %s311 = scalar_lea.sflag [#allocation12], %s310
        %s312 = sand.u32 %s177, 1
        %s313 = smul.addr %s312, 4
        %s314 = scalar_lea.vmem [#allocation13], %s313
        %315 = vst [vmem:[#allocation2] sm:$0xff] 0.0
        %316 = vst [vmem:[#allocation2 + $0x8] sm:$0xff] 0.0
        %317 = vst [vmem:[#allocation2 + $0x10] sm:$0xff] 0.0
        %318 = vst [vmem:[#allocation2 + $0x18] sm:$0xff] 0.0
        %319 = vst [vmem:[#allocation2 + $0x20] sm:$0xff] 0.0
        %320 = vst [vmem:[#allocation2 + $0x28] sm:$0xff] 0.0
        %321 = vst [vmem:[#allocation2 + $0x30] sm:$0xff] 0.0
        %322 = vst [vmem:[#allocation2 + $0x38] sm:$0xff] 0.0
        %323 = vst [vmem:[#allocation2 + $0x140] sm:$0xff] 0.0
        %324 = vst [vmem:[#allocation2 + $0x148] sm:$0xff] 0.0
        %325 = vst [vmem:[#allocation2 + $0x150] sm:$0xff] 0.0
        %326 = vst [vmem:[#allocation2 + $0x158] sm:$0xff] 0.0
        %327 = vst [vmem:[#allocation2 + $0x160] sm:$0xff] 0.0
        %328 = vst [vmem:[#allocation2 + $0x168] sm:$0xff] 0.0
        %329 = vst [vmem:[#allocation2 + $0x170] sm:$0xff] 0.0
        %330 = vst [vmem:[#allocation2 + $0x178] sm:$0xff] 0.0
        %v331 = vld [vmem:[%s268] sm:$0xff]
        %v332 = vld [vmem:[%s268 + $0x8] sm:$0xff]
        %v333 = vld [vmem:[%s268 + $0x10] sm:$0xff]
        %v334 = vld [vmem:[%s268 + $0x18] sm:$0xff]
        %v335 = vld [vmem:[%s268 + $0x20] sm:$0xff]
        %v336 = vld [vmem:[%s268 + $0x28] sm:$0xff]
        %v337 = vld [vmem:[%s268 + $0x30] sm:$0xff]
        %v338 = vld [vmem:[%s268 + $0x38] sm:$0xff]
        %v339 = vld [vmem:[%s268 + $0x40] sm:$0xff]
        %v340 = vld [vmem:[%s268 + $0x48] sm:$0xff]
        %v341 = vld [vmem:[%s268 + $0x50] sm:$0xff]
        %v342 = vld [vmem:[%s268 + $0x58] sm:$0xff]
        %v343 = vld [vmem:[%s268 + $0x60] sm:$0xff]
        %v344 = vld [vmem:[%s268 + $0x68] sm:$0xff]
        %v345 = vld [vmem:[%s268 + $0x70] sm:$0xff]
        %v346 = vld [vmem:[%s268 + $0x78] sm:$0xff]
        %v347 = vld [vmem:[%s268 + $0x80] sm:$0xff]
        %v348 = vld [vmem:[%s268 + $0x88] sm:$0xff]
        %v349 = vld [vmem:[%s268 + $0x90] sm:$0xff]
        %v350 = vld [vmem:[%s268 + $0x98] sm:$0xff]
        %v351 = vld [vmem:[%s268 + $0xa0] sm:$0xff]
        %v352 = vld [vmem:[%s268 + $0xa8] sm:$0xff]
        %v353 = vld [vmem:[%s268 + $0xb0] sm:$0xff]
        %v354 = vld [vmem:[%s268 + $0xb8] sm:$0xff]
        %v355 = vld [vmem:[%s268 + $0xc0] sm:$0xff]
        %v356 = vld [vmem:[%s268 + $0xc8] sm:$0xff]
        %v357 = vld [vmem:[%s268 + $0xd0] sm:$0xff]
        %v358 = vld [vmem:[%s268 + $0xd8] sm:$0xff]
        %v359 = vld [vmem:[%s268 + $0xe0] sm:$0xff]
        %v360 = vld [vmem:[%s268 + $0xe8] sm:$0xff]
        %v361 = vld [vmem:[%s268 + $0xf0] sm:$0xff]
        %v362 = vld [vmem:[%s268 + $0xf8] sm:$0xff]
        %363 = vst [vmem:[#allocation2 + $0x40] sm:$0xff] %v331
        %364 = vst [vmem:[#allocation2 + $0x48] sm:$0xff] %v332
        %365 = vst [vmem:[#allocation2 + $0x50] sm:$0xff] %v333
        %366 = vst [vmem:[#allocation2 + $0x58] sm:$0xff] %v334
        %367 = vst [vmem:[#allocation2 + $0x60] sm:$0xff] %v335
        %368 = vst [vmem:[#allocation2 + $0x68] sm:$0xff] %v336
        %369 = vst [vmem:[#allocation2 + $0x70] sm:$0xff] %v337
        %370 = vst [vmem:[#allocation2 + $0x78] sm:$0xff] %v338
        %371 = vst [vmem:[#allocation2 + $0x80] sm:$0xff] %v339
        %372 = vst [vmem:[#allocation2 + $0x88] sm:$0xff] %v340
        %373 = vst [vmem:[#allocation2 + $0x90] sm:$0xff] %v341
        %374 = vst [vmem:[#allocation2 + $0x98] sm:$0xff] %v342
        %375 = vst [vmem:[#allocation2 + $0xa0] sm:$0xff] %v343
        %376 = vst [vmem:[#allocation2 + $0xa8] sm:$0xff] %v344
        %377 = vst [vmem:[#allocation2 + $0xb0] sm:$0xff] %v345
        %378 = vst [vmem:[#allocation2 + $0xb8] sm:$0xff] %v346
        %379 = vst [vmem:[#allocation2 + $0xc0] sm:$0xff] %v347
        %380 = vst [vmem:[#allocation2 + $0xc8] sm:$0xff] %v348
        %381 = vst [vmem:[#allocation2 + $0xd0] sm:$0xff] %v349
        %382 = vst [vmem:[#allocation2 + $0xd8] sm:$0xff] %v350
        %383 = vst [vmem:[#allocation2 + $0xe0] sm:$0xff] %v351
        %384 = vst [vmem:[#allocation2 + $0xe8] sm:$0xff] %v352
        %385 = vst [vmem:[#allocation2 + $0xf0] sm:$0xff] %v353
        %386 = vst [vmem:[#allocation2 + $0xf8] sm:$0xff] %v354
        %387 = vst [vmem:[#allocation2 + $0x100] sm:$0xff] %v355
        %388 = vst [vmem:[#allocation2 + $0x108] sm:$0xff] %v356
        %389 = vst [vmem:[#allocation2 + $0x110] sm:$0xff] %v357
        %390 = vst [vmem:[#allocation2 + $0x118] sm:$0xff] %v358
        %391 = vst [vmem:[#allocation2 + $0x120] sm:$0xff] %v359
        %392 = vst [vmem:[#allocation2 + $0x128] sm:$0xff] %v360
        %393 = vst [vmem:[#allocation2 + $0x130] sm:$0xff] %v361
        %394 = vst [vmem:[#allocation2 + $0x138] sm:$0xff] %v362
        %v395 = vld [vmem:[%s3] sm:$0xff]
        %v396 = vld [vmem:[%s3 + $0x8] sm:$0xff]
        %v397 = vld [vmem:[%s3 + $0x10] sm:$0xff]
        %v398 = vld [vmem:[%s3 + $0x18] sm:$0xff]
        %v399 = vld [vmem:[%s3 + $0x20] sm:$0xff]
        %v400 = vld [vmem:[%s3 + $0x28] sm:$0xff]
        %v401 = vld [vmem:[%s3 + $0x30] sm:$0xff]
        %v402 = vld [vmem:[%s3 + $0x38] sm:$0xff]
        %s403 = scalar_lea.vmem %s3, 64
        %v404 = vld [vmem:[%s403] sm:$0xff]
        %v405 = vld [vmem:[%s403 + $0x8] sm:$0xff]
        %v406 = vld [vmem:[%s403 + $0x10] sm:$0xff]
        %v407 = vld [vmem:[%s403 + $0x18] sm:$0xff]
        %v408 = vld [vmem:[%s403 + $0x20] sm:$0xff]
        %v409 = vld [vmem:[%s403 + $0x28] sm:$0xff]
        %v410 = vld [vmem:[%s403 + $0x30] sm:$0xff]
        %v411 = vld [vmem:[%s403 + $0x38] sm:$0xff]
        %v412 = vld [vmem:[#allocation2] sm:$0x80]
        %v413 = vld [vmem:[#allocation2 + $0x8] sm:$0x80]
        %v414 = vld [vmem:[#allocation2 + $0x10] sm:$0x80]
        %v415 = vld [vmem:[#allocation2 + $0x18] sm:$0x80]
        %v416 = vld [vmem:[#allocation2 + $0x20] sm:$0xff]
        %v417 = vld [vmem:[#allocation2 + $0x28] sm:$0xff]
        %v418 = vld [vmem:[#allocation2 + $0x30] sm:$0xff]
        %v419 = vld [vmem:[#allocation2 + $0x38] sm:$0xff]
        %v420 = vld [vmem:[#allocation2 + $0x40] sm:$0xff]
        %v421 = vld [vmem:[#allocation2 + $0x48] sm:$0xff]
        %v422 = vld [vmem:[#allocation2 + $0x50] sm:$0xff]
        %v423 = vld [vmem:[#allocation2 + $0x58] sm:$0xff]
        %v424 = vld [vmem:[#allocation2 + $0x60] sm:$0xff]
        %v425 = vld [vmem:[#allocation2 + $0x68] sm:$0xff]
        %v426 = vld [vmem:[#allocation2 + $0x70] sm:$0xff]
        %v427 = vld [vmem:[#allocation2 + $0x78] sm:$0xff]
        %v428 = vld [vmem:[#allocation2 + $0x80] sm:$0xff]
        %v429 = vld [vmem:[#allocation2 + $0x88] sm:$0xff]
        %v430 = vld [vmem:[#allocation2 + $0x90] sm:$0xff]
        %v431 = vld [vmem:[#allocation2 + $0x98] sm:$0xff]
        %v432 = vld [vmem:[#allocation2 + $0xa0] sm:$0xff]
        %v433 = vld [vmem:[#allocation2 + $0xa8] sm:$0xff]
        %v434 = vld [vmem:[#allocation2 + $0xb0] sm:$0xff]
        %v435 = vld [vmem:[#allocation2 + $0xb8] sm:$0xff]
        %v436 = vld [vmem:[#allocation2 + $0xc0] sm:$0xff]
        %v437 = vld [vmem:[#allocation2 + $0xc8] sm:$0xff]
        %v438 = vld [vmem:[#allocation2 + $0xd0] sm:$0xff]
        %v439 = vld [vmem:[#allocation2 + $0xd8] sm:$0xff]
        %v440 = vld [vmem:[#allocation2 + $0xe0] sm:$0xff]
        %v441 = vld [vmem:[#allocation2 + $0xe8] sm:$0xff]
        %v442 = vld [vmem:[#allocation2 + $0xf0] sm:$0xff]
        %v443 = vld [vmem:[#allocation2 + $0xf8] sm:$0xff]
        %v444 = vld [vmem:[#allocation2 + $0x100] sm:$0x7f]
        %v445 = vld [vmem:[#allocation2 + $0x108] sm:$0x7f]
        %v446 = vld [vmem:[#allocation2 + $0x110] sm:$0x7f]
        %v447 = vld [vmem:[#allocation2 + $0x118] sm:$0x7f]
        %449 = vset.pattern.permute.xlu0 0
        %450 = vperm.xlu0 %449, %v395
        %v451 = vpop.permute.xlu0 %450
        %453 = vset.pattern.permute.xlu0 0
        %454 = vperm.xlu0 %453, %v396
        %v455 = vpop.permute.xlu0 %454
        %457 = vset.pattern.permute.xlu0 0
        %458 = vperm.xlu0 %457, %v397
        %v459 = vpop.permute.xlu0 %458
        %461 = vset.pattern.permute.xlu0 0
        %462 = vperm.xlu0 %461, %v398
        %v463 = vpop.permute.xlu0 %462
        %465 = vset.pattern.permute.xlu0 0
        %466 = vperm.xlu0 %465, %v399
        %v467 = vpop.permute.xlu0 %466
        %469 = vset.pattern.permute.xlu0 0
        %470 = vperm.xlu0 %469, %v400
        %v471 = vpop.permute.xlu0 %470
        %473 = vset.pattern.permute.xlu0 0
        %474 = vperm.xlu0 %473, %v401
        %v475 = vpop.permute.xlu0 %474
        %477 = vset.pattern.permute.xlu0 0
        %478 = vperm.xlu0 %477, %v402
        %v479 = vpop.permute.xlu0 %478
        %vm480 = vcmask 1046528
        %v481 = vrot.slane %v451, 1
        %v482 = vrot.slane %v455, 1
        %v483 = vsel %vm480, %v481, %v482
        %v484 = vrot.slane %v459, 1
        %v485 = vsel %vm480, %v482, %v484
        %v486 = vrot.slane %v463, 1
        %v487 = vsel %vm480, %v484, %v486
        %v488 = vrot.slane %v467, 1
        %v489 = vsel %vm480, %v486, %v488
        %v490 = vrot.slane %v471, 1
        %v491 = vsel %vm480, %v488, %v490
        %v492 = vrot.slane %v475, 1
        %v493 = vsel %vm480, %v490, %v492
        %v494 = vrot.slane %v479, 1
        %v495 = vsel %vm480, %v492, %v494
        %v505 = vmul.f32 %v412, %v481
        %v506 = vmul.f32 %v413, %v481
        %v507 = vmul.f32 %v414, %v481
        %v508 = vmul.f32 %v415, %v481
        %v509 = vmul.f32 %v416, %v483
        %v510 = vmul.f32 %v417, %v483
        %v511 = vmul.f32 %v418, %v483
        %v512 = vmul.f32 %v419, %v483
        %v513 = vmul.f32 %v420, %v485
        %v514 = vmul.f32 %v421, %v485
        %v515 = vmul.f32 %v422, %v485
        %v516 = vmul.f32 %v423, %v485
        %v517 = vmul.f32 %v424, %v487
        %v518 = vmul.f32 %v425, %v487
        %v519 = vmul.f32 %v426, %v487
        %v520 = vmul.f32 %v427, %v487
        %v521 = vmul.f32 %v428, %v489
        %v522 = vmul.f32 %v429, %v489
        %v523 = vmul.f32 %v430, %v489
        %v524 = vmul.f32 %v431, %v489
        %v525 = vmul.f32 %v432, %v491
        %v526 = vmul.f32 %v433, %v491
        %v527 = vmul.f32 %v434, %v491
        %v528 = vmul.f32 %v435, %v491
        %v529 = vmul.f32 %v436, %v493
        %v530 = vmul.f32 %v437, %v493
        %v531 = vmul.f32 %v438, %v493
        %v532 = vmul.f32 %v439, %v493
        %v533 = vmul.f32 %v440, %v495
        %v534 = vmul.f32 %v441, %v495
        %v535 = vmul.f32 %v442, %v495
        %v536 = vmul.f32 %v443, %v495
        %v537 = vmul.f32 %v444, %v494
        %v538 = vmul.f32 %v445, %v494
        %v539 = vmul.f32 %v446, %v494
        %v540 = vmul.f32 %v447, %v494
        %v541 = vpack.c.bf16 %v509, %v505
        %v542 = vpack.c.bf16 %v510, %v506
        %v543 = vpack.c.bf16 %v511, %v507
        %v544 = vpack.c.bf16 %v512, %v508
        %v545 = vpack.c.bf16 %v517, %v513
        %v546 = vpack.c.bf16 %v518, %v514
        %v547 = vpack.c.bf16 %v519, %v515
        %v548 = vpack.c.bf16 %v520, %v516
        %v549 = vpack.c.bf16 %v525, %v521
        %v550 = vpack.c.bf16 %v526, %v522
        %v551 = vpack.c.bf16 %v527, %v523
        %v552 = vpack.c.bf16 %v528, %v524
        %v553 = vpack.c.bf16 %v533, %v529
        %v554 = vpack.c.bf16 %v534, %v530
        %v555 = vpack.c.bf16 %v535, %v531
        %v556 = vpack.c.bf16 %v536, %v532
        %v557 = vpack.c.bf16 %v537, %v537
        %v558 = vpack.c.bf16 %v538, %v538
        %v559 = vpack.c.bf16 %v539, %v539
        %v560 = vpack.c.bf16 %v540, %v540
        %v561 = vld [vmem:[#allocation2 + $0x20] sm:$0x80]
        %v562 = vld [vmem:[#allocation2 + $0x28] sm:$0x80]
        %v563 = vld [vmem:[#allocation2 + $0x30] sm:$0x80]
        %v564 = vld [vmem:[#allocation2 + $0x38] sm:$0x80]
        %v565 = vld [vmem:[#allocation2 + $0x40] sm:$0xff]
        %v566 = vld [vmem:[#allocation2 + $0x48] sm:$0xff]
        %v567 = vld [vmem:[#allocation2 + $0x50] sm:$0xff]
        %v568 = vld [vmem:[#allocation2 + $0x58] sm:$0xff]
        %v569 = vld [vmem:[#allocation2 + $0x60] sm:$0xff]
        %v570 = vld [vmem:[#allocation2 + $0x68] sm:$0xff]
        %v571 = vld [vmem:[#allocation2 + $0x70] sm:$0xff]
        %v572 = vld [vmem:[#allocation2 + $0x78] sm:$0xff]
        %v573 = vld [vmem:[#allocation2 + $0x80] sm:$0xff]
        %v574 = vld [vmem:[#allocation2 + $0x88] sm:$0xff]
        %v575 = vld [vmem:[#allocation2 + $0x90] sm:$0xff]
        %v576 = vld [vmem:[#allocation2 + $0x98] sm:$0xff]
        %v577 = vld [vmem:[#allocation2 + $0xa0] sm:$0xff]
        %v578 = vld [vmem:[#allocation2 + $0xa8] sm:$0xff]
        %v579 = vld [vmem:[#allocation2 + $0xb0] sm:$0xff]
        %v580 = vld [vmem:[#allocation2 + $0xb8] sm:$0xff]
        %v581 = vld [vmem:[#allocation2 + $0xc0] sm:$0xff]
        %v582 = vld [vmem:[#allocation2 + $0xc8] sm:$0xff]
        %v583 = vld [vmem:[#allocation2 + $0xd0] sm:$0xff]
        %v584 = vld [vmem:[#allocation2 + $0xd8] sm:$0xff]
        %v585 = vld [vmem:[#allocation2 + $0xe0] sm:$0xff]
        %v586 = vld [vmem:[#allocation2 + $0xe8] sm:$0xff]
        %v587 = vld [vmem:[#allocation2 + $0xf0] sm:$0xff]
        %v588 = vld [vmem:[#allocation2 + $0xf8] sm:$0xff]
        %v589 = vld [vmem:[#allocation2 + $0x100] sm:$0xff]
        %v590 = vld [vmem:[#allocation2 + $0x108] sm:$0xff]
        %v591 = vld [vmem:[#allocation2 + $0x110] sm:$0xff]
        %v592 = vld [vmem:[#allocation2 + $0x118] sm:$0xff]
        %v593 = vld [vmem:[#allocation2 + $0x120] sm:$0x7f]
        %v594 = vld [vmem:[#allocation2 + $0x128] sm:$0x7f]
        %v595 = vld [vmem:[#allocation2 + $0x130] sm:$0x7f]
        %v596 = vld [vmem:[#allocation2 + $0x138] sm:$0x7f]
        %v597 = vmul.f32 %v561, %v481
        %v598 = vmul.f32 %v562, %v481
        %v599 = vmul.f32 %v563, %v481
        %v600 = vmul.f32 %v564, %v481
        %v601 = vmul.f32 %v565, %v483
        %v602 = vmul.f32 %v566, %v483
        %v603 = vmul.f32 %v567, %v483
        %v604 = vmul.f32 %v568, %v483
        %v605 = vmul.f32 %v569, %v485
        %v606 = vmul.f32 %v570, %v485
        %v607 = vmul.f32 %v571, %v485
        %v608 = vmul.f32 %v572, %v485
        %v609 = vmul.f32 %v573, %v487
        %v610 = vmul.f32 %v574, %v487
        %v611 = vmul.f32 %v575, %v487
        %v612 = vmul.f32 %v576, %v487
        %v613 = vmul.f32 %v577, %v489
        %v614 = vmul.f32 %v578, %v489
        %v615 = vmul.f32 %v579, %v489
        %v616 = vmul.f32 %v580, %v489
        %v617 = vmul.f32 %v581, %v491
        %v618 = vmul.f32 %v582, %v491
        %v619 = vmul.f32 %v583, %v491
        %v620 = vmul.f32 %v584, %v491
        %v621 = vmul.f32 %v585, %v493
        %v622 = vmul.f32 %v586, %v493
        %v623 = vmul.f32 %v587, %v493
        %v624 = vmul.f32 %v588, %v493
        %v625 = vmul.f32 %v589, %v495
        %v626 = vmul.f32 %v590, %v495
        %v627 = vmul.f32 %v591, %v495
        %v628 = vmul.f32 %v592, %v495
        %v629 = vmul.f32 %v593, %v494
        %v630 = vmul.f32 %v594, %v494
        %v631 = vmul.f32 %v595, %v494
        %v632 = vmul.f32 %v596, %v494
        %v633 = vpack.c.bf16 %v601, %v597
        %v634 = vpack.c.bf16 %v602, %v598
        %v635 = vpack.c.bf16 %v603, %v599
        %v636 = vpack.c.bf16 %v604, %v600
        %v637 = vpack.c.bf16 %v609, %v605
        %v638 = vpack.c.bf16 %v610, %v606
        %v639 = vpack.c.bf16 %v611, %v607
        %v640 = vpack.c.bf16 %v612, %v608
        %v641 = vpack.c.bf16 %v617, %v613
        %v642 = vpack.c.bf16 %v618, %v614
        %v643 = vpack.c.bf16 %v619, %v615
        %v644 = vpack.c.bf16 %v620, %v616
        %v645 = vpack.c.bf16 %v625, %v621
        %v646 = vpack.c.bf16 %v626, %v622
        %v647 = vpack.c.bf16 %v627, %v623
        %v648 = vpack.c.bf16 %v628, %v624
        %v649 = vpack.c.bf16 %v629, %v629
        %v650 = vpack.c.bf16 %v630, %v630
        %v651 = vpack.c.bf16 %v631, %v631
        %v652 = vpack.c.bf16 %v632, %v632
        %v653 = vld [vmem:[#allocation2 + $0x40] sm:$0x80]
        %v654 = vld [vmem:[#allocation2 + $0x48] sm:$0x80]
        %v655 = vld [vmem:[#allocation2 + $0x50] sm:$0x80]
        %v656 = vld [vmem:[#allocation2 + $0x58] sm:$0x80]
        %v657 = vld [vmem:[#allocation2 + $0x120] sm:$0xff]
        %v658 = vld [vmem:[#allocation2 + $0x128] sm:$0xff]
        %v659 = vld [vmem:[#allocation2 + $0x130] sm:$0xff]
        %v660 = vld [vmem:[#allocation2 + $0x138] sm:$0xff]
        %v661 = vld [vmem:[#allocation2 + $0x140] sm:$0x7f]
        %v662 = vld [vmem:[#allocation2 + $0x148] sm:$0x7f]
        %v663 = vld [vmem:[#allocation2 + $0x150] sm:$0x7f]
        %v664 = vld [vmem:[#allocation2 + $0x158] sm:$0x7f]
        %v665 = vmul.f32 %v653, %v481
        %v666 = vmul.f32 %v654, %v481
        %v667 = vmul.f32 %v655, %v481
        %v668 = vmul.f32 %v656, %v481
        %v669 = vmul.f32 %v569, %v483
        %v670 = vmul.f32 %v570, %v483
        %v671 = vmul.f32 %v571, %v483
        %v672 = vmul.f32 %v572, %v483
        %v673 = vmul.f32 %v573, %v485
        %v674 = vmul.f32 %v574, %v485
        %v675 = vmul.f32 %v575, %v485
        %v676 = vmul.f32 %v576, %v485
        %v677 = vmul.f32 %v577, %v487
        %v678 = vmul.f32 %v578, %v487
        %v679 = vmul.f32 %v579, %v487
        %v680 = vmul.f32 %v580, %v487
        %v681 = vmul.f32 %v581, %v489
        %v682 = vmul.f32 %v582, %v489
        %v683 = vmul.f32 %v583, %v489
        %v684 = vmul.f32 %v584, %v489
        %v685 = vmul.f32 %v585, %v491
        %v686 = vmul.f32 %v586, %v491
        %v687 = vmul.f32 %v587, %v491
        %v688 = vmul.f32 %v588, %v491
        %v689 = vmul.f32 %v589, %v493
        %v690 = vmul.f32 %v590, %v493
        %v691 = vmul.f32 %v591, %v493
        %v692 = vmul.f32 %v592, %v493
        %v693 = vmul.f32 %v657, %v495
        %v694 = vmul.f32 %v658, %v495
        %v695 = vmul.f32 %v659, %v495
        %v696 = vmul.f32 %v660, %v495
        %v697 = vmul.f32 %v661, %v494
        %v698 = vmul.f32 %v662, %v494
        %v699 = vmul.f32 %v663, %v494
        %v700 = vmul.f32 %v664, %v494
        %v701 = vpack.c.bf16 %v669, %v665
        %v702 = vpack.c.bf16 %v670, %v666
        %v703 = vpack.c.bf16 %v671, %v667
        %v704 = vpack.c.bf16 %v672, %v668
        %v705 = vpack.c.bf16 %v677, %v673
        %v706 = vpack.c.bf16 %v678, %v674
        %v707 = vpack.c.bf16 %v679, %v675
        %v708 = vpack.c.bf16 %v680, %v676
        %v709 = vpack.c.bf16 %v685, %v681
        %v710 = vpack.c.bf16 %v686, %v682
        %v711 = vpack.c.bf16 %v687, %v683
        %v712 = vpack.c.bf16 %v688, %v684
        %v713 = vpack.c.bf16 %v693, %v689
        %v714 = vpack.c.bf16 %v694, %v690
        %v715 = vpack.c.bf16 %v695, %v691
        %v716 = vpack.c.bf16 %v696, %v692
        %v717 = vpack.c.bf16 %v697, %v697
        %v718 = vpack.c.bf16 %v698, %v698
        %v719 = vpack.c.bf16 %v699, %v699
        %v720 = vpack.c.bf16 %v700, %v700
        %v721 = vld [vmem:[#allocation7] sm:$0xff]
        %v722 = vld [vmem:[#allocation7 + $0x8] sm:$0xff]
        %v723 = vld [vmem:[#allocation7 + $0x10] sm:$0xff]
        %v724 = vld [vmem:[#allocation7 + $0x18] sm:$0xff]
        %v725 = vld [vmem:[#allocation7 + $0x20] sm:$0xff]
        %v726 = vld [vmem:[#allocation7 + $0x28] sm:$0xff]
        %v727 = vld [vmem:[#allocation7 + $0x30] sm:$0xff]
        %v728 = vld [vmem:[#allocation7 + $0x38] sm:$0xff]
        %v729 = vld [vmem:[#allocation7 + $0x40] sm:$0xff]
        %v730 = vld [vmem:[#allocation7 + $0x48] sm:$0xff]
        %v731 = vld [vmem:[#allocation7 + $0x50] sm:$0xff]
        %v732 = vld [vmem:[#allocation7 + $0x58] sm:$0xff]
        %v733 = vld [vmem:[#allocation7 + $0x60] sm:$0xff]
        %v734 = vld [vmem:[#allocation7 + $0x68] sm:$0xff]
        %v735 = vld [vmem:[#allocation7 + $0x70] sm:$0xff]
        %v736 = vld [vmem:[#allocation7 + $0x78] sm:$0xff]
        %v737 = vld [vmem:[#allocation7 + $0x80] sm:$0xff]
        %v738 = vld [vmem:[#allocation7 + $0x88] sm:$0xff]
        %v739 = vld [vmem:[#allocation7 + $0x90] sm:$0xff]
        %v740 = vld [vmem:[#allocation7 + $0x98] sm:$0xff]
        %v741 = vld [vmem:[#allocation7 + $0xa0] sm:$0xff]
        %v742 = vld [vmem:[#allocation7 + $0xa8] sm:$0xff]
        %v743 = vld [vmem:[#allocation7 + $0xb0] sm:$0xff]
        %v744 = vld [vmem:[#allocation7 + $0xb8] sm:$0xff]
        %v745 = vld [vmem:[#allocation7 + $0xc0] sm:$0xff]
        %v746 = vld [vmem:[#allocation7 + $0xc8] sm:$0xff]
        %v747 = vld [vmem:[#allocation7 + $0xd0] sm:$0xff]
        %v748 = vld [vmem:[#allocation7 + $0xd8] sm:$0xff]
        %v749 = vld [vmem:[#allocation7 + $0xe0] sm:$0xff]
        %v750 = vld [vmem:[#allocation7 + $0xe8] sm:$0xff]
        %v751 = vld [vmem:[#allocation7 + $0xf0] sm:$0xff]
        %v752 = vld [vmem:[#allocation7 + $0xf8] sm:$0xff]
        %v753 = vld [vmem:[#allocation7 + $0x100] sm:$0xff]
        %v754 = vld [vmem:[#allocation7 + $0x108] sm:$0xff]
        %v755 = vld [vmem:[#allocation7 + $0x110] sm:$0xff]
        %v756 = vld [vmem:[#allocation7 + $0x118] sm:$0xff]
        %v757 = vld [vmem:[#allocation7 + $0x120] sm:$0xff]
        %v758 = vld [vmem:[#allocation7 + $0x128] sm:$0xff]
        %v759 = vld [vmem:[#allocation7 + $0x130] sm:$0xff]
        %v760 = vld [vmem:[#allocation7 + $0x138] sm:$0xff]
        %v761 = vld [vmem:[#allocation7 + $0x140] sm:$0xff]
        %v762 = vld [vmem:[#allocation7 + $0x148] sm:$0xff]
        %v763 = vld [vmem:[#allocation7 + $0x150] sm:$0xff]
        %v764 = vld [vmem:[#allocation7 + $0x158] sm:$0xff]
        %v765 = vld [vmem:[#allocation7 + $0x160] sm:$0xff]
        %v766 = vld [vmem:[#allocation7 + $0x168] sm:$0xff]
        %v767 = vld [vmem:[#allocation7 + $0x170] sm:$0xff]
        %v768 = vld [vmem:[#allocation7 + $0x178] sm:$0xff]
        %v769 = vld [vmem:[#allocation7 + $0x180] sm:$0xff]
        %v770 = vld [vmem:[#allocation7 + $0x188] sm:$0xff]
        %v771 = vld [vmem:[#allocation7 + $0x190] sm:$0xff]
        %v772 = vld [vmem:[#allocation7 + $0x198] sm:$0xff]
        %v773 = vld [vmem:[#allocation7 + $0x1a0] sm:$0xff]
        %v774 = vld [vmem:[#allocation7 + $0x1a8] sm:$0xff]
        %v775 = vld [vmem:[#allocation7 + $0x1b0] sm:$0xff]
        %v776 = vld [vmem:[#allocation7 + $0x1b8] sm:$0xff]
        %v777 = vld [vmem:[#allocation7 + $0x1c0] sm:$0xff]
        %v778 = vld [vmem:[#allocation7 + $0x1c8] sm:$0xff]
        %v779 = vld [vmem:[#allocation7 + $0x1d0] sm:$0xff]
        %v780 = vld [vmem:[#allocation7 + $0x1d8] sm:$0xff]
        %v781 = vld [vmem:[#allocation7 + $0x1e0] sm:$0xff]
        %v782 = vld [vmem:[#allocation7 + $0x1e8] sm:$0xff]
        %v783 = vld [vmem:[#allocation7 + $0x1f0] sm:$0xff]
        %v784 = vld [vmem:[#allocation7 + $0x1f8] sm:$0xff]
        %v785 = vld [vmem:[#allocation7 + $0x200] sm:$0xff]
        %v786 = vld [vmem:[#allocation7 + $0x208] sm:$0xff]
        %v787 = vld [vmem:[#allocation7 + $0x210] sm:$0xff]
        %v788 = vld [vmem:[#allocation7 + $0x218] sm:$0xff]
        %v789 = vld [vmem:[#allocation7 + $0x220] sm:$0xff]
        %v790 = vld [vmem:[#allocation7 + $0x228] sm:$0xff]
        %v791 = vld [vmem:[#allocation7 + $0x230] sm:$0xff]
        %v792 = vld [vmem:[#allocation7 + $0x238] sm:$0xff]
        %v793 = vld [vmem:[#allocation7 + $0x240] sm:$0xff]
        %v794 = vld [vmem:[#allocation7 + $0x248] sm:$0xff]
        %v795 = vld [vmem:[#allocation7 + $0x250] sm:$0xff]
        %v796 = vld [vmem:[#allocation7 + $0x258] sm:$0xff]
        %v797 = vld [vmem:[#allocation7 + $0x260] sm:$0xff]
        %v798 = vld [vmem:[#allocation7 + $0x268] sm:$0xff]
        %v799 = vld [vmem:[#allocation7 + $0x270] sm:$0xff]
        %v800 = vld [vmem:[#allocation7 + $0x278] sm:$0xff]
        %v801 = vld [vmem:[#allocation7 + $0x280] sm:$0xff]
        %v802 = vld [vmem:[#allocation7 + $0x288] sm:$0xff]
        %v803 = vld [vmem:[#allocation7 + $0x290] sm:$0xff]
        %v804 = vld [vmem:[#allocation7 + $0x298] sm:$0xff]
        %v805 = vld [vmem:[#allocation7 + $0x2a0] sm:$0xff]
        %v806 = vld [vmem:[#allocation7 + $0x2a8] sm:$0xff]
        %v807 = vld [vmem:[#allocation7 + $0x2b0] sm:$0xff]
        %v808 = vld [vmem:[#allocation7 + $0x2b8] sm:$0xff]
        %v809 = vld [vmem:[#allocation7 + $0x2c0] sm:$0xff]
        %v810 = vld [vmem:[#allocation7 + $0x2c8] sm:$0xff]
        %v811 = vld [vmem:[#allocation7 + $0x2d0] sm:$0xff]
        %v812 = vld [vmem:[#allocation7 + $0x2d8] sm:$0xff]
        %v813 = vld [vmem:[#allocation7 + $0x2e0] sm:$0xff]
        %v814 = vld [vmem:[#allocation7 + $0x2e8] sm:$0xff]
        %v815 = vld [vmem:[#allocation7 + $0x2f0] sm:$0xff]
        %v816 = vld [vmem:[#allocation7 + $0x2f8] sm:$0xff]
        %v817 = vld [vmem:[#allocation7 + $0x300] sm:$0xff]
        %v818 = vld [vmem:[#allocation7 + $0x308] sm:$0xff]
        %v819 = vld [vmem:[#allocation7 + $0x310] sm:$0xff]
        %v820 = vld [vmem:[#allocation7 + $0x318] sm:$0xff]
        %v821 = vld [vmem:[#allocation7 + $0x320] sm:$0xff]
        %v822 = vld [vmem:[#allocation7 + $0x328] sm:$0xff]
        %v823 = vld [vmem:[#allocation7 + $0x330] sm:$0xff]
        %v824 = vld [vmem:[#allocation7 + $0x338] sm:$0xff]
        %v825 = vld [vmem:[#allocation7 + $0x340] sm:$0xff]
        %v826 = vld [vmem:[#allocation7 + $0x348] sm:$0xff]
        %v827 = vld [vmem:[#allocation7 + $0x350] sm:$0xff]
        %v828 = vld [vmem:[#allocation7 + $0x358] sm:$0xff]
        %v829 = vld [vmem:[#allocation7 + $0x360] sm:$0xff]
        %v830 = vld [vmem:[#allocation7 + $0x368] sm:$0xff]
        %v831 = vld [vmem:[#allocation7 + $0x370] sm:$0xff]
        %v832 = vld [vmem:[#allocation7 + $0x378] sm:$0xff]
        %v833 = vld [vmem:[#allocation7 + $0x380] sm:$0xff]
        %v834 = vld [vmem:[#allocation7 + $0x388] sm:$0xff]
        %v835 = vld [vmem:[#allocation7 + $0x390] sm:$0xff]
        %v836 = vld [vmem:[#allocation7 + $0x398] sm:$0xff]
        %v837 = vld [vmem:[#allocation7 + $0x3a0] sm:$0xff]
        %v838 = vld [vmem:[#allocation7 + $0x3a8] sm:$0xff]
        %v839 = vld [vmem:[#allocation7 + $0x3b0] sm:$0xff]
        %v840 = vld [vmem:[#allocation7 + $0x3b8] sm:$0xff]
        %v841 = vld [vmem:[#allocation7 + $0x3c0] sm:$0xff]
        %v842 = vld [vmem:[#allocation7 + $0x3c8] sm:$0xff]
        %v843 = vld [vmem:[#allocation7 + $0x3d0] sm:$0xff]
        %v844 = vld [vmem:[#allocation7 + $0x3d8] sm:$0xff]
        %v845 = vld [vmem:[#allocation7 + $0x3e0] sm:$0xff]
        %v846 = vld [vmem:[#allocation7 + $0x3e8] sm:$0xff]
        %v847 = vld [vmem:[#allocation7 + $0x3f0] sm:$0xff]
        %v848 = vld [vmem:[#allocation7 + $0x3f8] sm:$0xff]
        %v849 = vld [vmem:[#allocation7 + $0x400] sm:$0xff]
        %v850 = vld [vmem:[#allocation7 + $0x408] sm:$0xff]
        %v851 = vld [vmem:[#allocation7 + $0x410] sm:$0xff]
        %v852 = vld [vmem:[#allocation7 + $0x418] sm:$0xff]
        %v853 = vld [vmem:[#allocation7 + $0x420] sm:$0xff]
        %v854 = vld [vmem:[#allocation7 + $0x428] sm:$0xff]
        %v855 = vld [vmem:[#allocation7 + $0x430] sm:$0xff]
        %v856 = vld [vmem:[#allocation7 + $0x438] sm:$0xff]
        %v857 = vld [vmem:[#allocation7 + $0x440] sm:$0xff]
        %v858 = vld [vmem:[#allocation7 + $0x448] sm:$0xff]
        %v859 = vld [vmem:[#allocation7 + $0x450] sm:$0xff]
        %v860 = vld [vmem:[#allocation7 + $0x458] sm:$0xff]
        %v861 = vld [vmem:[#allocation7 + $0x460] sm:$0xff]
        %v862 = vld [vmem:[#allocation7 + $0x468] sm:$0xff]
        %v863 = vld [vmem:[#allocation7 + $0x470] sm:$0xff]
        %v864 = vld [vmem:[#allocation7 + $0x478] sm:$0xff]
        %v865 = vld [vmem:[#allocation7 + $0x480] sm:$0xff]
        %v866 = vld [vmem:[#allocation7 + $0x488] sm:$0xff]
        %v867 = vld [vmem:[#allocation7 + $0x490] sm:$0xff]
        %v868 = vld [vmem:[#allocation7 + $0x498] sm:$0xff]
        %v869 = vld [vmem:[#allocation7 + $0x4a0] sm:$0xff]
        %v870 = vld [vmem:[#allocation7 + $0x4a8] sm:$0xff]
        %v871 = vld [vmem:[#allocation7 + $0x4b0] sm:$0xff]
        %v872 = vld [vmem:[#allocation7 + $0x4b8] sm:$0xff]
        %v873 = vld [vmem:[#allocation7 + $0x4c0] sm:$0xff]
        %v874 = vld [vmem:[#allocation7 + $0x4c8] sm:$0xff]
        %v875 = vld [vmem:[#allocation7 + $0x4d0] sm:$0xff]
        %v876 = vld [vmem:[#allocation7 + $0x4d8] sm:$0xff]
        %v877 = vld [vmem:[#allocation7 + $0x4e0] sm:$0xff]
        %v878 = vld [vmem:[#allocation7 + $0x4e8] sm:$0xff]
        %v879 = vld [vmem:[#allocation7 + $0x4f0] sm:$0xff]
        %v880 = vld [vmem:[#allocation7 + $0x4f8] sm:$0xff]
        %v881 = vld [vmem:[#allocation7 + $0x500] sm:$0xff]
        %v882 = vld [vmem:[#allocation7 + $0x508] sm:$0xff]
        %v883 = vld [vmem:[#allocation7 + $0x510] sm:$0xff]
        %v884 = vld [vmem:[#allocation7 + $0x518] sm:$0xff]
        %v885 = vld [vmem:[#allocation7 + $0x520] sm:$0xff]
        %v886 = vld [vmem:[#allocation7 + $0x528] sm:$0xff]
        %v887 = vld [vmem:[#allocation7 + $0x530] sm:$0xff]
        %v888 = vld [vmem:[#allocation7 + $0x538] sm:$0xff]
        %v889 = vld [vmem:[#allocation7 + $0x540] sm:$0xff]
        %v890 = vld [vmem:[#allocation7 + $0x548] sm:$0xff]
        %v891 = vld [vmem:[#allocation7 + $0x550] sm:$0xff]
        %v892 = vld [vmem:[#allocation7 + $0x558] sm:$0xff]
        %v893 = vld [vmem:[#allocation7 + $0x560] sm:$0xff]
        %v894 = vld [vmem:[#allocation7 + $0x568] sm:$0xff]
        %v895 = vld [vmem:[#allocation7 + $0x570] sm:$0xff]
        %v896 = vld [vmem:[#allocation7 + $0x578] sm:$0xff]
        %v897 = vld [vmem:[#allocation7 + $0x580] sm:$0xff]
        %v898 = vld [vmem:[#allocation7 + $0x588] sm:$0xff]
        %v899 = vld [vmem:[#allocation7 + $0x590] sm:$0xff]
        %v900 = vld [vmem:[#allocation7 + $0x598] sm:$0xff]
        %v901 = vld [vmem:[#allocation7 + $0x5a0] sm:$0xff]
        %v902 = vld [vmem:[#allocation7 + $0x5a8] sm:$0xff]
        %v903 = vld [vmem:[#allocation7 + $0x5b0] sm:$0xff]
        %v904 = vld [vmem:[#allocation7 + $0x5b8] sm:$0xff]
        %v905 = vld [vmem:[#allocation7 + $0x5c0] sm:$0xff]
        %v906 = vld [vmem:[#allocation7 + $0x5c8] sm:$0xff]
        %v907 = vld [vmem:[#allocation7 + $0x5d0] sm:$0xff]
        %v908 = vld [vmem:[#allocation7 + $0x5d8] sm:$0xff]
        %v909 = vld [vmem:[#allocation7 + $0x5e0] sm:$0xff]
        %v910 = vld [vmem:[#allocation7 + $0x5e8] sm:$0xff]
        %v911 = vld [vmem:[#allocation7 + $0x5f0] sm:$0xff]
        %v912 = vld [vmem:[#allocation7 + $0x5f8] sm:$0xff]
        %v913 = vld [vmem:[#allocation7 + $0x600] sm:$0xff]
        %v914 = vld [vmem:[#allocation7 + $0x608] sm:$0xff]
        %v915 = vld [vmem:[#allocation7 + $0x610] sm:$0xff]
        %v916 = vld [vmem:[#allocation7 + $0x618] sm:$0xff]
        %v917 = vld [vmem:[#allocation7 + $0x620] sm:$0xff]
        %v918 = vld [vmem:[#allocation7 + $0x628] sm:$0xff]
        %v919 = vld [vmem:[#allocation7 + $0x630] sm:$0xff]
        %v920 = vld [vmem:[#allocation7 + $0x638] sm:$0xff]
        %v921 = vld [vmem:[#allocation7 + $0x640] sm:$0xff]
        %v922 = vld [vmem:[#allocation7 + $0x648] sm:$0xff]
        %v923 = vld [vmem:[#allocation7 + $0x650] sm:$0xff]
        %v924 = vld [vmem:[#allocation7 + $0x658] sm:$0xff]
        %v925 = vld [vmem:[#allocation7 + $0x660] sm:$0xff]
        %v926 = vld [vmem:[#allocation7 + $0x668] sm:$0xff]
        %v927 = vld [vmem:[#allocation7 + $0x670] sm:$0xff]
        %v928 = vld [vmem:[#allocation7 + $0x678] sm:$0xff]
        %v929 = vld [vmem:[#allocation7 + $0x680] sm:$0xff]
        %v930 = vld [vmem:[#allocation7 + $0x688] sm:$0xff]
        %v931 = vld [vmem:[#allocation7 + $0x690] sm:$0xff]
        %v932 = vld [vmem:[#allocation7 + $0x698] sm:$0xff]
        %v933 = vld [vmem:[#allocation7 + $0x6a0] sm:$0xff]
        %v934 = vld [vmem:[#allocation7 + $0x6a8] sm:$0xff]
        %v935 = vld [vmem:[#allocation7 + $0x6b0] sm:$0xff]
        %v936 = vld [vmem:[#allocation7 + $0x6b8] sm:$0xff]
        %v937 = vld [vmem:[#allocation7 + $0x6c0] sm:$0xff]
        %v938 = vld [vmem:[#allocation7 + $0x6c8] sm:$0xff]
        %v939 = vld [vmem:[#allocation7 + $0x6d0] sm:$0xff]
        %v940 = vld [vmem:[#allocation7 + $0x6d8] sm:$0xff]
        %v941 = vld [vmem:[#allocation7 + $0x6e0] sm:$0xff]
        %v942 = vld [vmem:[#allocation7 + $0x6e8] sm:$0xff]
        %v943 = vld [vmem:[#allocation7 + $0x6f0] sm:$0xff]
        %v944 = vld [vmem:[#allocation7 + $0x6f8] sm:$0xff]
        %v945 = vld [vmem:[#allocation7 + $0x700] sm:$0xff]
        %v946 = vld [vmem:[#allocation7 + $0x708] sm:$0xff]
        %v947 = vld [vmem:[#allocation7 + $0x710] sm:$0xff]
        %v948 = vld [vmem:[#allocation7 + $0x718] sm:$0xff]
        %v949 = vld [vmem:[#allocation7 + $0x720] sm:$0xff]
        %v950 = vld [vmem:[#allocation7 + $0x728] sm:$0xff]
        %v951 = vld [vmem:[#allocation7 + $0x730] sm:$0xff]
        %v952 = vld [vmem:[#allocation7 + $0x738] sm:$0xff]
        %v953 = vld [vmem:[#allocation7 + $0x740] sm:$0xff]
        %v954 = vld [vmem:[#allocation7 + $0x748] sm:$0xff]
        %v955 = vld [vmem:[#allocation7 + $0x750] sm:$0xff]
        %v956 = vld [vmem:[#allocation7 + $0x758] sm:$0xff]
        %v957 = vld [vmem:[#allocation7 + $0x760] sm:$0xff]
        %v958 = vld [vmem:[#allocation7 + $0x768] sm:$0xff]
        %v959 = vld [vmem:[#allocation7 + $0x770] sm:$0xff]
        %v960 = vld [vmem:[#allocation7 + $0x778] sm:$0xff]
        %v961 = vld [vmem:[#allocation7 + $0x780] sm:$0xff]
        %v962 = vld [vmem:[#allocation7 + $0x788] sm:$0xff]
        %v963 = vld [vmem:[#allocation7 + $0x790] sm:$0xff]
        %v964 = vld [vmem:[#allocation7 + $0x798] sm:$0xff]
        %v965 = vld [vmem:[#allocation7 + $0x7a0] sm:$0xff]
        %v966 = vld [vmem:[#allocation7 + $0x7a8] sm:$0xff]
        %v967 = vld [vmem:[#allocation7 + $0x7b0] sm:$0xff]
        %v968 = vld [vmem:[#allocation7 + $0x7b8] sm:$0xff]
        %v969 = vld [vmem:[#allocation7 + $0x7c0] sm:$0xff]
        %v970 = vld [vmem:[#allocation7 + $0x7c8] sm:$0xff]
        %v971 = vld [vmem:[#allocation7 + $0x7d0] sm:$0xff]
        %v972 = vld [vmem:[#allocation7 + $0x7d8] sm:$0xff]
        %v973 = vld [vmem:[#allocation7 + $0x7e0] sm:$0xff]
        %v974 = vld [vmem:[#allocation7 + $0x7e8] sm:$0xff]
        %v975 = vld [vmem:[#allocation7 + $0x7f0] sm:$0xff]
        %v976 = vld [vmem:[#allocation7 + $0x7f8] sm:$0xff]
        %v977 = vld [vmem:[#allocation7 + $0x800] sm:$0xff]
        %v978 = vld [vmem:[#allocation7 + $0x808] sm:$0xff]
        %v979 = vld [vmem:[#allocation7 + $0x810] sm:$0xff]
        %v980 = vld [vmem:[#allocation7 + $0x818] sm:$0xff]
        %v981 = vld [vmem:[#allocation7 + $0x820] sm:$0xff]
        %v982 = vld [vmem:[#allocation7 + $0x828] sm:$0xff]
        %v983 = vld [vmem:[#allocation7 + $0x830] sm:$0xff]
        %v984 = vld [vmem:[#allocation7 + $0x838] sm:$0xff]
        %v985 = vld [vmem:[#allocation7 + $0x840] sm:$0xff]
        %v986 = vld [vmem:[#allocation7 + $0x848] sm:$0xff]
        %v987 = vld [vmem:[#allocation7 + $0x850] sm:$0xff]
        %v988 = vld [vmem:[#allocation7 + $0x858] sm:$0xff]
        %v989 = vld [vmem:[#allocation7 + $0x860] sm:$0xff]
        %v990 = vld [vmem:[#allocation7 + $0x868] sm:$0xff]
        %v991 = vld [vmem:[#allocation7 + $0x870] sm:$0xff]
        %v992 = vld [vmem:[#allocation7 + $0x878] sm:$0xff]
        %v993 = vld [vmem:[#allocation7 + $0x880] sm:$0xff]
        %v994 = vld [vmem:[#allocation7 + $0x888] sm:$0xff]
        %v995 = vld [vmem:[#allocation7 + $0x890] sm:$0xff]
        %v996 = vld [vmem:[#allocation7 + $0x898] sm:$0xff]
        %v997 = vld [vmem:[#allocation7 + $0x8a0] sm:$0xff]
        %v998 = vld [vmem:[#allocation7 + $0x8a8] sm:$0xff]
        %v999 = vld [vmem:[#allocation7 + $0x8b0] sm:$0xff]
        %v1000 = vld [vmem:[#allocation7 + $0x8b8] sm:$0xff]
        %v1001 = vld [vmem:[#allocation7 + $0x8c0] sm:$0xff]
        %v1002 = vld [vmem:[#allocation7 + $0x8c8] sm:$0xff]
        %v1003 = vld [vmem:[#allocation7 + $0x8d0] sm:$0xff]
        %v1004 = vld [vmem:[#allocation7 + $0x8d8] sm:$0xff]
        %v1005 = vld [vmem:[#allocation7 + $0x8e0] sm:$0xff]
        %v1006 = vld [vmem:[#allocation7 + $0x8e8] sm:$0xff]
        %v1007 = vld [vmem:[#allocation7 + $0x8f0] sm:$0xff]
        %v1008 = vld [vmem:[#allocation7 + $0x8f8] sm:$0xff]
        %v1009 = vld [vmem:[#allocation7 + $0x900] sm:$0xff]
        %v1010 = vld [vmem:[#allocation7 + $0x908] sm:$0xff]
        %v1011 = vld [vmem:[#allocation7 + $0x910] sm:$0xff]
        %v1012 = vld [vmem:[#allocation7 + $0x918] sm:$0xff]
        %v1013 = vld [vmem:[#allocation7 + $0x920] sm:$0xff]
        %v1014 = vld [vmem:[#allocation7 + $0x928] sm:$0xff]
        %v1015 = vld [vmem:[#allocation7 + $0x930] sm:$0xff]
        %v1016 = vld [vmem:[#allocation7 + $0x938] sm:$0xff]
        %v1017 = vld [vmem:[#allocation7 + $0x940] sm:$0xff]
        %v1018 = vld [vmem:[#allocation7 + $0x948] sm:$0xff]
        %v1019 = vld [vmem:[#allocation7 + $0x950] sm:$0xff]
        %v1020 = vld [vmem:[#allocation7 + $0x958] sm:$0xff]
        %v1021 = vld [vmem:[#allocation7 + $0x960] sm:$0xff]
        %v1022 = vld [vmem:[#allocation7 + $0x968] sm:$0xff]
        %v1023 = vld [vmem:[#allocation7 + $0x970] sm:$0xff]
        %v1024 = vld [vmem:[#allocation7 + $0x978] sm:$0xff]
        %v1025 = vld [vmem:[#allocation7 + $0x980] sm:$0xff]
        %v1026 = vld [vmem:[#allocation7 + $0x988] sm:$0xff]
        %v1027 = vld [vmem:[#allocation7 + $0x990] sm:$0xff]
        %v1028 = vld [vmem:[#allocation7 + $0x998] sm:$0xff]
        %v1029 = vld [vmem:[#allocation7 + $0x9a0] sm:$0xff]
        %v1030 = vld [vmem:[#allocation7 + $0x9a8] sm:$0xff]
        %v1031 = vld [vmem:[#allocation7 + $0x9b0] sm:$0xff]
        %v1032 = vld [vmem:[#allocation7 + $0x9b8] sm:$0xff]
        %v1033 = vld [vmem:[#allocation7 + $0x9c0] sm:$0xff]
        %v1034 = vld [vmem:[#allocation7 + $0x9c8] sm:$0xff]
        %v1035 = vld [vmem:[#allocation7 + $0x9d0] sm:$0xff]
        %v1036 = vld [vmem:[#allocation7 + $0x9d8] sm:$0xff]
        %v1037 = vld [vmem:[#allocation7 + $0x9e0] sm:$0xff]
        %v1038 = vld [vmem:[#allocation7 + $0x9e8] sm:$0xff]
        %v1039 = vld [vmem:[#allocation7 + $0x9f0] sm:$0xff]
        %v1040 = vld [vmem:[#allocation7 + $0x9f8] sm:$0xff]
        %v1041 = vld [vmem:[#allocation7 + $0xa00] sm:$0xff]
        %v1042 = vld [vmem:[#allocation7 + $0xa08] sm:$0xff]
        %v1043 = vld [vmem:[#allocation7 + $0xa10] sm:$0xff]
        %v1044 = vld [vmem:[#allocation7 + $0xa18] sm:$0xff]
        %v1045 = vld [vmem:[#allocation7 + $0xa20] sm:$0xff]
        %v1046 = vld [vmem:[#allocation7 + $0xa28] sm:$0xff]
        %v1047 = vld [vmem:[#allocation7 + $0xa30] sm:$0xff]
        %v1048 = vld [vmem:[#allocation7 + $0xa38] sm:$0xff]
        %v1049 = vld [vmem:[#allocation7 + $0xa40] sm:$0xff]
        %v1050 = vld [vmem:[#allocation7 + $0xa48] sm:$0xff]
        %v1051 = vld [vmem:[#allocation7 + $0xa50] sm:$0xff]
        %v1052 = vld [vmem:[#allocation7 + $0xa58] sm:$0xff]
        %v1053 = vld [vmem:[#allocation7 + $0xa60] sm:$0xff]
        %v1054 = vld [vmem:[#allocation7 + $0xa68] sm:$0xff]
        %v1055 = vld [vmem:[#allocation7 + $0xa70] sm:$0xff]
        %v1056 = vld [vmem:[#allocation7 + $0xa78] sm:$0xff]
        %v1057 = vld [vmem:[#allocation7 + $0xa80] sm:$0xff]
        %v1058 = vld [vmem:[#allocation7 + $0xa88] sm:$0xff]
        %v1059 = vld [vmem:[#allocation7 + $0xa90] sm:$0xff]
        %v1060 = vld [vmem:[#allocation7 + $0xa98] sm:$0xff]
        %v1061 = vld [vmem:[#allocation7 + $0xaa0] sm:$0xff]
        %v1062 = vld [vmem:[#allocation7 + $0xaa8] sm:$0xff]
        %v1063 = vld [vmem:[#allocation7 + $0xab0] sm:$0xff]
        %v1064 = vld [vmem:[#allocation7 + $0xab8] sm:$0xff]
        %v1065 = vld [vmem:[#allocation7 + $0xac0] sm:$0xff]
        %v1066 = vld [vmem:[#allocation7 + $0xac8] sm:$0xff]
        %v1067 = vld [vmem:[#allocation7 + $0xad0] sm:$0xff]
        %v1068 = vld [vmem:[#allocation7 + $0xad8] sm:$0xff]
        %v1069 = vld [vmem:[#allocation7 + $0xae0] sm:$0xff]
        %v1070 = vld [vmem:[#allocation7 + $0xae8] sm:$0xff]
        %v1071 = vld [vmem:[#allocation7 + $0xaf0] sm:$0xff]
        %v1072 = vld [vmem:[#allocation7 + $0xaf8] sm:$0xff]
        %v1073 = vld [vmem:[#allocation7 + $0xb00] sm:$0xff]
        %v1074 = vld [vmem:[#allocation7 + $0xb08] sm:$0xff]
        %v1075 = vld [vmem:[#allocation7 + $0xb10] sm:$0xff]
        %v1076 = vld [vmem:[#allocation7 + $0xb18] sm:$0xff]
        %v1077 = vld [vmem:[#allocation7 + $0xb20] sm:$0xff]
        %v1078 = vld [vmem:[#allocation7 + $0xb28] sm:$0xff]
        %v1079 = vld [vmem:[#allocation7 + $0xb30] sm:$0xff]
        %v1080 = vld [vmem:[#allocation7 + $0xb38] sm:$0xff]
        %v1081 = vld [vmem:[#allocation7 + $0xb40] sm:$0xff]
        %v1082 = vld [vmem:[#allocation7 + $0xb48] sm:$0xff]
        %v1083 = vld [vmem:[#allocation7 + $0xb50] sm:$0xff]
        %v1084 = vld [vmem:[#allocation7 + $0xb58] sm:$0xff]
        %v1085 = vld [vmem:[#allocation7 + $0xb60] sm:$0xff]
        %v1086 = vld [vmem:[#allocation7 + $0xb68] sm:$0xff]
        %v1087 = vld [vmem:[#allocation7 + $0xb70] sm:$0xff]
        %v1088 = vld [vmem:[#allocation7 + $0xb78] sm:$0xff]
        %v1089 = vld [vmem:[#allocation7 + $0xb80] sm:$0xff]
        %v1090 = vld [vmem:[#allocation7 + $0xb88] sm:$0xff]
        %v1091 = vld [vmem:[#allocation7 + $0xb90] sm:$0xff]
        %v1092 = vld [vmem:[#allocation7 + $0xb98] sm:$0xff]
        %v1093 = vld [vmem:[#allocation7 + $0xba0] sm:$0xff]
        %v1094 = vld [vmem:[#allocation7 + $0xba8] sm:$0xff]
        %v1095 = vld [vmem:[#allocation7 + $0xbb0] sm:$0xff]
        %v1096 = vld [vmem:[#allocation7 + $0xbb8] sm:$0xff]
        %v1097 = vld [vmem:[#allocation7 + $0xbc0] sm:$0xff]
        %v1098 = vld [vmem:[#allocation7 + $0xbc8] sm:$0xff]
        %v1099 = vld [vmem:[#allocation7 + $0xbd0] sm:$0xff]
        %v1100 = vld [vmem:[#allocation7 + $0xbd8] sm:$0xff]
        %v1101 = vld [vmem:[#allocation7 + $0xbe0] sm:$0xff]
        %v1102 = vld [vmem:[#allocation7 + $0xbe8] sm:$0xff]
        %v1103 = vld [vmem:[#allocation7 + $0xbf0] sm:$0xff]
        %v1104 = vld [vmem:[#allocation7 + $0xbf8] sm:$0xff]
        %vm1105 = vsmask.f32 4352
        %v1107 = vshrl.u32 %v541, 16
        %v1109 = vrot.slane %v1107, 3
        %v1110 = vshll.u32 %v541, 16
        %v1112 = vrot.slane %v1110, 4
        %v1113 = vor.u32 %v1109, %v1112
        %v1115 = vshrl.u32 %v545, 16
        %v1117 = vrot.slane %v1115, 3
        %v1118 = vshll.u32 %v545, 16
        %v1120 = vrot.slane %v1118, 4
        %v1121 = vor.u32 %v1117, %v1120
        %v1122 = vsel %vm1105, %v1113, %v1121
        %v1124 = vshrl.u32 %v542, 16
        %v1126 = vrot.slane %v1124, 3
        %v1127 = vshll.u32 %v542, 16
        %v1129 = vrot.slane %v1127, 4
        %v1130 = vor.u32 %v1126, %v1129
        %v1132 = vshrl.u32 %v546, 16
        %v1134 = vrot.slane %v1132, 3
        %v1135 = vshll.u32 %v546, 16
        %v1137 = vrot.slane %v1135, 4
        %v1138 = vor.u32 %v1134, %v1137
        %v1139 = vsel %vm1105, %v1130, %v1138
        %v1141 = vshrl.u32 %v543, 16
        %v1143 = vrot.slane %v1141, 3
        %v1144 = vshll.u32 %v543, 16
        %v1146 = vrot.slane %v1144, 4
        %v1147 = vor.u32 %v1143, %v1146
        %v1149 = vshrl.u32 %v547, 16
        %v1151 = vrot.slane %v1149, 3
        %v1152 = vshll.u32 %v547, 16
        %v1154 = vrot.slane %v1152, 4
        %v1155 = vor.u32 %v1151, %v1154
        %v1156 = vsel %vm1105, %v1147, %v1155
        %v1158 = vshrl.u32 %v544, 16
        %v1160 = vrot.slane %v1158, 3
        %v1161 = vshll.u32 %v544, 16
        %v1163 = vrot.slane %v1161, 4
        %v1164 = vor.u32 %v1160, %v1163
        %v1166 = vshrl.u32 %v548, 16
        %v1168 = vrot.slane %v1166, 3
        %v1169 = vshll.u32 %v548, 16
        %v1171 = vrot.slane %v1169, 4
        %v1172 = vor.u32 %v1168, %v1171
        %v1173 = vsel %vm1105, %v1164, %v1172
        %v1175 = vshrl.u32 %v633, 16
        %v1177 = vrot.slane %v1175, 3
        %v1178 = vshll.u32 %v633, 16
        %v1180 = vrot.slane %v1178, 4
        %v1181 = vor.u32 %v1177, %v1180
        %v1183 = vshrl.u32 %v637, 16
        %v1185 = vrot.slane %v1183, 3
        %v1186 = vshll.u32 %v637, 16
        %v1188 = vrot.slane %v1186, 4
        %v1189 = vor.u32 %v1185, %v1188
        %v1190 = vsel %vm1105, %v1181, %v1189
        %v1192 = vshrl.u32 %v634, 16
        %v1194 = vrot.slane %v1192, 3
        %v1195 = vshll.u32 %v634, 16
        %v1197 = vrot.slane %v1195, 4
        %v1198 = vor.u32 %v1194, %v1197
        %v1200 = vshrl.u32 %v638, 16
        %v1202 = vrot.slane %v1200, 3
        %v1203 = vshll.u32 %v638, 16
        %v1205 = vrot.slane %v1203, 4
        %v1206 = vor.u32 %v1202, %v1205
        %v1207 = vsel %vm1105, %v1198, %v1206
        %v1209 = vshrl.u32 %v635, 16
        %v1211 = vrot.slane %v1209, 3
        %v1212 = vshll.u32 %v635, 16
        %v1214 = vrot.slane %v1212, 4
        %v1215 = vor.u32 %v1211, %v1214
        %v1217 = vshrl.u32 %v639, 16
        %v1219 = vrot.slane %v1217, 3
        %v1220 = vshll.u32 %v639, 16
        %v1222 = vrot.slane %v1220, 4
        %v1223 = vor.u32 %v1219, %v1222
        %v1224 = vsel %vm1105, %v1215, %v1223
        %v1226 = vshrl.u32 %v636, 16
        %v1228 = vrot.slane %v1226, 3
        %v1229 = vshll.u32 %v636, 16
        %v1231 = vrot.slane %v1229, 4
        %v1232 = vor.u32 %v1228, %v1231
        %v1234 = vshrl.u32 %v640, 16
        %v1236 = vrot.slane %v1234, 3
        %v1237 = vshll.u32 %v640, 16
        %v1239 = vrot.slane %v1237, 4
        %v1240 = vor.u32 %v1236, %v1239
        %v1241 = vsel %vm1105, %v1232, %v1240
        %v1243 = vshrl.u32 %v701, 16
        %v1245 = vrot.slane %v1243, 3
        %v1246 = vshll.u32 %v701, 16
        %v1248 = vrot.slane %v1246, 4
        %v1249 = vor.u32 %v1245, %v1248
        %v1251 = vshrl.u32 %v705, 16
        %v1253 = vrot.slane %v1251, 3
        %v1254 = vshll.u32 %v705, 16
        %v1256 = vrot.slane %v1254, 4
        %v1257 = vor.u32 %v1253, %v1256
        %v1258 = vsel %vm1105, %v1249, %v1257
        %v1260 = vshrl.u32 %v702, 16
        %v1262 = vrot.slane %v1260, 3
        %v1263 = vshll.u32 %v702, 16
        %v1265 = vrot.slane %v1263, 4
        %v1266 = vor.u32 %v1262, %v1265
        %v1268 = vshrl.u32 %v706, 16
        %v1270 = vrot.slane %v1268, 3
        %v1271 = vshll.u32 %v706, 16
        %v1273 = vrot.slane %v1271, 4
        %v1274 = vor.u32 %v1270, %v1273
        %v1275 = vsel %vm1105, %v1266, %v1274
        %v1277 = vshrl.u32 %v703, 16
        %v1279 = vrot.slane %v1277, 3
        %v1280 = vshll.u32 %v703, 16
        %v1282 = vrot.slane %v1280, 4
        %v1283 = vor.u32 %v1279, %v1282
        %v1285 = vshrl.u32 %v707, 16
        %v1287 = vrot.slane %v1285, 3
        %v1288 = vshll.u32 %v707, 16
        %v1290 = vrot.slane %v1288, 4
        %v1291 = vor.u32 %v1287, %v1290
        %v1292 = vsel %vm1105, %v1283, %v1291
        %v1294 = vshrl.u32 %v704, 16
        %v1296 = vrot.slane %v1294, 3
        %v1297 = vshll.u32 %v704, 16
        %v1299 = vrot.slane %v1297, 4
        %v1300 = vor.u32 %v1296, %v1299
        %v1302 = vshrl.u32 %v708, 16
        %v1304 = vrot.slane %v1302, 3
        %v1305 = vshll.u32 %v708, 16
        %v1307 = vrot.slane %v1305, 4
        %v1308 = vor.u32 %v1304, %v1307
        %v1309 = vsel %vm1105, %v1300, %v1308
        %v1311 = vshrl.u32 %v549, 16
        %v1313 = vrot.slane %v1311, 3
        %v1314 = vshll.u32 %v549, 16
        %v1316 = vrot.slane %v1314, 4
        %v1317 = vor.u32 %v1313, %v1316
        %v1318 = vsel %vm1105, %v1121, %v1317
        %v1320 = vshrl.u32 %v550, 16
        %v1322 = vrot.slane %v1320, 3
        %v1323 = vshll.u32 %v550, 16
        %v1325 = vrot.slane %v1323, 4
        %v1326 = vor.u32 %v1322, %v1325
        %v1327 = vsel %vm1105, %v1138, %v1326
        %v1329 = vshrl.u32 %v551, 16
        %v1331 = vrot.slane %v1329, 3
        %v1332 = vshll.u32 %v551, 16
        %v1334 = vrot.slane %v1332, 4
        %v1335 = vor.u32 %v1331, %v1334
        %v1336 = vsel %vm1105, %v1155, %v1335
        %v1338 = vshrl.u32 %v552, 16
        %v1340 = vrot.slane %v1338, 3
        %v1341 = vshll.u32 %v552, 16
        %v1343 = vrot.slane %v1341, 4
        %v1344 = vor.u32 %v1340, %v1343
        %v1345 = vsel %vm1105, %v1172, %v1344
        %v1347 = vshrl.u32 %v641, 16
        %v1349 = vrot.slane %v1347, 3
        %v1350 = vshll.u32 %v641, 16
        %v1352 = vrot.slane %v1350, 4
        %v1353 = vor.u32 %v1349, %v1352
        %v1354 = vsel %vm1105, %v1189, %v1353
        %v1356 = vshrl.u32 %v642, 16
        %v1358 = vrot.slane %v1356, 3
        %v1359 = vshll.u32 %v642, 16
        %v1361 = vrot.slane %v1359, 4
        %v1362 = vor.u32 %v1358, %v1361
        %v1363 = vsel %vm1105, %v1206, %v1362
        %v1365 = vshrl.u32 %v643, 16
        %v1367 = vrot.slane %v1365, 3
        %v1368 = vshll.u32 %v643, 16
        %v1370 = vrot.slane %v1368, 4
        %v1371 = vor.u32 %v1367, %v1370
        %v1372 = vsel %vm1105, %v1223, %v1371
        %v1374 = vshrl.u32 %v644, 16
        %v1376 = vrot.slane %v1374, 3
        %v1377 = vshll.u32 %v644, 16
        %v1379 = vrot.slane %v1377, 4
        %v1380 = vor.u32 %v1376, %v1379
        %v1381 = vsel %vm1105, %v1240, %v1380
        %v1383 = vshrl.u32 %v709, 16
        %v1385 = vrot.slane %v1383, 3
        %v1386 = vshll.u32 %v709, 16
        %v1388 = vrot.slane %v1386, 4
        %v1389 = vor.u32 %v1385, %v1388
        %v1390 = vsel %vm1105, %v1257, %v1389
        %v1392 = vshrl.u32 %v710, 16
        %v1394 = vrot.slane %v1392, 3
        %v1395 = vshll.u32 %v710, 16
        %v1397 = vrot.slane %v1395, 4
        %v1398 = vor.u32 %v1394, %v1397
        %v1399 = vsel %vm1105, %v1274, %v1398
        %v1401 = vshrl.u32 %v711, 16
        %v1403 = vrot.slane %v1401, 3
        %v1404 = vshll.u32 %v711, 16
        %v1406 = vrot.slane %v1404, 4
        %v1407 = vor.u32 %v1403, %v1406
        %v1408 = vsel %vm1105, %v1291, %v1407
        %v1410 = vshrl.u32 %v712, 16
        %v1412 = vrot.slane %v1410, 3
        %v1413 = vshll.u32 %v712, 16
        %v1415 = vrot.slane %v1413, 4
        %v1416 = vor.u32 %v1412, %v1415
        %v1417 = vsel %vm1105, %v1308, %v1416
        %v1419 = vshrl.u32 %v553, 16
        %v1421 = vrot.slane %v1419, 3
        %v1422 = vshll.u32 %v553, 16
        %v1424 = vrot.slane %v1422, 4
        %v1425 = vor.u32 %v1421, %v1424
        %v1426 = vsel %vm1105, %v1317, %v1425
        %v1428 = vshrl.u32 %v554, 16
        %v1430 = vrot.slane %v1428, 3
        %v1431 = vshll.u32 %v554, 16
        %v1433 = vrot.slane %v1431, 4
        %v1434 = vor.u32 %v1430, %v1433
        %v1435 = vsel %vm1105, %v1326, %v1434
        %v1437 = vshrl.u32 %v555, 16
        %v1439 = vrot.slane %v1437, 3
        %v1440 = vshll.u32 %v555, 16
        %v1442 = vrot.slane %v1440, 4
        %v1443 = vor.u32 %v1439, %v1442
        %v1444 = vsel %vm1105, %v1335, %v1443
        %v1446 = vshrl.u32 %v556, 16
        %v1448 = vrot.slane %v1446, 3
        %v1449 = vshll.u32 %v556, 16
        %v1451 = vrot.slane %v1449, 4
        %v1452 = vor.u32 %v1448, %v1451
        %v1453 = vsel %vm1105, %v1344, %v1452
        %v1455 = vshrl.u32 %v645, 16
        %v1457 = vrot.slane %v1455, 3
        %v1458 = vshll.u32 %v645, 16
        %v1460 = vrot.slane %v1458, 4
        %v1461 = vor.u32 %v1457, %v1460
        %v1462 = vsel %vm1105, %v1353, %v1461
        %v1464 = vshrl.u32 %v646, 16
        %v1466 = vrot.slane %v1464, 3
        %v1467 = vshll.u32 %v646, 16
        %v1469 = vrot.slane %v1467, 4
        %v1470 = vor.u32 %v1466, %v1469
        %v1471 = vsel %vm1105, %v1362, %v1470
        %v1473 = vshrl.u32 %v647, 16
        %v1475 = vrot.slane %v1473, 3
        %v1476 = vshll.u32 %v647, 16
        %v1478 = vrot.slane %v1476, 4
        %v1479 = vor.u32 %v1475, %v1478
        %v1480 = vsel %vm1105, %v1371, %v1479
        %v1482 = vshrl.u32 %v648, 16
        %v1484 = vrot.slane %v1482, 3
        %v1485 = vshll.u32 %v648, 16
        %v1487 = vrot.slane %v1485, 4
        %v1488 = vor.u32 %v1484, %v1487
        %v1489 = vsel %vm1105, %v1380, %v1488
        %v1491 = vshrl.u32 %v713, 16
        %v1493 = vrot.slane %v1491, 3
        %v1494 = vshll.u32 %v713, 16
        %v1496 = vrot.slane %v1494, 4
        %v1497 = vor.u32 %v1493, %v1496
        %v1498 = vsel %vm1105, %v1389, %v1497
        %v1500 = vshrl.u32 %v714, 16
        %v1502 = vrot.slane %v1500, 3
        %v1503 = vshll.u32 %v714, 16
        %v1505 = vrot.slane %v1503, 4
        %v1506 = vor.u32 %v1502, %v1505
        %v1507 = vsel %vm1105, %v1398, %v1506
        %v1509 = vshrl.u32 %v715, 16
        %v1511 = vrot.slane %v1509, 3
        %v1512 = vshll.u32 %v715, 16
        %v1514 = vrot.slane %v1512, 4
        %v1515 = vor.u32 %v1511, %v1514
        %v1516 = vsel %vm1105, %v1407, %v1515
        %v1518 = vshrl.u32 %v716, 16
        %v1520 = vrot.slane %v1518, 3
        %v1521 = vshll.u32 %v716, 16
        %v1523 = vrot.slane %v1521, 4
        %v1524 = vor.u32 %v1520, %v1523
        %v1525 = vsel %vm1105, %v1416, %v1524
        %v1527 = vshrl.u32 %v557, 16
        %v1529 = vrot.slane %v1527, 3
        %v1530 = vshll.u32 %v557, 16
        %v1532 = vrot.slane %v1530, 4
        %v1533 = vor.u32 %v1529, %v1532
        %v1534 = vsel %vm1105, %v1425, %v1533
        %v1536 = vshrl.u32 %v558, 16
        %v1538 = vrot.slane %v1536, 3
        %v1539 = vshll.u32 %v558, 16
        %v1541 = vrot.slane %v1539, 4
        %v1542 = vor.u32 %v1538, %v1541
        %v1543 = vsel %vm1105, %v1434, %v1542
        %v1545 = vshrl.u32 %v559, 16
        %v1547 = vrot.slane %v1545, 3
        %v1548 = vshll.u32 %v559, 16
        %v1550 = vrot.slane %v1548, 4
        %v1551 = vor.u32 %v1547, %v1550
        %v1552 = vsel %vm1105, %v1443, %v1551
        %v1554 = vshrl.u32 %v560, 16
        %v1556 = vrot.slane %v1554, 3
        %v1557 = vshll.u32 %v560, 16
        %v1559 = vrot.slane %v1557, 4
        %v1560 = vor.u32 %v1556, %v1559
        %v1561 = vsel %vm1105, %v1452, %v1560
        %v1563 = vshrl.u32 %v649, 16
        %v1565 = vrot.slane %v1563, 3
        %v1566 = vshll.u32 %v649, 16
        %v1568 = vrot.slane %v1566, 4
        %v1569 = vor.u32 %v1565, %v1568
        %v1570 = vsel %vm1105, %v1461, %v1569
        %v1572 = vshrl.u32 %v650, 16
        %v1574 = vrot.slane %v1572, 3
        %v1575 = vshll.u32 %v650, 16
        %v1577 = vrot.slane %v1575, 4
        %v1578 = vor.u32 %v1574, %v1577
        %v1579 = vsel %vm1105, %v1470, %v1578
        %v1581 = vshrl.u32 %v651, 16
        %v1583 = vrot.slane %v1581, 3
        %v1584 = vshll.u32 %v651, 16
        %v1586 = vrot.slane %v1584, 4
        %v1587 = vor.u32 %v1583, %v1586
        %v1588 = vsel %vm1105, %v1479, %v1587
        %v1590 = vshrl.u32 %v652, 16
        %v1592 = vrot.slane %v1590, 3
        %v1593 = vshll.u32 %v652, 16
        %v1595 = vrot.slane %v1593, 4
        %v1596 = vor.u32 %v1592, %v1595
        %v1597 = vsel %vm1105, %v1488, %v1596
        %v1599 = vshrl.u32 %v717, 16
        %v1601 = vrot.slane %v1599, 3
        %v1602 = vshll.u32 %v717, 16
        %v1604 = vrot.slane %v1602, 4
        %v1605 = vor.u32 %v1601, %v1604
        %v1606 = vsel %vm1105, %v1497, %v1605
        %v1608 = vshrl.u32 %v718, 16
        %v1610 = vrot.slane %v1608, 3
        %v1611 = vshll.u32 %v718, 16
        %v1613 = vrot.slane %v1611, 4
        %v1614 = vor.u32 %v1610, %v1613
        %v1615 = vsel %vm1105, %v1506, %v1614
        %v1617 = vshrl.u32 %v719, 16
        %v1619 = vrot.slane %v1617, 3
        %v1620 = vshll.u32 %v719, 16
        %v1622 = vrot.slane %v1620, 4
        %v1623 = vor.u32 %v1619, %v1622
        %v1624 = vsel %vm1105, %v1515, %v1623
        %v1626 = vshrl.u32 %v720, 16
        %v1628 = vrot.slane %v1626, 3
        %v1629 = vshll.u32 %v720, 16
        %v1631 = vrot.slane %v1629, 4
        %v1632 = vor.u32 %v1628, %v1631
        %v1633 = vsel %vm1105, %v1524, %v1632
        %v2066 = vunpack.c.l.b16 %v721
        %v2067 = vunpack.c.h.b16 %v721
        %v2068 = vunpack.c.l.b16 %v722
        %v2069 = vunpack.c.h.b16 %v722
        %v2070 = vunpack.c.l.b16 %v723
        %v2071 = vunpack.c.h.b16 %v723
        %v2072 = vunpack.c.l.b16 %v724
        %v2073 = vunpack.c.h.b16 %v724
        %v2074 = vunpack.c.l.b16 %v725
        %v2075 = vunpack.c.h.b16 %v725
        %v2076 = vunpack.c.l.b16 %v726
        %v2077 = vunpack.c.h.b16 %v726
        %v2078 = vunpack.c.l.b16 %v727
        %v2079 = vunpack.c.h.b16 %v727
        %v2080 = vunpack.c.l.b16 %v728
        %v2081 = vunpack.c.h.b16 %v728
        %v2082 = vunpack.c.l.b16 %v729
        %v2083 = vunpack.c.h.b16 %v729
        %v2084 = vunpack.c.l.b16 %v730
        %v2085 = vunpack.c.h.b16 %v730
        %v2086 = vunpack.c.l.b16 %v731
        %v2087 = vunpack.c.h.b16 %v731
        %v2088 = vunpack.c.l.b16 %v732
        %v2089 = vunpack.c.h.b16 %v732
        %v2090 = vunpack.c.l.b16 %v733
        %v2091 = vunpack.c.h.b16 %v733
        %v2092 = vunpack.c.l.b16 %v734
        %v2093 = vunpack.c.h.b16 %v734
        %v2094 = vunpack.c.l.b16 %v735
        %v2095 = vunpack.c.h.b16 %v735
        %v2096 = vunpack.c.l.b16 %v736
        %v2097 = vunpack.c.h.b16 %v736
        %v2098 = vunpack.c.l.b16 %v737
        %v2099 = vunpack.c.h.b16 %v737
        %v2100 = vunpack.c.l.b16 %v738
        %v2101 = vunpack.c.h.b16 %v738
        %v2102 = vunpack.c.l.b16 %v739
        %v2103 = vunpack.c.h.b16 %v739
        %v2104 = vunpack.c.l.b16 %v740
        %v2105 = vunpack.c.h.b16 %v740
        %v2106 = vunpack.c.l.b16 %v741
        %v2107 = vunpack.c.h.b16 %v741
        %v2108 = vunpack.c.l.b16 %v742
        %v2109 = vunpack.c.h.b16 %v742
        %v2110 = vunpack.c.l.b16 %v743
        %v2111 = vunpack.c.h.b16 %v743
        %v2112 = vunpack.c.l.b16 %v744
        %v2113 = vunpack.c.h.b16 %v744
        %v2114 = vunpack.c.l.b16 %v745
        %v2115 = vunpack.c.h.b16 %v745
        %v2116 = vunpack.c.l.b16 %v746
        %v2117 = vunpack.c.h.b16 %v746
        %v2118 = vunpack.c.l.b16 %v747
        %v2119 = vunpack.c.h.b16 %v747
        %v2120 = vunpack.c.l.b16 %v748
        %v2121 = vunpack.c.h.b16 %v748
        %v2122 = vunpack.c.l.b16 %v749
        %v2123 = vunpack.c.h.b16 %v749
        %v2124 = vunpack.c.l.b16 %v750
        %v2125 = vunpack.c.h.b16 %v750
        %v2126 = vunpack.c.l.b16 %v751
        %v2127 = vunpack.c.h.b16 %v751
        %v2128 = vunpack.c.l.b16 %v752
        %v2129 = vunpack.c.h.b16 %v752
        %v2130 = vunpack.c.l.b16 %v753
        %v2131 = vunpack.c.h.b16 %v753
        %v2132 = vunpack.c.l.b16 %v754
        %v2133 = vunpack.c.h.b16 %v754
        %v2134 = vunpack.c.l.b16 %v755
        %v2135 = vunpack.c.h.b16 %v755
        %v2136 = vunpack.c.l.b16 %v756
        %v2137 = vunpack.c.h.b16 %v756
        %v2138 = vunpack.c.l.b16 %v757
        %v2139 = vunpack.c.h.b16 %v757
        %v2140 = vunpack.c.l.b16 %v758
        %v2141 = vunpack.c.h.b16 %v758
        %v2142 = vunpack.c.l.b16 %v759
        %v2143 = vunpack.c.h.b16 %v759
        %v2144 = vunpack.c.l.b16 %v760
        %v2145 = vunpack.c.h.b16 %v760
        %v2146 = vunpack.c.l.b16 %v761
        %v2147 = vunpack.c.h.b16 %v761
        %v2148 = vunpack.c.l.b16 %v762
        %v2149 = vunpack.c.h.b16 %v762
        %v2150 = vunpack.c.l.b16 %v763
        %v2151 = vunpack.c.h.b16 %v763
        %v2152 = vunpack.c.l.b16 %v764
        %v2153 = vunpack.c.h.b16 %v764
        %v2154 = vunpack.c.l.b16 %v765
        %v2155 = vunpack.c.h.b16 %v765
        %v2156 = vunpack.c.l.b16 %v766
        %v2157 = vunpack.c.h.b16 %v766
        %v2158 = vunpack.c.l.b16 %v767
        %v2159 = vunpack.c.h.b16 %v767
        %v2160 = vunpack.c.l.b16 %v768
        %v2161 = vunpack.c.h.b16 %v768
        %v2162 = vunpack.c.l.b16 %v769
        %v2163 = vunpack.c.h.b16 %v769
        %v2164 = vunpack.c.l.b16 %v770
        %v2165 = vunpack.c.h.b16 %v770
        %v2166 = vunpack.c.l.b16 %v771
        %v2167 = vunpack.c.h.b16 %v771
        %v2168 = vunpack.c.l.b16 %v772
        %v2169 = vunpack.c.h.b16 %v772
        %v2170 = vunpack.c.l.b16 %v773
        %v2171 = vunpack.c.h.b16 %v773
        %v2172 = vunpack.c.l.b16 %v774
        %v2173 = vunpack.c.h.b16 %v774
        %v2174 = vunpack.c.l.b16 %v775
        %v2175 = vunpack.c.h.b16 %v775
        %v2176 = vunpack.c.l.b16 %v776
        %v2177 = vunpack.c.h.b16 %v776
        %v2178 = vunpack.c.l.b16 %v777
        %v2179 = vunpack.c.h.b16 %v777
        %v2180 = vunpack.c.l.b16 %v778
        %v2181 = vunpack.c.h.b16 %v778
        %v2182 = vunpack.c.l.b16 %v779
        %v2183 = vunpack.c.h.b16 %v779
        %v2184 = vunpack.c.l.b16 %v780
        %v2185 = vunpack.c.h.b16 %v780
        %v2186 = vunpack.c.l.b16 %v781
        %v2187 = vunpack.c.h.b16 %v781
        %v2188 = vunpack.c.l.b16 %v782
        %v2189 = vunpack.c.h.b16 %v782
        %v2190 = vunpack.c.l.b16 %v783
        %v2191 = vunpack.c.h.b16 %v783
        %v2192 = vunpack.c.l.b16 %v784
        %v2193 = vunpack.c.h.b16 %v784
        %v2194 = vunpack.c.l.b16 %v785
        %v2195 = vunpack.c.h.b16 %v785
        %v2196 = vunpack.c.l.b16 %v786
        %v2197 = vunpack.c.h.b16 %v786
        %v2198 = vunpack.c.l.b16 %v787
        %v2199 = vunpack.c.h.b16 %v787
        %v2200 = vunpack.c.l.b16 %v788
        %v2201 = vunpack.c.h.b16 %v788
        %v2202 = vunpack.c.l.b16 %v789
        %v2203 = vunpack.c.h.b16 %v789
        %v2204 = vunpack.c.l.b16 %v790
        %v2205 = vunpack.c.h.b16 %v790
        %v2206 = vunpack.c.l.b16 %v791
        %v2207 = vunpack.c.h.b16 %v791
        %v2208 = vunpack.c.l.b16 %v792
        %v2209 = vunpack.c.h.b16 %v792
        %v2210 = vunpack.c.l.b16 %v793
        %v2211 = vunpack.c.h.b16 %v793
        %v2212 = vunpack.c.l.b16 %v794
        %v2213 = vunpack.c.h.b16 %v794
        %v2214 = vunpack.c.l.b16 %v795
        %v2215 = vunpack.c.h.b16 %v795
        %v2216 = vunpack.c.l.b16 %v796
        %v2217 = vunpack.c.h.b16 %v796
        %v2218 = vunpack.c.l.b16 %v797
        %v2219 = vunpack.c.h.b16 %v797
        %v2220 = vunpack.c.l.b16 %v798
        %v2221 = vunpack.c.h.b16 %v798
        %v2222 = vunpack.c.l.b16 %v799
        %v2223 = vunpack.c.h.b16 %v799
        %v2224 = vunpack.c.l.b16 %v800
        %v2225 = vunpack.c.h.b16 %v800
        %v2226 = vunpack.c.l.b16 %v801
        %v2227 = vunpack.c.h.b16 %v801
        %v2228 = vunpack.c.l.b16 %v802
        %v2229 = vunpack.c.h.b16 %v802
        %v2230 = vunpack.c.l.b16 %v803
        %v2231 = vunpack.c.h.b16 %v803
        %v2232 = vunpack.c.l.b16 %v804
        %v2233 = vunpack.c.h.b16 %v804
        %v2234 = vunpack.c.l.b16 %v805
        %v2235 = vunpack.c.h.b16 %v805
        %v2236 = vunpack.c.l.b16 %v806
        %v2237 = vunpack.c.h.b16 %v806
        %v2238 = vunpack.c.l.b16 %v807
        %v2239 = vunpack.c.h.b16 %v807
        %v2240 = vunpack.c.l.b16 %v808
        %v2241 = vunpack.c.h.b16 %v808
        %v2242 = vunpack.c.l.b16 %v809
        %v2243 = vunpack.c.h.b16 %v809
        %v2244 = vunpack.c.l.b16 %v810
        %v2245 = vunpack.c.h.b16 %v810
        %v2246 = vunpack.c.l.b16 %v811
        %v2247 = vunpack.c.h.b16 %v811
        %v2248 = vunpack.c.l.b16 %v812
        %v2249 = vunpack.c.h.b16 %v812
        %v2250 = vunpack.c.l.b16 %v813
        %v2251 = vunpack.c.h.b16 %v813
        %v2252 = vunpack.c.l.b16 %v814
        %v2253 = vunpack.c.h.b16 %v814
        %v2254 = vunpack.c.l.b16 %v815
        %v2255 = vunpack.c.h.b16 %v815
        %v2256 = vunpack.c.l.b16 %v816
        %v2257 = vunpack.c.h.b16 %v816
        %v2258 = vunpack.c.l.b16 %v817
        %v2259 = vunpack.c.h.b16 %v817
        %v2260 = vunpack.c.l.b16 %v818
        %v2261 = vunpack.c.h.b16 %v818
        %v2262 = vunpack.c.l.b16 %v819
        %v2263 = vunpack.c.h.b16 %v819
        %v2264 = vunpack.c.l.b16 %v820
        %v2265 = vunpack.c.h.b16 %v820
        %v2266 = vunpack.c.l.b16 %v821
        %v2267 = vunpack.c.h.b16 %v821
        %v2268 = vunpack.c.l.b16 %v822
        %v2269 = vunpack.c.h.b16 %v822
        %v2270 = vunpack.c.l.b16 %v823
        %v2271 = vunpack.c.h.b16 %v823
        %v2272 = vunpack.c.l.b16 %v824
        %v2273 = vunpack.c.h.b16 %v824
        %v2274 = vunpack.c.l.b16 %v825
        %v2275 = vunpack.c.h.b16 %v825
        %v2276 = vunpack.c.l.b16 %v826
        %v2277 = vunpack.c.h.b16 %v826
        %v2278 = vunpack.c.l.b16 %v827
        %v2279 = vunpack.c.h.b16 %v827
        %v2280 = vunpack.c.l.b16 %v828
        %v2281 = vunpack.c.h.b16 %v828
        %v2282 = vunpack.c.l.b16 %v829
        %v2283 = vunpack.c.h.b16 %v829
        %v2284 = vunpack.c.l.b16 %v830
        %v2285 = vunpack.c.h.b16 %v830
        %v2286 = vunpack.c.l.b16 %v831
        %v2287 = vunpack.c.h.b16 %v831
        %v2288 = vunpack.c.l.b16 %v832
        %v2289 = vunpack.c.h.b16 %v832
        %v2290 = vunpack.c.l.b16 %v833
        %v2291 = vunpack.c.h.b16 %v833
        %v2292 = vunpack.c.l.b16 %v834
        %v2293 = vunpack.c.h.b16 %v834
        %v2294 = vunpack.c.l.b16 %v835
        %v2295 = vunpack.c.h.b16 %v835
        %v2296 = vunpack.c.l.b16 %v836
        %v2297 = vunpack.c.h.b16 %v836
        %v2298 = vunpack.c.l.b16 %v837
        %v2299 = vunpack.c.h.b16 %v837
        %v2300 = vunpack.c.l.b16 %v838
        %v2301 = vunpack.c.h.b16 %v838
        %v2302 = vunpack.c.l.b16 %v839
        %v2303 = vunpack.c.h.b16 %v839
        %v2304 = vunpack.c.l.b16 %v840
        %v2305 = vunpack.c.h.b16 %v840
        %v2306 = vunpack.c.l.b16 %v841
        %v2307 = vunpack.c.h.b16 %v841
        %v2308 = vunpack.c.l.b16 %v842
        %v2309 = vunpack.c.h.b16 %v842
        %v2310 = vunpack.c.l.b16 %v843
        %v2311 = vunpack.c.h.b16 %v843
        %v2312 = vunpack.c.l.b16 %v844
        %v2313 = vunpack.c.h.b16 %v844
        %v2314 = vunpack.c.l.b16 %v845
        %v2315 = vunpack.c.h.b16 %v845
        %v2316 = vunpack.c.l.b16 %v846
        %v2317 = vunpack.c.h.b16 %v846
        %v2318 = vunpack.c.l.b16 %v847
        %v2319 = vunpack.c.h.b16 %v847
        %v2320 = vunpack.c.l.b16 %v848
        %v2321 = vunpack.c.h.b16 %v848
        %v2322 = vunpack.c.l.b16 %v849
        %v2323 = vunpack.c.h.b16 %v849
        %v2324 = vunpack.c.l.b16 %v850
        %v2325 = vunpack.c.h.b16 %v850
        %v2326 = vunpack.c.l.b16 %v851
        %v2327 = vunpack.c.h.b16 %v851
        %v2328 = vunpack.c.l.b16 %v852
        %v2329 = vunpack.c.h.b16 %v852
        %v2330 = vunpack.c.l.b16 %v853
        %v2331 = vunpack.c.h.b16 %v853
        %v2332 = vunpack.c.l.b16 %v854
        %v2333 = vunpack.c.h.b16 %v854
        %v2334 = vunpack.c.l.b16 %v855
        %v2335 = vunpack.c.h.b16 %v855
        %v2336 = vunpack.c.l.b16 %v856
        %v2337 = vunpack.c.h.b16 %v856
        %v2338 = vunpack.c.l.b16 %v857
        %v2339 = vunpack.c.h.b16 %v857
        %v2340 = vunpack.c.l.b16 %v858
        %v2341 = vunpack.c.h.b16 %v858
        %v2342 = vunpack.c.l.b16 %v859
        %v2343 = vunpack.c.h.b16 %v859
        %v2344 = vunpack.c.l.b16 %v860
        %v2345 = vunpack.c.h.b16 %v860
        %v2346 = vunpack.c.l.b16 %v861
        %v2347 = vunpack.c.h.b16 %v861
        %v2348 = vunpack.c.l.b16 %v862
        %v2349 = vunpack.c.h.b16 %v862
        %v2350 = vunpack.c.l.b16 %v863
        %v2351 = vunpack.c.h.b16 %v863
        %v2352 = vunpack.c.l.b16 %v864
        %v2353 = vunpack.c.h.b16 %v864
        %v2354 = vunpack.c.l.b16 %v865
        %v2355 = vunpack.c.h.b16 %v865
        %v2356 = vunpack.c.l.b16 %v866
        %v2357 = vunpack.c.h.b16 %v866
        %v2358 = vunpack.c.l.b16 %v867
        %v2359 = vunpack.c.h.b16 %v867
        %v2360 = vunpack.c.l.b16 %v868
        %v2361 = vunpack.c.h.b16 %v868
        %v2362 = vunpack.c.l.b16 %v869
        %v2363 = vunpack.c.h.b16 %v869
        %v2364 = vunpack.c.l.b16 %v870
        %v2365 = vunpack.c.h.b16 %v870
        %v2366 = vunpack.c.l.b16 %v871
        %v2367 = vunpack.c.h.b16 %v871
        %v2368 = vunpack.c.l.b16 %v872
        %v2369 = vunpack.c.h.b16 %v872
        %v2370 = vunpack.c.l.b16 %v873
        %v2371 = vunpack.c.h.b16 %v873
        %v2372 = vunpack.c.l.b16 %v874
        %v2373 = vunpack.c.h.b16 %v874
        %v2374 = vunpack.c.l.b16 %v875
        %v2375 = vunpack.c.h.b16 %v875
        %v2376 = vunpack.c.l.b16 %v876
        %v2377 = vunpack.c.h.b16 %v876
        %v2378 = vunpack.c.l.b16 %v877
        %v2379 = vunpack.c.h.b16 %v877
        %v2380 = vunpack.c.l.b16 %v878
        %v2381 = vunpack.c.h.b16 %v878
        %v2382 = vunpack.c.l.b16 %v879
        %v2383 = vunpack.c.h.b16 %v879
        %v2384 = vunpack.c.l.b16 %v880
        %v2385 = vunpack.c.h.b16 %v880
        %v2386 = vunpack.c.l.b16 %v881
        %v2387 = vunpack.c.h.b16 %v881
        %v2388 = vunpack.c.l.b16 %v882
        %v2389 = vunpack.c.h.b16 %v882
        %v2390 = vunpack.c.l.b16 %v883
        %v2391 = vunpack.c.h.b16 %v883
        %v2392 = vunpack.c.l.b16 %v884
        %v2393 = vunpack.c.h.b16 %v884
        %v2394 = vunpack.c.l.b16 %v885
        %v2395 = vunpack.c.h.b16 %v885
        %v2396 = vunpack.c.l.b16 %v886
        %v2397 = vunpack.c.h.b16 %v886
        %v2398 = vunpack.c.l.b16 %v887
        %v2399 = vunpack.c.h.b16 %v887
        %v2400 = vunpack.c.l.b16 %v888
        %v2401 = vunpack.c.h.b16 %v888
        %v2402 = vunpack.c.l.b16 %v889
        %v2403 = vunpack.c.h.b16 %v889
        %v2404 = vunpack.c.l.b16 %v890
        %v2405 = vunpack.c.h.b16 %v890
        %v2406 = vunpack.c.l.b16 %v891
        %v2407 = vunpack.c.h.b16 %v891
        %v2408 = vunpack.c.l.b16 %v892
        %v2409 = vunpack.c.h.b16 %v892
        %v2410 = vunpack.c.l.b16 %v893
        %v2411 = vunpack.c.h.b16 %v893
        %v2412 = vunpack.c.l.b16 %v894
        %v2413 = vunpack.c.h.b16 %v894
        %v2414 = vunpack.c.l.b16 %v895
        %v2415 = vunpack.c.h.b16 %v895
        %v2416 = vunpack.c.l.b16 %v896
        %v2417 = vunpack.c.h.b16 %v896
        %v2418 = vunpack.c.l.b16 %v897
        %v2419 = vunpack.c.h.b16 %v897
        %v2420 = vunpack.c.l.b16 %v898
        %v2421 = vunpack.c.h.b16 %v898
        %v2422 = vunpack.c.l.b16 %v899
        %v2423 = vunpack.c.h.b16 %v899
        %v2424 = vunpack.c.l.b16 %v900
        %v2425 = vunpack.c.h.b16 %v900
        %v2426 = vunpack.c.l.b16 %v901
        %v2427 = vunpack.c.h.b16 %v901
        %v2428 = vunpack.c.l.b16 %v902
        %v2429 = vunpack.c.h.b16 %v902
        %v2430 = vunpack.c.l.b16 %v903
        %v2431 = vunpack.c.h.b16 %v903
        %v2432 = vunpack.c.l.b16 %v904
        %v2433 = vunpack.c.h.b16 %v904
        %v2434 = vunpack.c.l.b16 %v905
        %v2435 = vunpack.c.h.b16 %v905
        %v2436 = vunpack.c.l.b16 %v906
        %v2437 = vunpack.c.h.b16 %v906
        %v2438 = vunpack.c.l.b16 %v907
        %v2439 = vunpack.c.h.b16 %v907
        %v2440 = vunpack.c.l.b16 %v908
        %v2441 = vunpack.c.h.b16 %v908
        %v2442 = vunpack.c.l.b16 %v909
        %v2443 = vunpack.c.h.b16 %v909
        %v2444 = vunpack.c.l.b16 %v910
        %v2445 = vunpack.c.h.b16 %v910
        %v2446 = vunpack.c.l.b16 %v911
        %v2447 = vunpack.c.h.b16 %v911
        %v2448 = vunpack.c.l.b16 %v912
        %v2449 = vunpack.c.h.b16 %v912
        %v2450 = vunpack.c.l.b16 %v913
        %v2451 = vunpack.c.h.b16 %v913
        %v2452 = vunpack.c.l.b16 %v914
        %v2453 = vunpack.c.h.b16 %v914
        %v2454 = vunpack.c.l.b16 %v915
        %v2455 = vunpack.c.h.b16 %v915
        %v2456 = vunpack.c.l.b16 %v916
        %v2457 = vunpack.c.h.b16 %v916
        %v2458 = vunpack.c.l.b16 %v917
        %v2459 = vunpack.c.h.b16 %v917
        %v2460 = vunpack.c.l.b16 %v918
        %v2461 = vunpack.c.h.b16 %v918
        %v2462 = vunpack.c.l.b16 %v919
        %v2463 = vunpack.c.h.b16 %v919
        %v2464 = vunpack.c.l.b16 %v920
        %v2465 = vunpack.c.h.b16 %v920
        %v2466 = vunpack.c.l.b16 %v921
        %v2467 = vunpack.c.h.b16 %v921
        %v2468 = vunpack.c.l.b16 %v922
        %v2469 = vunpack.c.h.b16 %v922
        %v2470 = vunpack.c.l.b16 %v923
        %v2471 = vunpack.c.h.b16 %v923
        %v2472 = vunpack.c.l.b16 %v924
        %v2473 = vunpack.c.h.b16 %v924
        %v2474 = vunpack.c.l.b16 %v925
        %v2475 = vunpack.c.h.b16 %v925
        %v2476 = vunpack.c.l.b16 %v926
        %v2477 = vunpack.c.h.b16 %v926
        %v2478 = vunpack.c.l.b16 %v927
        %v2479 = vunpack.c.h.b16 %v927
        %v2480 = vunpack.c.l.b16 %v928
        %v2481 = vunpack.c.h.b16 %v928
        %v2482 = vunpack.c.l.b16 %v929
        %v2483 = vunpack.c.h.b16 %v929
        %v2484 = vunpack.c.l.b16 %v930
        %v2485 = vunpack.c.h.b16 %v930
        %v2486 = vunpack.c.l.b16 %v931
        %v2487 = vunpack.c.h.b16 %v931
        %v2488 = vunpack.c.l.b16 %v932
        %v2489 = vunpack.c.h.b16 %v932
        %v2490 = vunpack.c.l.b16 %v933
        %v2491 = vunpack.c.h.b16 %v933
        %v2492 = vunpack.c.l.b16 %v934
        %v2493 = vunpack.c.h.b16 %v934
        %v2494 = vunpack.c.l.b16 %v935
        %v2495 = vunpack.c.h.b16 %v935
        %v2496 = vunpack.c.l.b16 %v936
        %v2497 = vunpack.c.h.b16 %v936
        %v2498 = vunpack.c.l.b16 %v937
        %v2499 = vunpack.c.h.b16 %v937
        %v2500 = vunpack.c.l.b16 %v938
        %v2501 = vunpack.c.h.b16 %v938
        %v2502 = vunpack.c.l.b16 %v939
        %v2503 = vunpack.c.h.b16 %v939
        %v2504 = vunpack.c.l.b16 %v940
        %v2505 = vunpack.c.h.b16 %v940
        %v2506 = vunpack.c.l.b16 %v941
        %v2507 = vunpack.c.h.b16 %v941
        %v2508 = vunpack.c.l.b16 %v942
        %v2509 = vunpack.c.h.b16 %v942
        %v2510 = vunpack.c.l.b16 %v943
        %v2511 = vunpack.c.h.b16 %v943
        %v2512 = vunpack.c.l.b16 %v944
        %v2513 = vunpack.c.h.b16 %v944
        %v2514 = vunpack.c.l.b16 %v945
        %v2515 = vunpack.c.h.b16 %v945
        %v2516 = vunpack.c.l.b16 %v946
        %v2517 = vunpack.c.h.b16 %v946
        %v2518 = vunpack.c.l.b16 %v947
        %v2519 = vunpack.c.h.b16 %v947
        %v2520 = vunpack.c.l.b16 %v948
        %v2521 = vunpack.c.h.b16 %v948
        %v2522 = vunpack.c.l.b16 %v949
        %v2523 = vunpack.c.h.b16 %v949
        %v2524 = vunpack.c.l.b16 %v950
        %v2525 = vunpack.c.h.b16 %v950
        %v2526 = vunpack.c.l.b16 %v951
        %v2527 = vunpack.c.h.b16 %v951
        %v2528 = vunpack.c.l.b16 %v952
        %v2529 = vunpack.c.h.b16 %v952
        %v2530 = vunpack.c.l.b16 %v953
        %v2531 = vunpack.c.h.b16 %v953
        %v2532 = vunpack.c.l.b16 %v954
        %v2533 = vunpack.c.h.b16 %v954
        %v2534 = vunpack.c.l.b16 %v955
        %v2535 = vunpack.c.h.b16 %v955
        %v2536 = vunpack.c.l.b16 %v956
        %v2537 = vunpack.c.h.b16 %v956
        %v2538 = vunpack.c.l.b16 %v957
        %v2539 = vunpack.c.h.b16 %v957
        %v2540 = vunpack.c.l.b16 %v958
        %v2541 = vunpack.c.h.b16 %v958
        %v2542 = vunpack.c.l.b16 %v959
        %v2543 = vunpack.c.h.b16 %v959
        %v2544 = vunpack.c.l.b16 %v960
        %v2545 = vunpack.c.h.b16 %v960
        %v2546 = vunpack.c.l.b16 %v961
        %v2547 = vunpack.c.h.b16 %v961
        %v2548 = vunpack.c.l.b16 %v962
        %v2549 = vunpack.c.h.b16 %v962
        %v2550 = vunpack.c.l.b16 %v963
        %v2551 = vunpack.c.h.b16 %v963
        %v2552 = vunpack.c.l.b16 %v964
        %v2553 = vunpack.c.h.b16 %v964
        %v2554 = vunpack.c.l.b16 %v965
        %v2555 = vunpack.c.h.b16 %v965
        %v2556 = vunpack.c.l.b16 %v966
        %v2557 = vunpack.c.h.b16 %v966
        %v2558 = vunpack.c.l.b16 %v967
        %v2559 = vunpack.c.h.b16 %v967
        %v2560 = vunpack.c.l.b16 %v968
        %v2561 = vunpack.c.h.b16 %v968
        %v2562 = vunpack.c.l.b16 %v969
        %v2563 = vunpack.c.h.b16 %v969
        %v2564 = vunpack.c.l.b16 %v970
        %v2565 = vunpack.c.h.b16 %v970
        %v2566 = vunpack.c.l.b16 %v971
        %v2567 = vunpack.c.h.b16 %v971
        %v2568 = vunpack.c.l.b16 %v972
        %v2569 = vunpack.c.h.b16 %v972
        %v2570 = vunpack.c.l.b16 %v973
        %v2571 = vunpack.c.h.b16 %v973
        %v2572 = vunpack.c.l.b16 %v974
        %v2573 = vunpack.c.h.b16 %v974
        %v2574 = vunpack.c.l.b16 %v975
        %v2575 = vunpack.c.h.b16 %v975
        %v2576 = vunpack.c.l.b16 %v976
        %v2577 = vunpack.c.h.b16 %v976
        %v2578 = vunpack.c.l.b16 %v977
        %v2579 = vunpack.c.h.b16 %v977
        %v2580 = vunpack.c.l.b16 %v978
        %v2581 = vunpack.c.h.b16 %v978
        %v2582 = vunpack.c.l.b16 %v979
        %v2583 = vunpack.c.h.b16 %v979
        %v2584 = vunpack.c.l.b16 %v980
        %v2585 = vunpack.c.h.b16 %v980
        %v2586 = vunpack.c.l.b16 %v981
        %v2587 = vunpack.c.h.b16 %v981
        %v2588 = vunpack.c.l.b16 %v982
        %v2589 = vunpack.c.h.b16 %v982
        %v2590 = vunpack.c.l.b16 %v983
        %v2591 = vunpack.c.h.b16 %v983
        %v2592 = vunpack.c.l.b16 %v984
        %v2593 = vunpack.c.h.b16 %v984
        %v2594 = vunpack.c.l.b16 %v985
        %v2595 = vunpack.c.h.b16 %v985
        %v2596 = vunpack.c.l.b16 %v986
        %v2597 = vunpack.c.h.b16 %v986
        %v2598 = vunpack.c.l.b16 %v987
        %v2599 = vunpack.c.h.b16 %v987
        %v2600 = vunpack.c.l.b16 %v988
        %v2601 = vunpack.c.h.b16 %v988
        %v2602 = vunpack.c.l.b16 %v989
        %v2603 = vunpack.c.h.b16 %v989
        %v2604 = vunpack.c.l.b16 %v990
        %v2605 = vunpack.c.h.b16 %v990
        %v2606 = vunpack.c.l.b16 %v991
        %v2607 = vunpack.c.h.b16 %v991
        %v2608 = vunpack.c.l.b16 %v992
        %v2609 = vunpack.c.h.b16 %v992
        %v2610 = vunpack.c.l.b16 %v993
        %v2611 = vunpack.c.h.b16 %v993
        %v2612 = vunpack.c.l.b16 %v994
        %v2613 = vunpack.c.h.b16 %v994
        %v2614 = vunpack.c.l.b16 %v995
        %v2615 = vunpack.c.h.b16 %v995
        %v2616 = vunpack.c.l.b16 %v996
        %v2617 = vunpack.c.h.b16 %v996
        %v2618 = vunpack.c.l.b16 %v997
        %v2619 = vunpack.c.h.b16 %v997
        %v2620 = vunpack.c.l.b16 %v998
        %v2621 = vunpack.c.h.b16 %v998
        %v2622 = vunpack.c.l.b16 %v999
        %v2623 = vunpack.c.h.b16 %v999
        %v2624 = vunpack.c.l.b16 %v1000
        %v2625 = vunpack.c.h.b16 %v1000
        %v2626 = vunpack.c.l.b16 %v1001
        %v2627 = vunpack.c.h.b16 %v1001
        %v2628 = vunpack.c.l.b16 %v1002
        %v2629 = vunpack.c.h.b16 %v1002
        %v2630 = vunpack.c.l.b16 %v1003
        %v2631 = vunpack.c.h.b16 %v1003
        %v2632 = vunpack.c.l.b16 %v1004
        %v2633 = vunpack.c.h.b16 %v1004
        %v2634 = vunpack.c.l.b16 %v1005
        %v2635 = vunpack.c.h.b16 %v1005
        %v2636 = vunpack.c.l.b16 %v1006
        %v2637 = vunpack.c.h.b16 %v1006
        %v2638 = vunpack.c.l.b16 %v1007
        %v2639 = vunpack.c.h.b16 %v1007
        %v2640 = vunpack.c.l.b16 %v1008
        %v2641 = vunpack.c.h.b16 %v1008
        %v2642 = vunpack.c.l.b16 %v1009
        %v2643 = vunpack.c.h.b16 %v1009
        %v2644 = vunpack.c.l.b16 %v1010
        %v2645 = vunpack.c.h.b16 %v1010
        %v2646 = vunpack.c.l.b16 %v1011
        %v2647 = vunpack.c.h.b16 %v1011
        %v2648 = vunpack.c.l.b16 %v1012
        %v2649 = vunpack.c.h.b16 %v1012
        %v2650 = vunpack.c.l.b16 %v1013
        %v2651 = vunpack.c.h.b16 %v1013
        %v2652 = vunpack.c.l.b16 %v1014
        %v2653 = vunpack.c.h.b16 %v1014
        %v2654 = vunpack.c.l.b16 %v1015
        %v2655 = vunpack.c.h.b16 %v1015
        %v2656 = vunpack.c.l.b16 %v1016
        %v2657 = vunpack.c.h.b16 %v1016
        %v2658 = vunpack.c.l.b16 %v1017
        %v2659 = vunpack.c.h.b16 %v1017
        %v2660 = vunpack.c.l.b16 %v1018
        %v2661 = vunpack.c.h.b16 %v1018
        %v2662 = vunpack.c.l.b16 %v1019
        %v2663 = vunpack.c.h.b16 %v1019
        %v2664 = vunpack.c.l.b16 %v1020
        %v2665 = vunpack.c.h.b16 %v1020
        %v2666 = vunpack.c.l.b16 %v1021
        %v2667 = vunpack.c.h.b16 %v1021
        %v2668 = vunpack.c.l.b16 %v1022
        %v2669 = vunpack.c.h.b16 %v1022
        %v2670 = vunpack.c.l.b16 %v1023
        %v2671 = vunpack.c.h.b16 %v1023
        %v2672 = vunpack.c.l.b16 %v1024
        %v2673 = vunpack.c.h.b16 %v1024
        %v2674 = vunpack.c.l.b16 %v1025
        %v2675 = vunpack.c.h.b16 %v1025
        %v2676 = vunpack.c.l.b16 %v1026
        %v2677 = vunpack.c.h.b16 %v1026
        %v2678 = vunpack.c.l.b16 %v1027
        %v2679 = vunpack.c.h.b16 %v1027
        %v2680 = vunpack.c.l.b16 %v1028
        %v2681 = vunpack.c.h.b16 %v1028
        %v2682 = vunpack.c.l.b16 %v1029
        %v2683 = vunpack.c.h.b16 %v1029
        %v2684 = vunpack.c.l.b16 %v1030
        %v2685 = vunpack.c.h.b16 %v1030
        %v2686 = vunpack.c.l.b16 %v1031
        %v2687 = vunpack.c.h.b16 %v1031
        %v2688 = vunpack.c.l.b16 %v1032
        %v2689 = vunpack.c.h.b16 %v1032
        %v2690 = vunpack.c.l.b16 %v1033
        %v2691 = vunpack.c.h.b16 %v1033
        %v2692 = vunpack.c.l.b16 %v1034
        %v2693 = vunpack.c.h.b16 %v1034
        %v2694 = vunpack.c.l.b16 %v1035
        %v2695 = vunpack.c.h.b16 %v1035
        %v2696 = vunpack.c.l.b16 %v1036
        %v2697 = vunpack.c.h.b16 %v1036
        %v2698 = vunpack.c.l.b16 %v1037
        %v2699 = vunpack.c.h.b16 %v1037
        %v2700 = vunpack.c.l.b16 %v1038
        %v2701 = vunpack.c.h.b16 %v1038
        %v2702 = vunpack.c.l.b16 %v1039
        %v2703 = vunpack.c.h.b16 %v1039
        %v2704 = vunpack.c.l.b16 %v1040
        %v2705 = vunpack.c.h.b16 %v1040
        %v2706 = vunpack.c.l.b16 %v1041
        %v2707 = vunpack.c.h.b16 %v1041
        %v2708 = vunpack.c.l.b16 %v1042
        %v2709 = vunpack.c.h.b16 %v1042
        %v2710 = vunpack.c.l.b16 %v1043
        %v2711 = vunpack.c.h.b16 %v1043
        %v2712 = vunpack.c.l.b16 %v1044
        %v2713 = vunpack.c.h.b16 %v1044
        %v2714 = vunpack.c.l.b16 %v1045
        %v2715 = vunpack.c.h.b16 %v1045
        %v2716 = vunpack.c.l.b16 %v1046
        %v2717 = vunpack.c.h.b16 %v1046
        %v2718 = vunpack.c.l.b16 %v1047
        %v2719 = vunpack.c.h.b16 %v1047
        %v2720 = vunpack.c.l.b16 %v1048
        %v2721 = vunpack.c.h.b16 %v1048
        %v2722 = vunpack.c.l.b16 %v1049
        %v2723 = vunpack.c.h.b16 %v1049
        %v2724 = vunpack.c.l.b16 %v1050
        %v2725 = vunpack.c.h.b16 %v1050
        %v2726 = vunpack.c.l.b16 %v1051
        %v2727 = vunpack.c.h.b16 %v1051
        %v2728 = vunpack.c.l.b16 %v1052
        %v2729 = vunpack.c.h.b16 %v1052
        %v2730 = vunpack.c.l.b16 %v1053
        %v2731 = vunpack.c.h.b16 %v1053
        %v2732 = vunpack.c.l.b16 %v1054
        %v2733 = vunpack.c.h.b16 %v1054
        %v2734 = vunpack.c.l.b16 %v1055
        %v2735 = vunpack.c.h.b16 %v1055
        %v2736 = vunpack.c.l.b16 %v1056
        %v2737 = vunpack.c.h.b16 %v1056
        %v2738 = vunpack.c.l.b16 %v1057
        %v2739 = vunpack.c.h.b16 %v1057
        %v2740 = vunpack.c.l.b16 %v1058
        %v2741 = vunpack.c.h.b16 %v1058
        %v2742 = vunpack.c.l.b16 %v1059
        %v2743 = vunpack.c.h.b16 %v1059
        %v2744 = vunpack.c.l.b16 %v1060
        %v2745 = vunpack.c.h.b16 %v1060
        %v2746 = vunpack.c.l.b16 %v1061
        %v2747 = vunpack.c.h.b16 %v1061
        %v2748 = vunpack.c.l.b16 %v1062
        %v2749 = vunpack.c.h.b16 %v1062
        %v2750 = vunpack.c.l.b16 %v1063
        %v2751 = vunpack.c.h.b16 %v1063
        %v2752 = vunpack.c.l.b16 %v1064
        %v2753 = vunpack.c.h.b16 %v1064
        %v2754 = vunpack.c.l.b16 %v1065
        %v2755 = vunpack.c.h.b16 %v1065
        %v2756 = vunpack.c.l.b16 %v1066
        %v2757 = vunpack.c.h.b16 %v1066
        %v2758 = vunpack.c.l.b16 %v1067
        %v2759 = vunpack.c.h.b16 %v1067
        %v2760 = vunpack.c.l.b16 %v1068
        %v2761 = vunpack.c.h.b16 %v1068
        %v2762 = vunpack.c.l.b16 %v1069
        %v2763 = vunpack.c.h.b16 %v1069
        %v2764 = vunpack.c.l.b16 %v1070
        %v2765 = vunpack.c.h.b16 %v1070
        %v2766 = vunpack.c.l.b16 %v1071
        %v2767 = vunpack.c.h.b16 %v1071
        %v2768 = vunpack.c.l.b16 %v1072
        %v2769 = vunpack.c.h.b16 %v1072
        %v2770 = vunpack.c.l.b16 %v1073
        %v2771 = vunpack.c.h.b16 %v1073
        %v2772 = vunpack.c.l.b16 %v1074
        %v2773 = vunpack.c.h.b16 %v1074
        %v2774 = vunpack.c.l.b16 %v1075
        %v2775 = vunpack.c.h.b16 %v1075
        %v2776 = vunpack.c.l.b16 %v1076
        %v2777 = vunpack.c.h.b16 %v1076
        %v2778 = vunpack.c.l.b16 %v1077
        %v2779 = vunpack.c.h.b16 %v1077
        %v2780 = vunpack.c.l.b16 %v1078
        %v2781 = vunpack.c.h.b16 %v1078
        %v2782 = vunpack.c.l.b16 %v1079
        %v2783 = vunpack.c.h.b16 %v1079
        %v2784 = vunpack.c.l.b16 %v1080
        %v2785 = vunpack.c.h.b16 %v1080
        %v2786 = vunpack.c.l.b16 %v1081
        %v2787 = vunpack.c.h.b16 %v1081
        %v2788 = vunpack.c.l.b16 %v1082
        %v2789 = vunpack.c.h.b16 %v1082
        %v2790 = vunpack.c.l.b16 %v1083
        %v2791 = vunpack.c.h.b16 %v1083
        %v2792 = vunpack.c.l.b16 %v1084
        %v2793 = vunpack.c.h.b16 %v1084
        %v2794 = vunpack.c.l.b16 %v1085
        %v2795 = vunpack.c.h.b16 %v1085
        %v2796 = vunpack.c.l.b16 %v1086
        %v2797 = vunpack.c.h.b16 %v1086
        %v2798 = vunpack.c.l.b16 %v1087
        %v2799 = vunpack.c.h.b16 %v1087
        %v2800 = vunpack.c.l.b16 %v1088
        %v2801 = vunpack.c.h.b16 %v1088
        %v2802 = vunpack.c.l.b16 %v1089
        %v2803 = vunpack.c.h.b16 %v1089
        %v2804 = vunpack.c.l.b16 %v1090
        %v2805 = vunpack.c.h.b16 %v1090
        %v2806 = vunpack.c.l.b16 %v1091
        %v2807 = vunpack.c.h.b16 %v1091
        %v2808 = vunpack.c.l.b16 %v1092
        %v2809 = vunpack.c.h.b16 %v1092
        %v2810 = vunpack.c.l.b16 %v1093
        %v2811 = vunpack.c.h.b16 %v1093
        %v2812 = vunpack.c.l.b16 %v1094
        %v2813 = vunpack.c.h.b16 %v1094
        %v2814 = vunpack.c.l.b16 %v1095
        %v2815 = vunpack.c.h.b16 %v1095
        %v2816 = vunpack.c.l.b16 %v1096
        %v2817 = vunpack.c.h.b16 %v1096
        %v2818 = vunpack.c.l.b16 %v1097
        %v2819 = vunpack.c.h.b16 %v1097
        %v2820 = vunpack.c.l.b16 %v1098
        %v2821 = vunpack.c.h.b16 %v1098
        %v2822 = vunpack.c.l.b16 %v1099
        %v2823 = vunpack.c.h.b16 %v1099
        %v2824 = vunpack.c.l.b16 %v1100
        %v2825 = vunpack.c.h.b16 %v1100
        %v2826 = vunpack.c.l.b16 %v1101
        %v2827 = vunpack.c.h.b16 %v1101
        %v2828 = vunpack.c.l.b16 %v1102
        %v2829 = vunpack.c.h.b16 %v1102
        %v2830 = vunpack.c.l.b16 %v1103
        %v2831 = vunpack.c.h.b16 %v1103
        %v2832 = vunpack.c.l.b16 %v1104
        %v2833 = vunpack.c.h.b16 %v1104
        %v2834 = vpack.c.b16 %v2070, %v2066
        %v2835 = vpack.c.b16 %v2071, %v2067
        %v2836 = vpack.c.b16 %v2072, %v2068
        %v2837 = vpack.c.b16 %v2073, %v2069
        %v2838 = vpack.c.b16 %v2078, %v2074
        %v2839 = vpack.c.b16 %v2079, %v2075
        %v2840 = vpack.c.b16 %v2080, %v2076
        %v2841 = vpack.c.b16 %v2081, %v2077
        %v2842 = vpack.c.b16 %v2086, %v2082
        %v2843 = vpack.c.b16 %v2087, %v2083
        %v2844 = vpack.c.b16 %v2088, %v2084
        %v2845 = vpack.c.b16 %v2089, %v2085
        %v2846 = vpack.c.b16 %v2094, %v2090
        %v2847 = vpack.c.b16 %v2095, %v2091
        %v2848 = vpack.c.b16 %v2096, %v2092
        %v2849 = vpack.c.b16 %v2097, %v2093
        %v2850 = vpack.c.b16 %v2102, %v2098
        %v2851 = vpack.c.b16 %v2103, %v2099
        %v2852 = vpack.c.b16 %v2104, %v2100
        %v2853 = vpack.c.b16 %v2105, %v2101
        %v2854 = vpack.c.b16 %v2110, %v2106
        %v2855 = vpack.c.b16 %v2111, %v2107
        %v2856 = vpack.c.b16 %v2112, %v2108
        %v2857 = vpack.c.b16 %v2113, %v2109
        %v2858 = vpack.c.b16 %v2118, %v2114
        %v2859 = vpack.c.b16 %v2119, %v2115
        %v2860 = vpack.c.b16 %v2120, %v2116
        %v2861 = vpack.c.b16 %v2121, %v2117
        %v2862 = vpack.c.b16 %v2126, %v2122
        %v2863 = vpack.c.b16 %v2127, %v2123
        %v2864 = vpack.c.b16 %v2128, %v2124
        %v2865 = vpack.c.b16 %v2129, %v2125
        %v2866 = vpack.c.b16 %v2134, %v2130
        %v2867 = vpack.c.b16 %v2135, %v2131
        %v2868 = vpack.c.b16 %v2136, %v2132
        %v2869 = vpack.c.b16 %v2137, %v2133
        %v2870 = vpack.c.b16 %v2142, %v2138
        %v2871 = vpack.c.b16 %v2143, %v2139
        %v2872 = vpack.c.b16 %v2144, %v2140
        %v2873 = vpack.c.b16 %v2145, %v2141
        %v2874 = vpack.c.b16 %v2150, %v2146
        %v2875 = vpack.c.b16 %v2151, %v2147
        %v2876 = vpack.c.b16 %v2152, %v2148
        %v2877 = vpack.c.b16 %v2153, %v2149
        %v2878 = vpack.c.b16 %v2158, %v2154
        %v2879 = vpack.c.b16 %v2159, %v2155
        %v2880 = vpack.c.b16 %v2160, %v2156
        %v2881 = vpack.c.b16 %v2161, %v2157
        %v2882 = vpack.c.b16 %v2166, %v2162
        %v2883 = vpack.c.b16 %v2167, %v2163
        %v2884 = vpack.c.b16 %v2168, %v2164
        %v2885 = vpack.c.b16 %v2169, %v2165
        %v2886 = vpack.c.b16 %v2174, %v2170
        %v2887 = vpack.c.b16 %v2175, %v2171
        %v2888 = vpack.c.b16 %v2176, %v2172
        %v2889 = vpack.c.b16 %v2177, %v2173
        %v2890 = vpack.c.b16 %v2182, %v2178
        %v2891 = vpack.c.b16 %v2183, %v2179
        %v2892 = vpack.c.b16 %v2184, %v2180
        %v2893 = vpack.c.b16 %v2185, %v2181
        %v2894 = vpack.c.b16 %v2190, %v2186
        %v2895 = vpack.c.b16 %v2191, %v2187
        %v2896 = vpack.c.b16 %v2192, %v2188
        %v2897 = vpack.c.b16 %v2193, %v2189
        %v2898 = vpack.c.b16 %v2198, %v2194
        %v2899 = vpack.c.b16 %v2199, %v2195
        %v2900 = vpack.c.b16 %v2200, %v2196
        %v2901 = vpack.c.b16 %v2201, %v2197
        %v2902 = vpack.c.b16 %v2206, %v2202
        %v2903 = vpack.c.b16 %v2207, %v2203
        %v2904 = vpack.c.b16 %v2208, %v2204
        %v2905 = vpack.c.b16 %v2209, %v2205
        %v2906 = vpack.c.b16 %v2214, %v2210
        %v2907 = vpack.c.b16 %v2215, %v2211
        %v2908 = vpack.c.b16 %v2216, %v2212
        %v2909 = vpack.c.b16 %v2217, %v2213
        %v2910 = vpack.c.b16 %v2222, %v2218
        %v2911 = vpack.c.b16 %v2223, %v2219
        %v2912 = vpack.c.b16 %v2224, %v2220
        %v2913 = vpack.c.b16 %v2225, %v2221
        %v2914 = vpack.c.b16 %v2230, %v2226
        %v2915 = vpack.c.b16 %v2231, %v2227
        %v2916 = vpack.c.b16 %v2232, %v2228
        %v2917 = vpack.c.b16 %v2233, %v2229
        %v2918 = vpack.c.b16 %v2238, %v2234
        %v2919 = vpack.c.b16 %v2239, %v2235
        %v2920 = vpack.c.b16 %v2240, %v2236
        %v2921 = vpack.c.b16 %v2241, %v2237
        %v2922 = vpack.c.b16 %v2246, %v2242
        %v2923 = vpack.c.b16 %v2247, %v2243
        %v2924 = vpack.c.b16 %v2248, %v2244
        %v2925 = vpack.c.b16 %v2249, %v2245
        %v2926 = vpack.c.b16 %v2254, %v2250
        %v2927 = vpack.c.b16 %v2255, %v2251
        %v2928 = vpack.c.b16 %v2256, %v2252
        %v2929 = vpack.c.b16 %v2257, %v2253
        %v2930 = vpack.c.b16 %v2262, %v2258
        %v2931 = vpack.c.b16 %v2263, %v2259
        %v2932 = vpack.c.b16 %v2264, %v2260
        %v2933 = vpack.c.b16 %v2265, %v2261
        %v2934 = vpack.c.b16 %v2270, %v2266
        %v2935 = vpack.c.b16 %v2271, %v2267
        %v2936 = vpack.c.b16 %v2272, %v2268
        %v2937 = vpack.c.b16 %v2273, %v2269
        %v2938 = vpack.c.b16 %v2278, %v2274
        %v2939 = vpack.c.b16 %v2279, %v2275
        %v2940 = vpack.c.b16 %v2280, %v2276
        %v2941 = vpack.c.b16 %v2281, %v2277
        %v2942 = vpack.c.b16 %v2286, %v2282
        %v2943 = vpack.c.b16 %v2287, %v2283
        %v2944 = vpack.c.b16 %v2288, %v2284
        %v2945 = vpack.c.b16 %v2289, %v2285
        %v2946 = vpack.c.b16 %v2294, %v2290
        %v2947 = vpack.c.b16 %v2295, %v2291
        %v2948 = vpack.c.b16 %v2296, %v2292
        %v2949 = vpack.c.b16 %v2297, %v2293
        %v2950 = vpack.c.b16 %v2302, %v2298
        %v2951 = vpack.c.b16 %v2303, %v2299
        %v2952 = vpack.c.b16 %v2304, %v2300
        %v2953 = vpack.c.b16 %v2305, %v2301
        %v2954 = vpack.c.b16 %v2310, %v2306
        %v2955 = vpack.c.b16 %v2311, %v2307
        %v2956 = vpack.c.b16 %v2312, %v2308
        %v2957 = vpack.c.b16 %v2313, %v2309
        %v2958 = vpack.c.b16 %v2318, %v2314
        %v2959 = vpack.c.b16 %v2319, %v2315
        %v2960 = vpack.c.b16 %v2320, %v2316
        %v2961 = vpack.c.b16 %v2321, %v2317
        %v2962 = vpack.c.b16 %v2326, %v2322
        %v2963 = vpack.c.b16 %v2327, %v2323
        %v2964 = vpack.c.b16 %v2328, %v2324
        %v2965 = vpack.c.b16 %v2329, %v2325
        %v2966 = vpack.c.b16 %v2334, %v2330
        %v2967 = vpack.c.b16 %v2335, %v2331
        %v2968 = vpack.c.b16 %v2336, %v2332
        %v2969 = vpack.c.b16 %v2337, %v2333
        %v2970 = vpack.c.b16 %v2342, %v2338
        %v2971 = vpack.c.b16 %v2343, %v2339
        %v2972 = vpack.c.b16 %v2344, %v2340
        %v2973 = vpack.c.b16 %v2345, %v2341
        %v2974 = vpack.c.b16 %v2350, %v2346
        %v2975 = vpack.c.b16 %v2351, %v2347
        %v2976 = vpack.c.b16 %v2352, %v2348
        %v2977 = vpack.c.b16 %v2353, %v2349
        %v2978 = vpack.c.b16 %v2358, %v2354
        %v2979 = vpack.c.b16 %v2359, %v2355
        %v2980 = vpack.c.b16 %v2360, %v2356
        %v2981 = vpack.c.b16 %v2361, %v2357
        %v2982 = vpack.c.b16 %v2366, %v2362
        %v2983 = vpack.c.b16 %v2367, %v2363
        %v2984 = vpack.c.b16 %v2368, %v2364
        %v2985 = vpack.c.b16 %v2369, %v2365
        %v2986 = vpack.c.b16 %v2374, %v2370
        %v2987 = vpack.c.b16 %v2375, %v2371
        %v2988 = vpack.c.b16 %v2376, %v2372
        %v2989 = vpack.c.b16 %v2377, %v2373
        %v2990 = vpack.c.b16 %v2382, %v2378
        %v2991 = vpack.c.b16 %v2383, %v2379
        %v2992 = vpack.c.b16 %v2384, %v2380
        %v2993 = vpack.c.b16 %v2385, %v2381
        %v2994 = vpack.c.b16 %v2390, %v2386
        %v2995 = vpack.c.b16 %v2391, %v2387
        %v2996 = vpack.c.b16 %v2392, %v2388
        %v2997 = vpack.c.b16 %v2393, %v2389
        %v2998 = vpack.c.b16 %v2398, %v2394
        %v2999 = vpack.c.b16 %v2399, %v2395
        %v3000 = vpack.c.b16 %v2400, %v2396
        %v3001 = vpack.c.b16 %v2401, %v2397
        %v3002 = vpack.c.b16 %v2406, %v2402
        %v3003 = vpack.c.b16 %v2407, %v2403
        %v3004 = vpack.c.b16 %v2408, %v2404
        %v3005 = vpack.c.b16 %v2409, %v2405
        %v3006 = vpack.c.b16 %v2414, %v2410
        %v3007 = vpack.c.b16 %v2415, %v2411
        %v3008 = vpack.c.b16 %v2416, %v2412
        %v3009 = vpack.c.b16 %v2417, %v2413
        %v3010 = vpack.c.b16 %v2422, %v2418
        %v3011 = vpack.c.b16 %v2423, %v2419
        %v3012 = vpack.c.b16 %v2424, %v2420
        %v3013 = vpack.c.b16 %v2425, %v2421
        %v3014 = vpack.c.b16 %v2430, %v2426
        %v3015 = vpack.c.b16 %v2431, %v2427
        %v3016 = vpack.c.b16 %v2432, %v2428
        %v3017 = vpack.c.b16 %v2433, %v2429
        %v3018 = vpack.c.b16 %v2438, %v2434
        %v3019 = vpack.c.b16 %v2439, %v2435
        %v3020 = vpack.c.b16 %v2440, %v2436
        %v3021 = vpack.c.b16 %v2441, %v2437
        %v3022 = vpack.c.b16 %v2446, %v2442
        %v3023 = vpack.c.b16 %v2447, %v2443
        %v3024 = vpack.c.b16 %v2448, %v2444
        %v3025 = vpack.c.b16 %v2449, %v2445
        %v3026 = vpack.c.b16 %v2454, %v2450
        %v3027 = vpack.c.b16 %v2455, %v2451
        %v3028 = vpack.c.b16 %v2456, %v2452
        %v3029 = vpack.c.b16 %v2457, %v2453
        %v3030 = vpack.c.b16 %v2462, %v2458
        %v3031 = vpack.c.b16 %v2463, %v2459
        %v3032 = vpack.c.b16 %v2464, %v2460
        %v3033 = vpack.c.b16 %v2465, %v2461
        %v3034 = vpack.c.b16 %v2470, %v2466
        %v3035 = vpack.c.b16 %v2471, %v2467
        %v3036 = vpack.c.b16 %v2472, %v2468
        %v3037 = vpack.c.b16 %v2473, %v2469
        %v3038 = vpack.c.b16 %v2478, %v2474
        %v3039 = vpack.c.b16 %v2479, %v2475
        %v3040 = vpack.c.b16 %v2480, %v2476
        %v3041 = vpack.c.b16 %v2481, %v2477
        %v3042 = vpack.c.b16 %v2486, %v2482
        %v3043 = vpack.c.b16 %v2487, %v2483
        %v3044 = vpack.c.b16 %v2488, %v2484
        %v3045 = vpack.c.b16 %v2489, %v2485
        %v3046 = vpack.c.b16 %v2494, %v2490
        %v3047 = vpack.c.b16 %v2495, %v2491
        %v3048 = vpack.c.b16 %v2496, %v2492
        %v3049 = vpack.c.b16 %v2497, %v2493
        %v3050 = vpack.c.b16 %v2502, %v2498
        %v3051 = vpack.c.b16 %v2503, %v2499
        %v3052 = vpack.c.b16 %v2504, %v2500
        %v3053 = vpack.c.b16 %v2505, %v2501
        %v3054 = vpack.c.b16 %v2510, %v2506
        %v3055 = vpack.c.b16 %v2511, %v2507
        %v3056 = vpack.c.b16 %v2512, %v2508
        %v3057 = vpack.c.b16 %v2513, %v2509
        %v3058 = vpack.c.b16 %v2518, %v2514
        %v3059 = vpack.c.b16 %v2519, %v2515
        %v3060 = vpack.c.b16 %v2520, %v2516
        %v3061 = vpack.c.b16 %v2521, %v2517
        %v3062 = vpack.c.b16 %v2526, %v2522
        %v3063 = vpack.c.b16 %v2527, %v2523
        %v3064 = vpack.c.b16 %v2528, %v2524
        %v3065 = vpack.c.b16 %v2529, %v2525
        %v3066 = vpack.c.b16 %v2534, %v2530
        %v3067 = vpack.c.b16 %v2535, %v2531
        %v3068 = vpack.c.b16 %v2536, %v2532
        %v3069 = vpack.c.b16 %v2537, %v2533
        %v3070 = vpack.c.b16 %v2542, %v2538
        %v3071 = vpack.c.b16 %v2543, %v2539
        %v3072 = vpack.c.b16 %v2544, %v2540
        %v3073 = vpack.c.b16 %v2545, %v2541
        %v3074 = vpack.c.b16 %v2550, %v2546
        %v3075 = vpack.c.b16 %v2551, %v2547
        %v3076 = vpack.c.b16 %v2552, %v2548
        %v3077 = vpack.c.b16 %v2553, %v2549
        %v3078 = vpack.c.b16 %v2558, %v2554
        %v3079 = vpack.c.b16 %v2559, %v2555
        %v3080 = vpack.c.b16 %v2560, %v2556
        %v3081 = vpack.c.b16 %v2561, %v2557
        %v3082 = vpack.c.b16 %v2566, %v2562
        %v3083 = vpack.c.b16 %v2567, %v2563
        %v3084 = vpack.c.b16 %v2568, %v2564
        %v3085 = vpack.c.b16 %v2569, %v2565
        %v3086 = vpack.c.b16 %v2574, %v2570
        %v3087 = vpack.c.b16 %v2575, %v2571
        %v3088 = vpack.c.b16 %v2576, %v2572
        %v3089 = vpack.c.b16 %v2577, %v2573
        %v3090 = vpack.c.b16 %v2582, %v2578
        %v3091 = vpack.c.b16 %v2583, %v2579
        %v3092 = vpack.c.b16 %v2584, %v2580
        %v3093 = vpack.c.b16 %v2585, %v2581
        %v3094 = vpack.c.b16 %v2590, %v2586
        %v3095 = vpack.c.b16 %v2591, %v2587
        %v3096 = vpack.c.b16 %v2592, %v2588
        %v3097 = vpack.c.b16 %v2593, %v2589
        %v3098 = vpack.c.b16 %v2598, %v2594
        %v3099 = vpack.c.b16 %v2599, %v2595
        %v3100 = vpack.c.b16 %v2600, %v2596
        %v3101 = vpack.c.b16 %v2601, %v2597
        %v3102 = vpack.c.b16 %v2606, %v2602
        %v3103 = vpack.c.b16 %v2607, %v2603
        %v3104 = vpack.c.b16 %v2608, %v2604
        %v3105 = vpack.c.b16 %v2609, %v2605
        %v3106 = vpack.c.b16 %v2614, %v2610
        %v3107 = vpack.c.b16 %v2615, %v2611
        %v3108 = vpack.c.b16 %v2616, %v2612
        %v3109 = vpack.c.b16 %v2617, %v2613
        %v3110 = vpack.c.b16 %v2622, %v2618
        %v3111 = vpack.c.b16 %v2623, %v2619
        %v3112 = vpack.c.b16 %v2624, %v2620
        %v3113 = vpack.c.b16 %v2625, %v2621
        %v3114 = vpack.c.b16 %v2630, %v2626
        %v3115 = vpack.c.b16 %v2631, %v2627
        %v3116 = vpack.c.b16 %v2632, %v2628
        %v3117 = vpack.c.b16 %v2633, %v2629
        %v3118 = vpack.c.b16 %v2638, %v2634
        %v3119 = vpack.c.b16 %v2639, %v2635
        %v3120 = vpack.c.b16 %v2640, %v2636
        %v3121 = vpack.c.b16 %v2641, %v2637
        %v3122 = vpack.c.b16 %v2646, %v2642
        %v3123 = vpack.c.b16 %v2647, %v2643
        %v3124 = vpack.c.b16 %v2648, %v2644
        %v3125 = vpack.c.b16 %v2649, %v2645
        %v3126 = vpack.c.b16 %v2654, %v2650
        %v3127 = vpack.c.b16 %v2655, %v2651
        %v3128 = vpack.c.b16 %v2656, %v2652
        %v3129 = vpack.c.b16 %v2657, %v2653
        %v3130 = vpack.c.b16 %v2662, %v2658
        %v3131 = vpack.c.b16 %v2663, %v2659
        %v3132 = vpack.c.b16 %v2664, %v2660
        %v3133 = vpack.c.b16 %v2665, %v2661
        %v3134 = vpack.c.b16 %v2670, %v2666
        %v3135 = vpack.c.b16 %v2671, %v2667
        %v3136 = vpack.c.b16 %v2672, %v2668
        %v3137 = vpack.c.b16 %v2673, %v2669
        %v3138 = vpack.c.b16 %v2678, %v2674
        %v3139 = vpack.c.b16 %v2679, %v2675
        %v3140 = vpack.c.b16 %v2680, %v2676
        %v3141 = vpack.c.b16 %v2681, %v2677
        %v3142 = vpack.c.b16 %v2686, %v2682
        %v3143 = vpack.c.b16 %v2687, %v2683
        %v3144 = vpack.c.b16 %v2688, %v2684
        %v3145 = vpack.c.b16 %v2689, %v2685
        %v3146 = vpack.c.b16 %v2694, %v2690
        %v3147 = vpack.c.b16 %v2695, %v2691
        %v3148 = vpack.c.b16 %v2696, %v2692
        %v3149 = vpack.c.b16 %v2697, %v2693
        %v3150 = vpack.c.b16 %v2702, %v2698
        %v3151 = vpack.c.b16 %v2703, %v2699
        %v3152 = vpack.c.b16 %v2704, %v2700
        %v3153 = vpack.c.b16 %v2705, %v2701
        %v3154 = vpack.c.b16 %v2710, %v2706
        %v3155 = vpack.c.b16 %v2711, %v2707
        %v3156 = vpack.c.b16 %v2712, %v2708
        %v3157 = vpack.c.b16 %v2713, %v2709
        %v3158 = vpack.c.b16 %v2718, %v2714
        %v3159 = vpack.c.b16 %v2719, %v2715
        %v3160 = vpack.c.b16 %v2720, %v2716
        %v3161 = vpack.c.b16 %v2721, %v2717
        %v3162 = vpack.c.b16 %v2726, %v2722
        %v3163 = vpack.c.b16 %v2727, %v2723
        %v3164 = vpack.c.b16 %v2728, %v2724
        %v3165 = vpack.c.b16 %v2729, %v2725
        %v3166 = vpack.c.b16 %v2734, %v2730
        %v3167 = vpack.c.b16 %v2735, %v2731
        %v3168 = vpack.c.b16 %v2736, %v2732
        %v3169 = vpack.c.b16 %v2737, %v2733
        %v3170 = vpack.c.b16 %v2742, %v2738
        %v3171 = vpack.c.b16 %v2743, %v2739
        %v3172 = vpack.c.b16 %v2744, %v2740
        %v3173 = vpack.c.b16 %v2745, %v2741
        %v3174 = vpack.c.b16 %v2750, %v2746
        %v3175 = vpack.c.b16 %v2751, %v2747
        %v3176 = vpack.c.b16 %v2752, %v2748
        %v3177 = vpack.c.b16 %v2753, %v2749
        %v3178 = vpack.c.b16 %v2758, %v2754
        %v3179 = vpack.c.b16 %v2759, %v2755
        %v3180 = vpack.c.b16 %v2760, %v2756
        %v3181 = vpack.c.b16 %v2761, %v2757
        %v3182 = vpack.c.b16 %v2766, %v2762
        %v3183 = vpack.c.b16 %v2767, %v2763
        %v3184 = vpack.c.b16 %v2768, %v2764
        %v3185 = vpack.c.b16 %v2769, %v2765
        %v3186 = vpack.c.b16 %v2774, %v2770
        %v3187 = vpack.c.b16 %v2775, %v2771
        %v3188 = vpack.c.b16 %v2776, %v2772
        %v3189 = vpack.c.b16 %v2777, %v2773
        %v3190 = vpack.c.b16 %v2782, %v2778
        %v3191 = vpack.c.b16 %v2783, %v2779
        %v3192 = vpack.c.b16 %v2784, %v2780
        %v3193 = vpack.c.b16 %v2785, %v2781
        %v3194 = vpack.c.b16 %v2790, %v2786
        %v3195 = vpack.c.b16 %v2791, %v2787
        %v3196 = vpack.c.b16 %v2792, %v2788
        %v3197 = vpack.c.b16 %v2793, %v2789
        %v3198 = vpack.c.b16 %v2798, %v2794
        %v3199 = vpack.c.b16 %v2799, %v2795
        %v3200 = vpack.c.b16 %v2800, %v2796
        %v3201 = vpack.c.b16 %v2801, %v2797
        %v3202 = vpack.c.b16 %v2806, %v2802
        %v3203 = vpack.c.b16 %v2807, %v2803
        %v3204 = vpack.c.b16 %v2808, %v2804
        %v3205 = vpack.c.b16 %v2809, %v2805
        %v3206 = vpack.c.b16 %v2814, %v2810
        %v3207 = vpack.c.b16 %v2815, %v2811
        %v3208 = vpack.c.b16 %v2816, %v2812
        %v3209 = vpack.c.b16 %v2817, %v2813
        %v3210 = vpack.c.b16 %v2822, %v2818
        %v3211 = vpack.c.b16 %v2823, %v2819
        %v3212 = vpack.c.b16 %v2824, %v2820
        %v3213 = vpack.c.b16 %v2825, %v2821
        %v3214 = vpack.c.b16 %v2830, %v2826
        %v3215 = vpack.c.b16 %v2831, %v2827
        %v3216 = vpack.c.b16 %v2832, %v2828
        %v3217 = vpack.c.b16 %v2833, %v2829
        %3602 = vmatprep.subr.bf16.mxu0 %v2835
        %3603 = vmatpush1.bf16.msra.mxu0 %v2834
        %3604 = vmatprep.subr.bf16.mxu0 %v2839
        %3605 = vmatpush1.bf16.msra.mxu0 %v2838
        %3606 = vmatprep.subr.bf16.mxu0 %v2843
        %3607 = vmatpush1.bf16.msra.mxu0 %v2842
        %3608 = vmatprep.subr.bf16.mxu0 %v2847
        %3609 = vmatpush1.bf16.msra.mxu0 %v2846
        %3610 = vmatprep.subr.bf16.mxu0 %v2851
        %3611 = vmatpush1.bf16.msra.mxu0 %v2850
        %3612 = vmatprep.subr.bf16.mxu0 %v2855
        %3613 = vmatpush1.bf16.msra.mxu0 %v2854
        %3614 = vmatprep.subr.bf16.mxu0 %v2859
        %3615 = vmatpush1.bf16.msra.mxu0 %v2858
        %3616 = vmatprep.subr.bf16.mxu0 %v2863
        %3617 = vmatpush1.bf16.msra.mxu0 %v2862
        %3618 = vmatprep.subr.bf16.mxu0 %v2867
        %3619 = vmatpush1.bf16.msra.mxu0 %v2866
        %3620 = vmatprep.subr.bf16.mxu0 %v2871
        %3621 = vmatpush1.bf16.msra.mxu0 %v2870
        %3622 = vmatprep.subr.bf16.mxu0 %v2875
        %3623 = vmatpush1.bf16.msra.mxu0 %v2874
        %3624 = vmatprep.subr.bf16.mxu0 %v2879
        %3625 = vmatpush1.bf16.msra.mxu0 %v2878
        %3626 = vmatprep.subr.bf16.mxu0 %v2883
        %3627 = vmatpush1.bf16.msra.mxu0 %v2882
        %3628 = vmatprep.subr.bf16.mxu0 %v2887
        %3629 = vmatpush1.bf16.msra.mxu0 %v2886
        %3630 = vmatprep.subr.bf16.mxu0 %v2891
        %3631 = vmatpush1.bf16.msra.mxu0 %v2890
        %3632 = vmatprep.subr.bf16.mxu0 %v2895
        %3633 = vmatpush1.bf16.msra.mxu0 %v2894
        %3634 = vmatprep.mubr.bf16.mxu0 %v1139
        %3635 = vmatmul.mubr.bf16.gmra.mrb[0].mxu0 %v1122
        %v3636 = vpop.f32.mrb[0].mxu0
        %v3637 = vadd.f32 0.0, %v3636
        %v3638 = vpop.f32.mrb[0].mxu0
        %v3639 = vadd.f32 0.0, %v3638
        %v3640 = vpop.f32.mrb[0].mxu0
        %v3641 = vadd.f32 0.0, %v3640
        %v3642 = vpop.f32.mrb[0].mxu0
        %v3643 = vadd.f32 0.0, %v3642
        %3644 = vmatprep.mubr.bf16.mxu0 %v1327
        %3645 = vmatmul.mubr.bf16.gmra.mrb[0].mxu0 %v1318
        %v3646 = vpop.f32.mrb[0].mxu0
        %v3647 = vadd.f32 0.0, %v3646
        %v3648 = vpop.f32.mrb[0].mxu0
        %v3649 = vadd.f32 0.0, %v3648
        %v3650 = vpop.f32.mrb[0].mxu0
        %v3651 = vadd.f32 0.0, %v3650
        %v3652 = vpop.f32.mrb[0].mxu0
        %v3653 = vadd.f32 0.0, %v3652
        %3654 = vmatprep.mubr.bf16.mxu0 %v1435
        %3655 = vmatmul.mubr.bf16.gmra.mrb[0].mxu0 %v1426
        %v3656 = vpop.f32.mrb[0].mxu0
        %v3657 = vadd.f32 0.0, %v3656
        %v3658 = vpop.f32.mrb[0].mxu0
        %v3659 = vadd.f32 0.0, %v3658
        %v3660 = vpop.f32.mrb[0].mxu0
        %v3661 = vadd.f32 0.0, %v3660
        %v3662 = vpop.f32.mrb[0].mxu0
        %v3663 = vadd.f32 0.0, %v3662
        %3664 = vmatprep.mubr.bf16.mxu0 %v1543
        %3665 = vmatmul.mubr.bf16.gmra.mrb[0].mxu0 %v1534
        %v3666 = vpop.f32.mrb[0].mxu0
        %v3667 = vadd.f32 0.0, %v3666
        %v3668 = vpop.f32.mrb[0].mxu0
        %v3669 = vadd.f32 0.0, %v3668
        %v3670 = vpop.f32.mrb[0].mxu0
        %v3671 = vadd.f32 0.0, %v3670
        %v3672 = vpop.f32.mrb[0].mxu0
        %v3673 = vadd.f32 0.0, %v3672
        %3674 = vdwg.mxu0
        %3675 = vmatprep.subr.bf16.mxu0 %v2899
        %3676 = vmatpush1.bf16.msra.mxu0 %v2898
        %3677 = vmatprep.subr.bf16.mxu0 %v2903
        %3678 = vmatpush1.bf16.msra.mxu0 %v2902
        %3679 = vmatprep.subr.bf16.mxu0 %v2907
        %3680 = vmatpush1.bf16.msra.mxu0 %v2906
        %3681 = vmatprep.subr.bf16.mxu0 %v2911
        %3682 = vmatpush1.bf16.msra.mxu0 %v2910
        %3683 = vmatprep.subr.bf16.mxu0 %v2915
        %3684 = vmatpush1.bf16.msra.mxu0 %v2914
        %3685 = vmatprep.subr.bf16.mxu0 %v2919
        %3686 = vmatpush1.bf16.msra.mxu0 %v2918
        %3687 = vmatprep.subr.bf16.mxu0 %v2923
        %3688 = vmatpush1.bf16.msra.mxu0 %v2922
        %3689 = vmatprep.subr.bf16.mxu0 %v2927
        %3690 = vmatpush1.bf16.msra.mxu0 %v2926
        %3691 = vmatprep.subr.bf16.mxu0 %v2931
        %3692 = vmatpush1.bf16.msra.mxu0 %v2930
        %3693 = vmatprep.subr.bf16.mxu0 %v2935
        %3694 = vmatpush1.bf16.msra.mxu0 %v2934
        %3695 = vmatprep.subr.bf16.mxu0 %v2939
        %3696 = vmatpush1.bf16.msra.mxu0 %v2938
        %3697 = vmatprep.subr.bf16.mxu0 %v2943
        %3698 = vmatpush1.bf16.msra.mxu0 %v2942
        %3699 = vmatprep.subr.bf16.mxu0 %v2947
        %3700 = vmatpush1.bf16.msra.mxu0 %v2946
        %3701 = vmatprep.subr.bf16.mxu0 %v2951
        %3702 = vmatpush1.bf16.msra.mxu0 %v2950
        %3703 = vmatprep.subr.bf16.mxu0 %v2955
        %3704 = vmatpush1.bf16.msra.mxu0 %v2954
        %3705 = vmatprep.subr.bf16.mxu0 %v2959
        %3706 = vmatpush1.bf16.msra.mxu0 %v2958
        %3707 = vmatprep.mubr.bf16.mxu0 %v1173
        %3708 = vmatmul.mubr.bf16.gmra.mrb[0].mxu0 %v1156
        %v3709 = vpop.f32.mrb[0].mxu0
        %v3710 = vadd.f32 %v3637, %v3709
        %v3711 = vpop.f32.mrb[0].mxu0
        %v3712 = vadd.f32 %v3639, %v3711
        %v3713 = vpop.f32.mrb[0].mxu0
        %v3714 = vadd.f32 %v3641, %v3713
        %v3715 = vpop.f32.mrb[0].mxu0
        %v3716 = vadd.f32 %v3643, %v3715
        %3717 = vmatprep.mubr.bf16.mxu0 %v1345
        %3718 = vmatmul.mubr.bf16.gmra.mrb[0].mxu0 %v1336
        %v3719 = vpop.f32.mrb[0].mxu0
        %v3720 = vadd.f32 %v3647, %v3719
        %v3721 = vpop.f32.mrb[0].mxu0
        %v3722 = vadd.f32 %v3649, %v3721
        %v3723 = vpop.f32.mrb[0].mxu0
        %v3724 = vadd.f32 %v3651, %v3723
        %v3725 = vpop.f32.mrb[0].mxu0
        %v3726 = vadd.f32 %v3653, %v3725
        %3727 = vmatprep.mubr.bf16.mxu0 %v1453
        %3728 = vmatmul.mubr.bf16.gmra.mrb[0].mxu0 %v1444
        %v3729 = vpop.f32.mrb[0].mxu0
        %v3730 = vadd.f32 %v3657, %v3729
        %v3731 = vpop.f32.mrb[0].mxu0
        %v3732 = vadd.f32 %v3659, %v3731
        %v3733 = vpop.f32.mrb[0].mxu0
        %v3734 = vadd.f32 %v3661, %v3733
        %v3735 = vpop.f32.mrb[0].mxu0
        %v3736 = vadd.f32 %v3663, %v3735
        %3737 = vmatprep.mubr.bf16.mxu0 %v1561
        %3738 = vmatmul.mubr.bf16.gmra.mrb[0].mxu0 %v1552
        %v3739 = vpop.f32.mrb[0].mxu0
        %v3740 = vadd.f32 %v3667, %v3739
        %v3741 = vpop.f32.mrb[0].mxu0
        %v3742 = vadd.f32 %v3669, %v3741
        %v3743 = vpop.f32.mrb[0].mxu0
        %v3744 = vadd.f32 %v3671, %v3743
        %v3745 = vpop.f32.mrb[0].mxu0
        %v3746 = vadd.f32 %v3673, %v3745
        %3747 = vdwg.mxu0
        %3748 = vmatprep.subr.bf16.mxu0 %v2963
        %3749 = vmatpush1.bf16.msra.mxu0 %v2962
        %3750 = vmatprep.subr.bf16.mxu0 %v2967
        %3751 = vmatpush1.bf16.msra.mxu0 %v2966
        %3752 = vmatprep.subr.bf16.mxu0 %v2971
        %3753 = vmatpush1.bf16.msra.mxu0 %v2970
        %3754 = vmatprep.subr.bf16.mxu0 %v2975
        %3755 = vmatpush1.bf16.msra.mxu0 %v2974
        %3756 = vmatprep.subr.bf16.mxu0 %v2979
        %3757 = vmatpush1.bf16.msra.mxu0 %v2978
        %3758 = vmatprep.subr.bf16.mxu0 %v2983
        %3759 = vmatpush1.bf16.msra.mxu0 %v2982
        %3760 = vmatprep.subr.bf16.mxu0 %v2987
        %3761 = vmatpush1.bf16.msra.mxu0 %v2986
        %3762 = vmatprep.subr.bf16.mxu0 %v2991
        %3763 = vmatpush1.bf16.msra.mxu0 %v2990
        %3764 = vmatprep.subr.bf16.mxu0 %v2995
        %3765 = vmatpush1.bf16.msra.mxu0 %v2994
        %3766 = vmatprep.subr.bf16.mxu0 %v2999
        %3767 = vmatpush1.bf16.msra.mxu0 %v2998
        %3768 = vmatprep.subr.bf16.mxu0 %v3003
        %3769 = vmatpush1.bf16.msra.mxu0 %v3002
        %3770 = vmatprep.subr.bf16.mxu0 %v3007
        %3771 = vmatpush1.bf16.msra.mxu0 %v3006
        %3772 = vmatprep.subr.bf16.mxu0 %v3011
        %3773 = vmatpush1.bf16.msra.mxu0 %v3010
        %3774 = vmatprep.subr.bf16.mxu0 %v3015
        %3775 = vmatpush1.bf16.msra.mxu0 %v3014
        %3776 = vmatprep.subr.bf16.mxu0 %v3019
        %3777 = vmatpush1.bf16.msra.mxu0 %v3018
        %3778 = vmatprep.subr.bf16.mxu0 %v3023
        %3779 = vmatpush1.bf16.msra.mxu0 %v3022
        %3780 = vmatprep.mubr.bf16.mxu0 %v1207
        %3781 = vmatmul.mubr.bf16.gmra.mrb[0].mxu0 %v1190
        %v3782 = vpop.f32.mrb[0].mxu0
        %v3783 = vadd.f32 %v3710, %v3782
        %v3784 = vpop.f32.mrb[0].mxu0
        %v3785 = vadd.f32 %v3712, %v3784
        %v3786 = vpop.f32.mrb[0].mxu0
        %v3787 = vadd.f32 %v3714, %v3786
        %v3788 = vpop.f32.mrb[0].mxu0
        %v3789 = vadd.f32 %v3716, %v3788
        %3790 = vmatprep.mubr.bf16.mxu0 %v1363
        %3791 = vmatmul.mubr.bf16.gmra.mrb[0].mxu0 %v1354
        %v3792 = vpop.f32.mrb[0].mxu0
        %v3793 = vadd.f32 %v3720, %v3792
        %v3794 = vpop.f32.mrb[0].mxu0
        %v3795 = vadd.f32 %v3722, %v3794
        %v3796 = vpop.f32.mrb[0].mxu0
        %v3797 = vadd.f32 %v3724, %v3796
        %v3798 = vpop.f32.mrb[0].mxu0
        %v3799 = vadd.f32 %v3726, %v3798
        %3800 = vmatprep.mubr.bf16.mxu0 %v1471
        %3801 = vmatmul.mubr.bf16.gmra.mrb[0].mxu0 %v1462
        %v3802 = vpop.f32.mrb[0].mxu0
        %v3803 = vadd.f32 %v3730, %v3802
        %v3804 = vpop.f32.mrb[0].mxu0
        %v3805 = vadd.f32 %v3732, %v3804
        %v3806 = vpop.f32.mrb[0].mxu0
        %v3807 = vadd.f32 %v3734, %v3806
        %v3808 = vpop.f32.mrb[0].mxu0
        %v3809 = vadd.f32 %v3736, %v3808
        %3810 = vmatprep.mubr.bf16.mxu0 %v1579
        %3811 = vmatmul.mubr.bf16.gmra.mrb[0].mxu0 %v1570
        %v3812 = vpop.f32.mrb[0].mxu0
        %v3813 = vadd.f32 %v3740, %v3812
        %v3814 = vpop.f32.mrb[0].mxu0
        %v3815 = vadd.f32 %v3742, %v3814
        %v3816 = vpop.f32.mrb[0].mxu0
        %v3817 = vadd.f32 %v3744, %v3816
        %v3818 = vpop.f32.mrb[0].mxu0
        %v3819 = vadd.f32 %v3746, %v3818
        %3820 = vdwg.mxu0
        %3821 = vmatprep.subr.bf16.mxu0 %v3027
        %3822 = vmatpush1.bf16.msra.mxu0 %v3026
        %3823 = vmatprep.subr.bf16.mxu0 %v3031
        %3824 = vmatpush1.bf16.msra.mxu0 %v3030
        %3825 = vmatprep.subr.bf16.mxu0 %v3035
        %3826 = vmatpush1.bf16.msra.mxu0 %v3034
        %3827 = vmatprep.subr.bf16.mxu0 %v3039
        %3828 = vmatpush1.bf16.msra.mxu0 %v3038
        %3829 = vmatprep.subr.bf16.mxu0 %v3043
        %3830 = vmatpush1.bf16.msra.mxu0 %v3042
        %3831 = vmatprep.subr.bf16.mxu0 %v3047
        %3832 = vmatpush1.bf16.msra.mxu0 %v3046
        %3833 = vmatprep.subr.bf16.mxu0 %v3051
        %3834 = vmatpush1.bf16.msra.mxu0 %v3050
        %3835 = vmatprep.subr.bf16.mxu0 %v3055
        %3836 = vmatpush1.bf16.msra.mxu0 %v3054
        %3837 = vmatprep.subr.bf16.mxu0 %v3059
        %3838 = vmatpush1.bf16.msra.mxu0 %v3058
        %3839 = vmatprep.subr.bf16.mxu0 %v3063
        %3840 = vmatpush1.bf16.msra.mxu0 %v3062
        %3841 = vmatprep.subr.bf16.mxu0 %v3067
        %3842 = vmatpush1.bf16.msra.mxu0 %v3066
        %3843 = vmatprep.subr.bf16.mxu0 %v3071
        %3844 = vmatpush1.bf16.msra.mxu0 %v3070
        %3845 = vmatprep.subr.bf16.mxu0 %v3075
        %3846 = vmatpush1.bf16.msra.mxu0 %v3074
        %3847 = vmatprep.subr.bf16.mxu0 %v3079
        %3848 = vmatpush1.bf16.msra.mxu0 %v3078
        %3849 = vmatprep.subr.bf16.mxu0 %v3083
        %3850 = vmatpush1.bf16.msra.mxu0 %v3082
        %3851 = vmatprep.subr.bf16.mxu0 %v3087
        %3852 = vmatpush1.bf16.msra.mxu0 %v3086
        %3853 = vmatprep.mubr.bf16.mxu0 %v1241
        %3854 = vmatmul.mubr.bf16.gmra.mrb[0].mxu0 %v1224
        %v3855 = vpop.f32.mrb[0].mxu0
        %v3856 = vadd.f32 %v3783, %v3855
        %v3857 = vpop.f32.mrb[0].mxu0
        %v3858 = vadd.f32 %v3785, %v3857
        %v3859 = vpop.f32.mrb[0].mxu0
        %v3860 = vadd.f32 %v3787, %v3859
        %v3861 = vpop.f32.mrb[0].mxu0
        %v3862 = vadd.f32 %v3789, %v3861
        %3863 = vmatprep.mubr.bf16.mxu0 %v1381
        %3864 = vmatmul.mubr.bf16.gmra.mrb[0].mxu0 %v1372
        %v3865 = vpop.f32.mrb[0].mxu0
        %v3866 = vadd.f32 %v3793, %v3865
        %v3867 = vpop.f32.mrb[0].mxu0
        %v3868 = vadd.f32 %v3795, %v3867
        %v3869 = vpop.f32.mrb[0].mxu0
        %v3870 = vadd.f32 %v3797, %v3869
        %v3871 = vpop.f32.mrb[0].mxu0
        %v3872 = vadd.f32 %v3799, %v3871
        %3873 = vmatprep.mubr.bf16.mxu0 %v1489
        %3874 = vmatmul.mubr.bf16.gmra.mrb[0].mxu0 %v1480
        %v3875 = vpop.f32.mrb[0].mxu0
        %v3876 = vadd.f32 %v3803, %v3875
        %v3877 = vpop.f32.mrb[0].mxu0
        %v3878 = vadd.f32 %v3805, %v3877
        %v3879 = vpop.f32.mrb[0].mxu0
        %v3880 = vadd.f32 %v3807, %v3879
        %v3881 = vpop.f32.mrb[0].mxu0
        %v3882 = vadd.f32 %v3809, %v3881
        %3883 = vmatprep.mubr.bf16.mxu0 %v1597
        %3884 = vmatmul.mubr.bf16.gmra.mrb[0].mxu0 %v1588
        %v3885 = vpop.f32.mrb[0].mxu0
        %v3886 = vadd.f32 %v3813, %v3885
        %v3887 = vpop.f32.mrb[0].mxu0
        %v3888 = vadd.f32 %v3815, %v3887
        %v3889 = vpop.f32.mrb[0].mxu0
        %v3890 = vadd.f32 %v3817, %v3889
        %v3891 = vpop.f32.mrb[0].mxu0
        %v3892 = vadd.f32 %v3819, %v3891
        %3893 = vdwg.mxu0
        %3894 = vmatprep.subr.bf16.mxu0 %v3091
        %3895 = vmatpush1.bf16.msra.mxu0 %v3090
        %3896 = vmatprep.subr.bf16.mxu0 %v3095
        %3897 = vmatpush1.bf16.msra.mxu0 %v3094
        %3898 = vmatprep.subr.bf16.mxu0 %v3099
        %3899 = vmatpush1.bf16.msra.mxu0 %v3098
        %3900 = vmatprep.subr.bf16.mxu0 %v3103
        %3901 = vmatpush1.bf16.msra.mxu0 %v3102
        %3902 = vmatprep.subr.bf16.mxu0 %v3107
        %3903 = vmatpush1.bf16.msra.mxu0 %v3106
        %3904 = vmatprep.subr.bf16.mxu0 %v3111
        %3905 = vmatpush1.bf16.msra.mxu0 %v3110
        %3906 = vmatprep.subr.bf16.mxu0 %v3115
        %3907 = vmatpush1.bf16.msra.mxu0 %v3114
        %3908 = vmatprep.subr.bf16.mxu0 %v3119
        %3909 = vmatpush1.bf16.msra.mxu0 %v3118
        %3910 = vmatprep.subr.bf16.mxu0 %v3123
        %3911 = vmatpush1.bf16.msra.mxu0 %v3122
        %3912 = vmatprep.subr.bf16.mxu0 %v3127
        %3913 = vmatpush1.bf16.msra.mxu0 %v3126
        %3914 = vmatprep.subr.bf16.mxu0 %v3131
        %3915 = vmatpush1.bf16.msra.mxu0 %v3130
        %3916 = vmatprep.subr.bf16.mxu0 %v3135
        %3917 = vmatpush1.bf16.msra.mxu0 %v3134
        %3918 = vmatprep.subr.bf16.mxu0 %v3139
        %3919 = vmatpush1.bf16.msra.mxu0 %v3138
        %3920 = vmatprep.subr.bf16.mxu0 %v3143
        %3921 = vmatpush1.bf16.msra.mxu0 %v3142
        %3922 = vmatprep.subr.bf16.mxu0 %v3147
        %3923 = vmatpush1.bf16.msra.mxu0 %v3146
        %3924 = vmatprep.subr.bf16.mxu0 %v3151
        %3925 = vmatpush1.bf16.msra.mxu0 %v3150
        %3926 = vmatprep.mubr.bf16.mxu0 %v1275
        %3927 = vmatmul.mubr.bf16.gmra.mrb[0].mxu0 %v1258
        %v3928 = vpop.f32.mrb[0].mxu0
        %v3929 = vadd.f32 %v3856, %v3928
        %v3930 = vpop.f32.mrb[0].mxu0
        %v3931 = vadd.f32 %v3858, %v3930
        %v3932 = vpop.f32.mrb[0].mxu0
        %v3933 = vadd.f32 %v3860, %v3932
        %v3934 = vpop.f32.mrb[0].mxu0
        %v3935 = vadd.f32 %v3862, %v3934
        %3936 = vmatprep.mubr.bf16.mxu0 %v1399
        %3937 = vmatmul.mubr.bf16.gmra.mrb[0].mxu0 %v1390
        %v3938 = vpop.f32.mrb[0].mxu0
        %v3939 = vadd.f32 %v3866, %v3938
        %v3940 = vpop.f32.mrb[0].mxu0
        %v3941 = vadd.f32 %v3868, %v3940
        %v3942 = vpop.f32.mrb[0].mxu0
        %v3943 = vadd.f32 %v3870, %v3942
        %v3944 = vpop.f32.mrb[0].mxu0
        %v3945 = vadd.f32 %v3872, %v3944
        %3946 = vmatprep.mubr.bf16.mxu0 %v1507
        %3947 = vmatmul.mubr.bf16.gmra.mrb[0].mxu0 %v1498
        %v3948 = vpop.f32.mrb[0].mxu0
        %v3949 = vadd.f32 %v3876, %v3948
        %v3950 = vpop.f32.mrb[0].mxu0
        %v3951 = vadd.f32 %v3878, %v3950
        %v3952 = vpop.f32.mrb[0].mxu0
        %v3953 = vadd.f32 %v3880, %v3952
        %v3954 = vpop.f32.mrb[0].mxu0
        %v3955 = vadd.f32 %v3882, %v3954
        %3956 = vmatprep.mubr.bf16.mxu0 %v1615
        %3957 = vmatmul.mubr.bf16.gmra.mrb[0].mxu0 %v1606
        %v3958 = vpop.f32.mrb[0].mxu0
        %v3959 = vadd.f32 %v3886, %v3958
        %v3960 = vpop.f32.mrb[0].mxu0
        %v3961 = vadd.f32 %v3888, %v3960
        %v3962 = vpop.f32.mrb[0].mxu0
        %v3963 = vadd.f32 %v3890, %v3962
        %v3964 = vpop.f32.mrb[0].mxu0
        %v3965 = vadd.f32 %v3892, %v3964
        %3966 = vdwg.mxu0
        %3967 = vmatprep.subr.bf16.mxu0 %v3155
        %3968 = vmatpush1.bf16.msra.mxu0 %v3154
        %3969 = vmatprep.subr.bf16.mxu0 %v3159
        %3970 = vmatpush1.bf16.msra.mxu0 %v3158
        %3971 = vmatprep.subr.bf16.mxu0 %v3163
        %3972 = vmatpush1.bf16.msra.mxu0 %v3162
        %3973 = vmatprep.subr.bf16.mxu0 %v3167
        %3974 = vmatpush1.bf16.msra.mxu0 %v3166
        %3975 = vmatprep.subr.bf16.mxu0 %v3171
        %3976 = vmatpush1.bf16.msra.mxu0 %v3170
        %3977 = vmatprep.subr.bf16.mxu0 %v3175
        %3978 = vmatpush1.bf16.msra.mxu0 %v3174
        %3979 = vmatprep.subr.bf16.mxu0 %v3179
        %3980 = vmatpush1.bf16.msra.mxu0 %v3178
        %3981 = vmatprep.subr.bf16.mxu0 %v3183
        %3982 = vmatpush1.bf16.msra.mxu0 %v3182
        %3983 = vmatprep.subr.bf16.mxu0 %v3187
        %3984 = vmatpush1.bf16.msra.mxu0 %v3186
        %3985 = vmatprep.subr.bf16.mxu0 %v3191
        %3986 = vmatpush1.bf16.msra.mxu0 %v3190
        %3987 = vmatprep.subr.bf16.mxu0 %v3195
        %3988 = vmatpush1.bf16.msra.mxu0 %v3194
        %3989 = vmatprep.subr.bf16.mxu0 %v3199
        %3990 = vmatpush1.bf16.msra.mxu0 %v3198
        %3991 = vmatprep.subr.bf16.mxu0 %v3203
        %3992 = vmatpush1.bf16.msra.mxu0 %v3202
        %3993 = vmatprep.subr.bf16.mxu0 %v3207
        %3994 = vmatpush1.bf16.msra.mxu0 %v3206
        %3995 = vmatprep.subr.bf16.mxu0 %v3211
        %3996 = vmatpush1.bf16.msra.mxu0 %v3210
        %3997 = vmatprep.subr.bf16.mxu0 %v3215
        %3998 = vmatpush1.bf16.msra.mxu0 %v3214
        %3999 = vmatprep.mubr.bf16.mxu0 %v1309
        %4000 = vmatmul.mubr.bf16.gmra.mrb[0].mxu0 %v1292
        %v4001 = vpop.f32.mrb[0].mxu0
        %v4002 = vadd.f32 %v3929, %v4001
        %v4003 = vpop.f32.mrb[0].mxu0
        %v4004 = vadd.f32 %v3931, %v4003
        %v4005 = vpop.f32.mrb[0].mxu0
        %v4006 = vadd.f32 %v3933, %v4005
        %v4007 = vpop.f32.mrb[0].mxu0
        %v4008 = vadd.f32 %v3935, %v4007
        %4009 = vmatprep.mubr.bf16.mxu0 %v1417
        %4010 = vmatmul.mubr.bf16.gmra.mrb[0].mxu0 %v1408
        %v4011 = vpop.f32.mrb[0].mxu0
        %v4012 = vadd.f32 %v3939, %v4011
        %v4013 = vpop.f32.mrb[0].mxu0
        %v4014 = vadd.f32 %v3941, %v4013
        %v4015 = vpop.f32.mrb[0].mxu0
        %v4016 = vadd.f32 %v3943, %v4015
        %v4017 = vpop.f32.mrb[0].mxu0
        %v4018 = vadd.f32 %v3945, %v4017
        %4019 = vmatprep.mubr.bf16.mxu0 %v1525
        %4020 = vmatmul.mubr.bf16.gmra.mrb[0].mxu0 %v1516
        %v4021 = vpop.f32.mrb[0].mxu0
        %v4022 = vadd.f32 %v3949, %v4021
        %v4023 = vpop.f32.mrb[0].mxu0
        %v4024 = vadd.f32 %v3951, %v4023
        %v4025 = vpop.f32.mrb[0].mxu0
        %v4026 = vadd.f32 %v3953, %v4025
        %v4027 = vpop.f32.mrb[0].mxu0
        %v4028 = vadd.f32 %v3955, %v4027
        %4029 = vmatprep.mubr.bf16.mxu0 %v1633
        %4030 = vmatmul.mubr.bf16.gmra.mrb[0].mxu0 %v1624
        %v4031 = vpop.f32.mrb[0].mxu0
        %v4032 = vadd.f32 %v3959, %v4031
        %v4033 = vpop.f32.mrb[0].mxu0
        %v4034 = vadd.f32 %v3961, %v4033
        %v4035 = vpop.f32.mrb[0].mxu0
        %v4036 = vadd.f32 %v3963, %v4035
        %v4037 = vpop.f32.mrb[0].mxu0
        %v4038 = vadd.f32 %v3965, %v4037
        %4039 = vdwg.mxu0
        %4040 = vmatprep.subr.bf16.mxu0 %v2837
        %4041 = vmatpush1.bf16.msra.mxu0 %v2836
        %4042 = vmatprep.subr.bf16.mxu0 %v2841
        %4043 = vmatpush1.bf16.msra.mxu0 %v2840
        %4044 = vmatprep.subr.bf16.mxu0 %v2845
        %4045 = vmatpush1.bf16.msra.mxu0 %v2844
        %4046 = vmatprep.subr.bf16.mxu0 %v2849
        %4047 = vmatpush1.bf16.msra.mxu0 %v2848
        %4048 = vmatprep.subr.bf16.mxu0 %v2853
        %4049 = vmatpush1.bf16.msra.mxu0 %v2852
        %4050 = vmatprep.subr.bf16.mxu0 %v2857
        %4051 = vmatpush1.bf16.msra.mxu0 %v2856
        %4052 = vmatprep.subr.bf16.mxu0 %v2861
        %4053 = vmatpush1.bf16.msra.mxu0 %v2860
        %4054 = vmatprep.subr.bf16.mxu0 %v2865
        %4055 = vmatpush1.bf16.msra.mxu0 %v2864
        %4056 = vmatprep.subr.bf16.mxu0 %v2869
        %4057 = vmatpush1.bf16.msra.mxu0 %v2868
        %4058 = vmatprep.subr.bf16.mxu0 %v2873
        %4059 = vmatpush1.bf16.msra.mxu0 %v2872
        %4060 = vmatprep.subr.bf16.mxu0 %v2877
        %4061 = vmatpush1.bf16.msra.mxu0 %v2876
        %4062 = vmatprep.subr.bf16.mxu0 %v2881
        %4063 = vmatpush1.bf16.msra.mxu0 %v2880
        %4064 = vmatprep.subr.bf16.mxu0 %v2885
        %4065 = vmatpush1.bf16.msra.mxu0 %v2884
        %4066 = vmatprep.subr.bf16.mxu0 %v2889
        %4067 = vmatpush1.bf16.msra.mxu0 %v2888
        %4068 = vmatprep.subr.bf16.mxu0 %v2893
        %4069 = vmatpush1.bf16.msra.mxu0 %v2892
        %4070 = vmatprep.subr.bf16.mxu0 %v2897
        %4071 = vmatpush1.bf16.msra.mxu0 %v2896
        %4072 = vmatprep.mubr.bf16.mxu0 %v1139
        %4073 = vmatmul.mubr.bf16.gmra.mrb[0].mxu0 %v1122
        %v4074 = vpop.f32.mrb[0].mxu0
        %v4075 = vadd.f32 0.0, %v4074
        %v4076 = vpop.f32.mrb[0].mxu0
        %v4077 = vadd.f32 0.0, %v4076
        %v4078 = vpop.f32.mrb[0].mxu0
        %v4079 = vadd.f32 0.0, %v4078
        %v4080 = vpop.f32.mrb[0].mxu0
        %v4081 = vadd.f32 0.0, %v4080
        %4082 = vmatprep.mubr.bf16.mxu0 %v1327
        %4083 = vmatmul.mubr.bf16.gmra.mrb[0].mxu0 %v1318
        %v4084 = vpop.f32.mrb[0].mxu0
        %v4085 = vadd.f32 0.0, %v4084
        %v4086 = vpop.f32.mrb[0].mxu0
        %v4087 = vadd.f32 0.0, %v4086
        %v4088 = vpop.f32.mrb[0].mxu0
        %v4089 = vadd.f32 0.0, %v4088
        %v4090 = vpop.f32.mrb[0].mxu0
        %v4091 = vadd.f32 0.0, %v4090
        %4092 = vmatprep.mubr.bf16.mxu0 %v1435
        %4093 = vmatmul.mubr.bf16.gmra.mrb[0].mxu0 %v1426
        %v4094 = vpop.f32.mrb[0].mxu0
        %v4095 = vadd.f32 0.0, %v4094
        %v4096 = vpop.f32.mrb[0].mxu0
        %v4097 = vadd.f32 0.0, %v4096
        %v4098 = vpop.f32.mrb[0].mxu0
        %v4099 = vadd.f32 0.0, %v4098
        %v4100 = vpop.f32.mrb[0].mxu0
        %v4101 = vadd.f32 0.0, %v4100
        %4102 = vmatprep.mubr.bf16.mxu0 %v1543
        %4103 = vmatmul.mubr.bf16.gmra.mrb[0].mxu0 %v1534
        %v4104 = vpop.f32.mrb[0].mxu0
        %v4105 = vadd.f32 0.0, %v4104
        %v4106 = vpop.f32.mrb[0].mxu0
        %v4107 = vadd.f32 0.0, %v4106
        %v4108 = vpop.f32.mrb[0].mxu0
        %v4109 = vadd.f32 0.0, %v4108
        %v4110 = vpop.f32.mrb[0].mxu0
        %v4111 = vadd.f32 0.0, %v4110
        %4112 = vdwg.mxu0
        %4113 = vmatprep.subr.bf16.mxu0 %v2901
        %4114 = vmatpush1.bf16.msra.mxu0 %v2900
        %4115 = vmatprep.subr.bf16.mxu0 %v2905
        %4116 = vmatpush1.bf16.msra.mxu0 %v2904
        %4117 = vmatprep.subr.bf16.mxu0 %v2909
        %4118 = vmatpush1.bf16.msra.mxu0 %v2908
        %4119 = vmatprep.subr.bf16.mxu0 %v2913
        %4120 = vmatpush1.bf16.msra.mxu0 %v2912
        %4121 = vmatprep.subr.bf16.mxu0 %v2917
        %4122 = vmatpush1.bf16.msra.mxu0 %v2916
        %4123 = vmatprep.subr.bf16.mxu0 %v2921
        %4124 = vmatpush1.bf16.msra.mxu0 %v2920
        %4125 = vmatprep.subr.bf16.mxu0 %v2925
        %4126 = vmatpush1.bf16.msra.mxu0 %v2924
        %4127 = vmatprep.subr.bf16.mxu0 %v2929
        %4128 = vmatpush1.bf16.msra.mxu0 %v2928
        %4129 = vmatprep.subr.bf16.mxu0 %v2933
        %4130 = vmatpush1.bf16.msra.mxu0 %v2932
        %4131 = vmatprep.subr.bf16.mxu0 %v2937
        %4132 = vmatpush1.bf16.msra.mxu0 %v2936
        %4133 = vmatprep.subr.bf16.mxu0 %v2941
        %4134 = vmatpush1.bf16.msra.mxu0 %v2940
        %4135 = vmatprep.subr.bf16.mxu0 %v2945
        %4136 = vmatpush1.bf16.msra.mxu0 %v2944
        %4137 = vmatprep.subr.bf16.mxu0 %v2949
        %4138 = vmatpush1.bf16.msra.mxu0 %v2948
        %4139 = vmatprep.subr.bf16.mxu0 %v2953
        %4140 = vmatpush1.bf16.msra.mxu0 %v2952
        %4141 = vmatprep.subr.bf16.mxu0 %v2957
        %4142 = vmatpush1.bf16.msra.mxu0 %v2956
        %4143 = vmatprep.subr.bf16.mxu0 %v2961
        %4144 = vmatpush1.bf16.msra.mxu0 %v2960
        %4145 = vmatprep.mubr.bf16.mxu0 %v1173
        %4146 = vmatmul.mubr.bf16.gmra.mrb[0].mxu0 %v1156
        %v4147 = vpop.f32.mrb[0].mxu0
        %v4148 = vadd.f32 %v4075, %v4147
        %v4149 = vpop.f32.mrb[0].mxu0
        %v4150 = vadd.f32 %v4077, %v4149
        %v4151 = vpop.f32.mrb[0].mxu0
        %v4152 = vadd.f32 %v4079, %v4151
        %v4153 = vpop.f32.mrb[0].mxu0
        %v4154 = vadd.f32 %v4081, %v4153
        %4155 = vmatprep.mubr.bf16.mxu0 %v1345
        %4156 = vmatmul.mubr.bf16.gmra.mrb[0].mxu0 %v1336
        %v4157 = vpop.f32.mrb[0].mxu0
        %v4158 = vadd.f32 %v4085, %v4157
        %v4159 = vpop.f32.mrb[0].mxu0
        %v4160 = vadd.f32 %v4087, %v4159
        %v4161 = vpop.f32.mrb[0].mxu0
        %v4162 = vadd.f32 %v4089, %v4161
        %v4163 = vpop.f32.mrb[0].mxu0
        %v4164 = vadd.f32 %v4091, %v4163
        %4165 = vmatprep.mubr.bf16.mxu0 %v1453
        %4166 = vmatmul.mubr.bf16.gmra.mrb[0].mxu0 %v1444
        %v4167 = vpop.f32.mrb[0].mxu0
        %v4168 = vadd.f32 %v4095, %v4167
        %v4169 = vpop.f32.mrb[0].mxu0
        %v4170 = vadd.f32 %v4097, %v4169
        %v4171 = vpop.f32.mrb[0].mxu0
        %v4172 = vadd.f32 %v4099, %v4171
        %v4173 = vpop.f32.mrb[0].mxu0
        %v4174 = vadd.f32 %v4101, %v4173
        %4175 = vmatprep.mubr.bf16.mxu0 %v1561
        %4176 = vmatmul.mubr.bf16.gmra.mrb[0].mxu0 %v1552
        %v4177 = vpop.f32.mrb[0].mxu0
        %v4178 = vadd.f32 %v4105, %v4177
        %v4179 = vpop.f32.mrb[0].mxu0
        %v4180 = vadd.f32 %v4107, %v4179
        %v4181 = vpop.f32.mrb[0].mxu0
        %v4182 = vadd.f32 %v4109, %v4181
        %v4183 = vpop.f32.mrb[0].mxu0
        %v4184 = vadd.f32 %v4111, %v4183
        %4185 = vdwg.mxu0
        %4186 = vmatprep.subr.bf16.mxu0 %v2965
        %4187 = vmatpush1.bf16.msra.mxu0 %v2964
        %4188 = vmatprep.subr.bf16.mxu0 %v2969
        %4189 = vmatpush1.bf16.msra.mxu0 %v2968
        %4190 = vmatprep.subr.bf16.mxu0 %v2973
        %4191 = vmatpush1.bf16.msra.mxu0 %v2972
        %4192 = vmatprep.subr.bf16.mxu0 %v2977
        %4193 = vmatpush1.bf16.msra.mxu0 %v2976
        %4194 = vmatprep.subr.bf16.mxu0 %v2981
        %4195 = vmatpush1.bf16.msra.mxu0 %v2980
        %4196 = vmatprep.subr.bf16.mxu0 %v2985
        %4197 = vmatpush1.bf16.msra.mxu0 %v2984
        %4198 = vmatprep.subr.bf16.mxu0 %v2989
        %4199 = vmatpush1.bf16.msra.mxu0 %v2988
        %4200 = vmatprep.subr.bf16.mxu0 %v2993
        %4201 = vmatpush1.bf16.msra.mxu0 %v2992
        %4202 = vmatprep.subr.bf16.mxu0 %v2997
        %4203 = vmatpush1.bf16.msra.mxu0 %v2996
        %4204 = vmatprep.subr.bf16.mxu0 %v3001
        %4205 = vmatpush1.bf16.msra.mxu0 %v3000
        %4206 = vmatprep.subr.bf16.mxu0 %v3005
        %4207 = vmatpush1.bf16.msra.mxu0 %v3004
        %4208 = vmatprep.subr.bf16.mxu0 %v3009
        %4209 = vmatpush1.bf16.msra.mxu0 %v3008
        %4210 = vmatprep.subr.bf16.mxu0 %v3013
        %4211 = vmatpush1.bf16.msra.mxu0 %v3012
        %4212 = vmatprep.subr.bf16.mxu0 %v3017
        %4213 = vmatpush1.bf16.msra.mxu0 %v3016
        %4214 = vmatprep.subr.bf16.mxu0 %v3021
        %4215 = vmatpush1.bf16.msra.mxu0 %v3020
        %4216 = vmatprep.subr.bf16.mxu0 %v3025
        %4217 = vmatpush1.bf16.msra.mxu0 %v3024
        %4218 = vmatprep.mubr.bf16.mxu0 %v1207
        %4219 = vmatmul.mubr.bf16.gmra.mrb[0].mxu0 %v1190
        %v4220 = vpop.f32.mrb[0].mxu0
        %v4221 = vadd.f32 %v4148, %v4220
        %v4222 = vpop.f32.mrb[0].mxu0
        %v4223 = vadd.f32 %v4150, %v4222
        %v4224 = vpop.f32.mrb[0].mxu0
        %v4225 = vadd.f32 %v4152, %v4224
        %v4226 = vpop.f32.mrb[0].mxu0
        %v4227 = vadd.f32 %v4154, %v4226
        %4228 = vmatprep.mubr.bf16.mxu0 %v1363
        %4229 = vmatmul.mubr.bf16.gmra.mrb[0].mxu0 %v1354
        %v4230 = vpop.f32.mrb[0].mxu0
        %v4231 = vadd.f32 %v4158, %v4230
        %v4232 = vpop.f32.mrb[0].mxu0
        %v4233 = vadd.f32 %v4160, %v4232
        %v4234 = vpop.f32.mrb[0].mxu0
        %v4235 = vadd.f32 %v4162, %v4234
        %v4236 = vpop.f32.mrb[0].mxu0
        %v4237 = vadd.f32 %v4164, %v4236
        %4238 = vmatprep.mubr.bf16.mxu0 %v1471
        %4239 = vmatmul.mubr.bf16.gmra.mrb[0].mxu0 %v1462
        %v4240 = vpop.f32.mrb[0].mxu0
        %v4241 = vadd.f32 %v4168, %v4240
        %v4242 = vpop.f32.mrb[0].mxu0
        %v4243 = vadd.f32 %v4170, %v4242
        %v4244 = vpop.f32.mrb[0].mxu0
        %v4245 = vadd.f32 %v4172, %v4244
        %v4246 = vpop.f32.mrb[0].mxu0
        %v4247 = vadd.f32 %v4174, %v4246
        %4248 = vmatprep.mubr.bf16.mxu0 %v1579
        %4249 = vmatmul.mubr.bf16.gmra.mrb[0].mxu0 %v1570
        %v4250 = vpop.f32.mrb[0].mxu0
        %v4251 = vadd.f32 %v4178, %v4250
        %v4252 = vpop.f32.mrb[0].mxu0
        %v4253 = vadd.f32 %v4180, %v4252
        %v4254 = vpop.f32.mrb[0].mxu0
        %v4255 = vadd.f32 %v4182, %v4254
        %v4256 = vpop.f32.mrb[0].mxu0
        %v4257 = vadd.f32 %v4184, %v4256
        %4258 = vdwg.mxu0
        %4259 = vmatprep.subr.bf16.mxu0 %v3029
        %4260 = vmatpush1.bf16.msra.mxu0 %v3028
        %4261 = vmatprep.subr.bf16.mxu0 %v3033
        %4262 = vmatpush1.bf16.msra.mxu0 %v3032
        %4263 = vmatprep.subr.bf16.mxu0 %v3037
        %4264 = vmatpush1.bf16.msra.mxu0 %v3036
        %4265 = vmatprep.subr.bf16.mxu0 %v3041
        %4266 = vmatpush1.bf16.msra.mxu0 %v3040
        %4267 = vmatprep.subr.bf16.mxu0 %v3045
        %4268 = vmatpush1.bf16.msra.mxu0 %v3044
        %4269 = vmatprep.subr.bf16.mxu0 %v3049
        %4270 = vmatpush1.bf16.msra.mxu0 %v3048
        %4271 = vmatprep.subr.bf16.mxu0 %v3053
        %4272 = vmatpush1.bf16.msra.mxu0 %v3052
        %4273 = vmatprep.subr.bf16.mxu0 %v3057
        %4274 = vmatpush1.bf16.msra.mxu0 %v3056
        %4275 = vmatprep.subr.bf16.mxu0 %v3061
        %4276 = vmatpush1.bf16.msra.mxu0 %v3060
        %4277 = vmatprep.subr.bf16.mxu0 %v3065
        %4278 = vmatpush1.bf16.msra.mxu0 %v3064
        %4279 = vmatprep.subr.bf16.mxu0 %v3069
        %4280 = vmatpush1.bf16.msra.mxu0 %v3068
        %4281 = vmatprep.subr.bf16.mxu0 %v3073
        %4282 = vmatpush1.bf16.msra.mxu0 %v3072
        %4283 = vmatprep.subr.bf16.mxu0 %v3077
        %4284 = vmatpush1.bf16.msra.mxu0 %v3076
        %4285 = vmatprep.subr.bf16.mxu0 %v3081
        %4286 = vmatpush1.bf16.msra.mxu0 %v3080
        %4287 = vmatprep.subr.bf16.mxu0 %v3085
        %4288 = vmatpush1.bf16.msra.mxu0 %v3084
        %4289 = vmatprep.subr.bf16.mxu0 %v3089
        %4290 = vmatpush1.bf16.msra.mxu0 %v3088
        %4291 = vmatprep.mubr.bf16.mxu0 %v1241
        %4292 = vmatmul.mubr.bf16.gmra.mrb[0].mxu0 %v1224
        %v4293 = vpop.f32.mrb[0].mxu0
        %v4294 = vadd.f32 %v4221, %v4293
        %v4295 = vpop.f32.mrb[0].mxu0
        %v4296 = vadd.f32 %v4223, %v4295
        %v4297 = vpop.f32.mrb[0].mxu0
        %v4298 = vadd.f32 %v4225, %v4297
        %v4299 = vpop.f32.mrb[0].mxu0
        %v4300 = vadd.f32 %v4227, %v4299
        %4301 = vmatprep.mubr.bf16.mxu0 %v1381
        %4302 = vmatmul.mubr.bf16.gmra.mrb[0].mxu0 %v1372
        %v4303 = vpop.f32.mrb[0].mxu0
        %v4304 = vadd.f32 %v4231, %v4303
        %v4305 = vpop.f32.mrb[0].mxu0
        %v4306 = vadd.f32 %v4233, %v4305
        %v4307 = vpop.f32.mrb[0].mxu0
        %v4308 = vadd.f32 %v4235, %v4307
        %v4309 = vpop.f32.mrb[0].mxu0
        %v4310 = vadd.f32 %v4237, %v4309
        %4311 = vmatprep.mubr.bf16.mxu0 %v1489
        %4312 = vmatmul.mubr.bf16.gmra.mrb[0].mxu0 %v1480
        %v4313 = vpop.f32.mrb[0].mxu0
        %v4314 = vadd.f32 %v4241, %v4313
        %v4315 = vpop.f32.mrb[0].mxu0
        %v4316 = vadd.f32 %v4243, %v4315
        %v4317 = vpop.f32.mrb[0].mxu0
        %v4318 = vadd.f32 %v4245, %v4317
        %v4319 = vpop.f32.mrb[0].mxu0
        %v4320 = vadd.f32 %v4247, %v4319
        %4321 = vmatprep.mubr.bf16.mxu0 %v1597
        %4322 = vmatmul.mubr.bf16.gmra.mrb[0].mxu0 %v1588
        %v4323 = vpop.f32.mrb[0].mxu0
        %v4324 = vadd.f32 %v4251, %v4323
        %v4325 = vpop.f32.mrb[0].mxu0
        %v4326 = vadd.f32 %v4253, %v4325
        %v4327 = vpop.f32.mrb[0].mxu0
        %v4328 = vadd.f32 %v4255, %v4327
        %v4329 = vpop.f32.mrb[0].mxu0
        %v4330 = vadd.f32 %v4257, %v4329
        %4331 = vdwg.mxu0
        %4332 = vmatprep.subr.bf16.mxu0 %v3093
        %4333 = vmatpush1.bf16.msra.mxu0 %v3092
        %4334 = vmatprep.subr.bf16.mxu0 %v3097
        %4335 = vmatpush1.bf16.msra.mxu0 %v3096
        %4336 = vmatprep.subr.bf16.mxu0 %v3101
        %4337 = vmatpush1.bf16.msra.mxu0 %v3100
        %4338 = vmatprep.subr.bf16.mxu0 %v3105
        %4339 = vmatpush1.bf16.msra.mxu0 %v3104
        %4340 = vmatprep.subr.bf16.mxu0 %v3109
        %4341 = vmatpush1.bf16.msra.mxu0 %v3108
        %4342 = vmatprep.subr.bf16.mxu0 %v3113
        %4343 = vmatpush1.bf16.msra.mxu0 %v3112
        %4344 = vmatprep.subr.bf16.mxu0 %v3117
        %4345 = vmatpush1.bf16.msra.mxu0 %v3116
        %4346 = vmatprep.subr.bf16.mxu0 %v3121
        %4347 = vmatpush1.bf16.msra.mxu0 %v3120
        %4348 = vmatprep.subr.bf16.mxu0 %v3125
        %4349 = vmatpush1.bf16.msra.mxu0 %v3124
        %4350 = vmatprep.subr.bf16.mxu0 %v3129
        %4351 = vmatpush1.bf16.msra.mxu0 %v3128
        %4352 = vmatprep.subr.bf16.mxu0 %v3133
        %4353 = vmatpush1.bf16.msra.mxu0 %v3132
        %4354 = vmatprep.subr.bf16.mxu0 %v3137
        %4355 = vmatpush1.bf16.msra.mxu0 %v3136
        %4356 = vmatprep.subr.bf16.mxu0 %v3141
        %4357 = vmatpush1.bf16.msra.mxu0 %v3140
        %4358 = vmatprep.subr.bf16.mxu0 %v3145
        %4359 = vmatpush1.bf16.msra.mxu0 %v3144
        %4360 = vmatprep.subr.bf16.mxu0 %v3149
        %4361 = vmatpush1.bf16.msra.mxu0 %v3148
        %4362 = vmatprep.subr.bf16.mxu0 %v3153
        %4363 = vmatpush1.bf16.msra.mxu0 %v3152
        %4364 = vmatprep.mubr.bf16.mxu0 %v1275
        %4365 = vmatmul.mubr.bf16.gmra.mrb[0].mxu0 %v1258
        %v4366 = vpop.f32.mrb[0].mxu0
        %v4367 = vadd.f32 %v4294, %v4366
        %v4368 = vpop.f32.mrb[0].mxu0
        %v4369 = vadd.f32 %v4296, %v4368
        %v4370 = vpop.f32.mrb[0].mxu0
        %v4371 = vadd.f32 %v4298, %v4370
        %v4372 = vpop.f32.mrb[0].mxu0
        %v4373 = vadd.f32 %v4300, %v4372
        %4374 = vmatprep.mubr.bf16.mxu0 %v1399
        %4375 = vmatmul.mubr.bf16.gmra.mrb[0].mxu0 %v1390
        %v4376 = vpop.f32.mrb[0].mxu0
        %v4377 = vadd.f32 %v4304, %v4376
        %v4378 = vpop.f32.mrb[0].mxu0
        %v4379 = vadd.f32 %v4306, %v4378
        %v4380 = vpop.f32.mrb[0].mxu0
        %v4381 = vadd.f32 %v4308, %v4380
        %v4382 = vpop.f32.mrb[0].mxu0
        %v4383 = vadd.f32 %v4310, %v4382
        %4384 = vmatprep.mubr.bf16.mxu0 %v1507
        %4385 = vmatmul.mubr.bf16.gmra.mrb[0].mxu0 %v1498
        %v4386 = vpop.f32.mrb[0].mxu0
        %v4387 = vadd.f32 %v4314, %v4386
        %v4388 = vpop.f32.mrb[0].mxu0
        %v4389 = vadd.f32 %v4316, %v4388
        %v4390 = vpop.f32.mrb[0].mxu0
        %v4391 = vadd.f32 %v4318, %v4390
        %v4392 = vpop.f32.mrb[0].mxu0
        %v4393 = vadd.f32 %v4320, %v4392
        %4394 = vmatprep.mubr.bf16.mxu0 %v1615
        %4395 = vmatmul.mubr.bf16.gmra.mrb[0].mxu0 %v1606
        %v4396 = vpop.f32.mrb[0].mxu0
        %v4397 = vadd.f32 %v4324, %v4396
        %v4398 = vpop.f32.mrb[0].mxu0
        %v4399 = vadd.f32 %v4326, %v4398
        %v4400 = vpop.f32.mrb[0].mxu0
        %v4401 = vadd.f32 %v4328, %v4400
        %v4402 = vpop.f32.mrb[0].mxu0
        %v4403 = vadd.f32 %v4330, %v4402
        %4404 = vdwg.mxu0
        %4405 = vmatprep.subr.bf16.mxu0 %v3157
        %4406 = vmatpush1.bf16.msra.mxu0 %v3156
        %4407 = vmatprep.subr.bf16.mxu0 %v3161
        %4408 = vmatpush1.bf16.msra.mxu0 %v3160
        %4409 = vmatprep.subr.bf16.mxu0 %v3165
        %4410 = vmatpush1.bf16.msra.mxu0 %v3164
        %4411 = vmatprep.subr.bf16.mxu0 %v3169
        %4412 = vmatpush1.bf16.msra.mxu0 %v3168
        %4413 = vmatprep.subr.bf16.mxu0 %v3173
        %4414 = vmatpush1.bf16.msra.mxu0 %v3172
        %4415 = vmatprep.subr.bf16.mxu0 %v3177
        %4416 = vmatpush1.bf16.msra.mxu0 %v3176
        %4417 = vmatprep.subr.bf16.mxu0 %v3181
        %4418 = vmatpush1.bf16.msra.mxu0 %v3180
        %4419 = vmatprep.subr.bf16.mxu0 %v3185
        %4420 = vmatpush1.bf16.msra.mxu0 %v3184
        %4421 = vmatprep.subr.bf16.mxu0 %v3189
        %4422 = vmatpush1.bf16.msra.mxu0 %v3188
        %4423 = vmatprep.subr.bf16.mxu0 %v3193
        %4424 = vmatpush1.bf16.msra.mxu0 %v3192
        %4425 = vmatprep.subr.bf16.mxu0 %v3197
        %4426 = vmatpush1.bf16.msra.mxu0 %v3196
        %4427 = vmatprep.subr.bf16.mxu0 %v3201
        %4428 = vmatpush1.bf16.msra.mxu0 %v3200
        %4429 = vmatprep.subr.bf16.mxu0 %v3205
        %4430 = vmatpush1.bf16.msra.mxu0 %v3204
        %4431 = vmatprep.subr.bf16.mxu0 %v3209
        %4432 = vmatpush1.bf16.msra.mxu0 %v3208
        %4433 = vmatprep.subr.bf16.mxu0 %v3213
        %4434 = vmatpush1.bf16.msra.mxu0 %v3212
        %4435 = vmatprep.subr.bf16.mxu0 %v3217
        %4436 = vmatpush1.bf16.msra.mxu0 %v3216
        %4437 = vmatprep.mubr.bf16.mxu0 %v1309
        %4438 = vmatmul.mubr.bf16.gmra.mrb[0].mxu0 %v1292
        %v4439 = vpop.f32.mrb[0].mxu0
        %v4440 = vadd.f32 %v4367, %v4439
        %v4441 = vpop.f32.mrb[0].mxu0
        %v4442 = vadd.f32 %v4369, %v4441
        %v4443 = vpop.f32.mrb[0].mxu0
        %v4444 = vadd.f32 %v4371, %v4443
        %v4445 = vpop.f32.mrb[0].mxu0
        %v4446 = vadd.f32 %v4373, %v4445
        %4447 = vmatprep.mubr.bf16.mxu0 %v1417
        %4448 = vmatmul.mubr.bf16.gmra.mrb[0].mxu0 %v1408
        %v4449 = vpop.f32.mrb[0].mxu0
        %v4450 = vadd.f32 %v4377, %v4449
        %v4451 = vpop.f32.mrb[0].mxu0
        %v4452 = vadd.f32 %v4379, %v4451
        %v4453 = vpop.f32.mrb[0].mxu0
        %v4454 = vadd.f32 %v4381, %v4453
        %v4455 = vpop.f32.mrb[0].mxu0
        %v4456 = vadd.f32 %v4383, %v4455
        %4457 = vmatprep.mubr.bf16.mxu0 %v1525
        %4458 = vmatmul.mubr.bf16.gmra.mrb[0].mxu0 %v1516
        %v4459 = vpop.f32.mrb[0].mxu0
        %v4460 = vadd.f32 %v4387, %v4459
        %v4461 = vpop.f32.mrb[0].mxu0
        %v4462 = vadd.f32 %v4389, %v4461
        %v4463 = vpop.f32.mrb[0].mxu0
        %v4464 = vadd.f32 %v4391, %v4463
        %v4465 = vpop.f32.mrb[0].mxu0
        %v4466 = vadd.f32 %v4393, %v4465
        %4467 = vmatprep.mubr.bf16.mxu0 %v1633
        %4468 = vmatmul.mubr.bf16.gmra.mrb[0].mxu0 %v1624
        %v4469 = vpop.f32.mrb[0].mxu0
        %v4470 = vadd.f32 %v4397, %v4469
        %v4471 = vpop.f32.mrb[0].mxu0
        %v4472 = vadd.f32 %v4399, %v4471
        %v4473 = vpop.f32.mrb[0].mxu0
        %v4474 = vadd.f32 %v4401, %v4473
        %v4475 = vpop.f32.mrb[0].mxu0
        %v4476 = vadd.f32 %v4403, %v4475
        %4477 = vdwg.mxu0
        %4478 = vst [vmem:[#allocation3] sm:$0xff] %v4002
        %4479 = vst [vmem:[#allocation3 + $0x8] sm:$0xff] %v4004
        %4480 = vst [vmem:[#allocation3 + $0x10] sm:$0xff] %v4440
        %4481 = vst [vmem:[#allocation3 + $0x18] sm:$0xff] %v4442
        %4482 = vst [vmem:[#allocation3 + $0x20] sm:$0xff] %v4006
        %4483 = vst [vmem:[#allocation3 + $0x28] sm:$0xff] %v4008
        %4484 = vst [vmem:[#allocation3 + $0x30] sm:$0xff] %v4444
        %4485 = vst [vmem:[#allocation3 + $0x38] sm:$0xff] %v4446
        %4486 = vst [vmem:[#allocation3 + $0x40] sm:$0xff] %v4012
        %4487 = vst [vmem:[#allocation3 + $0x48] sm:$0xff] %v4014
        %4488 = vst [vmem:[#allocation3 + $0x50] sm:$0xff] %v4450
        %4489 = vst [vmem:[#allocation3 + $0x58] sm:$0xff] %v4452
        %4490 = vst [vmem:[#allocation3 + $0x60] sm:$0xff] %v4016
        %4491 = vst [vmem:[#allocation3 + $0x68] sm:$0xff] %v4018
        %4492 = vst [vmem:[#allocation3 + $0x70] sm:$0xff] %v4454
        %4493 = vst [vmem:[#allocation3 + $0x78] sm:$0xff] %v4456
        %4494 = vst [vmem:[#allocation3 + $0x80] sm:$0xff] %v4022
        %4495 = vst [vmem:[#allocation3 + $0x88] sm:$0xff] %v4024
        %4496 = vst [vmem:[#allocation3 + $0x90] sm:$0xff] %v4460
        %4497 = vst [vmem:[#allocation3 + $0x98] sm:$0xff] %v4462
        %4498 = vst [vmem:[#allocation3 + $0xa0] sm:$0xff] %v4026
        %4499 = vst [vmem:[#allocation3 + $0xa8] sm:$0xff] %v4028
        %4500 = vst [vmem:[#allocation3 + $0xb0] sm:$0xff] %v4464
        %4501 = vst [vmem:[#allocation3 + $0xb8] sm:$0xff] %v4466
        %4502 = vst [vmem:[#allocation3 + $0xc0] sm:$0xff] %v4032
        %4503 = vst [vmem:[#allocation3 + $0xc8] sm:$0xff] %v4034
        %4504 = vst [vmem:[#allocation3 + $0xd0] sm:$0xff] %v4470
        %4505 = vst [vmem:[#allocation3 + $0xd8] sm:$0xff] %v4472
        %4506 = vst [vmem:[#allocation3 + $0xe0] sm:$0xff] %v4036
        %4507 = vst [vmem:[#allocation3 + $0xe8] sm:$0xff] %v4038
        %4508 = vst [vmem:[#allocation3 + $0xf0] sm:$0xff] %v4474
        %4509 = vst [vmem:[#allocation3 + $0xf8] sm:$0xff] %v4476
        %v4510 = vld [vmem:[#allocation2 + $0x20] sm:$0xff]
        %v4511 = vld [vmem:[#allocation2 + $0x28] sm:$0xff]
        %v4512 = vld [vmem:[#allocation2 + $0x30] sm:$0xff]
        %v4513 = vld [vmem:[#allocation2 + $0x38] sm:$0xff]
        %v4514 = vld [vmem:[#allocation2 + $0x40] sm:$0xff]
        %v4515 = vld [vmem:[#allocation2 + $0x48] sm:$0xff]
        %v4516 = vld [vmem:[#allocation2 + $0x50] sm:$0xff]
        %v4517 = vld [vmem:[#allocation2 + $0x58] sm:$0xff]
        %v4518 = vld [vmem:[#allocation2 + $0x60] sm:$0xff]
        %v4519 = vld [vmem:[#allocation2 + $0x68] sm:$0xff]
        %v4520 = vld [vmem:[#allocation2 + $0x70] sm:$0xff]
        %v4521 = vld [vmem:[#allocation2 + $0x78] sm:$0xff]
        %v4522 = vld [vmem:[#allocation2 + $0x80] sm:$0xff]
        %v4523 = vld [vmem:[#allocation2 + $0x88] sm:$0xff]
        %v4524 = vld [vmem:[#allocation2 + $0x90] sm:$0xff]
        %v4525 = vld [vmem:[#allocation2 + $0x98] sm:$0xff]
        %v4526 = vld [vmem:[#allocation2 + $0xa0] sm:$0xff]
        %v4527 = vld [vmem:[#allocation2 + $0xa8] sm:$0xff]
        %v4528 = vld [vmem:[#allocation2 + $0xb0] sm:$0xff]
        %v4529 = vld [vmem:[#allocation2 + $0xb8] sm:$0xff]
        %v4530 = vld [vmem:[#allocation2 + $0xc0] sm:$0xff]
        %v4531 = vld [vmem:[#allocation2 + $0xc8] sm:$0xff]
        %v4532 = vld [vmem:[#allocation2 + $0xd0] sm:$0xff]
        %v4533 = vld [vmem:[#allocation2 + $0xd8] sm:$0xff]
        %v4534 = vld [vmem:[#allocation2 + $0xe0] sm:$0xff]
        %v4535 = vld [vmem:[#allocation2 + $0xe8] sm:$0xff]
        %v4536 = vld [vmem:[#allocation2 + $0xf0] sm:$0xff]
        %v4537 = vld [vmem:[#allocation2 + $0xf8] sm:$0xff]
        %v4538 = vld [vmem:[#allocation2 + $0x100] sm:$0xff]
        %v4539 = vld [vmem:[#allocation2 + $0x108] sm:$0xff]
        %v4540 = vld [vmem:[#allocation2 + $0x110] sm:$0xff]
        %v4541 = vld [vmem:[#allocation2 + $0x118] sm:$0xff]
        %v4542 = vpack.c.bf16 %v4514, %v4510
        %v4543 = vpack.c.bf16 %v4515, %v4511
        %v4544 = vpack.c.bf16 %v4516, %v4512
        %v4545 = vpack.c.bf16 %v4517, %v4513
        %v4546 = vpack.c.bf16 %v4522, %v4518
        %v4547 = vpack.c.bf16 %v4523, %v4519
        %v4548 = vpack.c.bf16 %v4524, %v4520
        %v4549 = vpack.c.bf16 %v4525, %v4521
        %v4550 = vpack.c.bf16 %v4530, %v4526
        %v4551 = vpack.c.bf16 %v4531, %v4527
        %v4552 = vpack.c.bf16 %v4532, %v4528
        %v4553 = vpack.c.bf16 %v4533, %v4529
        %v4554 = vpack.c.bf16 %v4538, %v4534
        %v4555 = vpack.c.bf16 %v4539, %v4535
        %v4556 = vpack.c.bf16 %v4540, %v4536
        %v4557 = vpack.c.bf16 %v4541, %v4537
        %v4558 = vld [vmem:[#allocation2 + $0x120] sm:$0xff]
        %v4559 = vld [vmem:[#allocation2 + $0x128] sm:$0xff]
        %v4560 = vld [vmem:[#allocation2 + $0x130] sm:$0xff]
        %v4561 = vld [vmem:[#allocation2 + $0x138] sm:$0xff]
        %v4562 = vpack.c.bf16 %v4518, %v4514
        %v4563 = vpack.c.bf16 %v4519, %v4515
        %v4564 = vpack.c.bf16 %v4520, %v4516
        %v4565 = vpack.c.bf16 %v4521, %v4517
        %v4566 = vpack.c.bf16 %v4526, %v4522
        %v4567 = vpack.c.bf16 %v4527, %v4523
        %v4568 = vpack.c.bf16 %v4528, %v4524
        %v4569 = vpack.c.bf16 %v4529, %v4525
        %v4570 = vpack.c.bf16 %v4534, %v4530
        %v4571 = vpack.c.bf16 %v4535, %v4531
        %v4572 = vpack.c.bf16 %v4536, %v4532
        %v4573 = vpack.c.bf16 %v4537, %v4533
        %v4574 = vpack.c.bf16 %v4558, %v4538
        %v4575 = vpack.c.bf16 %v4559, %v4539
        %v4576 = vpack.c.bf16 %v4560, %v4540
        %v4577 = vpack.c.bf16 %v4561, %v4541
        %v4578 = vld [vmem:[#allocation2 + $0x140] sm:$0xff]
        %v4579 = vld [vmem:[#allocation2 + $0x148] sm:$0xff]
        %v4580 = vld [vmem:[#allocation2 + $0x150] sm:$0xff]
        %v4581 = vld [vmem:[#allocation2 + $0x158] sm:$0xff]
        %v4582 = vpack.c.bf16 %v4578, %v4558
        %v4583 = vpack.c.bf16 %v4579, %v4559
        %v4584 = vpack.c.bf16 %v4580, %v4560
        %v4585 = vpack.c.bf16 %v4581, %v4561
        %s4586 = scalar_lea.vmem [#allocation7], 3072
        %v4587 = vld [vmem:[%s4586] sm:$0xff]
        %v4588 = vld [vmem:[%s4586 + $0x8] sm:$0xff]
        %v4589 = vld [vmem:[%s4586 + $0x10] sm:$0xff]
        %v4590 = vld [vmem:[%s4586 + $0x18] sm:$0xff]
        %v4591 = vld [vmem:[%s4586 + $0x20] sm:$0xff]
        %v4592 = vld [vmem:[%s4586 + $0x28] sm:$0xff]
        %v4593 = vld [vmem:[%s4586 + $0x30] sm:$0xff]
        %v4594 = vld [vmem:[%s4586 + $0x38] sm:$0xff]
        %v4595 = vld [vmem:[%s4586 + $0x40] sm:$0xff]
        %v4596 = vld [vmem:[%s4586 + $0x48] sm:$0xff]
        %v4597 = vld [vmem:[%s4586 + $0x50] sm:$0xff]
        %v4598 = vld [vmem:[%s4586 + $0x58] sm:$0xff]
        %v4599 = vld [vmem:[%s4586 + $0x60] sm:$0xff]
        %v4600 = vld [vmem:[%s4586 + $0x68] sm:$0xff]
        %v4601 = vld [vmem:[%s4586 + $0x70] sm:$0xff]
        %v4602 = vld [vmem:[%s4586 + $0x78] sm:$0xff]
        %v4603 = vld [vmem:[%s4586 + $0x80] sm:$0xff]
        %v4604 = vld [vmem:[%s4586 + $0x88] sm:$0xff]
        %v4605 = vld [vmem:[%s4586 + $0x90] sm:$0xff]
        %v4606 = vld [vmem:[%s4586 + $0x98] sm:$0xff]
        %v4607 = vld [vmem:[%s4586 + $0xa0] sm:$0xff]
        %v4608 = vld [vmem:[%s4586 + $0xa8] sm:$0xff]
        %v4609 = vld [vmem:[%s4586 + $0xb0] sm:$0xff]
        %v4610 = vld [vmem:[%s4586 + $0xb8] sm:$0xff]
        %v4611 = vld [vmem:[%s4586 + $0xc0] sm:$0xff]
        %v4612 = vld [vmem:[%s4586 + $0xc8] sm:$0xff]
        %v4613 = vld [vmem:[%s4586 + $0xd0] sm:$0xff]
        %v4614 = vld [vmem:[%s4586 + $0xd8] sm:$0xff]
        %v4615 = vld [vmem:[%s4586 + $0xe0] sm:$0xff]
        %v4616 = vld [vmem:[%s4586 + $0xe8] sm:$0xff]
        %v4617 = vld [vmem:[%s4586 + $0xf0] sm:$0xff]
        %v4618 = vld [vmem:[%s4586 + $0xf8] sm:$0xff]
        %v4619 = vld [vmem:[%s4586 + $0x100] sm:$0xff]
        %v4620 = vld [vmem:[%s4586 + $0x108] sm:$0xff]
        %v4621 = vld [vmem:[%s4586 + $0x110] sm:$0xff]
        %v4622 = vld [vmem:[%s4586 + $0x118] sm:$0xff]
        %v4623 = vld [vmem:[%s4586 + $0x120] sm:$0xff]
        %v4624 = vld [vmem:[%s4586 + $0x128] sm:$0xff]
        %v4625 = vld [vmem:[%s4586 + $0x130] sm:$0xff]
        %v4626 = vld [vmem:[%s4586 + $0x138] sm:$0xff]
        %v4627 = vld [vmem:[%s4586 + $0x140] sm:$0xff]
        %v4628 = vld [vmem:[%s4586 + $0x148] sm:$0xff]
        %v4629 = vld [vmem:[%s4586 + $0x150] sm:$0xff]
        %v4630 = vld [vmem:[%s4586 + $0x158] sm:$0xff]
        %v4631 = vld [vmem:[%s4586 + $0x160] sm:$0xff]
        %v4632 = vld [vmem:[%s4586 + $0x168] sm:$0xff]
        %v4633 = vld [vmem:[%s4586 + $0x170] sm:$0xff]
        %v4634 = vld [vmem:[%s4586 + $0x178] sm:$0xff]
        %v4635 = vld [vmem:[%s4586 + $0x180] sm:$0xff]
        %v4636 = vld [vmem:[%s4586 + $0x188] sm:$0xff]
        %v4637 = vld [vmem:[%s4586 + $0x190] sm:$0xff]
        %v4638 = vld [vmem:[%s4586 + $0x198] sm:$0xff]
        %v4639 = vld [vmem:[%s4586 + $0x1a0] sm:$0xff]
        %v4640 = vld [vmem:[%s4586 + $0x1a8] sm:$0xff]
        %v4641 = vld [vmem:[%s4586 + $0x1b0] sm:$0xff]
        %v4642 = vld [vmem:[%s4586 + $0x1b8] sm:$0xff]
        %v4643 = vld [vmem:[%s4586 + $0x1c0] sm:$0xff]
        %v4644 = vld [vmem:[%s4586 + $0x1c8] sm:$0xff]
        %v4645 = vld [vmem:[%s4586 + $0x1d0] sm:$0xff]
        %v4646 = vld [vmem:[%s4586 + $0x1d8] sm:$0xff]
        %v4647 = vld [vmem:[%s4586 + $0x1e0] sm:$0xff]
        %v4648 = vld [vmem:[%s4586 + $0x1e8] sm:$0xff]
        %v4649 = vld [vmem:[%s4586 + $0x1f0] sm:$0xff]
        %v4650 = vld [vmem:[%s4586 + $0x1f8] sm:$0xff]
        %v4651 = vld [vmem:[%s4586 + $0x200] sm:$0xff]
        %v4652 = vld [vmem:[%s4586 + $0x208] sm:$0xff]
        %v4653 = vld [vmem:[%s4586 + $0x210] sm:$0xff]
        %v4654 = vld [vmem:[%s4586 + $0x218] sm:$0xff]
        %v4655 = vld [vmem:[%s4586 + $0x220] sm:$0xff]
        %v4656 = vld [vmem:[%s4586 + $0x228] sm:$0xff]
        %v4657 = vld [vmem:[%s4586 + $0x230] sm:$0xff]
        %v4658 = vld [vmem:[%s4586 + $0x238] sm:$0xff]
        %v4659 = vld [vmem:[%s4586 + $0x240] sm:$0xff]
        %v4660 = vld [vmem:[%s4586 + $0x248] sm:$0xff]
        %v4661 = vld [vmem:[%s4586 + $0x250] sm:$0xff]
        %v4662 = vld [vmem:[%s4586 + $0x258] sm:$0xff]
        %v4663 = vld [vmem:[%s4586 + $0x260] sm:$0xff]
        %v4664 = vld [vmem:[%s4586 + $0x268] sm:$0xff]
        %v4665 = vld [vmem:[%s4586 + $0x270] sm:$0xff]
        %v4666 = vld [vmem:[%s4586 + $0x278] sm:$0xff]
        %v4667 = vld [vmem:[%s4586 + $0x280] sm:$0xff]
        %v4668 = vld [vmem:[%s4586 + $0x288] sm:$0xff]
        %v4669 = vld [vmem:[%s4586 + $0x290] sm:$0xff]
        %v4670 = vld [vmem:[%s4586 + $0x298] sm:$0xff]
        %v4671 = vld [vmem:[%s4586 + $0x2a0] sm:$0xff]
        %v4672 = vld [vmem:[%s4586 + $0x2a8] sm:$0xff]
        %v4673 = vld [vmem:[%s4586 + $0x2b0] sm:$0xff]
        %v4674 = vld [vmem:[%s4586 + $0x2b8] sm:$0xff]
        %v4675 = vld [vmem:[%s4586 + $0x2c0] sm:$0xff]
        %v4676 = vld [vmem:[%s4586 + $0x2c8] sm:$0xff]
        %v4677 = vld [vmem:[%s4586 + $0x2d0] sm:$0xff]
        %v4678 = vld [vmem:[%s4586 + $0x2d8] sm:$0xff]
        %v4679 = vld [vmem:[%s4586 + $0x2e0] sm:$0xff]
        %v4680 = vld [vmem:[%s4586 + $0x2e8] sm:$0xff]
        %v4681 = vld [vmem:[%s4586 + $0x2f0] sm:$0xff]
        %v4682 = vld [vmem:[%s4586 + $0x2f8] sm:$0xff]
        %v4683 = vld [vmem:[%s4586 + $0x300] sm:$0xff]
        %v4684 = vld [vmem:[%s4586 + $0x308] sm:$0xff]
        %v4685 = vld [vmem:[%s4586 + $0x310] sm:$0xff]
        %v4686 = vld [vmem:[%s4586 + $0x318] sm:$0xff]
        %v4687 = vld [vmem:[%s4586 + $0x320] sm:$0xff]
        %v4688 = vld [vmem:[%s4586 + $0x328] sm:$0xff]
        %v4689 = vld [vmem:[%s4586 + $0x330] sm:$0xff]
        %v4690 = vld [vmem:[%s4586 + $0x338] sm:$0xff]
        %v4691 = vld [vmem:[%s4586 + $0x340] sm:$0xff]
        %v4692 = vld [vmem:[%s4586 + $0x348] sm:$0xff]
        %v4693 = vld [vmem:[%s4586 + $0x350] sm:$0xff]
        %v4694 = vld [vmem:[%s4586 + $0x358] sm:$0xff]
        %v4695 = vld [vmem:[%s4586 + $0x360] sm:$0xff]
        %v4696 = vld [vmem:[%s4586 + $0x368] sm:$0xff]
        %v4697 = vld [vmem:[%s4586 + $0x370] sm:$0xff]
        %v4698 = vld [vmem:[%s4586 + $0x378] sm:$0xff]
        %v4699 = vld [vmem:[%s4586 + $0x380] sm:$0xff]
        %v4700 = vld [vmem:[%s4586 + $0x388] sm:$0xff]
        %v4701 = vld [vmem:[%s4586 + $0x390] sm:$0xff]
        %v4702 = vld [vmem:[%s4586 + $0x398] sm:$0xff]
        %v4703 = vld [vmem:[%s4586 + $0x3a0] sm:$0xff]
        %v4704 = vld [vmem:[%s4586 + $0x3a8] sm:$0xff]
        %v4705 = vld [vmem:[%s4586 + $0x3b0] sm:$0xff]
        %v4706 = vld [vmem:[%s4586 + $0x3b8] sm:$0xff]
        %v4707 = vld [vmem:[%s4586 + $0x3c0] sm:$0xff]
        %v4708 = vld [vmem:[%s4586 + $0x3c8] sm:$0xff]
        %v4709 = vld [vmem:[%s4586 + $0x3d0] sm:$0xff]
        %v4710 = vld [vmem:[%s4586 + $0x3d8] sm:$0xff]
        %v4711 = vld [vmem:[%s4586 + $0x3e0] sm:$0xff]
        %v4712 = vld [vmem:[%s4586 + $0x3e8] sm:$0xff]
        %v4713 = vld [vmem:[%s4586 + $0x3f0] sm:$0xff]
        %v4714 = vld [vmem:[%s4586 + $0x3f8] sm:$0xff]
        %v4715 = vld [vmem:[%s4586 + $0x400] sm:$0xff]
        %v4716 = vld [vmem:[%s4586 + $0x408] sm:$0xff]
        %v4717 = vld [vmem:[%s4586 + $0x410] sm:$0xff]
        %v4718 = vld [vmem:[%s4586 + $0x418] sm:$0xff]
        %v4719 = vld [vmem:[%s4586 + $0x420] sm:$0xff]
        %v4720 = vld [vmem:[%s4586 + $0x428] sm:$0xff]
        %v4721 = vld [vmem:[%s4586 + $0x430] sm:$0xff]
        %v4722 = vld [vmem:[%s4586 + $0x438] sm:$0xff]
        %v4723 = vld [vmem:[%s4586 + $0x440] sm:$0xff]
        %v4724 = vld [vmem:[%s4586 + $0x448] sm:$0xff]
        %v4725 = vld [vmem:[%s4586 + $0x450] sm:$0xff]
        %v4726 = vld [vmem:[%s4586 + $0x458] sm:$0xff]
        %v4727 = vld [vmem:[%s4586 + $0x460] sm:$0xff]
        %v4728 = vld [vmem:[%s4586 + $0x468] sm:$0xff]
        %v4729 = vld [vmem:[%s4586 + $0x470] sm:$0xff]
        %v4730 = vld [vmem:[%s4586 + $0x478] sm:$0xff]
        %v4731 = vld [vmem:[%s4586 + $0x480] sm:$0xff]
        %v4732 = vld [vmem:[%s4586 + $0x488] sm:$0xff]
        %v4733 = vld [vmem:[%s4586 + $0x490] sm:$0xff]
        %v4734 = vld [vmem:[%s4586 + $0x498] sm:$0xff]
        %v4735 = vld [vmem:[%s4586 + $0x4a0] sm:$0xff]
        %v4736 = vld [vmem:[%s4586 + $0x4a8] sm:$0xff]
        %v4737 = vld [vmem:[%s4586 + $0x4b0] sm:$0xff]
        %v4738 = vld [vmem:[%s4586 + $0x4b8] sm:$0xff]
        %v4739 = vld [vmem:[%s4586 + $0x4c0] sm:$0xff]
        %v4740 = vld [vmem:[%s4586 + $0x4c8] sm:$0xff]
        %v4741 = vld [vmem:[%s4586 + $0x4d0] sm:$0xff]
        %v4742 = vld [vmem:[%s4586 + $0x4d8] sm:$0xff]
        %v4743 = vld [vmem:[%s4586 + $0x4e0] sm:$0xff]
        %v4744 = vld [vmem:[%s4586 + $0x4e8] sm:$0xff]
        %v4745 = vld [vmem:[%s4586 + $0x4f0] sm:$0xff]
        %v4746 = vld [vmem:[%s4586 + $0x4f8] sm:$0xff]
        %v4747 = vld [vmem:[%s4586 + $0x500] sm:$0xff]
        %v4748 = vld [vmem:[%s4586 + $0x508] sm:$0xff]
        %v4749 = vld [vmem:[%s4586 + $0x510] sm:$0xff]
        %v4750 = vld [vmem:[%s4586 + $0x518] sm:$0xff]
        %v4751 = vld [vmem:[%s4586 + $0x520] sm:$0xff]
        %v4752 = vld [vmem:[%s4586 + $0x528] sm:$0xff]
        %v4753 = vld [vmem:[%s4586 + $0x530] sm:$0xff]
        %v4754 = vld [vmem:[%s4586 + $0x538] sm:$0xff]
        %v4755 = vld [vmem:[%s4586 + $0x540] sm:$0xff]
        %v4756 = vld [vmem:[%s4586 + $0x548] sm:$0xff]
        %v4757 = vld [vmem:[%s4586 + $0x550] sm:$0xff]
        %v4758 = vld [vmem:[%s4586 + $0x558] sm:$0xff]
        %v4759 = vld [vmem:[%s4586 + $0x560] sm:$0xff]
        %v4760 = vld [vmem:[%s4586 + $0x568] sm:$0xff]
        %v4761 = vld [vmem:[%s4586 + $0x570] sm:$0xff]
        %v4762 = vld [vmem:[%s4586 + $0x578] sm:$0xff]
        %v4763 = vld [vmem:[%s4586 + $0x580] sm:$0xff]
        %v4764 = vld [vmem:[%s4586 + $0x588] sm:$0xff]
        %v4765 = vld [vmem:[%s4586 + $0x590] sm:$0xff]
        %v4766 = vld [vmem:[%s4586 + $0x598] sm:$0xff]
        %v4767 = vld [vmem:[%s4586 + $0x5a0] sm:$0xff]
        %v4768 = vld [vmem:[%s4586 + $0x5a8] sm:$0xff]
        %v4769 = vld [vmem:[%s4586 + $0x5b0] sm:$0xff]
        %v4770 = vld [vmem:[%s4586 + $0x5b8] sm:$0xff]
        %v4771 = vld [vmem:[%s4586 + $0x5c0] sm:$0xff]
        %v4772 = vld [vmem:[%s4586 + $0x5c8] sm:$0xff]
        %v4773 = vld [vmem:[%s4586 + $0x5d0] sm:$0xff]
        %v4774 = vld [vmem:[%s4586 + $0x5d8] sm:$0xff]
        %v4775 = vld [vmem:[%s4586 + $0x5e0] sm:$0xff]
        %v4776 = vld [vmem:[%s4586 + $0x5e8] sm:$0xff]
        %v4777 = vld [vmem:[%s4586 + $0x5f0] sm:$0xff]
        %v4778 = vld [vmem:[%s4586 + $0x5f8] sm:$0xff]
        %v4779 = vld [vmem:[%s4586 + $0x600] sm:$0xff]
        %v4780 = vld [vmem:[%s4586 + $0x608] sm:$0xff]
        %v4781 = vld [vmem:[%s4586 + $0x610] sm:$0xff]
        %v4782 = vld [vmem:[%s4586 + $0x618] sm:$0xff]
        %v4783 = vld [vmem:[%s4586 + $0x620] sm:$0xff]
        %v4784 = vld [vmem:[%s4586 + $0x628] sm:$0xff]
        %v4785 = vld [vmem:[%s4586 + $0x630] sm:$0xff]
        %v4786 = vld [vmem:[%s4586 + $0x638] sm:$0xff]
        %v4787 = vld [vmem:[%s4586 + $0x640] sm:$0xff]
        %v4788 = vld [vmem:[%s4586 + $0x648] sm:$0xff]
        %v4789 = vld [vmem:[%s4586 + $0x650] sm:$0xff]
        %v4790 = vld [vmem:[%s4586 + $0x658] sm:$0xff]
        %v4791 = vld [vmem:[%s4586 + $0x660] sm:$0xff]
        %v4792 = vld [vmem:[%s4586 + $0x668] sm:$0xff]
        %v4793 = vld [vmem:[%s4586 + $0x670] sm:$0xff]
        %v4794 = vld [vmem:[%s4586 + $0x678] sm:$0xff]
        %v4795 = vld [vmem:[%s4586 + $0x680] sm:$0xff]
        %v4796 = vld [vmem:[%s4586 + $0x688] sm:$0xff]
        %v4797 = vld [vmem:[%s4586 + $0x690] sm:$0xff]
        %v4798 = vld [vmem:[%s4586 + $0x698] sm:$0xff]
        %v4799 = vld [vmem:[%s4586 + $0x6a0] sm:$0xff]
        %v4800 = vld [vmem:[%s4586 + $0x6a8] sm:$0xff]
        %v4801 = vld [vmem:[%s4586 + $0x6b0] sm:$0xff]
        %v4802 = vld [vmem:[%s4586 + $0x6b8] sm:$0xff]
        %v4803 = vld [vmem:[%s4586 + $0x6c0] sm:$0xff]
        %v4804 = vld [vmem:[%s4586 + $0x6c8] sm:$0xff]
        %v4805 = vld [vmem:[%s4586 + $0x6d0] sm:$0xff]
        %v4806 = vld [vmem:[%s4586 + $0x6d8] sm:$0xff]
        %v4807 = vld [vmem:[%s4586 + $0x6e0] sm:$0xff]
        %v4808 = vld [vmem:[%s4586 + $0x6e8] sm:$0xff]
        %v4809 = vld [vmem:[%s4586 + $0x6f0] sm:$0xff]
        %v4810 = vld [vmem:[%s4586 + $0x6f8] sm:$0xff]
        %v4811 = vld [vmem:[%s4586 + $0x700] sm:$0xff]
        %v4812 = vld [vmem:[%s4586 + $0x708] sm:$0xff]
        %v4813 = vld [vmem:[%s4586 + $0x710] sm:$0xff]
        %v4814 = vld [vmem:[%s4586 + $0x718] sm:$0xff]
        %v4815 = vld [vmem:[%s4586 + $0x720] sm:$0xff]
        %v4816 = vld [vmem:[%s4586 + $0x728] sm:$0xff]
        %v4817 = vld [vmem:[%s4586 + $0x730] sm:$0xff]
        %v4818 = vld [vmem:[%s4586 + $0x738] sm:$0xff]
        %v4819 = vld [vmem:[%s4586 + $0x740] sm:$0xff]
        %v4820 = vld [vmem:[%s4586 + $0x748] sm:$0xff]
        %v4821 = vld [vmem:[%s4586 + $0x750] sm:$0xff]
        %v4822 = vld [vmem:[%s4586 + $0x758] sm:$0xff]
        %v4823 = vld [vmem:[%s4586 + $0x760] sm:$0xff]
        %v4824 = vld [vmem:[%s4586 + $0x768] sm:$0xff]
        %v4825 = vld [vmem:[%s4586 + $0x770] sm:$0xff]
        %v4826 = vld [vmem:[%s4586 + $0x778] sm:$0xff]
        %v4827 = vld [vmem:[%s4586 + $0x780] sm:$0xff]
        %v4828 = vld [vmem:[%s4586 + $0x788] sm:$0xff]
        %v4829 = vld [vmem:[%s4586 + $0x790] sm:$0xff]
        %v4830 = vld [vmem:[%s4586 + $0x798] sm:$0xff]
        %v4831 = vld [vmem:[%s4586 + $0x7a0] sm:$0xff]
        %v4832 = vld [vmem:[%s4586 + $0x7a8] sm:$0xff]
        %v4833 = vld [vmem:[%s4586 + $0x7b0] sm:$0xff]
        %v4834 = vld [vmem:[%s4586 + $0x7b8] sm:$0xff]
        %v4835 = vld [vmem:[%s4586 + $0x7c0] sm:$0xff]
        %v4836 = vld [vmem:[%s4586 + $0x7c8] sm:$0xff]
        %v4837 = vld [vmem:[%s4586 + $0x7d0] sm:$0xff]
        %v4838 = vld [vmem:[%s4586 + $0x7d8] sm:$0xff]
        %v4839 = vld [vmem:[%s4586 + $0x7e0] sm:$0xff]
        %v4840 = vld [vmem:[%s4586 + $0x7e8] sm:$0xff]
        %v4841 = vld [vmem:[%s4586 + $0x7f0] sm:$0xff]
        %v4842 = vld [vmem:[%s4586 + $0x7f8] sm:$0xff]
        %v4843 = vld [vmem:[%s4586 + $0x800] sm:$0xff]
        %v4844 = vld [vmem:[%s4586 + $0x808] sm:$0xff]
        %v4845 = vld [vmem:[%s4586 + $0x810] sm:$0xff]
        %v4846 = vld [vmem:[%s4586 + $0x818] sm:$0xff]
        %v4847 = vld [vmem:[%s4586 + $0x820] sm:$0xff]
        %v4848 = vld [vmem:[%s4586 + $0x828] sm:$0xff]
        %v4849 = vld [vmem:[%s4586 + $0x830] sm:$0xff]
        %v4850 = vld [vmem:[%s4586 + $0x838] sm:$0xff]
        %v4851 = vld [vmem:[%s4586 + $0x840] sm:$0xff]
        %v4852 = vld [vmem:[%s4586 + $0x848] sm:$0xff]
        %v4853 = vld [vmem:[%s4586 + $0x850] sm:$0xff]
        %v4854 = vld [vmem:[%s4586 + $0x858] sm:$0xff]
        %v4855 = vld [vmem:[%s4586 + $0x860] sm:$0xff]
        %v4856 = vld [vmem:[%s4586 + $0x868] sm:$0xff]
        %v4857 = vld [vmem:[%s4586 + $0x870] sm:$0xff]
        %v4858 = vld [vmem:[%s4586 + $0x878] sm:$0xff]
        %v4859 = vld [vmem:[%s4586 + $0x880] sm:$0xff]
        %v4860 = vld [vmem:[%s4586 + $0x888] sm:$0xff]
        %v4861 = vld [vmem:[%s4586 + $0x890] sm:$0xff]
        %v4862 = vld [vmem:[%s4586 + $0x898] sm:$0xff]
        %v4863 = vld [vmem:[%s4586 + $0x8a0] sm:$0xff]
        %v4864 = vld [vmem:[%s4586 + $0x8a8] sm:$0xff]
        %v4865 = vld [vmem:[%s4586 + $0x8b0] sm:$0xff]
        %v4866 = vld [vmem:[%s4586 + $0x8b8] sm:$0xff]
        %v4867 = vld [vmem:[%s4586 + $0x8c0] sm:$0xff]
        %v4868 = vld [vmem:[%s4586 + $0x8c8] sm:$0xff]
        %v4869 = vld [vmem:[%s4586 + $0x8d0] sm:$0xff]
        %v4870 = vld [vmem:[%s4586 + $0x8d8] sm:$0xff]
        %v4871 = vld [vmem:[%s4586 + $0x8e0] sm:$0xff]
        %v4872 = vld [vmem:[%s4586 + $0x8e8] sm:$0xff]
        %v4873 = vld [vmem:[%s4586 + $0x8f0] sm:$0xff]
        %v4874 = vld [vmem:[%s4586 + $0x8f8] sm:$0xff]
        %v4875 = vld [vmem:[%s4586 + $0x900] sm:$0xff]
        %v4876 = vld [vmem:[%s4586 + $0x908] sm:$0xff]
        %v4877 = vld [vmem:[%s4586 + $0x910] sm:$0xff]
        %v4878 = vld [vmem:[%s4586 + $0x918] sm:$0xff]
        %v4879 = vld [vmem:[%s4586 + $0x920] sm:$0xff]
        %v4880 = vld [vmem:[%s4586 + $0x928] sm:$0xff]
        %v4881 = vld [vmem:[%s4586 + $0x930] sm:$0xff]
        %v4882 = vld [vmem:[%s4586 + $0x938] sm:$0xff]
        %v4883 = vld [vmem:[%s4586 + $0x940] sm:$0xff]
        %v4884 = vld [vmem:[%s4586 + $0x948] sm:$0xff]
        %v4885 = vld [vmem:[%s4586 + $0x950] sm:$0xff]
        %v4886 = vld [vmem:[%s4586 + $0x958] sm:$0xff]
        %v4887 = vld [vmem:[%s4586 + $0x960] sm:$0xff]
        %v4888 = vld [vmem:[%s4586 + $0x968] sm:$0xff]
        %v4889 = vld [vmem:[%s4586 + $0x970] sm:$0xff]
        %v4890 = vld [vmem:[%s4586 + $0x978] sm:$0xff]
        %v4891 = vld [vmem:[%s4586 + $0x980] sm:$0xff]
        %v4892 = vld [vmem:[%s4586 + $0x988] sm:$0xff]
        %v4893 = vld [vmem:[%s4586 + $0x990] sm:$0xff]
        %v4894 = vld [vmem:[%s4586 + $0x998] sm:$0xff]
        %v4895 = vld [vmem:[%s4586 + $0x9a0] sm:$0xff]
        %v4896 = vld [vmem:[%s4586 + $0x9a8] sm:$0xff]
        %v4897 = vld [vmem:[%s4586 + $0x9b0] sm:$0xff]
        %v4898 = vld [vmem:[%s4586 + $0x9b8] sm:$0xff]
        %v4899 = vld [vmem:[%s4586 + $0x9c0] sm:$0xff]
        %v4900 = vld [vmem:[%s4586 + $0x9c8] sm:$0xff]
        %v4901 = vld [vmem:[%s4586 + $0x9d0] sm:$0xff]
        %v4902 = vld [vmem:[%s4586 + $0x9d8] sm:$0xff]
        %v4903 = vld [vmem:[%s4586 + $0x9e0] sm:$0xff]
        %v4904 = vld [vmem:[%s4586 + $0x9e8] sm:$0xff]
        %v4905 = vld [vmem:[%s4586 + $0x9f0] sm:$0xff]
        %v4906 = vld [vmem:[%s4586 + $0x9f8] sm:$0xff]
        %v4907 = vld [vmem:[%s4586 + $0xa00] sm:$0xff]
        %v4908 = vld [vmem:[%s4586 + $0xa08] sm:$0xff]
        %v4909 = vld [vmem:[%s4586 + $0xa10] sm:$0xff]
        %v4910 = vld [vmem:[%s4586 + $0xa18] sm:$0xff]
        %v4911 = vld [vmem:[%s4586 + $0xa20] sm:$0xff]
        %v4912 = vld [vmem:[%s4586 + $0xa28] sm:$0xff]
        %v4913 = vld [vmem:[%s4586 + $0xa30] sm:$0xff]
        %v4914 = vld [vmem:[%s4586 + $0xa38] sm:$0xff]
        %v4915 = vld [vmem:[%s4586 + $0xa40] sm:$0xff]
        %v4916 = vld [vmem:[%s4586 + $0xa48] sm:$0xff]
        %v4917 = vld [vmem:[%s4586 + $0xa50] sm:$0xff]
        %v4918 = vld [vmem:[%s4586 + $0xa58] sm:$0xff]
        %v4919 = vld [vmem:[%s4586 + $0xa60] sm:$0xff]
        %v4920 = vld [vmem:[%s4586 + $0xa68] sm:$0xff]
        %v4921 = vld [vmem:[%s4586 + $0xa70] sm:$0xff]
        %v4922 = vld [vmem:[%s4586 + $0xa78] sm:$0xff]
        %v4923 = vld [vmem:[%s4586 + $0xa80] sm:$0xff]
        %v4924 = vld [vmem:[%s4586 + $0xa88] sm:$0xff]
        %v4925 = vld [vmem:[%s4586 + $0xa90] sm:$0xff]
        %v4926 = vld [vmem:[%s4586 + $0xa98] sm:$0xff]
        %v4927 = vld [vmem:[%s4586 + $0xaa0] sm:$0xff]
        %v4928 = vld [vmem:[%s4586 + $0xaa8] sm:$0xff]
        %v4929 = vld [vmem:[%s4586 + $0xab0] sm:$0xff]
        %v4930 = vld [vmem:[%s4586 + $0xab8] sm:$0xff]
        %v4931 = vld [vmem:[%s4586 + $0xac0] sm:$0xff]
        %v4932 = vld [vmem:[%s4586 + $0xac8] sm:$0xff]
        %v4933 = vld [vmem:[%s4586 + $0xad0] sm:$0xff]
        %v4934 = vld [vmem:[%s4586 + $0xad8] sm:$0xff]
        %v4935 = vld [vmem:[%s4586 + $0xae0] sm:$0xff]
        %v4936 = vld [vmem:[%s4586 + $0xae8] sm:$0xff]
        %v4937 = vld [vmem:[%s4586 + $0xaf0] sm:$0xff]
        %v4938 = vld [vmem:[%s4586 + $0xaf8] sm:$0xff]
        %v4939 = vld [vmem:[%s4586 + $0xb00] sm:$0xff]
        %v4940 = vld [vmem:[%s4586 + $0xb08] sm:$0xff]
        %v4941 = vld [vmem:[%s4586 + $0xb10] sm:$0xff]
        %v4942 = vld [vmem:[%s4586 + $0xb18] sm:$0xff]
        %v4943 = vld [vmem:[%s4586 + $0xb20] sm:$0xff]
        %v4944 = vld [vmem:[%s4586 + $0xb28] sm:$0xff]
        %v4945 = vld [vmem:[%s4586 + $0xb30] sm:$0xff]
        %v4946 = vld [vmem:[%s4586 + $0xb38] sm:$0xff]
        %v4947 = vld [vmem:[%s4586 + $0xb40] sm:$0xff]
        %v4948 = vld [vmem:[%s4586 + $0xb48] sm:$0xff]
        %v4949 = vld [vmem:[%s4586 + $0xb50] sm:$0xff]
        %v4950 = vld [vmem:[%s4586 + $0xb58] sm:$0xff]
        %v4951 = vld [vmem:[%s4586 + $0xb60] sm:$0xff]
        %v4952 = vld [vmem:[%s4586 + $0xb68] sm:$0xff]
        %v4953 = vld [vmem:[%s4586 + $0xb70] sm:$0xff]
        %v4954 = vld [vmem:[%s4586 + $0xb78] sm:$0xff]
        %v4955 = vld [vmem:[%s4586 + $0xb80] sm:$0xff]
        %v4956 = vld [vmem:[%s4586 + $0xb88] sm:$0xff]
        %v4957 = vld [vmem:[%s4586 + $0xb90] sm:$0xff]
        %v4958 = vld [vmem:[%s4586 + $0xb98] sm:$0xff]
        %v4959 = vld [vmem:[%s4586 + $0xba0] sm:$0xff]
        %v4960 = vld [vmem:[%s4586 + $0xba8] sm:$0xff]
        %v4961 = vld [vmem:[%s4586 + $0xbb0] sm:$0xff]
        %v4962 = vld [vmem:[%s4586 + $0xbb8] sm:$0xff]
        %v4963 = vld [vmem:[%s4586 + $0xbc0] sm:$0xff]
        %v4964 = vld [vmem:[%s4586 + $0xbc8] sm:$0xff]
        %v4965 = vld [vmem:[%s4586 + $0xbd0] sm:$0xff]
        %v4966 = vld [vmem:[%s4586 + $0xbd8] sm:$0xff]
        %v4967 = vld [vmem:[%s4586 + $0xbe0] sm:$0xff]
        %v4968 = vld [vmem:[%s4586 + $0xbe8] sm:$0xff]
        %v4969 = vld [vmem:[%s4586 + $0xbf0] sm:$0xff]
        %v4970 = vld [vmem:[%s4586 + $0xbf8] sm:$0xff]
        %v5355 = vunpack.c.l.b16 %v4587
        %v5356 = vunpack.c.h.b16 %v4587
        %v5357 = vunpack.c.l.b16 %v4588
        %v5358 = vunpack.c.h.b16 %v4588
        %v5359 = vunpack.c.l.b16 %v4589
        %v5360 = vunpack.c.h.b16 %v4589
        %v5361 = vunpack.c.l.b16 %v4590
        %v5362 = vunpack.c.h.b16 %v4590
        %v5363 = vunpack.c.l.b16 %v4591
        %v5364 = vunpack.c.h.b16 %v4591
        %v5365 = vunpack.c.l.b16 %v4592
        %v5366 = vunpack.c.h.b16 %v4592
        %v5367 = vunpack.c.l.b16 %v4593
        %v5368 = vunpack.c.h.b16 %v4593
        %v5369 = vunpack.c.l.b16 %v4594
        %v5370 = vunpack.c.h.b16 %v4594
        %v5371 = vunpack.c.l.b16 %v4595
        %v5372 = vunpack.c.h.b16 %v4595
        %v5373 = vunpack.c.l.b16 %v4596
        %v5374 = vunpack.c.h.b16 %v4596
        %v5375 = vunpack.c.l.b16 %v4597
        %v5376 = vunpack.c.h.b16 %v4597
        %v5377 = vunpack.c.l.b16 %v4598
        %v5378 = vunpack.c.h.b16 %v4598
        %v5379 = vunpack.c.l.b16 %v4599
        %v5380 = vunpack.c.h.b16 %v4599
        %v5381 = vunpack.c.l.b16 %v4600
        %v5382 = vunpack.c.h.b16 %v4600
        %v5383 = vunpack.c.l.b16 %v4601
        %v5384 = vunpack.c.h.b16 %v4601
        %v5385 = vunpack.c.l.b16 %v4602
        %v5386 = vunpack.c.h.b16 %v4602
        %v5387 = vunpack.c.l.b16 %v4603
        %v5388 = vunpack.c.h.b16 %v4603
        %v5389 = vunpack.c.l.b16 %v4604
        %v5390 = vunpack.c.h.b16 %v4604
        %v5391 = vunpack.c.l.b16 %v4605
        %v5392 = vunpack.c.h.b16 %v4605
        %v5393 = vunpack.c.l.b16 %v4606
        %v5394 = vunpack.c.h.b16 %v4606
        %v5395 = vunpack.c.l.b16 %v4607
        %v5396 = vunpack.c.h.b16 %v4607
        %v5397 = vunpack.c.l.b16 %v4608
        %v5398 = vunpack.c.h.b16 %v4608
        %v5399 = vunpack.c.l.b16 %v4609
        %v5400 = vunpack.c.h.b16 %v4609
        %v5401 = vunpack.c.l.b16 %v4610
        %v5402 = vunpack.c.h.b16 %v4610
        %v5403 = vunpack.c.l.b16 %v4611
        %v5404 = vunpack.c.h.b16 %v4611
        %v5405 = vunpack.c.l.b16 %v4612
        %v5406 = vunpack.c.h.b16 %v4612
        %v5407 = vunpack.c.l.b16 %v4613
        %v5408 = vunpack.c.h.b16 %v4613
        %v5409 = vunpack.c.l.b16 %v4614
        %v5410 = vunpack.c.h.b16 %v4614
        %v5411 = vunpack.c.l.b16 %v4615
        %v5412 = vunpack.c.h.b16 %v4615
        %v5413 = vunpack.c.l.b16 %v4616
        %v5414 = vunpack.c.h.b16 %v4616
        %v5415 = vunpack.c.l.b16 %v4617
        %v5416 = vunpack.c.h.b16 %v4617
        %v5417 = vunpack.c.l.b16 %v4618
        %v5418 = vunpack.c.h.b16 %v4618
        %v5419 = vunpack.c.l.b16 %v4619
        %v5420 = vunpack.c.h.b16 %v4619
        %v5421 = vunpack.c.l.b16 %v4620
        %v5422 = vunpack.c.h.b16 %v4620
        %v5423 = vunpack.c.l.b16 %v4621
        %v5424 = vunpack.c.h.b16 %v4621
        %v5425 = vunpack.c.l.b16 %v4622
        %v5426 = vunpack.c.h.b16 %v4622
        %v5427 = vunpack.c.l.b16 %v4623
        %v5428 = vunpack.c.h.b16 %v4623
        %v5429 = vunpack.c.l.b16 %v4624
        %v5430 = vunpack.c.h.b16 %v4624
        %v5431 = vunpack.c.l.b16 %v4625
        %v5432 = vunpack.c.h.b16 %v4625
        %v5433 = vunpack.c.l.b16 %v4626
        %v5434 = vunpack.c.h.b16 %v4626
        %v5435 = vunpack.c.l.b16 %v4627
        %v5436 = vunpack.c.h.b16 %v4627
        %v5437 = vunpack.c.l.b16 %v4628
        %v5438 = vunpack.c.h.b16 %v4628
        %v5439 = vunpack.c.l.b16 %v4629
        %v5440 = vunpack.c.h.b16 %v4629
        %v5441 = vunpack.c.l.b16 %v4630
        %v5442 = vunpack.c.h.b16 %v4630
        %v5443 = vunpack.c.l.b16 %v4631
        %v5444 = vunpack.c.h.b16 %v4631
        %v5445 = vunpack.c.l.b16 %v4632
        %v5446 = vunpack.c.h.b16 %v4632
        %v5447 = vunpack.c.l.b16 %v4633
        %v5448 = vunpack.c.h.b16 %v4633
        %v5449 = vunpack.c.l.b16 %v4634
        %v5450 = vunpack.c.h.b16 %v4634
        %v5451 = vunpack.c.l.b16 %v4635
        %v5452 = vunpack.c.h.b16 %v4635
        %v5453 = vunpack.c.l.b16 %v4636
        %v5454 = vunpack.c.h.b16 %v4636
        %v5455 = vunpack.c.l.b16 %v4637
        %v5456 = vunpack.c.h.b16 %v4637
        %v5457 = vunpack.c.l.b16 %v4638
        %v5458 = vunpack.c.h.b16 %v4638
        %v5459 = vunpack.c.l.b16 %v4639
        %v5460 = vunpack.c.h.b16 %v4639
        %v5461 = vunpack.c.l.b16 %v4640
        %v5462 = vunpack.c.h.b16 %v4640
        %v5463 = vunpack.c.l.b16 %v4641
        %v5464 = vunpack.c.h.b16 %v4641
        %v5465 = vunpack.c.l.b16 %v4642
        %v5466 = vunpack.c.h.b16 %v4642
        %v5467 = vunpack.c.l.b16 %v4643
        %v5468 = vunpack.c.h.b16 %v4643
        %v5469 = vunpack.c.l.b16 %v4644
        %v5470 = vunpack.c.h.b16 %v4644
        %v5471 = vunpack.c.l.b16 %v4645
        %v5472 = vunpack.c.h.b16 %v4645
        %v5473 = vunpack.c.l.b16 %v4646
        %v5474 = vunpack.c.h.b16 %v4646
        %v5475 = vunpack.c.l.b16 %v4647
        %v5476 = vunpack.c.h.b16 %v4647
        %v5477 = vunpack.c.l.b16 %v4648
        %v5478 = vunpack.c.h.b16 %v4648
        %v5479 = vunpack.c.l.b16 %v4649
        %v5480 = vunpack.c.h.b16 %v4649
        %v5481 = vunpack.c.l.b16 %v4650
        %v5482 = vunpack.c.h.b16 %v4650
        %v5483 = vunpack.c.l.b16 %v4651
        %v5484 = vunpack.c.h.b16 %v4651
        %v5485 = vunpack.c.l.b16 %v4652
        %v5486 = vunpack.c.h.b16 %v4652
        %v5487 = vunpack.c.l.b16 %v4653
        %v5488 = vunpack.c.h.b16 %v4653
        %v5489 = vunpack.c.l.b16 %v4654
        %v5490 = vunpack.c.h.b16 %v4654
        %v5491 = vunpack.c.l.b16 %v4655
        %v5492 = vunpack.c.h.b16 %v4655
        %v5493 = vunpack.c.l.b16 %v4656
        %v5494 = vunpack.c.h.b16 %v4656
        %v5495 = vunpack.c.l.b16 %v4657
        %v5496 = vunpack.c.h.b16 %v4657
        %v5497 = vunpack.c.l.b16 %v4658
        %v5498 = vunpack.c.h.b16 %v4658
        %v5499 = vunpack.c.l.b16 %v4659
        %v5500 = vunpack.c.h.b16 %v4659
        %v5501 = vunpack.c.l.b16 %v4660
        %v5502 = vunpack.c.h.b16 %v4660
        %v5503 = vunpack.c.l.b16 %v4661
        %v5504 = vunpack.c.h.b16 %v4661
        %v5505 = vunpack.c.l.b16 %v4662
        %v5506 = vunpack.c.h.b16 %v4662
        %v5507 = vunpack.c.l.b16 %v4663
        %v5508 = vunpack.c.h.b16 %v4663
        %v5509 = vunpack.c.l.b16 %v4664
        %v5510 = vunpack.c.h.b16 %v4664
        %v5511 = vunpack.c.l.b16 %v4665
        %v5512 = vunpack.c.h.b16 %v4665
        %v5513 = vunpack.c.l.b16 %v4666
        %v5514 = vunpack.c.h.b16 %v4666
        %v5515 = vunpack.c.l.b16 %v4667
        %v5516 = vunpack.c.h.b16 %v4667
        %v5517 = vunpack.c.l.b16 %v4668
        %v5518 = vunpack.c.h.b16 %v4668
        %v5519 = vunpack.c.l.b16 %v4669
        %v5520 = vunpack.c.h.b16 %v4669
        %v5521 = vunpack.c.l.b16 %v4670
        %v5522 = vunpack.c.h.b16 %v4670
        %v5523 = vunpack.c.l.b16 %v4671
        %v5524 = vunpack.c.h.b16 %v4671
        %v5525 = vunpack.c.l.b16 %v4672
        %v5526 = vunpack.c.h.b16 %v4672
        %v5527 = vunpack.c.l.b16 %v4673
        %v5528 = vunpack.c.h.b16 %v4673
        %v5529 = vunpack.c.l.b16 %v4674
        %v5530 = vunpack.c.h.b16 %v4674
        %v5531 = vunpack.c.l.b16 %v4675
        %v5532 = vunpack.c.h.b16 %v4675
        %v5533 = vunpack.c.l.b16 %v4676
        %v5534 = vunpack.c.h.b16 %v4676
        %v5535 = vunpack.c.l.b16 %v4677
        %v5536 = vunpack.c.h.b16 %v4677
        %v5537 = vunpack.c.l.b16 %v4678
        %v5538 = vunpack.c.h.b16 %v4678
        %v5539 = vunpack.c.l.b16 %v4679
        %v5540 = vunpack.c.h.b16 %v4679
        %v5541 = vunpack.c.l.b16 %v4680
        %v5542 = vunpack.c.h.b16 %v4680
        %v5543 = vunpack.c.l.b16 %v4681
        %v5544 = vunpack.c.h.b16 %v4681
        %v5545 = vunpack.c.l.b16 %v4682
        %v5546 = vunpack.c.h.b16 %v4682
        %v5547 = vunpack.c.l.b16 %v4683
        %v5548 = vunpack.c.h.b16 %v4683
        %v5549 = vunpack.c.l.b16 %v4684
        %v5550 = vunpack.c.h.b16 %v4684
        %v5551 = vunpack.c.l.b16 %v4685
        %v5552 = vunpack.c.h.b16 %v4685
        %v5553 = vunpack.c.l.b16 %v4686
        %v5554 = vunpack.c.h.b16 %v4686
        %v5555 = vunpack.c.l.b16 %v4687
        %v5556 = vunpack.c.h.b16 %v4687
        %v5557 = vunpack.c.l.b16 %v4688
        %v5558 = vunpack.c.h.b16 %v4688
        %v5559 = vunpack.c.l.b16 %v4689
        %v5560 = vunpack.c.h.b16 %v4689
        %v5561 = vunpack.c.l.b16 %v4690
        %v5562 = vunpack.c.h.b16 %v4690
        %v5563 = vunpack.c.l.b16 %v4691
        %v5564 = vunpack.c.h.b16 %v4691
        %v5565 = vunpack.c.l.b16 %v4692
        %v5566 = vunpack.c.h.b16 %v4692
        %v5567 = vunpack.c.l.b16 %v4693
        %v5568 = vunpack.c.h.b16 %v4693
        %v5569 = vunpack.c.l.b16 %v4694
        %v5570 = vunpack.c.h.b16 %v4694
        %v5571 = vunpack.c.l.b16 %v4695
        %v5572 = vunpack.c.h.b16 %v4695
        %v5573 = vunpack.c.l.b16 %v4696
        %v5574 = vunpack.c.h.b16 %v4696
        %v5575 = vunpack.c.l.b16 %v4697
        %v5576 = vunpack.c.h.b16 %v4697
        %v5577 = vunpack.c.l.b16 %v4698
        %v5578 = vunpack.c.h.b16 %v4698
        %v5579 = vunpack.c.l.b16 %v4699
        %v5580 = vunpack.c.h.b16 %v4699
        %v5581 = vunpack.c.l.b16 %v4700
        %v5582 = vunpack.c.h.b16 %v4700
        %v5583 = vunpack.c.l.b16 %v4701
        %v5584 = vunpack.c.h.b16 %v4701
        %v5585 = vunpack.c.l.b16 %v4702
        %v5586 = vunpack.c.h.b16 %v4702
        %v5587 = vunpack.c.l.b16 %v4703
        %v5588 = vunpack.c.h.b16 %v4703
        %v5589 = vunpack.c.l.b16 %v4704
        %v5590 = vunpack.c.h.b16 %v4704
        %v5591 = vunpack.c.l.b16 %v4705
        %v5592 = vunpack.c.h.b16 %v4705
        %v5593 = vunpack.c.l.b16 %v4706
        %v5594 = vunpack.c.h.b16 %v4706
        %v5595 = vunpack.c.l.b16 %v4707
        %v5596 = vunpack.c.h.b16 %v4707
        %v5597 = vunpack.c.l.b16 %v4708
        %v5598 = vunpack.c.h.b16 %v4708
        %v5599 = vunpack.c.l.b16 %v4709
        %v5600 = vunpack.c.h.b16 %v4709
        %v5601 = vunpack.c.l.b16 %v4710
        %v5602 = vunpack.c.h.b16 %v4710
        %v5603 = vunpack.c.l.b16 %v4711
        %v5604 = vunpack.c.h.b16 %v4711
        %v5605 = vunpack.c.l.b16 %v4712
        %v5606 = vunpack.c.h.b16 %v4712
        %v5607 = vunpack.c.l.b16 %v4713
        %v5608 = vunpack.c.h.b16 %v4713
        %v5609 = vunpack.c.l.b16 %v4714
        %v5610 = vunpack.c.h.b16 %v4714
        %v5611 = vunpack.c.l.b16 %v4715
        %v5612 = vunpack.c.h.b16 %v4715
        %v5613 = vunpack.c.l.b16 %v4716
        %v5614 = vunpack.c.h.b16 %v4716
        %v5615 = vunpack.c.l.b16 %v4717
        %v5616 = vunpack.c.h.b16 %v4717
        %v5617 = vunpack.c.l.b16 %v4718
        %v5618 = vunpack.c.h.b16 %v4718
        %v5619 = vunpack.c.l.b16 %v4719
        %v5620 = vunpack.c.h.b16 %v4719
        %v5621 = vunpack.c.l.b16 %v4720
        %v5622 = vunpack.c.h.b16 %v4720
        %v5623 = vunpack.c.l.b16 %v4721
        %v5624 = vunpack.c.h.b16 %v4721
        %v5625 = vunpack.c.l.b16 %v4722
        %v5626 = vunpack.c.h.b16 %v4722
        %v5627 = vunpack.c.l.b16 %v4723
        %v5628 = vunpack.c.h.b16 %v4723
        %v5629 = vunpack.c.l.b16 %v4724
        %v5630 = vunpack.c.h.b16 %v4724
        %v5631 = vunpack.c.l.b16 %v4725
        %v5632 = vunpack.c.h.b16 %v4725
        %v5633 = vunpack.c.l.b16 %v4726
        %v5634 = vunpack.c.h.b16 %v4726
        %v5635 = vunpack.c.l.b16 %v4727
        %v5636 = vunpack.c.h.b16 %v4727
        %v5637 = vunpack.c.l.b16 %v4728
        %v5638 = vunpack.c.h.b16 %v4728
        %v5639 = vunpack.c.l.b16 %v4729
        %v5640 = vunpack.c.h.b16 %v4729
        %v5641 = vunpack.c.l.b16 %v4730
        %v5642 = vunpack.c.h.b16 %v4730
        %v5643 = vunpack.c.l.b16 %v4731
        %v5644 = vunpack.c.h.b16 %v4731
        %v5645 = vunpack.c.l.b16 %v4732
        %v5646 = vunpack.c.h.b16 %v4732
        %v5647 = vunpack.c.l.b16 %v4733
        %v5648 = vunpack.c.h.b16 %v4733
        %v5649 = vunpack.c.l.b16 %v4734
        %v5650 = vunpack.c.h.b16 %v4734
        %v5651 = vunpack.c.l.b16 %v4735
        %v5652 = vunpack.c.h.b16 %v4735
        %v5653 = vunpack.c.l.b16 %v4736
        %v5654 = vunpack.c.h.b16 %v4736
        %v5655 = vunpack.c.l.b16 %v4737
        %v5656 = vunpack.c.h.b16 %v4737
        %v5657 = vunpack.c.l.b16 %v4738
        %v5658 = vunpack.c.h.b16 %v4738
        %v5659 = vunpack.c.l.b16 %v4739
        %v5660 = vunpack.c.h.b16 %v4739
        %v5661 = vunpack.c.l.b16 %v4740
        %v5662 = vunpack.c.h.b16 %v4740
        %v5663 = vunpack.c.l.b16 %v4741
        %v5664 = vunpack.c.h.b16 %v4741
        %v5665 = vunpack.c.l.b16 %v4742
        %v5666 = vunpack.c.h.b16 %v4742
        %v5667 = vunpack.c.l.b16 %v4743
        %v5668 = vunpack.c.h.b16 %v4743
        %v5669 = vunpack.c.l.b16 %v4744
        %v5670 = vunpack.c.h.b16 %v4744
        %v5671 = vunpack.c.l.b16 %v4745
        %v5672 = vunpack.c.h.b16 %v4745
        %v5673 = vunpack.c.l.b16 %v4746
        %v5674 = vunpack.c.h.b16 %v4746
        %v5675 = vunpack.c.l.b16 %v4747
        %v5676 = vunpack.c.h.b16 %v4747
        %v5677 = vunpack.c.l.b16 %v4748
        %v5678 = vunpack.c.h.b16 %v4748
        %v5679 = vunpack.c.l.b16 %v4749
        %v5680 = vunpack.c.h.b16 %v4749
        %v5681 = vunpack.c.l.b16 %v4750
        %v5682 = vunpack.c.h.b16 %v4750
        %v5683 = vunpack.c.l.b16 %v4751
        %v5684 = vunpack.c.h.b16 %v4751
        %v5685 = vunpack.c.l.b16 %v4752
        %v5686 = vunpack.c.h.b16 %v4752
        %v5687 = vunpack.c.l.b16 %v4753
        %v5688 = vunpack.c.h.b16 %v4753
        %v5689 = vunpack.c.l.b16 %v4754
        %v5690 = vunpack.c.h.b16 %v4754
        %v5691 = vunpack.c.l.b16 %v4755
        %v5692 = vunpack.c.h.b16 %v4755
        %v5693 = vunpack.c.l.b16 %v4756
        %v5694 = vunpack.c.h.b16 %v4756
        %v5695 = vunpack.c.l.b16 %v4757
        %v5696 = vunpack.c.h.b16 %v4757
        %v5697 = vunpack.c.l.b16 %v4758
        %v5698 = vunpack.c.h.b16 %v4758
        %v5699 = vunpack.c.l.b16 %v4759
        %v5700 = vunpack.c.h.b16 %v4759
        %v5701 = vunpack.c.l.b16 %v4760
        %v5702 = vunpack.c.h.b16 %v4760
        %v5703 = vunpack.c.l.b16 %v4761
        %v5704 = vunpack.c.h.b16 %v4761
        %v5705 = vunpack.c.l.b16 %v4762
        %v5706 = vunpack.c.h.b16 %v4762
        %v5707 = vunpack.c.l.b16 %v4763
        %v5708 = vunpack.c.h.b16 %v4763
        %v5709 = vunpack.c.l.b16 %v4764
        %v5710 = vunpack.c.h.b16 %v4764
        %v5711 = vunpack.c.l.b16 %v4765
        %v5712 = vunpack.c.h.b16 %v4765
        %v5713 = vunpack.c.l.b16 %v4766
        %v5714 = vunpack.c.h.b16 %v4766
        %v5715 = vunpack.c.l.b16 %v4767
        %v5716 = vunpack.c.h.b16 %v4767
        %v5717 = vunpack.c.l.b16 %v4768
        %v5718 = vunpack.c.h.b16 %v4768
        %v5719 = vunpack.c.l.b16 %v4769
        %v5720 = vunpack.c.h.b16 %v4769
        %v5721 = vunpack.c.l.b16 %v4770
        %v5722 = vunpack.c.h.b16 %v4770
        %v5723 = vunpack.c.l.b16 %v4771
        %v5724 = vunpack.c.h.b16 %v4771
        %v5725 = vunpack.c.l.b16 %v4772
        %v5726 = vunpack.c.h.b16 %v4772
        %v5727 = vunpack.c.l.b16 %v4773
        %v5728 = vunpack.c.h.b16 %v4773
        %v5729 = vunpack.c.l.b16 %v4774
        %v5730 = vunpack.c.h.b16 %v4774
        %v5731 = vunpack.c.l.b16 %v4775
        %v5732 = vunpack.c.h.b16 %v4775
        %v5733 = vunpack.c.l.b16 %v4776
        %v5734 = vunpack.c.h.b16 %v4776
        %v5735 = vunpack.c.l.b16 %v4777
        %v5736 = vunpack.c.h.b16 %v4777
        %v5737 = vunpack.c.l.b16 %v4778
        %v5738 = vunpack.c.h.b16 %v4778
        %v5739 = vunpack.c.l.b16 %v4779
        %v5740 = vunpack.c.h.b16 %v4779
        %v5741 = vunpack.c.l.b16 %v4780
        %v5742 = vunpack.c.h.b16 %v4780
        %v5743 = vunpack.c.l.b16 %v4781
        %v5744 = vunpack.c.h.b16 %v4781
        %v5745 = vunpack.c.l.b16 %v4782
        %v5746 = vunpack.c.h.b16 %v4782
        %v5747 = vunpack.c.l.b16 %v4783
        %v5748 = vunpack.c.h.b16 %v4783
        %v5749 = vunpack.c.l.b16 %v4784
        %v5750 = vunpack.c.h.b16 %v4784
        %v5751 = vunpack.c.l.b16 %v4785
        %v5752 = vunpack.c.h.b16 %v4785
        %v5753 = vunpack.c.l.b16 %v4786
        %v5754 = vunpack.c.h.b16 %v4786
        %v5755 = vunpack.c.l.b16 %v4787
        %v5756 = vunpack.c.h.b16 %v4787
        %v5757 = vunpack.c.l.b16 %v4788
        %v5758 = vunpack.c.h.b16 %v4788
        %v5759 = vunpack.c.l.b16 %v4789
        %v5760 = vunpack.c.h.b16 %v4789
        %v5761 = vunpack.c.l.b16 %v4790
        %v5762 = vunpack.c.h.b16 %v4790
        %v5763 = vunpack.c.l.b16 %v4791
        %v5764 = vunpack.c.h.b16 %v4791
        %v5765 = vunpack.c.l.b16 %v4792
        %v5766 = vunpack.c.h.b16 %v4792
        %v5767 = vunpack.c.l.b16 %v4793
        %v5768 = vunpack.c.h.b16 %v4793
        %v5769 = vunpack.c.l.b16 %v4794
        %v5770 = vunpack.c.h.b16 %v4794
        %v5771 = vunpack.c.l.b16 %v4795
        %v5772 = vunpack.c.h.b16 %v4795
        %v5773 = vunpack.c.l.b16 %v4796
        %v5774 = vunpack.c.h.b16 %v4796
        %v5775 = vunpack.c.l.b16 %v4797
        %v5776 = vunpack.c.h.b16 %v4797
        %v5777 = vunpack.c.l.b16 %v4798
        %v5778 = vunpack.c.h.b16 %v4798
        %v5779 = vunpack.c.l.b16 %v4799
        %v5780 = vunpack.c.h.b16 %v4799
        %v5781 = vunpack.c.l.b16 %v4800
        %v5782 = vunpack.c.h.b16 %v4800
        %v5783 = vunpack.c.l.b16 %v4801
        %v5784 = vunpack.c.h.b16 %v4801
        %v5785 = vunpack.c.l.b16 %v4802
        %v5786 = vunpack.c.h.b16 %v4802
        %v5787 = vunpack.c.l.b16 %v4803
        %v5788 = vunpack.c.h.b16 %v4803
        %v5789 = vunpack.c.l.b16 %v4804
        %v5790 = vunpack.c.h.b16 %v4804
        %v5791 = vunpack.c.l.b16 %v4805
        %v5792 = vunpack.c.h.b16 %v4805
        %v5793 = vunpack.c.l.b16 %v4806
        %v5794 = vunpack.c.h.b16 %v4806
        %v5795 = vunpack.c.l.b16 %v4807
        %v5796 = vunpack.c.h.b16 %v4807
        %v5797 = vunpack.c.l.b16 %v4808
        %v5798 = vunpack.c.h.b16 %v4808
        %v5799 = vunpack.c.l.b16 %v4809
        %v5800 = vunpack.c.h.b16 %v4809
        %v5801 = vunpack.c.l.b16 %v4810
        %v5802 = vunpack.c.h.b16 %v4810
        %v5803 = vunpack.c.l.b16 %v4811
        %v5804 = vunpack.c.h.b16 %v4811
        %v5805 = vunpack.c.l.b16 %v4812
        %v5806 = vunpack.c.h.b16 %v4812
        %v5807 = vunpack.c.l.b16 %v4813
        %v5808 = vunpack.c.h.b16 %v4813
        %v5809 = vunpack.c.l.b16 %v4814
        %v5810 = vunpack.c.h.b16 %v4814
        %v5811 = vunpack.c.l.b16 %v4815
        %v5812 = vunpack.c.h.b16 %v4815
        %v5813 = vunpack.c.l.b16 %v4816
        %v5814 = vunpack.c.h.b16 %v4816
        %v5815 = vunpack.c.l.b16 %v4817
        %v5816 = vunpack.c.h.b16 %v4817
        %v5817 = vunpack.c.l.b16 %v4818
        %v5818 = vunpack.c.h.b16 %v4818
        %v5819 = vunpack.c.l.b16 %v4819
        %v5820 = vunpack.c.h.b16 %v4819
        %v5821 = vunpack.c.l.b16 %v4820
        %v5822 = vunpack.c.h.b16 %v4820
        %v5823 = vunpack.c.l.b16 %v4821
        %v5824 = vunpack.c.h.b16 %v4821
        %v5825 = vunpack.c.l.b16 %v4822
        %v5826 = vunpack.c.h.b16 %v4822
        %v5827 = vunpack.c.l.b16 %v4823
        %v5828 = vunpack.c.h.b16 %v4823
        %v5829 = vunpack.c.l.b16 %v4824
        %v5830 = vunpack.c.h.b16 %v4824
        %v5831 = vunpack.c.l.b16 %v4825
        %v5832 = vunpack.c.h.b16 %v4825
        %v5833 = vunpack.c.l.b16 %v4826
        %v5834 = vunpack.c.h.b16 %v4826
        %v5835 = vunpack.c.l.b16 %v4827
        %v5836 = vunpack.c.h.b16 %v4827
        %v5837 = vunpack.c.l.b16 %v4828
        %v5838 = vunpack.c.h.b16 %v4828
        %v5839 = vunpack.c.l.b16 %v4829
        %v5840 = vunpack.c.h.b16 %v4829
        %v5841 = vunpack.c.l.b16 %v4830
        %v5842 = vunpack.c.h.b16 %v4830
        %v5843 = vunpack.c.l.b16 %v4831
        %v5844 = vunpack.c.h.b16 %v4831
        %v5845 = vunpack.c.l.b16 %v4832
        %v5846 = vunpack.c.h.b16 %v4832
        %v5847 = vunpack.c.l.b16 %v4833
        %v5848 = vunpack.c.h.b16 %v4833
        %v5849 = vunpack.c.l.b16 %v4834
        %v5850 = vunpack.c.h.b16 %v4834
        %v5851 = vunpack.c.l.b16 %v4835
        %v5852 = vunpack.c.h.b16 %v4835
        %v5853 = vunpack.c.l.b16 %v4836
        %v5854 = vunpack.c.h.b16 %v4836
        %v5855 = vunpack.c.l.b16 %v4837
        %v5856 = vunpack.c.h.b16 %v4837
        %v5857 = vunpack.c.l.b16 %v4838
        %v5858 = vunpack.c.h.b16 %v4838
        %v5859 = vunpack.c.l.b16 %v4839
        %v5860 = vunpack.c.h.b16 %v4839
        %v5861 = vunpack.c.l.b16 %v4840
        %v5862 = vunpack.c.h.b16 %v4840
        %v5863 = vunpack.c.l.b16 %v4841
        %v5864 = vunpack.c.h.b16 %v4841
        %v5865 = vunpack.c.l.b16 %v4842
        %v5866 = vunpack.c.h.b16 %v4842
        %v5867 = vunpack.c.l.b16 %v4843
        %v5868 = vunpack.c.h.b16 %v4843
        %v5869 = vunpack.c.l.b16 %v4844
        %v5870 = vunpack.c.h.b16 %v4844
        %v5871 = vunpack.c.l.b16 %v4845
        %v5872 = vunpack.c.h.b16 %v4845
        %v5873 = vunpack.c.l.b16 %v4846
        %v5874 = vunpack.c.h.b16 %v4846
        %v5875 = vunpack.c.l.b16 %v4847
        %v5876 = vunpack.c.h.b16 %v4847
        %v5877 = vunpack.c.l.b16 %v4848
        %v5878 = vunpack.c.h.b16 %v4848
        %v5879 = vunpack.c.l.b16 %v4849
        %v5880 = vunpack.c.h.b16 %v4849
        %v5881 = vunpack.c.l.b16 %v4850
        %v5882 = vunpack.c.h.b16 %v4850
        %v5883 = vunpack.c.l.b16 %v4851
        %v5884 = vunpack.c.h.b16 %v4851
        %v5885 = vunpack.c.l.b16 %v4852
        %v5886 = vunpack.c.h.b16 %v4852
        %v5887 = vunpack.c.l.b16 %v4853
        %v5888 = vunpack.c.h.b16 %v4853
        %v5889 = vunpack.c.l.b16 %v4854
        %v5890 = vunpack.c.h.b16 %v4854
        %v5891 = vunpack.c.l.b16 %v4855
        %v5892 = vunpack.c.h.b16 %v4855
        %v5893 = vunpack.c.l.b16 %v4856
        %v5894 = vunpack.c.h.b16 %v4856
        %v5895 = vunpack.c.l.b16 %v4857
        %v5896 = vunpack.c.h.b16 %v4857
        %v5897 = vunpack.c.l.b16 %v4858
        %v5898 = vunpack.c.h.b16 %v4858
        %v5899 = vunpack.c.l.b16 %v4859
        %v5900 = vunpack.c.h.b16 %v4859
        %v5901 = vunpack.c.l.b16 %v4860
        %v5902 = vunpack.c.h.b16 %v4860
        %v5903 = vunpack.c.l.b16 %v4861
        %v5904 = vunpack.c.h.b16 %v4861
        %v5905 = vunpack.c.l.b16 %v4862
        %v5906 = vunpack.c.h.b16 %v4862
        %v5907 = vunpack.c.l.b16 %v4863
        %v5908 = vunpack.c.h.b16 %v4863
        %v5909 = vunpack.c.l.b16 %v4864
        %v5910 = vunpack.c.h.b16 %v4864
        %v5911 = vunpack.c.l.b16 %v4865
        %v5912 = vunpack.c.h.b16 %v4865
        %v5913 = vunpack.c.l.b16 %v4866
        %v5914 = vunpack.c.h.b16 %v4866
        %v5915 = vunpack.c.l.b16 %v4867
        %v5916 = vunpack.c.h.b16 %v4867
        %v5917 = vunpack.c.l.b16 %v4868
        %v5918 = vunpack.c.h.b16 %v4868
        %v5919 = vunpack.c.l.b16 %v4869
        %v5920 = vunpack.c.h.b16 %v4869
        %v5921 = vunpack.c.l.b16 %v4870
        %v5922 = vunpack.c.h.b16 %v4870
        %v5923 = vunpack.c.l.b16 %v4871
        %v5924 = vunpack.c.h.b16 %v4871
        %v5925 = vunpack.c.l.b16 %v4872
        %v5926 = vunpack.c.h.b16 %v4872
        %v5927 = vunpack.c.l.b16 %v4873
        %v5928 = vunpack.c.h.b16 %v4873
        %v5929 = vunpack.c.l.b16 %v4874
        %v5930 = vunpack.c.h.b16 %v4874
        %v5931 = vunpack.c.l.b16 %v4875
        %v5932 = vunpack.c.h.b16 %v4875
        %v5933 = vunpack.c.l.b16 %v4876
        %v5934 = vunpack.c.h.b16 %v4876
        %v5935 = vunpack.c.l.b16 %v4877
        %v5936 = vunpack.c.h.b16 %v4877
        %v5937 = vunpack.c.l.b16 %v4878
        %v5938 = vunpack.c.h.b16 %v4878
        %v5939 = vunpack.c.l.b16 %v4879
        %v5940 = vunpack.c.h.b16 %v4879
        %v5941 = vunpack.c.l.b16 %v4880
        %v5942 = vunpack.c.h.b16 %v4880
        %v5943 = vunpack.c.l.b16 %v4881
        %v5944 = vunpack.c.h.b16 %v4881
        %v5945 = vunpack.c.l.b16 %v4882
        %v5946 = vunpack.c.h.b16 %v4882
        %v5947 = vunpack.c.l.b16 %v4883
        %v5948 = vunpack.c.h.b16 %v4883
        %v5949 = vunpack.c.l.b16 %v4884
        %v5950 = vunpack.c.h.b16 %v4884
        %v5951 = vunpack.c.l.b16 %v4885
        %v5952 = vunpack.c.h.b16 %v4885
        %v5953 = vunpack.c.l.b16 %v4886
        %v5954 = vunpack.c.h.b16 %v4886
        %v5955 = vunpack.c.l.b16 %v4887
        %v5956 = vunpack.c.h.b16 %v4887
        %v5957 = vunpack.c.l.b16 %v4888
        %v5958 = vunpack.c.h.b16 %v4888
        %v5959 = vunpack.c.l.b16 %v4889
        %v5960 = vunpack.c.h.b16 %v4889
        %v5961 = vunpack.c.l.b16 %v4890
        %v5962 = vunpack.c.h.b16 %v4890
        %v5963 = vunpack.c.l.b16 %v4891
        %v5964 = vunpack.c.h.b16 %v4891
        %v5965 = vunpack.c.l.b16 %v4892
        %v5966 = vunpack.c.h.b16 %v4892
        %v5967 = vunpack.c.l.b16 %v4893
        %v5968 = vunpack.c.h.b16 %v4893
        %v5969 = vunpack.c.l.b16 %v4894
        %v5970 = vunpack.c.h.b16 %v4894
        %v5971 = vunpack.c.l.b16 %v4895
        %v5972 = vunpack.c.h.b16 %v4895
        %v5973 = vunpack.c.l.b16 %v4896
        %v5974 = vunpack.c.h.b16 %v4896
        %v5975 = vunpack.c.l.b16 %v4897
        %v5976 = vunpack.c.h.b16 %v4897
        %v5977 = vunpack.c.l.b16 %v4898
        %v5978 = vunpack.c.h.b16 %v4898
        %v5979 = vunpack.c.l.b16 %v4899
        %v5980 = vunpack.c.h.b16 %v4899
        %v5981 = vunpack.c.l.b16 %v4900
        %v5982 = vunpack.c.h.b16 %v4900
        %v5983 = vunpack.c.l.b16 %v4901
        %v5984 = vunpack.c.h.b16 %v4901
        %v5985 = vunpack.c.l.b16 %v4902
        %v5986 = vunpack.c.h.b16 %v4902
        %v5987 = vunpack.c.l.b16 %v4903
        %v5988 = vunpack.c.h.b16 %v4903
        %v5989 = vunpack.c.l.b16 %v4904
        %v5990 = vunpack.c.h.b16 %v4904
        %v5991 = vunpack.c.l.b16 %v4905
        %v5992 = vunpack.c.h.b16 %v4905
        %v5993 = vunpack.c.l.b16 %v4906
        %v5994 = vunpack.c.h.b16 %v4906
        %v5995 = vunpack.c.l.b16 %v4907
        %v5996 = vunpack.c.h.b16 %v4907
        %v5997 = vunpack.c.l.b16 %v4908
        %v5998 = vunpack.c.h.b16 %v4908
        %v5999 = vunpack.c.l.b16 %v4909
        %v6000 = vunpack.c.h.b16 %v4909
        %v6001 = vunpack.c.l.b16 %v4910
        %v6002 = vunpack.c.h.b16 %v4910
        %v6003 = vunpack.c.l.b16 %v4911
        %v6004 = vunpack.c.h.b16 %v4911
        %v6005 = vunpack.c.l.b16 %v4912
        %v6006 = vunpack.c.h.b16 %v4912
        %v6007 = vunpack.c.l.b16 %v4913
        %v6008 = vunpack.c.h.b16 %v4913
        %v6009 = vunpack.c.l.b16 %v4914
        %v6010 = vunpack.c.h.b16 %v4914
        %v6011 = vunpack.c.l.b16 %v4915
        %v6012 = vunpack.c.h.b16 %v4915
        %v6013 = vunpack.c.l.b16 %v4916
        %v6014 = vunpack.c.h.b16 %v4916
        %v6015 = vunpack.c.l.b16 %v4917
        %v6016 = vunpack.c.h.b16 %v4917
        %v6017 = vunpack.c.l.b16 %v4918
        %v6018 = vunpack.c.h.b16 %v4918
        %v6019 = vunpack.c.l.b16 %v4919
        %v6020 = vunpack.c.h.b16 %v4919
        %v6021 = vunpack.c.l.b16 %v4920
        %v6022 = vunpack.c.h.b16 %v4920
        %v6023 = vunpack.c.l.b16 %v4921
        %v6024 = vunpack.c.h.b16 %v4921
        %v6025 = vunpack.c.l.b16 %v4922
        %v6026 = vunpack.c.h.b16 %v4922
        %v6027 = vunpack.c.l.b16 %v4923
        %v6028 = vunpack.c.h.b16 %v4923
        %v6029 = vunpack.c.l.b16 %v4924
        %v6030 = vunpack.c.h.b16 %v4924
        %v6031 = vunpack.c.l.b16 %v4925
        %v6032 = vunpack.c.h.b16 %v4925
        %v6033 = vunpack.c.l.b16 %v4926
        %v6034 = vunpack.c.h.b16 %v4926
        %v6035 = vunpack.c.l.b16 %v4927
        %v6036 = vunpack.c.h.b16 %v4927
        %v6037 = vunpack.c.l.b16 %v4928
        %v6038 = vunpack.c.h.b16 %v4928
        %v6039 = vunpack.c.l.b16 %v4929
        %v6040 = vunpack.c.h.b16 %v4929
        %v6041 = vunpack.c.l.b16 %v4930
        %v6042 = vunpack.c.h.b16 %v4930
        %v6043 = vunpack.c.l.b16 %v4931
        %v6044 = vunpack.c.h.b16 %v4931
        %v6045 = vunpack.c.l.b16 %v4932
        %v6046 = vunpack.c.h.b16 %v4932
        %v6047 = vunpack.c.l.b16 %v4933
        %v6048 = vunpack.c.h.b16 %v4933
        %v6049 = vunpack.c.l.b16 %v4934
        %v6050 = vunpack.c.h.b16 %v4934
        %v6051 = vunpack.c.l.b16 %v4935
        %v6052 = vunpack.c.h.b16 %v4935
        %v6053 = vunpack.c.l.b16 %v4936
        %v6054 = vunpack.c.h.b16 %v4936
        %v6055 = vunpack.c.l.b16 %v4937
        %v6056 = vunpack.c.h.b16 %v4937
        %v6057 = vunpack.c.l.b16 %v4938
        %v6058 = vunpack.c.h.b16 %v4938
        %v6059 = vunpack.c.l.b16 %v4939
        %v6060 = vunpack.c.h.b16 %v4939
        %v6061 = vunpack.c.l.b16 %v4940
        %v6062 = vunpack.c.h.b16 %v4940
        %v6063 = vunpack.c.l.b16 %v4941
        %v6064 = vunpack.c.h.b16 %v4941
        %v6065 = vunpack.c.l.b16 %v4942
        %v6066 = vunpack.c.h.b16 %v4942
        %v6067 = vunpack.c.l.b16 %v4943
        %v6068 = vunpack.c.h.b16 %v4943
        %v6069 = vunpack.c.l.b16 %v4944
        %v6070 = vunpack.c.h.b16 %v4944
        %v6071 = vunpack.c.l.b16 %v4945
        %v6072 = vunpack.c.h.b16 %v4945
        %v6073 = vunpack.c.l.b16 %v4946
        %v6074 = vunpack.c.h.b16 %v4946
        %v6075 = vunpack.c.l.b16 %v4947
        %v6076 = vunpack.c.h.b16 %v4947
        %v6077 = vunpack.c.l.b16 %v4948
        %v6078 = vunpack.c.h.b16 %v4948
        %v6079 = vunpack.c.l.b16 %v4949
        %v6080 = vunpack.c.h.b16 %v4949
        %v6081 = vunpack.c.l.b16 %v4950
        %v6082 = vunpack.c.h.b16 %v4950
        %v6083 = vunpack.c.l.b16 %v4951
        %v6084 = vunpack.c.h.b16 %v4951
        %v6085 = vunpack.c.l.b16 %v4952
        %v6086 = vunpack.c.h.b16 %v4952
        %v6087 = vunpack.c.l.b16 %v4953
        %v6088 = vunpack.c.h.b16 %v4953
        %v6089 = vunpack.c.l.b16 %v4954
        %v6090 = vunpack.c.h.b16 %v4954
        %v6091 = vunpack.c.l.b16 %v4955
        %v6092 = vunpack.c.h.b16 %v4955
        %v6093 = vunpack.c.l.b16 %v4956
        %v6094 = vunpack.c.h.b16 %v4956
        %v6095 = vunpack.c.l.b16 %v4957
        %v6096 = vunpack.c.h.b16 %v4957
        %v6097 = vunpack.c.l.b16 %v4958
        %v6098 = vunpack.c.h.b16 %v4958
        %v6099 = vunpack.c.l.b16 %v4959
        %v6100 = vunpack.c.h.b16 %v4959
        %v6101 = vunpack.c.l.b16 %v4960
        %v6102 = vunpack.c.h.b16 %v4960
        %v6103 = vunpack.c.l.b16 %v4961
        %v6104 = vunpack.c.h.b16 %v4961
        %v6105 = vunpack.c.l.b16 %v4962
        %v6106 = vunpack.c.h.b16 %v4962
        %v6107 = vunpack.c.l.b16 %v4963
        %v6108 = vunpack.c.h.b16 %v4963
        %v6109 = vunpack.c.l.b16 %v4964
        %v6110 = vunpack.c.h.b16 %v4964
        %v6111 = vunpack.c.l.b16 %v4965
        %v6112 = vunpack.c.h.b16 %v4965
        %v6113 = vunpack.c.l.b16 %v4966
        %v6114 = vunpack.c.h.b16 %v4966
        %v6115 = vunpack.c.l.b16 %v4967
        %v6116 = vunpack.c.h.b16 %v4967
        %v6117 = vunpack.c.l.b16 %v4968
        %v6118 = vunpack.c.h.b16 %v4968
        %v6119 = vunpack.c.l.b16 %v4969
        %v6120 = vunpack.c.h.b16 %v4969
        %v6121 = vunpack.c.l.b16 %v4970
        %v6122 = vunpack.c.h.b16 %v4970
        %v6123 = vpack.c.b16 %v5359, %v5355
        %v6124 = vpack.c.b16 %v5360, %v5356
        %v6125 = vpack.c.b16 %v5361, %v5357
        %v6126 = vpack.c.b16 %v5362, %v5358
        %v6127 = vpack.c.b16 %v5367, %v5363
        %v6128 = vpack.c.b16 %v5368, %v5364
        %v6129 = vpack.c.b16 %v5369, %v5365
        %v6130 = vpack.c.b16 %v5370, %v5366
        %v6131 = vpack.c.b16 %v5375, %v5371
        %v6132 = vpack.c.b16 %v5376, %v5372
        %v6133 = vpack.c.b16 %v5377, %v5373
        %v6134 = vpack.c.b16 %v5378, %v5374
        %v6135 = vpack.c.b16 %v5383, %v5379
        %v6136 = vpack.c.b16 %v5384, %v5380
        %v6137 = vpack.c.b16 %v5385, %v5381
        %v6138 = vpack.c.b16 %v5386, %v5382
        %v6139 = vpack.c.b16 %v5391, %v5387
        %v6140 = vpack.c.b16 %v5392, %v5388
        %v6141 = vpack.c.b16 %v5393, %v5389
        %v6142 = vpack.c.b16 %v5394, %v5390
        %v6143 = vpack.c.b16 %v5399, %v5395
        %v6144 = vpack.c.b16 %v5400, %v5396
        %v6145 = vpack.c.b16 %v5401, %v5397
        %v6146 = vpack.c.b16 %v5402, %v5398
        %v6147 = vpack.c.b16 %v5407, %v5403
        %v6148 = vpack.c.b16 %v5408, %v5404
        %v6149 = vpack.c.b16 %v5409, %v5405
        %v6150 = vpack.c.b16 %v5410, %v5406
        %v6151 = vpack.c.b16 %v5415, %v5411
        %v6152 = vpack.c.b16 %v5416, %v5412
        %v6153 = vpack.c.b16 %v5417, %v5413
        %v6154 = vpack.c.b16 %v5418, %v5414
        %v6155 = vpack.c.b16 %v5423, %v5419
        %v6156 = vpack.c.b16 %v5424, %v5420
        %v6157 = vpack.c.b16 %v5425, %v5421
        %v6158 = vpack.c.b16 %v5426, %v5422
        %v6159 = vpack.c.b16 %v5431, %v5427
        %v6160 = vpack.c.b16 %v5432, %v5428
        %v6161 = vpack.c.b16 %v5433, %v5429
        %v6162 = vpack.c.b16 %v5434, %v5430
        %v6163 = vpack.c.b16 %v5439, %v5435
        %v6164 = vpack.c.b16 %v5440, %v5436
        %v6165 = vpack.c.b16 %v5441, %v5437
        %v6166 = vpack.c.b16 %v5442, %v5438
        %v6167 = vpack.c.b16 %v5447, %v5443
        %v6168 = vpack.c.b16 %v5448, %v5444
        %v6169 = vpack.c.b16 %v5449, %v5445
        %v6170 = vpack.c.b16 %v5450, %v5446
        %v6171 = vpack.c.b16 %v5455, %v5451
        %v6172 = vpack.c.b16 %v5456, %v5452
        %v6173 = vpack.c.b16 %v5457, %v5453
        %v6174 = vpack.c.b16 %v5458, %v5454
        %v6175 = vpack.c.b16 %v5463, %v5459
        %v6176 = vpack.c.b16 %v5464, %v5460
        %v6177 = vpack.c.b16 %v5465, %v5461
        %v6178 = vpack.c.b16 %v5466, %v5462
        %v6179 = vpack.c.b16 %v5471, %v5467
        %v6180 = vpack.c.b16 %v5472, %v5468
        %v6181 = vpack.c.b16 %v5473, %v5469
        %v6182 = vpack.c.b16 %v5474, %v5470
        %v6183 = vpack.c.b16 %v5479, %v5475
        %v6184 = vpack.c.b16 %v5480, %v5476
        %v6185 = vpack.c.b16 %v5481, %v5477
        %v6186 = vpack.c.b16 %v5482, %v5478
        %v6187 = vpack.c.b16 %v5487, %v5483
        %v6188 = vpack.c.b16 %v5488, %v5484
        %v6189 = vpack.c.b16 %v5489, %v5485
        %v6190 = vpack.c.b16 %v5490, %v5486
        %v6191 = vpack.c.b16 %v5495, %v5491
        %v6192 = vpack.c.b16 %v5496, %v5492
        %v6193 = vpack.c.b16 %v5497, %v5493
        %v6194 = vpack.c.b16 %v5498, %v5494
        %v6195 = vpack.c.b16 %v5503, %v5499
        %v6196 = vpack.c.b16 %v5504, %v5500
        %v6197 = vpack.c.b16 %v5505, %v5501
        %v6198 = vpack.c.b16 %v5506, %v5502
        %v6199 = vpack.c.b16 %v5511, %v5507
        %v6200 = vpack.c.b16 %v5512, %v5508
        %v6201 = vpack.c.b16 %v5513, %v5509
        %v6202 = vpack.c.b16 %v5514, %v5510
        %v6203 = vpack.c.b16 %v5519, %v5515
        %v6204 = vpack.c.b16 %v5520, %v5516
        %v6205 = vpack.c.b16 %v5521, %v5517
        %v6206 = vpack.c.b16 %v5522, %v5518
        %v6207 = vpack.c.b16 %v5527, %v5523
        %v6208 = vpack.c.b16 %v5528, %v5524
        %v6209 = vpack.c.b16 %v5529, %v5525
        %v6210 = vpack.c.b16 %v5530, %v5526
        %v6211 = vpack.c.b16 %v5535, %v5531
        %v6212 = vpack.c.b16 %v5536, %v5532
        %v6213 = vpack.c.b16 %v5537, %v5533
        %v6214 = vpack.c.b16 %v5538, %v5534
        %v6215 = vpack.c.b16 %v5543, %v5539
        %v6216 = vpack.c.b16 %v5544, %v5540
        %v6217 = vpack.c.b16 %v5545, %v5541
        %v6218 = vpack.c.b16 %v5546, %v5542
        %v6219 = vpack.c.b16 %v5551, %v5547
        %v6220 = vpack.c.b16 %v5552, %v5548
        %v6221 = vpack.c.b16 %v5553, %v5549
        %v6222 = vpack.c.b16 %v5554, %v5550
        %v6223 = vpack.c.b16 %v5559, %v5555
        %v6224 = vpack.c.b16 %v5560, %v5556
        %v6225 = vpack.c.b16 %v5561, %v5557
        %v6226 = vpack.c.b16 %v5562, %v5558
        %v6227 = vpack.c.b16 %v5567, %v5563
        %v6228 = vpack.c.b16 %v5568, %v5564
        %v6229 = vpack.c.b16 %v5569, %v5565
        %v6230 = vpack.c.b16 %v5570, %v5566
        %v6231 = vpack.c.b16 %v5575, %v5571
        %v6232 = vpack.c.b16 %v5576, %v5572
        %v6233 = vpack.c.b16 %v5577, %v5573
        %v6234 = vpack.c.b16 %v5578, %v5574
        %v6235 = vpack.c.b16 %v5583, %v5579
        %v6236 = vpack.c.b16 %v5584, %v5580
        %v6237 = vpack.c.b16 %v5585, %v5581
        %v6238 = vpack.c.b16 %v5586, %v5582
        %v6239 = vpack.c.b16 %v5591, %v5587
        %v6240 = vpack.c.b16 %v5592, %v5588
        %v6241 = vpack.c.b16 %v5593, %v5589
        %v6242 = vpack.c.b16 %v5594, %v5590
        %v6243 = vpack.c.b16 %v5599, %v5595
        %v6244 = vpack.c.b16 %v5600, %v5596
        %v6245 = vpack.c.b16 %v5601, %v5597
        %v6246 = vpack.c.b16 %v5602, %v5598
        %v6247 = vpack.c.b16 %v5607, %v5603
        %v6248 = vpack.c.b16 %v5608, %v5604
        %v6249 = vpack.c.b16 %v5609, %v5605
        %v6250 = vpack.c.b16 %v5610, %v5606
        %v6251 = vpack.c.b16 %v5615, %v5611
        %v6252 = vpack.c.b16 %v5616, %v5612
        %v6253 = vpack.c.b16 %v5617, %v5613
        %v6254 = vpack.c.b16 %v5618, %v5614
        %v6255 = vpack.c.b16 %v5623, %v5619
        %v6256 = vpack.c.b16 %v5624, %v5620
        %v6257 = vpack.c.b16 %v5625, %v5621
        %v6258 = vpack.c.b16 %v5626, %v5622
        %v6259 = vpack.c.b16 %v5631, %v5627
        %v6260 = vpack.c.b16 %v5632, %v5628
        %v6261 = vpack.c.b16 %v5633, %v5629
        %v6262 = vpack.c.b16 %v5634, %v5630
        %v6263 = vpack.c.b16 %v5639, %v5635
        %v6264 = vpack.c.b16 %v5640, %v5636
        %v6265 = vpack.c.b16 %v5641, %v5637
        %v6266 = vpack.c.b16 %v5642, %v5638
        %v6267 = vpack.c.b16 %v5647, %v5643
        %v6268 = vpack.c.b16 %v5648, %v5644
        %v6269 = vpack.c.b16 %v5649, %v5645
        %v6270 = vpack.c.b16 %v5650, %v5646
        %v6271 = vpack.c.b16 %v5655, %v5651
        %v6272 = vpack.c.b16 %v5656, %v5652
        %v6273 = vpack.c.b16 %v5657, %v5653
        %v6274 = vpack.c.b16 %v5658, %v5654
        %v6275 = vpack.c.b16 %v5663, %v5659
        %v6276 = vpack.c.b16 %v5664, %v5660
        %v6277 = vpack.c.b16 %v5665, %v5661
        %v6278 = vpack.c.b16 %v5666, %v5662
        %v6279 = vpack.c.b16 %v5671, %v5667
        %v6280 = vpack.c.b16 %v5672, %v5668
        %v6281 = vpack.c.b16 %v5673, %v5669
        %v6282 = vpack.c.b16 %v5674, %v5670
        %v6283 = vpack.c.b16 %v5679, %v5675
        %v6284 = vpack.c.b16 %v5680, %v5676
        %v6285 = vpack.c.b16 %v5681, %v5677
        %v6286 = vpack.c.b16 %v5682, %v5678
        %v6287 = vpack.c.b16 %v5687, %v5683
        %v6288 = vpack.c.b16 %v5688, %v5684
        %v6289 = vpack.c.b16 %v5689, %v5685
        %v6290 = vpack.c.b16 %v5690, %v5686
        %v6291 = vpack.c.b16 %v5695, %v5691
        %v6292 = vpack.c.b16 %v5696, %v5692
        %v6293 = vpack.c.b16 %v5697, %v5693
        %v6294 = vpack.c.b16 %v5698, %v5694
        %v6295 = vpack.c.b16 %v5703, %v5699
        %v6296 = vpack.c.b16 %v5704, %v5700
        %v6297 = vpack.c.b16 %v5705, %v5701
        %v6298 = vpack.c.b16 %v5706, %v5702
        %v6299 = vpack.c.b16 %v5711, %v5707
        %v6300 = vpack.c.b16 %v5712, %v5708
        %v6301 = vpack.c.b16 %v5713, %v5709
        %v6302 = vpack.c.b16 %v5714, %v5710
        %v6303 = vpack.c.b16 %v5719, %v5715
        %v6304 = vpack.c.b16 %v5720, %v5716
        %v6305 = vpack.c.b16 %v5721, %v5717
        %v6306 = vpack.c.b16 %v5722, %v5718
        %v6307 = vpack.c.b16 %v5727, %v5723
        %v6308 = vpack.c.b16 %v5728, %v5724
        %v6309 = vpack.c.b16 %v5729, %v5725
        %v6310 = vpack.c.b16 %v5730, %v5726
        %v6311 = vpack.c.b16 %v5735, %v5731
        %v6312 = vpack.c.b16 %v5736, %v5732
        %v6313 = vpack.c.b16 %v5737, %v5733
        %v6314 = vpack.c.b16 %v5738, %v5734
        %v6315 = vpack.c.b16 %v5743, %v5739
        %v6316 = vpack.c.b16 %v5744, %v5740
        %v6317 = vpack.c.b16 %v5745, %v5741
        %v6318 = vpack.c.b16 %v5746, %v5742
        %v6319 = vpack.c.b16 %v5751, %v5747
        %v6320 = vpack.c.b16 %v5752, %v5748
        %v6321 = vpack.c.b16 %v5753, %v5749
        %v6322 = vpack.c.b16 %v5754, %v5750
        %v6323 = vpack.c.b16 %v5759, %v5755
        %v6324 = vpack.c.b16 %v5760, %v5756
        %v6325 = vpack.c.b16 %v5761, %v5757
        %v6326 = vpack.c.b16 %v5762, %v5758
        %v6327 = vpack.c.b16 %v5767, %v5763
        %v6328 = vpack.c.b16 %v5768, %v5764
        %v6329 = vpack.c.b16 %v5769, %v5765
        %v6330 = vpack.c.b16 %v5770, %v5766
        %v6331 = vpack.c.b16 %v5775, %v5771
        %v6332 = vpack.c.b16 %v5776, %v5772
        %v6333 = vpack.c.b16 %v5777, %v5773
        %v6334 = vpack.c.b16 %v5778, %v5774
        %v6335 = vpack.c.b16 %v5783, %v5779
        %v6336 = vpack.c.b16 %v5784, %v5780
        %v6337 = vpack.c.b16 %v5785, %v5781
        %v6338 = vpack.c.b16 %v5786, %v5782
        %v6339 = vpack.c.b16 %v5791, %v5787
        %v6340 = vpack.c.b16 %v5792, %v5788
        %v6341 = vpack.c.b16 %v5793, %v5789
        %v6342 = vpack.c.b16 %v5794, %v5790
        %v6343 = vpack.c.b16 %v5799, %v5795
        %v6344 = vpack.c.b16 %v5800, %v5796
        %v6345 = vpack.c.b16 %v5801, %v5797
        %v6346 = vpack.c.b16 %v5802, %v5798
        %v6347 = vpack.c.b16 %v5807, %v5803
        %v6348 = vpack.c.b16 %v5808, %v5804
        %v6349 = vpack.c.b16 %v5809, %v5805
        %v6350 = vpack.c.b16 %v5810, %v5806
        %v6351 = vpack.c.b16 %v5815, %v5811
        %v6352 = vpack.c.b16 %v5816, %v5812
        %v6353 = vpack.c.b16 %v5817, %v5813
        %v6354 = vpack.c.b16 %v5818, %v5814
        %v6355 = vpack.c.b16 %v5823, %v5819
        %v6356 = vpack.c.b16 %v5824, %v5820
        %v6357 = vpack.c.b16 %v5825, %v5821
        %v6358 = vpack.c.b16 %v5826, %v5822
        %v6359 = vpack.c.b16 %v5831, %v5827
        %v6360 = vpack.c.b16 %v5832, %v5828
        %v6361 = vpack.c.b16 %v5833, %v5829
        %v6362 = vpack.c.b16 %v5834, %v5830
        %v6363 = vpack.c.b16 %v5839, %v5835
        %v6364 = vpack.c.b16 %v5840, %v5836
        %v6365 = vpack.c.b16 %v5841, %v5837
        %v6366 = vpack.c.b16 %v5842, %v5838
        %v6367 = vpack.c.b16 %v5847, %v5843
        %v6368 = vpack.c.b16 %v5848, %v5844
        %v6369 = vpack.c.b16 %v5849, %v5845
        %v6370 = vpack.c.b16 %v5850, %v5846
        %v6371 = vpack.c.b16 %v5855, %v5851
        %v6372 = vpack.c.b16 %v5856, %v5852
        %v6373 = vpack.c.b16 %v5857, %v5853
        %v6374 = vpack.c.b16 %v5858, %v5854
        %v6375 = vpack.c.b16 %v5863, %v5859
        %v6376 = vpack.c.b16 %v5864, %v5860
        %v6377 = vpack.c.b16 %v5865, %v5861
        %v6378 = vpack.c.b16 %v5866, %v5862
        %v6379 = vpack.c.b16 %v5871, %v5867
        %v6380 = vpack.c.b16 %v5872, %v5868
        %v6381 = vpack.c.b16 %v5873, %v5869
        %v6382 = vpack.c.b16 %v5874, %v5870
        %v6383 = vpack.c.b16 %v5879, %v5875
        %v6384 = vpack.c.b16 %v5880, %v5876
        %v6385 = vpack.c.b16 %v5881, %v5877
        %v6386 = vpack.c.b16 %v5882, %v5878
        %v6387 = vpack.c.b16 %v5887, %v5883
        %v6388 = vpack.c.b16 %v5888, %v5884
        %v6389 = vpack.c.b16 %v5889, %v5885
        %v6390 = vpack.c.b16 %v5890, %v5886
        %v6391 = vpack.c.b16 %v5895, %v5891
        %v6392 = vpack.c.b16 %v5896, %v5892
        %v6393 = vpack.c.b16 %v5897, %v5893
        %v6394 = vpack.c.b16 %v5898, %v5894
        %v6395 = vpack.c.b16 %v5903, %v5899
        %v6396 = vpack.c.b16 %v5904, %v5900
        %v6397 = vpack.c.b16 %v5905, %v5901
        %v6398 = vpack.c.b16 %v5906, %v5902
        %v6399 = vpack.c.b16 %v5911, %v5907
        %v6400 = vpack.c.b16 %v5912, %v5908
        %v6401 = vpack.c.b16 %v5913, %v5909
        %v6402 = vpack.c.b16 %v5914, %v5910
        %v6403 = vpack.c.b16 %v5919, %v5915
        %v6404 = vpack.c.b16 %v5920, %v5916
        %v6405 = vpack.c.b16 %v5921, %v5917
        %v6406 = vpack.c.b16 %v5922, %v5918
        %v6407 = vpack.c.b16 %v5927, %v5923
        %v6408 = vpack.c.b16 %v5928, %v5924
        %v6409 = vpack.c.b16 %v5929, %v5925
        %v6410 = vpack.c.b16 %v5930, %v5926
        %v6411 = vpack.c.b16 %v5935, %v5931
        %v6412 = vpack.c.b16 %v5936, %v5932
        %v6413 = vpack.c.b16 %v5937, %v5933
        %v6414 = vpack.c.b16 %v5938, %v5934
        %v6415 = vpack.c.b16 %v5943, %v5939
        %v6416 = vpack.c.b16 %v5944, %v5940
        %v6417 = vpack.c.b16 %v5945, %v5941
        %v6418 = vpack.c.b16 %v5946, %v5942
        %v6419 = vpack.c.b16 %v5951, %v5947
        %v6420 = vpack.c.b16 %v5952, %v5948
        %v6421 = vpack.c.b16 %v5953, %v5949
        %v6422 = vpack.c.b16 %v5954, %v5950
        %v6423 = vpack.c.b16 %v5959, %v5955
        %v6424 = vpack.c.b16 %v5960, %v5956
        %v6425 = vpack.c.b16 %v5961, %v5957
        %v6426 = vpack.c.b16 %v5962, %v5958
        %v6427 = vpack.c.b16 %v5967, %v5963
        %v6428 = vpack.c.b16 %v5968, %v5964
        %v6429 = vpack.c.b16 %v5969, %v5965
        %v6430 = vpack.c.b16 %v5970, %v5966
        %v6431 = vpack.c.b16 %v5975, %v5971
        %v6432 = vpack.c.b16 %v5976, %v5972
        %v6433 = vpack.c.b16 %v5977, %v5973
        %v6434 = vpack.c.b16 %v5978, %v5974
        %v6435 = vpack.c.b16 %v5983, %v5979
        %v6436 = vpack.c.b16 %v5984, %v5980
        %v6437 = vpack.c.b16 %v5985, %v5981
        %v6438 = vpack.c.b16 %v5986, %v5982
        %v6439 = vpack.c.b16 %v5991, %v5987
        %v6440 = vpack.c.b16 %v5992, %v5988
        %v6441 = vpack.c.b16 %v5993, %v5989
        %v6442 = vpack.c.b16 %v5994, %v5990
        %v6443 = vpack.c.b16 %v5999, %v5995
        %v6444 = vpack.c.b16 %v6000, %v5996
        %v6445 = vpack.c.b16 %v6001, %v5997
        %v6446 = vpack.c.b16 %v6002, %v5998
        %v6447 = vpack.c.b16 %v6007, %v6003
        %v6448 = vpack.c.b16 %v6008, %v6004
        %v6449 = vpack.c.b16 %v6009, %v6005
        %v6450 = vpack.c.b16 %v6010, %v6006
        %v6451 = vpack.c.b16 %v6015, %v6011
        %v6452 = vpack.c.b16 %v6016, %v6012
        %v6453 = vpack.c.b16 %v6017, %v6013
        %v6454 = vpack.c.b16 %v6018, %v6014
        %v6455 = vpack.c.b16 %v6023, %v6019
        %v6456 = vpack.c.b16 %v6024, %v6020
        %v6457 = vpack.c.b16 %v6025, %v6021
        %v6458 = vpack.c.b16 %v6026, %v6022
        %v6459 = vpack.c.b16 %v6031, %v6027
        %v6460 = vpack.c.b16 %v6032, %v6028
        %v6461 = vpack.c.b16 %v6033, %v6029
        %v6462 = vpack.c.b16 %v6034, %v6030
        %v6463 = vpack.c.b16 %v6039, %v6035
        %v6464 = vpack.c.b16 %v6040, %v6036
        %v6465 = vpack.c.b16 %v6041, %v6037
        %v6466 = vpack.c.b16 %v6042, %v6038
        %v6467 = vpack.c.b16 %v6047, %v6043
        %v6468 = vpack.c.b16 %v6048, %v6044
        %v6469 = vpack.c.b16 %v6049, %v6045
        %v6470 = vpack.c.b16 %v6050, %v6046
        %v6471 = vpack.c.b16 %v6055, %v6051
        %v6472 = vpack.c.b16 %v6056, %v6052
        %v6473 = vpack.c.b16 %v6057, %v6053
        %v6474 = vpack.c.b16 %v6058, %v6054
        %v6475 = vpack.c.b16 %v6063, %v6059
        %v6476 = vpack.c.b16 %v6064, %v6060
        %v6477 = vpack.c.b16 %v6065, %v6061
        %v6478 = vpack.c.b16 %v6066, %v6062
        %v6479 = vpack.c.b16 %v6071, %v6067
        %v6480 = vpack.c.b16 %v6072, %v6068
        %v6481 = vpack.c.b16 %v6073, %v6069
        %v6482 = vpack.c.b16 %v6074, %v6070
        %v6483 = vpack.c.b16 %v6079, %v6075
        %v6484 = vpack.c.b16 %v6080, %v6076
        %v6485 = vpack.c.b16 %v6081, %v6077
        %v6486 = vpack.c.b16 %v6082, %v6078
        %v6487 = vpack.c.b16 %v6087, %v6083
        %v6488 = vpack.c.b16 %v6088, %v6084
        %v6489 = vpack.c.b16 %v6089, %v6085
        %v6490 = vpack.c.b16 %v6090, %v6086
        %v6491 = vpack.c.b16 %v6095, %v6091
        %v6492 = vpack.c.b16 %v6096, %v6092
        %v6493 = vpack.c.b16 %v6097, %v6093
        %v6494 = vpack.c.b16 %v6098, %v6094
        %v6495 = vpack.c.b16 %v6103, %v6099
        %v6496 = vpack.c.b16 %v6104, %v6100
        %v6497 = vpack.c.b16 %v6105, %v6101
        %v6498 = vpack.c.b16 %v6106, %v6102
        %v6499 = vpack.c.b16 %v6111, %v6107
        %v6500 = vpack.c.b16 %v6112, %v6108
        %v6501 = vpack.c.b16 %v6113, %v6109
        %v6502 = vpack.c.b16 %v6114, %v6110
        %v6503 = vpack.c.b16 %v6119, %v6115
        %v6504 = vpack.c.b16 %v6120, %v6116
        %v6505 = vpack.c.b16 %v6121, %v6117
        %v6506 = vpack.c.b16 %v6122, %v6118
        %6891 = vmatprep.subr.bf16.mxu0 %v6124
        %6892 = vmatpush1.bf16.msra.mxu0 %v6123
        %6893 = vmatprep.subr.bf16.mxu0 %v6128
        %6894 = vmatpush1.bf16.msra.mxu0 %v6127
        %6895 = vmatprep.subr.bf16.mxu0 %v6132
        %6896 = vmatpush1.bf16.msra.mxu0 %v6131
        %6897 = vmatprep.subr.bf16.mxu0 %v6136
        %6898 = vmatpush1.bf16.msra.mxu0 %v6135
        %6899 = vmatprep.subr.bf16.mxu0 %v6140
        %6900 = vmatpush1.bf16.msra.mxu0 %v6139
        %6901 = vmatprep.subr.bf16.mxu0 %v6144
        %6902 = vmatpush1.bf16.msra.mxu0 %v6143
        %6903 = vmatprep.subr.bf16.mxu0 %v6148
        %6904 = vmatpush1.bf16.msra.mxu0 %v6147
        %6905 = vmatprep.subr.bf16.mxu0 %v6152
        %6906 = vmatpush1.bf16.msra.mxu0 %v6151
        %6907 = vmatprep.subr.bf16.mxu0 %v6156
        %6908 = vmatpush1.bf16.msra.mxu0 %v6155
        %6909 = vmatprep.subr.bf16.mxu0 %v6160
        %6910 = vmatpush1.bf16.msra.mxu0 %v6159
        %6911 = vmatprep.subr.bf16.mxu0 %v6164
        %6912 = vmatpush1.bf16.msra.mxu0 %v6163
        %6913 = vmatprep.subr.bf16.mxu0 %v6168
        %6914 = vmatpush1.bf16.msra.mxu0 %v6167
        %6915 = vmatprep.subr.bf16.mxu0 %v6172
        %6916 = vmatpush1.bf16.msra.mxu0 %v6171
        %6917 = vmatprep.subr.bf16.mxu0 %v6176
        %6918 = vmatpush1.bf16.msra.mxu0 %v6175
        %6919 = vmatprep.subr.bf16.mxu0 %v6180
        %6920 = vmatpush1.bf16.msra.mxu0 %v6179
        %6921 = vmatprep.subr.bf16.mxu0 %v6184
        %6922 = vmatpush1.bf16.msra.mxu0 %v6183
        %6923 = vmatprep.mubr.bf16.mxu0 %v4543
        %6924 = vmatmul.mubr.bf16.gmra.mrb[0].mxu0 %v4542
        %v6925 = vpop.f32.mrb[0].mxu0
        %v6926 = vadd.f32 0.0, %v6925
        %v6927 = vpop.f32.mrb[0].mxu0
        %v6928 = vadd.f32 0.0, %v6927
        %v6929 = vpop.f32.mrb[0].mxu0
        %v6930 = vadd.f32 0.0, %v6929
        %v6931 = vpop.f32.mrb[0].mxu0
        %v6932 = vadd.f32 0.0, %v6931
        %6933 = vmatprep.mubr.bf16.mxu0 %v4547
        %6934 = vmatmul.mubr.bf16.gmra.mrb[0].mxu0 %v4546
        %v6935 = vpop.f32.mrb[0].mxu0
        %v6936 = vadd.f32 0.0, %v6935
        %v6937 = vpop.f32.mrb[0].mxu0
        %v6938 = vadd.f32 0.0, %v6937
        %v6939 = vpop.f32.mrb[0].mxu0
        %v6940 = vadd.f32 0.0, %v6939
        %v6941 = vpop.f32.mrb[0].mxu0
        %v6942 = vadd.f32 0.0, %v6941
        %6943 = vmatprep.mubr.bf16.mxu0 %v4551
        %6944 = vmatmul.mubr.bf16.gmra.mrb[0].mxu0 %v4550
        %v6945 = vpop.f32.mrb[0].mxu0
        %v6946 = vadd.f32 0.0, %v6945
        %v6947 = vpop.f32.mrb[0].mxu0
        %v6948 = vadd.f32 0.0, %v6947
        %v6949 = vpop.f32.mrb[0].mxu0
        %v6950 = vadd.f32 0.0, %v6949
        %v6951 = vpop.f32.mrb[0].mxu0
        %v6952 = vadd.f32 0.0, %v6951
        %6953 = vmatprep.mubr.bf16.mxu0 %v4555
        %6954 = vmatmul.mubr.bf16.gmra.mrb[0].mxu0 %v4554
        %v6955 = vpop.f32.mrb[0].mxu0
        %v6956 = vadd.f32 0.0, %v6955
        %v6957 = vpop.f32.mrb[0].mxu0
        %v6958 = vadd.f32 0.0, %v6957
        %v6959 = vpop.f32.mrb[0].mxu0
        %v6960 = vadd.f32 0.0, %v6959
        %v6961 = vpop.f32.mrb[0].mxu0
        %v6962 = vadd.f32 0.0, %v6961
        %6963 = vdwg.mxu0
        %6964 = vmatprep.subr.bf16.mxu0 %v6188
        %6965 = vmatpush1.bf16.msra.mxu0 %v6187
        %6966 = vmatprep.subr.bf16.mxu0 %v6192
        %6967 = vmatpush1.bf16.msra.mxu0 %v6191
        %6968 = vmatprep.subr.bf16.mxu0 %v6196
        %6969 = vmatpush1.bf16.msra.mxu0 %v6195
        %6970 = vmatprep.subr.bf16.mxu0 %v6200
        %6971 = vmatpush1.bf16.msra.mxu0 %v6199
        %6972 = vmatprep.subr.bf16.mxu0 %v6204
        %6973 = vmatpush1.bf16.msra.mxu0 %v6203
        %6974 = vmatprep.subr.bf16.mxu0 %v6208
        %6975 = vmatpush1.bf16.msra.mxu0 %v6207
        %6976 = vmatprep.subr.bf16.mxu0 %v6212
        %6977 = vmatpush1.bf16.msra.mxu0 %v6211
        %6978 = vmatprep.subr.bf16.mxu0 %v6216
        %6979 = vmatpush1.bf16.msra.mxu0 %v6215
        %6980 = vmatprep.subr.bf16.mxu0 %v6220
        %6981 = vmatpush1.bf16.msra.mxu0 %v6219
        %6982 = vmatprep.subr.bf16.mxu0 %v6224
        %6983 = vmatpush1.bf16.msra.mxu0 %v6223
        %6984 = vmatprep.subr.bf16.mxu0 %v6228
        %6985 = vmatpush1.bf16.msra.mxu0 %v6227
        %6986 = vmatprep.subr.bf16.mxu0 %v6232
        %6987 = vmatpush1.bf16.msra.mxu0 %v6231
        %6988 = vmatprep.subr.bf16.mxu0 %v6236
        %6989 = vmatpush1.bf16.msra.mxu0 %v6235
        %6990 = vmatprep.subr.bf16.mxu0 %v6240
        %6991 = vmatpush1.bf16.msra.mxu0 %v6239
        %6992 = vmatprep.subr.bf16.mxu0 %v6244
        %6993 = vmatpush1.bf16.msra.mxu0 %v6243
        %6994 = vmatprep.subr.bf16.mxu0 %v6248
        %6995 = vmatpush1.bf16.msra.mxu0 %v6247
        %6996 = vmatprep.mubr.bf16.mxu0 %v4545
        %6997 = vmatmul.mubr.bf16.gmra.mrb[0].mxu0 %v4544
        %v6998 = vpop.f32.mrb[0].mxu0
        %v6999 = vadd.f32 %v6926, %v6998
        %v7000 = vpop.f32.mrb[0].mxu0
        %v7001 = vadd.f32 %v6928, %v7000
        %v7002 = vpop.f32.mrb[0].mxu0
        %v7003 = vadd.f32 %v6930, %v7002
        %v7004 = vpop.f32.mrb[0].mxu0
        %v7005 = vadd.f32 %v6932, %v7004
        %7006 = vmatprep.mubr.bf16.mxu0 %v4549
        %7007 = vmatmul.mubr.bf16.gmra.mrb[0].mxu0 %v4548
        %v7008 = vpop.f32.mrb[0].mxu0
        %v7009 = vadd.f32 %v6936, %v7008
        %v7010 = vpop.f32.mrb[0].mxu0
        %v7011 = vadd.f32 %v6938, %v7010
        %v7012 = vpop.f32.mrb[0].mxu0
        %v7013 = vadd.f32 %v6940, %v7012
        %v7014 = vpop.f32.mrb[0].mxu0
        %v7015 = vadd.f32 %v6942, %v7014
        %7016 = vmatprep.mubr.bf16.mxu0 %v4553
        %7017 = vmatmul.mubr.bf16.gmra.mrb[0].mxu0 %v4552
        %v7018 = vpop.f32.mrb[0].mxu0
        %v7019 = vadd.f32 %v6946, %v7018
        %v7020 = vpop.f32.mrb[0].mxu0
        %v7021 = vadd.f32 %v6948, %v7020
        %v7022 = vpop.f32.mrb[0].mxu0
        %v7023 = vadd.f32 %v6950, %v7022
        %v7024 = vpop.f32.mrb[0].mxu0
        %v7025 = vadd.f32 %v6952, %v7024
        %7026 = vmatprep.mubr.bf16.mxu0 %v4557
        %7027 = vmatmul.mubr.bf16.gmra.mrb[0].mxu0 %v4556
        %v7028 = vpop.f32.mrb[0].mxu0
        %v7029 = vadd.f32 %v6956, %v7028
        %v7030 = vpop.f32.mrb[0].mxu0
        %v7031 = vadd.f32 %v6958, %v7030
        %v7032 = vpop.f32.mrb[0].mxu0
        %v7033 = vadd.f32 %v6960, %v7032
        %v7034 = vpop.f32.mrb[0].mxu0
        %v7035 = vadd.f32 %v6962, %v7034
        %7036 = vdwg.mxu0
        %7037 = vmatprep.subr.bf16.mxu0 %v6252
        %7038 = vmatpush1.bf16.msra.mxu0 %v6251
        %7039 = vmatprep.subr.bf16.mxu0 %v6256
        %7040 = vmatpush1.bf16.msra.mxu0 %v6255
        %7041 = vmatprep.subr.bf16.mxu0 %v6260
        %7042 = vmatpush1.bf16.msra.mxu0 %v6259
        %7043 = vmatprep.subr.bf16.mxu0 %v6264
        %7044 = vmatpush1.bf16.msra.mxu0 %v6263
        %7045 = vmatprep.subr.bf16.mxu0 %v6268
        %7046 = vmatpush1.bf16.msra.mxu0 %v6267
        %7047 = vmatprep.subr.bf16.mxu0 %v6272
        %7048 = vmatpush1.bf16.msra.mxu0 %v6271
        %7049 = vmatprep.subr.bf16.mxu0 %v6276
        %7050 = vmatpush1.bf16.msra.mxu0 %v6275
        %7051 = vmatprep.subr.bf16.mxu0 %v6280
        %7052 = vmatpush1.bf16.msra.mxu0 %v6279
        %7053 = vmatprep.subr.bf16.mxu0 %v6284
        %7054 = vmatpush1.bf16.msra.mxu0 %v6283
        %7055 = vmatprep.subr.bf16.mxu0 %v6288
        %7056 = vmatpush1.bf16.msra.mxu0 %v6287
        %7057 = vmatprep.subr.bf16.mxu0 %v6292
        %7058 = vmatpush1.bf16.msra.mxu0 %v6291
        %7059 = vmatprep.subr.bf16.mxu0 %v6296
        %7060 = vmatpush1.bf16.msra.mxu0 %v6295
        %7061 = vmatprep.subr.bf16.mxu0 %v6300
        %7062 = vmatpush1.bf16.msra.mxu0 %v6299
        %7063 = vmatprep.subr.bf16.mxu0 %v6304
        %7064 = vmatpush1.bf16.msra.mxu0 %v6303
        %7065 = vmatprep.subr.bf16.mxu0 %v6308
        %7066 = vmatpush1.bf16.msra.mxu0 %v6307
        %7067 = vmatprep.subr.bf16.mxu0 %v6312
        %7068 = vmatpush1.bf16.msra.mxu0 %v6311
        %7069 = vmatprep.mubr.bf16.mxu0 %v4563
        %7070 = vmatmul.mubr.bf16.gmra.mrb[0].mxu0 %v4562
        %v7071 = vpop.f32.mrb[0].mxu0
        %v7072 = vadd.f32 %v6999, %v7071
        %v7073 = vpop.f32.mrb[0].mxu0
        %v7074 = vadd.f32 %v7001, %v7073
        %v7075 = vpop.f32.mrb[0].mxu0
        %v7076 = vadd.f32 %v7003, %v7075
        %v7077 = vpop.f32.mrb[0].mxu0
        %v7078 = vadd.f32 %v7005, %v7077
        %7079 = vmatprep.mubr.bf16.mxu0 %v4567
        %7080 = vmatmul.mubr.bf16.gmra.mrb[0].mxu0 %v4566
        %v7081 = vpop.f32.mrb[0].mxu0
        %v7082 = vadd.f32 %v7009, %v7081
        %v7083 = vpop.f32.mrb[0].mxu0
        %v7084 = vadd.f32 %v7011, %v7083
        %v7085 = vpop.f32.mrb[0].mxu0
        %v7086 = vadd.f32 %v7013, %v7085
        %v7087 = vpop.f32.mrb[0].mxu0
        %v7088 = vadd.f32 %v7015, %v7087
        %7089 = vmatprep.mubr.bf16.mxu0 %v4571
        %7090 = vmatmul.mubr.bf16.gmra.mrb[0].mxu0 %v4570
        %v7091 = vpop.f32.mrb[0].mxu0
        %v7092 = vadd.f32 %v7019, %v7091
        %v7093 = vpop.f32.mrb[0].mxu0
        %v7094 = vadd.f32 %v7021, %v7093
        %v7095 = vpop.f32.mrb[0].mxu0
        %v7096 = vadd.f32 %v7023, %v7095
        %v7097 = vpop.f32.mrb[0].mxu0
        %v7098 = vadd.f32 %v7025, %v7097
        %7099 = vmatprep.mubr.bf16.mxu0 %v4575
        %7100 = vmatmul.mubr.bf16.gmra.mrb[0].mxu0 %v4574
        %v7101 = vpop.f32.mrb[0].mxu0
        %v7102 = vadd.f32 %v7029, %v7101
        %v7103 = vpop.f32.mrb[0].mxu0
        %v7104 = vadd.f32 %v7031, %v7103
        %v7105 = vpop.f32.mrb[0].mxu0
        %v7106 = vadd.f32 %v7033, %v7105
        %v7107 = vpop.f32.mrb[0].mxu0
        %v7108 = vadd.f32 %v7035, %v7107
        %7109 = vdwg.mxu0
        %7110 = vmatprep.subr.bf16.mxu0 %v6316
        %7111 = vmatpush1.bf16.msra.mxu0 %v6315
        %7112 = vmatprep.subr.bf16.mxu0 %v6320
        %7113 = vmatpush1.bf16.msra.mxu0 %v6319
        %7114 = vmatprep.subr.bf16.mxu0 %v6324
        %7115 = vmatpush1.bf16.msra.mxu0 %v6323
        %7116 = vmatprep.subr.bf16.mxu0 %v6328
        %7117 = vmatpush1.bf16.msra.mxu0 %v6327
        %7118 = vmatprep.subr.bf16.mxu0 %v6332
        %7119 = vmatpush1.bf16.msra.mxu0 %v6331
        %7120 = vmatprep.subr.bf16.mxu0 %v6336
        %7121 = vmatpush1.bf16.msra.mxu0 %v6335
        %7122 = vmatprep.subr.bf16.mxu0 %v6340
        %7123 = vmatpush1.bf16.msra.mxu0 %v6339
        %7124 = vmatprep.subr.bf16.mxu0 %v6344
        %7125 = vmatpush1.bf16.msra.mxu0 %v6343
        %7126 = vmatprep.subr.bf16.mxu0 %v6348
        %7127 = vmatpush1.bf16.msra.mxu0 %v6347
        %7128 = vmatprep.subr.bf16.mxu0 %v6352
        %7129 = vmatpush1.bf16.msra.mxu0 %v6351
        %7130 = vmatprep.subr.bf16.mxu0 %v6356
        %7131 = vmatpush1.bf16.msra.mxu0 %v6355
        %7132 = vmatprep.subr.bf16.mxu0 %v6360
        %7133 = vmatpush1.bf16.msra.mxu0 %v6359
        %7134 = vmatprep.subr.bf16.mxu0 %v6364
        %7135 = vmatpush1.bf16.msra.mxu0 %v6363
        %7136 = vmatprep.subr.bf16.mxu0 %v6368
        %7137 = vmatpush1.bf16.msra.mxu0 %v6367
        %7138 = vmatprep.subr.bf16.mxu0 %v6372
        %7139 = vmatpush1.bf16.msra.mxu0 %v6371
        %7140 = vmatprep.subr.bf16.mxu0 %v6376
        %7141 = vmatpush1.bf16.msra.mxu0 %v6375
        %7142 = vmatprep.mubr.bf16.mxu0 %v4565
        %7143 = vmatmul.mubr.bf16.gmra.mrb[0].mxu0 %v4564
        %v7144 = vpop.f32.mrb[0].mxu0
        %v7145 = vadd.f32 %v7072, %v7144
        %v7146 = vpop.f32.mrb[0].mxu0
        %v7147 = vadd.f32 %v7074, %v7146
        %v7148 = vpop.f32.mrb[0].mxu0
        %v7149 = vadd.f32 %v7076, %v7148
        %v7150 = vpop.f32.mrb[0].mxu0
        %v7151 = vadd.f32 %v7078, %v7150
        %7152 = vmatprep.mubr.bf16.mxu0 %v4569
        %7153 = vmatmul.mubr.bf16.gmra.mrb[0].mxu0 %v4568
        %v7154 = vpop.f32.mrb[0].mxu0
        %v7155 = vadd.f32 %v7082, %v7154
        %v7156 = vpop.f32.mrb[0].mxu0
        %v7157 = vadd.f32 %v7084, %v7156
        %v7158 = vpop.f32.mrb[0].mxu0
        %v7159 = vadd.f32 %v7086, %v7158
        %v7160 = vpop.f32.mrb[0].mxu0
        %v7161 = vadd.f32 %v7088, %v7160
        %7162 = vmatprep.mubr.bf16.mxu0 %v4573
        %7163 = vmatmul.mubr.bf16.gmra.mrb[0].mxu0 %v4572
        %v7164 = vpop.f32.mrb[0].mxu0
        %v7165 = vadd.f32 %v7092, %v7164
        %v7166 = vpop.f32.mrb[0].mxu0
        %v7167 = vadd.f32 %v7094, %v7166
        %v7168 = vpop.f32.mrb[0].mxu0
        %v7169 = vadd.f32 %v7096, %v7168
        %v7170 = vpop.f32.mrb[0].mxu0
        %v7171 = vadd.f32 %v7098, %v7170
        %7172 = vmatprep.mubr.bf16.mxu0 %v4577
        %7173 = vmatmul.mubr.bf16.gmra.mrb[0].mxu0 %v4576
        %v7174 = vpop.f32.mrb[0].mxu0
        %v7175 = vadd.f32 %v7102, %v7174
        %v7176 = vpop.f32.mrb[0].mxu0
        %v7177 = vadd.f32 %v7104, %v7176
        %v7178 = vpop.f32.mrb[0].mxu0
        %v7179 = vadd.f32 %v7106, %v7178
        %v7180 = vpop.f32.mrb[0].mxu0
        %v7181 = vadd.f32 %v7108, %v7180
        %7182 = vdwg.mxu0
        %7183 = vmatprep.subr.bf16.mxu0 %v6380
        %7184 = vmatpush1.bf16.msra.mxu0 %v6379
        %7185 = vmatprep.subr.bf16.mxu0 %v6384
        %7186 = vmatpush1.bf16.msra.mxu0 %v6383
        %7187 = vmatprep.subr.bf16.mxu0 %v6388
        %7188 = vmatpush1.bf16.msra.mxu0 %v6387
        %7189 = vmatprep.subr.bf16.mxu0 %v6392
        %7190 = vmatpush1.bf16.msra.mxu0 %v6391
        %7191 = vmatprep.subr.bf16.mxu0 %v6396
        %7192 = vmatpush1.bf16.msra.mxu0 %v6395
        %7193 = vmatprep.subr.bf16.mxu0 %v6400
        %7194 = vmatpush1.bf16.msra.mxu0 %v6399
        %7195 = vmatprep.subr.bf16.mxu0 %v6404
        %7196 = vmatpush1.bf16.msra.mxu0 %v6403
        %7197 = vmatprep.subr.bf16.mxu0 %v6408
        %7198 = vmatpush1.bf16.msra.mxu0 %v6407
        %7199 = vmatprep.subr.bf16.mxu0 %v6412
        %7200 = vmatpush1.bf16.msra.mxu0 %v6411
        %7201 = vmatprep.subr.bf16.mxu0 %v6416
        %7202 = vmatpush1.bf16.msra.mxu0 %v6415
        %7203 = vmatprep.subr.bf16.mxu0 %v6420
        %7204 = vmatpush1.bf16.msra.mxu0 %v6419
        %7205 = vmatprep.subr.bf16.mxu0 %v6424
        %7206 = vmatpush1.bf16.msra.mxu0 %v6423
        %7207 = vmatprep.subr.bf16.mxu0 %v6428
        %7208 = vmatpush1.bf16.msra.mxu0 %v6427
        %7209 = vmatprep.subr.bf16.mxu0 %v6432
        %7210 = vmatpush1.bf16.msra.mxu0 %v6431
        %7211 = vmatprep.subr.bf16.mxu0 %v6436
        %7212 = vmatpush1.bf16.msra.mxu0 %v6435
        %7213 = vmatprep.subr.bf16.mxu0 %v6440
        %7214 = vmatpush1.bf16.msra.mxu0 %v6439
        %7215 = vmatprep.mubr.bf16.mxu0 %v4547
        %7216 = vmatmul.mubr.bf16.gmra.mrb[0].mxu0 %v4546
        %v7217 = vpop.f32.mrb[0].mxu0
        %v7218 = vadd.f32 %v7145, %v7217
        %v7219 = vpop.f32.mrb[0].mxu0
        %v7220 = vadd.f32 %v7147, %v7219
        %v7221 = vpop.f32.mrb[0].mxu0
        %v7222 = vadd.f32 %v7149, %v7221
        %v7223 = vpop.f32.mrb[0].mxu0
        %v7224 = vadd.f32 %v7151, %v7223
        %7225 = vmatprep.mubr.bf16.mxu0 %v4551
        %7226 = vmatmul.mubr.bf16.gmra.mrb[0].mxu0 %v4550
        %v7227 = vpop.f32.mrb[0].mxu0
        %v7228 = vadd.f32 %v7155, %v7227
        %v7229 = vpop.f32.mrb[0].mxu0
        %v7230 = vadd.f32 %v7157, %v7229
        %v7231 = vpop.f32.mrb[0].mxu0
        %v7232 = vadd.f32 %v7159, %v7231
        %v7233 = vpop.f32.mrb[0].mxu0
        %v7234 = vadd.f32 %v7161, %v7233
        %7235 = vmatprep.mubr.bf16.mxu0 %v4555
        %7236 = vmatmul.mubr.bf16.gmra.mrb[0].mxu0 %v4554
        %v7237 = vpop.f32.mrb[0].mxu0
        %v7238 = vadd.f32 %v7165, %v7237
        %v7239 = vpop.f32.mrb[0].mxu0
        %v7240 = vadd.f32 %v7167, %v7239
        %v7241 = vpop.f32.mrb[0].mxu0
        %v7242 = vadd.f32 %v7169, %v7241
        %v7243 = vpop.f32.mrb[0].mxu0
        %v7244 = vadd.f32 %v7171, %v7243
        %7245 = vmatprep.mubr.bf16.mxu0 %v4583
        %7246 = vmatmul.mubr.bf16.gmra.mrb[0].mxu0 %v4582
        %v7247 = vpop.f32.mrb[0].mxu0
        %v7248 = vadd.f32 %v7175, %v7247
        %v7249 = vpop.f32.mrb[0].mxu0
        %v7250 = vadd.f32 %v7177, %v7249
        %v7251 = vpop.f32.mrb[0].mxu0
        %v7252 = vadd.f32 %v7179, %v7251
        %v7253 = vpop.f32.mrb[0].mxu0
        %v7254 = vadd.f32 %v7181, %v7253
        %7255 = vdwg.mxu0
        %7256 = vmatprep.subr.bf16.mxu0 %v6444
        %7257 = vmatpush1.bf16.msra.mxu0 %v6443
        %7258 = vmatprep.subr.bf16.mxu0 %v6448
        %7259 = vmatpush1.bf16.msra.mxu0 %v6447
        %7260 = vmatprep.subr.bf16.mxu0 %v6452
        %7261 = vmatpush1.bf16.msra.mxu0 %v6451
        %7262 = vmatprep.subr.bf16.mxu0 %v6456
        %7263 = vmatpush1.bf16.msra.mxu0 %v6455
        %7264 = vmatprep.subr.bf16.mxu0 %v6460
        %7265 = vmatpush1.bf16.msra.mxu0 %v6459
        %7266 = vmatprep.subr.bf16.mxu0 %v6464
        %7267 = vmatpush1.bf16.msra.mxu0 %v6463
        %7268 = vmatprep.subr.bf16.mxu0 %v6468
        %7269 = vmatpush1.bf16.msra.mxu0 %v6467
        %7270 = vmatprep.subr.bf16.mxu0 %v6472
        %7271 = vmatpush1.bf16.msra.mxu0 %v6471
        %7272 = vmatprep.subr.bf16.mxu0 %v6476
        %7273 = vmatpush1.bf16.msra.mxu0 %v6475
        %7274 = vmatprep.subr.bf16.mxu0 %v6480
        %7275 = vmatpush1.bf16.msra.mxu0 %v6479
        %7276 = vmatprep.subr.bf16.mxu0 %v6484
        %7277 = vmatpush1.bf16.msra.mxu0 %v6483
        %7278 = vmatprep.subr.bf16.mxu0 %v6488
        %7279 = vmatpush1.bf16.msra.mxu0 %v6487
        %7280 = vmatprep.subr.bf16.mxu0 %v6492
        %7281 = vmatpush1.bf16.msra.mxu0 %v6491
        %7282 = vmatprep.subr.bf16.mxu0 %v6496
        %7283 = vmatpush1.bf16.msra.mxu0 %v6495
        %7284 = vmatprep.subr.bf16.mxu0 %v6500
        %7285 = vmatpush1.bf16.msra.mxu0 %v6499
        %7286 = vmatprep.subr.bf16.mxu0 %v6504
        %7287 = vmatpush1.bf16.msra.mxu0 %v6503
        %7288 = vmatprep.mubr.bf16.mxu0 %v4549
        %7289 = vmatmul.mubr.bf16.gmra.mrb[0].mxu0 %v4548
        %v7290 = vpop.f32.mrb[0].mxu0
        %v7291 = vadd.f32 %v7218, %v7290
        %v7292 = vpop.f32.mrb[0].mxu0
        %v7293 = vadd.f32 %v7220, %v7292
        %v7294 = vpop.f32.mrb[0].mxu0
        %v7295 = vadd.f32 %v7222, %v7294
        %v7296 = vpop.f32.mrb[0].mxu0
        %v7297 = vadd.f32 %v7224, %v7296
        %7298 = vmatprep.mubr.bf16.mxu0 %v4553
        %7299 = vmatmul.mubr.bf16.gmra.mrb[0].mxu0 %v4552
        %v7300 = vpop.f32.mrb[0].mxu0
        %v7301 = vadd.f32 %v7228, %v7300
        %v7302 = vpop.f32.mrb[0].mxu0
        %v7303 = vadd.f32 %v7230, %v7302
        %v7304 = vpop.f32.mrb[0].mxu0
        %v7305 = vadd.f32 %v7232, %v7304
        %v7306 = vpop.f32.mrb[0].mxu0
        %v7307 = vadd.f32 %v7234, %v7306
        %7308 = vmatprep.mubr.bf16.mxu0 %v4557
        %7309 = vmatmul.mubr.bf16.gmra.mrb[0].mxu0 %v4556
        %v7310 = vpop.f32.mrb[0].mxu0
        %v7311 = vadd.f32 %v7238, %v7310
        %v7312 = vpop.f32.mrb[0].mxu0
        %v7313 = vadd.f32 %v7240, %v7312
        %v7314 = vpop.f32.mrb[0].mxu0
        %v7315 = vadd.f32 %v7242, %v7314
        %v7316 = vpop.f32.mrb[0].mxu0
        %v7317 = vadd.f32 %v7244, %v7316
        %7318 = vmatprep.mubr.bf16.mxu0 %v4585
        %7319 = vmatmul.mubr.bf16.gmra.mrb[0].mxu0 %v4584
        %v7320 = vpop.f32.mrb[0].mxu0
        %v7321 = vadd.f32 %v7248, %v7320
        %v7322 = vpop.f32.mrb[0].mxu0
        %v7323 = vadd.f32 %v7250, %v7322
        %v7324 = vpop.f32.mrb[0].mxu0
        %v7325 = vadd.f32 %v7252, %v7324
        %v7326 = vpop.f32.mrb[0].mxu0
        %v7327 = vadd.f32 %v7254, %v7326
        %7328 = vdwg.mxu0
        %7329 = vmatprep.subr.bf16.mxu0 %v6126
        %7330 = vmatpush1.bf16.msra.mxu0 %v6125
        %7331 = vmatprep.subr.bf16.mxu0 %v6130
        %7332 = vmatpush1.bf16.msra.mxu0 %v6129
        %7333 = vmatprep.subr.bf16.mxu0 %v6134
        %7334 = vmatpush1.bf16.msra.mxu0 %v6133
        %7335 = vmatprep.subr.bf16.mxu0 %v6138
        %7336 = vmatpush1.bf16.msra.mxu0 %v6137
        %7337 = vmatprep.subr.bf16.mxu0 %v6142
        %7338 = vmatpush1.bf16.msra.mxu0 %v6141
        %7339 = vmatprep.subr.bf16.mxu0 %v6146
        %7340 = vmatpush1.bf16.msra.mxu0 %v6145
        %7341 = vmatprep.subr.bf16.mxu0 %v6150
        %7342 = vmatpush1.bf16.msra.mxu0 %v6149
        %7343 = vmatprep.subr.bf16.mxu0 %v6154
        %7344 = vmatpush1.bf16.msra.mxu0 %v6153
        %7345 = vmatprep.subr.bf16.mxu0 %v6158
        %7346 = vmatpush1.bf16.msra.mxu0 %v6157
        %7347 = vmatprep.subr.bf16.mxu0 %v6162
        %7348 = vmatpush1.bf16.msra.mxu0 %v6161
        %7349 = vmatprep.subr.bf16.mxu0 %v6166
        %7350 = vmatpush1.bf16.msra.mxu0 %v6165
        %7351 = vmatprep.subr.bf16.mxu0 %v6170
        %7352 = vmatpush1.bf16.msra.mxu0 %v6169
        %7353 = vmatprep.subr.bf16.mxu0 %v6174
        %7354 = vmatpush1.bf16.msra.mxu0 %v6173
        %7355 = vmatprep.subr.bf16.mxu0 %v6178
        %7356 = vmatpush1.bf16.msra.mxu0 %v6177
        %7357 = vmatprep.subr.bf16.mxu0 %v6182
        %7358 = vmatpush1.bf16.msra.mxu0 %v6181
        %7359 = vmatprep.subr.bf16.mxu0 %v6186
        %7360 = vmatpush1.bf16.msra.mxu0 %v6185
        %7361 = vmatprep.mubr.bf16.mxu0 %v4543
        %7362 = vmatmul.mubr.bf16.gmra.mrb[0].mxu0 %v4542
        %v7363 = vpop.f32.mrb[0].mxu0
        %v7364 = vadd.f32 0.0, %v7363
        %v7365 = vpop.f32.mrb[0].mxu0
        %v7366 = vadd.f32 0.0, %v7365
        %v7367 = vpop.f32.mrb[0].mxu0
        %v7368 = vadd.f32 0.0, %v7367
        %v7369 = vpop.f32.mrb[0].mxu0
        %v7370 = vadd.f32 0.0, %v7369
        %7371 = vmatprep.mubr.bf16.mxu0 %v4547
        %7372 = vmatmul.mubr.bf16.gmra.mrb[0].mxu0 %v4546
        %v7373 = vpop.f32.mrb[0].mxu0
        %v7374 = vadd.f32 0.0, %v7373
        %v7375 = vpop.f32.mrb[0].mxu0
        %v7376 = vadd.f32 0.0, %v7375
        %v7377 = vpop.f32.mrb[0].mxu0
        %v7378 = vadd.f32 0.0, %v7377
        %v7379 = vpop.f32.mrb[0].mxu0
        %v7380 = vadd.f32 0.0, %v7379
        %7381 = vmatprep.mubr.bf16.mxu0 %v4551
        %7382 = vmatmul.mubr.bf16.gmra.mrb[0].mxu0 %v4550
        %v7383 = vpop.f32.mrb[0].mxu0
        %v7384 = vadd.f32 0.0, %v7383
        %v7385 = vpop.f32.mrb[0].mxu0
        %v7386 = vadd.f32 0.0, %v7385
        %v7387 = vpop.f32.mrb[0].mxu0
        %v7388 = vadd.f32 0.0, %v7387
        %v7389 = vpop.f32.mrb[0].mxu0
        %v7390 = vadd.f32 0.0, %v7389
        %7391 = vmatprep.mubr.bf16.mxu0 %v4555
        %7392 = vmatmul.mubr.bf16.gmra.mrb[0].mxu0 %v4554
        %v7393 = vpop.f32.mrb[0].mxu0
        %v7394 = vadd.f32 0.0, %v7393
        %v7395 = vpop.f32.mrb[0].mxu0
        %v7396 = vadd.f32 0.0, %v7395
        %v7397 = vpop.f32.mrb[0].mxu0
        %v7398 = vadd.f32 0.0, %v7397
        %v7399 = vpop.f32.mrb[0].mxu0
        %v7400 = vadd.f32 0.0, %v7399
        %7401 = vdwg.mxu0
        %7402 = vmatprep.subr.bf16.mxu0 %v6190
        %7403 = vmatpush1.bf16.msra.mxu0 %v6189
        %7404 = vmatprep.subr.bf16.mxu0 %v6194
        %7405 = vmatpush1.bf16.msra.mxu0 %v6193
        %7406 = vmatprep.subr.bf16.mxu0 %v6198
        %7407 = vmatpush1.bf16.msra.mxu0 %v6197
        %7408 = vmatprep.subr.bf16.mxu0 %v6202
        %7409 = vmatpush1.bf16.msra.mxu0 %v6201
        %7410 = vmatprep.subr.bf16.mxu0 %v6206
        %7411 = vmatpush1.bf16.msra.mxu0 %v6205
        %7412 = vmatprep.subr.bf16.mxu0 %v6210
        %7413 = vmatpush1.bf16.msra.mxu0 %v6209
        %7414 = vmatprep.subr.bf16.mxu0 %v6214
        %7415 = vmatpush1.bf16.msra.mxu0 %v6213
        %7416 = vmatprep.subr.bf16.mxu0 %v6218
        %7417 = vmatpush1.bf16.msra.mxu0 %v6217
        %7418 = vmatprep.subr.bf16.mxu0 %v6222
        %7419 = vmatpush1.bf16.msra.mxu0 %v6221
        %7420 = vmatprep.subr.bf16.mxu0 %v6226
        %7421 = vmatpush1.bf16.msra.mxu0 %v6225
        %7422 = vmatprep.subr.bf16.mxu0 %v6230
        %7423 = vmatpush1.bf16.msra.mxu0 %v6229
        %7424 = vmatprep.subr.bf16.mxu0 %v6234
        %7425 = vmatpush1.bf16.msra.mxu0 %v6233
        %7426 = vmatprep.subr.bf16.mxu0 %v6238
        %7427 = vmatpush1.bf16.msra.mxu0 %v6237
        %7428 = vmatprep.subr.bf16.mxu0 %v6242
        %7429 = vmatpush1.bf16.msra.mxu0 %v6241
        %7430 = vmatprep.subr.bf16.mxu0 %v6246
        %7431 = vmatpush1.bf16.msra.mxu0 %v6245
        %7432 = vmatprep.subr.bf16.mxu0 %v6250
        %7433 = vmatpush1.bf16.msra.mxu0 %v6249
        %7434 = vmatprep.mubr.bf16.mxu0 %v4545
        %7435 = vmatmul.mubr.bf16.gmra.mrb[0].mxu0 %v4544
        %v7436 = vpop.f32.mrb[0].mxu0
        %v7437 = vadd.f32 %v7364, %v7436
        %v7438 = vpop.f32.mrb[0].mxu0
        %v7439 = vadd.f32 %v7366, %v7438
        %v7440 = vpop.f32.mrb[0].mxu0
        %v7441 = vadd.f32 %v7368, %v7440
        %v7442 = vpop.f32.mrb[0].mxu0
        %v7443 = vadd.f32 %v7370, %v7442
        %7444 = vmatprep.mubr.bf16.mxu0 %v4549
        %7445 = vmatmul.mubr.bf16.gmra.mrb[0].mxu0 %v4548
        %v7446 = vpop.f32.mrb[0].mxu0
        %v7447 = vadd.f32 %v7374, %v7446
        %v7448 = vpop.f32.mrb[0].mxu0
        %v7449 = vadd.f32 %v7376, %v7448
        %v7450 = vpop.f32.mrb[0].mxu0
        %v7451 = vadd.f32 %v7378, %v7450
        %v7452 = vpop.f32.mrb[0].mxu0
        %v7453 = vadd.f32 %v7380, %v7452
        %7454 = vmatprep.mubr.bf16.mxu0 %v4553
        %7455 = vmatmul.mubr.bf16.gmra.mrb[0].mxu0 %v4552
        %v7456 = vpop.f32.mrb[0].mxu0
        %v7457 = vadd.f32 %v7384, %v7456
        %v7458 = vpop.f32.mrb[0].mxu0
        %v7459 = vadd.f32 %v7386, %v7458
        %v7460 = vpop.f32.mrb[0].mxu0
        %v7461 = vadd.f32 %v7388, %v7460
        %v7462 = vpop.f32.mrb[0].mxu0
        %v7463 = vadd.f32 %v7390, %v7462
        %7464 = vmatprep.mubr.bf16.mxu0 %v4557
        %7465 = vmatmul.mubr.bf16.gmra.mrb[0].mxu0 %v4556
        %v7466 = vpop.f32.mrb[0].mxu0
        %v7467 = vadd.f32 %v7394, %v7466
        %v7468 = vpop.f32.mrb[0].mxu0
        %v7469 = vadd.f32 %v7396, %v7468
        %v7470 = vpop.f32.mrb[0].mxu0
        %v7471 = vadd.f32 %v7398, %v7470
        %v7472 = vpop.f32.mrb[0].mxu0
        %v7473 = vadd.f32 %v7400, %v7472
        %7474 = vdwg.mxu0
        %7475 = vmatprep.subr.bf16.mxu0 %v6254
        %7476 = vmatpush1.bf16.msra.mxu0 %v6253
        %7477 = vmatprep.subr.bf16.mxu0 %v6258
        %7478 = vmatpush1.bf16.msra.mxu0 %v6257
        %7479 = vmatprep.subr.bf16.mxu0 %v6262
        %7480 = vmatpush1.bf16.msra.mxu0 %v6261
        %7481 = vmatprep.subr.bf16.mxu0 %v6266
        %7482 = vmatpush1.bf16.msra.mxu0 %v6265
        %7483 = vmatprep.subr.bf16.mxu0 %v6270
        %7484 = vmatpush1.bf16.msra.mxu0 %v6269
        %7485 = vmatprep.subr.bf16.mxu0 %v6274
        %7486 = vmatpush1.bf16.msra.mxu0 %v6273
        %7487 = vmatprep.subr.bf16.mxu0 %v6278
        %7488 = vmatpush1.bf16.msra.mxu0 %v6277
        %7489 = vmatprep.subr.bf16.mxu0 %v6282
        %7490 = vmatpush1.bf16.msra.mxu0 %v6281
        %7491 = vmatprep.subr.bf16.mxu0 %v6286
        %7492 = vmatpush1.bf16.msra.mxu0 %v6285
        %7493 = vmatprep.subr.bf16.mxu0 %v6290
        %7494 = vmatpush1.bf16.msra.mxu0 %v6289
        %7495 = vmatprep.subr.bf16.mxu0 %v6294
        %7496 = vmatpush1.bf16.msra.mxu0 %v6293
        %7497 = vmatprep.subr.bf16.mxu0 %v6298
        %7498 = vmatpush1.bf16.msra.mxu0 %v6297
        %7499 = vmatprep.subr.bf16.mxu0 %v6302
        %7500 = vmatpush1.bf16.msra.mxu0 %v6301
        %7501 = vmatprep.subr.bf16.mxu0 %v6306
        %7502 = vmatpush1.bf16.msra.mxu0 %v6305
        %7503 = vmatprep.subr.bf16.mxu0 %v6310
        %7504 = vmatpush1.bf16.msra.mxu0 %v6309
        %7505 = vmatprep.subr.bf16.mxu0 %v6314
        %7506 = vmatpush1.bf16.msra.mxu0 %v6313
        %7507 = vmatprep.mubr.bf16.mxu0 %v4563
        %7508 = vmatmul.mubr.bf16.gmra.mrb[0].mxu0 %v4562
        %v7509 = vpop.f32.mrb[0].mxu0
        %v7510 = vadd.f32 %v7437, %v7509
        %v7511 = vpop.f32.mrb[0].mxu0
        %v7512 = vadd.f32 %v7439, %v7511
        %v7513 = vpop.f32.mrb[0].mxu0
        %v7514 = vadd.f32 %v7441, %v7513
        %v7515 = vpop.f32.mrb[0].mxu0
        %v7516 = vadd.f32 %v7443, %v7515
        %7517 = vmatprep.mubr.bf16.mxu0 %v4567
        %7518 = vmatmul.mubr.bf16.gmra.mrb[0].mxu0 %v4566
        %v7519 = vpop.f32.mrb[0].mxu0
        %v7520 = vadd.f32 %v7447, %v7519
        %v7521 = vpop.f32.mrb[0].mxu0
        %v7522 = vadd.f32 %v7449, %v7521
        %v7523 = vpop.f32.mrb[0].mxu0
        %v7524 = vadd.f32 %v7451, %v7523
        %v7525 = vpop.f32.mrb[0].mxu0
        %v7526 = vadd.f32 %v7453, %v7525
        %7527 = vmatprep.mubr.bf16.mxu0 %v4571
        %7528 = vmatmul.mubr.bf16.gmra.mrb[0].mxu0 %v4570
        %v7529 = vpop.f32.mrb[0].mxu0
        %v7530 = vadd.f32 %v7457, %v7529
        %v7531 = vpop.f32.mrb[0].mxu0
        %v7532 = vadd.f32 %v7459, %v7531
        %v7533 = vpop.f32.mrb[0].mxu0
        %v7534 = vadd.f32 %v7461, %v7533
        %v7535 = vpop.f32.mrb[0].mxu0
        %v7536 = vadd.f32 %v7463, %v7535
        %7537 = vmatprep.mubr.bf16.mxu0 %v4575
        %7538 = vmatmul.mubr.bf16.gmra.mrb[0].mxu0 %v4574
        %v7539 = vpop.f32.mrb[0].mxu0
        %v7540 = vadd.f32 %v7467, %v7539
        %v7541 = vpop.f32.mrb[0].mxu0
        %v7542 = vadd.f32 %v7469, %v7541
        %v7543 = vpop.f32.mrb[0].mxu0
        %v7544 = vadd.f32 %v7471, %v7543
        %v7545 = vpop.f32.mrb[0].mxu0
        %v7546 = vadd.f32 %v7473, %v7545
        %7547 = vdwg.mxu0
        %7548 = vmatprep.subr.bf16.mxu0 %v6318
        %7549 = vmatpush1.bf16.msra.mxu0 %v6317
        %7550 = vmatprep.subr.bf16.mxu0 %v6322
        %7551 = vmatpush1.bf16.msra.mxu0 %v6321
        %7552 = vmatprep.subr.bf16.mxu0 %v6326
        %7553 = vmatpush1.bf16.msra.mxu0 %v6325
        %7554 = vmatprep.subr.bf16.mxu0 %v6330
        %7555 = vmatpush1.bf16.msra.mxu0 %v6329
        %7556 = vmatprep.subr.bf16.mxu0 %v6334
        %7557 = vmatpush1.bf16.msra.mxu0 %v6333
        %7558 = vmatprep.subr.bf16.mxu0 %v6338
        %7559 = vmatpush1.bf16.msra.mxu0 %v6337
        %7560 = vmatprep.subr.bf16.mxu0 %v6342
        %7561 = vmatpush1.bf16.msra.mxu0 %v6341
        %7562 = vmatprep.subr.bf16.mxu0 %v6346
        %7563 = vmatpush1.bf16.msra.mxu0 %v6345
        %7564 = vmatprep.subr.bf16.mxu0 %v6350
        %7565 = vmatpush1.bf16.msra.mxu0 %v6349
        %7566 = vmatprep.subr.bf16.mxu0 %v6354
        %7567 = vmatpush1.bf16.msra.mxu0 %v6353
        %7568 = vmatprep.subr.bf16.mxu0 %v6358
        %7569 = vmatpush1.bf16.msra.mxu0 %v6357
        %7570 = vmatprep.subr.bf16.mxu0 %v6362
        %7571 = vmatpush1.bf16.msra.mxu0 %v6361
        %7572 = vmatprep.subr.bf16.mxu0 %v6366
        %7573 = vmatpush1.bf16.msra.mxu0 %v6365
        %7574 = vmatprep.subr.bf16.mxu0 %v6370
        %7575 = vmatpush1.bf16.msra.mxu0 %v6369
        %7576 = vmatprep.subr.bf16.mxu0 %v6374
        %7577 = vmatpush1.bf16.msra.mxu0 %v6373
        %7578 = vmatprep.subr.bf16.mxu0 %v6378
        %7579 = vmatpush1.bf16.msra.mxu0 %v6377
        %7580 = vmatprep.mubr.bf16.mxu0 %v4565
        %7581 = vmatmul.mubr.bf16.gmra.mrb[0].mxu0 %v4564
        %v7582 = vpop.f32.mrb[0].mxu0
        %v7583 = vadd.f32 %v7510, %v7582
        %v7584 = vpop.f32.mrb[0].mxu0
        %v7585 = vadd.f32 %v7512, %v7584
        %v7586 = vpop.f32.mrb[0].mxu0
        %v7587 = vadd.f32 %v7514, %v7586
        %v7588 = vpop.f32.mrb[0].mxu0
        %v7589 = vadd.f32 %v7516, %v7588
        %7590 = vmatprep.mubr.bf16.mxu0 %v4569
        %7591 = vmatmul.mubr.bf16.gmra.mrb[0].mxu0 %v4568
        %v7592 = vpop.f32.mrb[0].mxu0
        %v7593 = vadd.f32 %v7520, %v7592
        %v7594 = vpop.f32.mrb[0].mxu0
        %v7595 = vadd.f32 %v7522, %v7594
        %v7596 = vpop.f32.mrb[0].mxu0
        %v7597 = vadd.f32 %v7524, %v7596
        %v7598 = vpop.f32.mrb[0].mxu0
        %v7599 = vadd.f32 %v7526, %v7598
        %7600 = vmatprep.mubr.bf16.mxu0 %v4573
        %7601 = vmatmul.mubr.bf16.gmra.mrb[0].mxu0 %v4572
        %v7602 = vpop.f32.mrb[0].mxu0
        %v7603 = vadd.f32 %v7530, %v7602
        %v7604 = vpop.f32.mrb[0].mxu0
        %v7605 = vadd.f32 %v7532, %v7604
        %v7606 = vpop.f32.mrb[0].mxu0
        %v7607 = vadd.f32 %v7534, %v7606
        %v7608 = vpop.f32.mrb[0].mxu0
        %v7609 = vadd.f32 %v7536, %v7608
        %7610 = vmatprep.mubr.bf16.mxu0 %v4577
        %7611 = vmatmul.mubr.bf16.gmra.mrb[0].mxu0 %v4576
        %v7612 = vpop.f32.mrb[0].mxu0
        %v7613 = vadd.f32 %v7540, %v7612
        %v7614 = vpop.f32.mrb[0].mxu0
        %v7615 = vadd.f32 %v7542, %v7614
        %v7616 = vpop.f32.mrb[0].mxu0
        %v7617 = vadd.f32 %v7544, %v7616
        %v7618 = vpop.f32.mrb[0].mxu0
        %v7619 = vadd.f32 %v7546, %v7618
        %7620 = vdwg.mxu0
        %7621 = vmatprep.subr.bf16.mxu0 %v6382
        %7622 = vmatpush1.bf16.msra.mxu0 %v6381
        %7623 = vmatprep.subr.bf16.mxu0 %v6386
        %7624 = vmatpush1.bf16.msra.mxu0 %v6385
        %7625 = vmatprep.subr.bf16.mxu0 %v6390
        %7626 = vmatpush1.bf16.msra.mxu0 %v6389
        %7627 = vmatprep.subr.bf16.mxu0 %v6394
        %7628 = vmatpush1.bf16.msra.mxu0 %v6393
        %7629 = vmatprep.subr.bf16.mxu0 %v6398
        %7630 = vmatpush1.bf16.msra.mxu0 %v6397
        %7631 = vmatprep.subr.bf16.mxu0 %v6402
        %7632 = vmatpush1.bf16.msra.mxu0 %v6401
        %7633 = vmatprep.subr.bf16.mxu0 %v6406
        %7634 = vmatpush1.bf16.msra.mxu0 %v6405
        %7635 = vmatprep.subr.bf16.mxu0 %v6410
        %7636 = vmatpush1.bf16.msra.mxu0 %v6409
        %7637 = vmatprep.subr.bf16.mxu0 %v6414
        %7638 = vmatpush1.bf16.msra.mxu0 %v6413
        %7639 = vmatprep.subr.bf16.mxu0 %v6418
        %7640 = vmatpush1.bf16.msra.mxu0 %v6417
        %7641 = vmatprep.subr.bf16.mxu0 %v6422
        %7642 = vmatpush1.bf16.msra.mxu0 %v6421
        %7643 = vmatprep.subr.bf16.mxu0 %v6426
        %7644 = vmatpush1.bf16.msra.mxu0 %v6425
        %7645 = vmatprep.subr.bf16.mxu0 %v6430
        %7646 = vmatpush1.bf16.msra.mxu0 %v6429
        %7647 = vmatprep.subr.bf16.mxu0 %v6434
        %7648 = vmatpush1.bf16.msra.mxu0 %v6433
        %7649 = vmatprep.subr.bf16.mxu0 %v6438
        %7650 = vmatpush1.bf16.msra.mxu0 %v6437
        %7651 = vmatprep.subr.bf16.mxu0 %v6442
        %7652 = vmatpush1.bf16.msra.mxu0 %v6441
        %7653 = vmatprep.mubr.bf16.mxu0 %v4547
        %7654 = vmatmul.mubr.bf16.gmra.mrb[0].mxu0 %v4546
        %v7655 = vpop.f32.mrb[0].mxu0
        %v7656 = vadd.f32 %v7583, %v7655
        %v7657 = vpop.f32.mrb[0].mxu0
        %v7658 = vadd.f32 %v7585, %v7657
        %v7659 = vpop.f32.mrb[0].mxu0
        %v7660 = vadd.f32 %v7587, %v7659
        %v7661 = vpop.f32.mrb[0].mxu0
        %v7662 = vadd.f32 %v7589, %v7661
        %7663 = vmatprep.mubr.bf16.mxu0 %v4551
        %7664 = vmatmul.mubr.bf16.gmra.mrb[0].mxu0 %v4550
        %v7665 = vpop.f32.mrb[0].mxu0
        %v7666 = vadd.f32 %v7593, %v7665
        %v7667 = vpop.f32.mrb[0].mxu0
        %v7668 = vadd.f32 %v7595, %v7667
        %v7669 = vpop.f32.mrb[0].mxu0
        %v7670 = vadd.f32 %v7597, %v7669
        %v7671 = vpop.f32.mrb[0].mxu0
        %v7672 = vadd.f32 %v7599, %v7671
        %7673 = vmatprep.mubr.bf16.mxu0 %v4555
        %7674 = vmatmul.mubr.bf16.gmra.mrb[0].mxu0 %v4554
        %v7675 = vpop.f32.mrb[0].mxu0
        %v7676 = vadd.f32 %v7603, %v7675
        %v7677 = vpop.f32.mrb[0].mxu0
        %v7678 = vadd.f32 %v7605, %v7677
        %v7679 = vpop.f32.mrb[0].mxu0
        %v7680 = vadd.f32 %v7607, %v7679
        %v7681 = vpop.f32.mrb[0].mxu0
        %v7682 = vadd.f32 %v7609, %v7681
        %7683 = vmatprep.mubr.bf16.mxu0 %v4583
        %7684 = vmatmul.mubr.bf16.gmra.mrb[0].mxu0 %v4582
        %v7685 = vpop.f32.mrb[0].mxu0
        %v7686 = vadd.f32 %v7613, %v7685
        %v7687 = vpop.f32.mrb[0].mxu0
        %v7688 = vadd.f32 %v7615, %v7687
        %v7689 = vpop.f32.mrb[0].mxu0
        %v7690 = vadd.f32 %v7617, %v7689
        %v7691 = vpop.f32.mrb[0].mxu0
        %v7692 = vadd.f32 %v7619, %v7691
        %7693 = vdwg.mxu0
        %7694 = vmatprep.subr.bf16.mxu0 %v6446
        %7695 = vmatpush1.bf16.msra.mxu0 %v6445
        %7696 = vmatprep.subr.bf16.mxu0 %v6450
        %7697 = vmatpush1.bf16.msra.mxu0 %v6449
        %7698 = vmatprep.subr.bf16.mxu0 %v6454
        %7699 = vmatpush1.bf16.msra.mxu0 %v6453
        %7700 = vmatprep.subr.bf16.mxu0 %v6458
        %7701 = vmatpush1.bf16.msra.mxu0 %v6457
        %7702 = vmatprep.subr.bf16.mxu0 %v6462
        %7703 = vmatpush1.bf16.msra.mxu0 %v6461
        %7704 = vmatprep.subr.bf16.mxu0 %v6466
        %7705 = vmatpush1.bf16.msra.mxu0 %v6465
        %7706 = vmatprep.subr.bf16.mxu0 %v6470
        %7707 = vmatpush1.bf16.msra.mxu0 %v6469
        %7708 = vmatprep.subr.bf16.mxu0 %v6474
        %7709 = vmatpush1.bf16.msra.mxu0 %v6473
        %7710 = vmatprep.subr.bf16.mxu0 %v6478
        %7711 = vmatpush1.bf16.msra.mxu0 %v6477
        %7712 = vmatprep.subr.bf16.mxu0 %v6482
        %7713 = vmatpush1.bf16.msra.mxu0 %v6481
        %7714 = vmatprep.subr.bf16.mxu0 %v6486
        %7715 = vmatpush1.bf16.msra.mxu0 %v6485
        %7716 = vmatprep.subr.bf16.mxu0 %v6490
        %7717 = vmatpush1.bf16.msra.mxu0 %v6489
        %7718 = vmatprep.subr.bf16.mxu0 %v6494
        %7719 = vmatpush1.bf16.msra.mxu0 %v6493
        %7720 = vmatprep.subr.bf16.mxu0 %v6498
        %7721 = vmatpush1.bf16.msra.mxu0 %v6497
        %7722 = vmatprep.subr.bf16.mxu0 %v6502
        %7723 = vmatpush1.bf16.msra.mxu0 %v6501
        %7724 = vmatprep.subr.bf16.mxu0 %v6506
        %7725 = vmatpush1.bf16.msra.mxu0 %v6505
        %7726 = vmatprep.mubr.bf16.mxu0 %v4549
        %7727 = vmatmul.mubr.bf16.gmra.mrb[0].mxu0 %v4548
        %v7728 = vpop.f32.mrb[0].mxu0
        %v7729 = vadd.f32 %v7656, %v7728
        %v7730 = vpop.f32.mrb[0].mxu0
        %v7731 = vadd.f32 %v7658, %v7730
        %v7732 = vpop.f32.mrb[0].mxu0
        %v7733 = vadd.f32 %v7660, %v7732
        %v7734 = vpop.f32.mrb[0].mxu0
        %v7735 = vadd.f32 %v7662, %v7734
        %7736 = vmatprep.mubr.bf16.mxu0 %v4553
        %7737 = vmatmul.mubr.bf16.gmra.mrb[0].mxu0 %v4552
        %v7738 = vpop.f32.mrb[0].mxu0
        %v7739 = vadd.f32 %v7666, %v7738
        %v7740 = vpop.f32.mrb[0].mxu0
        %v7741 = vadd.f32 %v7668, %v7740
        %v7742 = vpop.f32.mrb[0].mxu0
        %v7743 = vadd.f32 %v7670, %v7742
        %v7744 = vpop.f32.mrb[0].mxu0
        %v7745 = vadd.f32 %v7672, %v7744
        %7746 = vmatprep.mubr.bf16.mxu0 %v4557
        %7747 = vmatmul.mubr.bf16.gmra.mrb[0].mxu0 %v4556
        %v7748 = vpop.f32.mrb[0].mxu0
        %v7749 = vadd.f32 %v7676, %v7748
        %v7750 = vpop.f32.mrb[0].mxu0
        %v7751 = vadd.f32 %v7678, %v7750
        %v7752 = vpop.f32.mrb[0].mxu0
        %v7753 = vadd.f32 %v7680, %v7752
        %v7754 = vpop.f32.mrb[0].mxu0
        %v7755 = vadd.f32 %v7682, %v7754
        %7756 = vmatprep.mubr.bf16.mxu0 %v4585
        %7757 = vmatmul.mubr.bf16.gmra.mrb[0].mxu0 %v4584
        %v7758 = vpop.f32.mrb[0].mxu0
        %v7759 = vadd.f32 %v7686, %v7758
        %v7760 = vpop.f32.mrb[0].mxu0
        %v7761 = vadd.f32 %v7688, %v7760
        %v7762 = vpop.f32.mrb[0].mxu0
        %v7763 = vadd.f32 %v7690, %v7762
        %v7764 = vpop.f32.mrb[0].mxu0
        %v7765 = vadd.f32 %v7692, %v7764
        %7766 = vdwg.mxu0
        %v7767 = vld [vmem:[#allocation3] sm:$0xff]
        %v7768 = vld [vmem:[#allocation3 + $0x8] sm:$0xff]
        %v7769 = vld [vmem:[#allocation3 + $0x10] sm:$0xff]
        %v7770 = vld [vmem:[#allocation3 + $0x18] sm:$0xff]
        %v7771 = vld [vmem:[#allocation3 + $0x20] sm:$0xff]
        %v7772 = vld [vmem:[#allocation3 + $0x28] sm:$0xff]
        %v7773 = vld [vmem:[#allocation3 + $0x30] sm:$0xff]
        %v7774 = vld [vmem:[#allocation3 + $0x38] sm:$0xff]
        %v7775 = vld [vmem:[#allocation3 + $0x40] sm:$0xff]
        %v7776 = vld [vmem:[#allocation3 + $0x48] sm:$0xff]
        %v7777 = vld [vmem:[#allocation3 + $0x50] sm:$0xff]
        %v7778 = vld [vmem:[#allocation3 + $0x58] sm:$0xff]
        %v7779 = vld [vmem:[#allocation3 + $0x60] sm:$0xff]
        %v7780 = vld [vmem:[#allocation3 + $0x68] sm:$0xff]
        %v7781 = vld [vmem:[#allocation3 + $0x70] sm:$0xff]
        %v7782 = vld [vmem:[#allocation3 + $0x78] sm:$0xff]
        %v7783 = vld [vmem:[#allocation3 + $0x80] sm:$0xff]
        %v7784 = vld [vmem:[#allocation3 + $0x88] sm:$0xff]
        %v7785 = vld [vmem:[#allocation3 + $0x90] sm:$0xff]
        %v7786 = vld [vmem:[#allocation3 + $0x98] sm:$0xff]
        %v7787 = vld [vmem:[#allocation3 + $0xa0] sm:$0xff]
        %v7788 = vld [vmem:[#allocation3 + $0xa8] sm:$0xff]
        %v7789 = vld [vmem:[#allocation3 + $0xb0] sm:$0xff]
        %v7790 = vld [vmem:[#allocation3 + $0xb8] sm:$0xff]
        %v7791 = vld [vmem:[#allocation3 + $0xc0] sm:$0xff]
        %v7792 = vld [vmem:[#allocation3 + $0xc8] sm:$0xff]
        %v7793 = vld [vmem:[#allocation3 + $0xd0] sm:$0xff]
        %v7794 = vld [vmem:[#allocation3 + $0xd8] sm:$0xff]
        %v7795 = vld [vmem:[#allocation3 + $0xe0] sm:$0xff]
        %v7796 = vld [vmem:[#allocation3 + $0xe8] sm:$0xff]
        %v7797 = vld [vmem:[#allocation3 + $0xf0] sm:$0xff]
        %v7798 = vld [vmem:[#allocation3 + $0xf8] sm:$0xff]
        %v7799 = vadd.f32 %v7767, %v7291
        %v7800 = vadd.f32 %v7768, %v7293
        %v7801 = vadd.f32 %v7769, %v7729
        %v7802 = vadd.f32 %v7770, %v7731
        %v7803 = vadd.f32 %v7771, %v7295
        %v7804 = vadd.f32 %v7772, %v7297
        %v7805 = vadd.f32 %v7773, %v7733
        %v7806 = vadd.f32 %v7774, %v7735
        %v7807 = vadd.f32 %v7775, %v7301
        %v7808 = vadd.f32 %v7776, %v7303
        %v7809 = vadd.f32 %v7777, %v7739
        %v7810 = vadd.f32 %v7778, %v7741
        %v7811 = vadd.f32 %v7779, %v7305
        %v7812 = vadd.f32 %v7780, %v7307
        %v7813 = vadd.f32 %v7781, %v7743
        %v7814 = vadd.f32 %v7782, %v7745
        %v7815 = vadd.f32 %v7783, %v7311
        %v7816 = vadd.f32 %v7784, %v7313
        %v7817 = vadd.f32 %v7785, %v7749
        %v7818 = vadd.f32 %v7786, %v7751
        %v7819 = vadd.f32 %v7787, %v7315
        %v7820 = vadd.f32 %v7788, %v7317
        %v7821 = vadd.f32 %v7789, %v7753
        %v7822 = vadd.f32 %v7790, %v7755
        %v7823 = vadd.f32 %v7791, %v7321
        %v7824 = vadd.f32 %v7792, %v7323
        %v7825 = vadd.f32 %v7793, %v7759
        %v7826 = vadd.f32 %v7794, %v7761
        %v7827 = vadd.f32 %v7795, %v7325
        %v7828 = vadd.f32 %v7796, %v7327
        %v7829 = vadd.f32 %v7797, %v7763
        %v7830 = vadd.f32 %v7798, %v7765
        %7831 = vst [vmem:[#allocation3] sm:$0xff] %v7799
        %7832 = vst [vmem:[#allocation3 + $0x8] sm:$0xff] %v7800
        %7833 = vst [vmem:[#allocation3 + $0x10] sm:$0xff] %v7801
        %7834 = vst [vmem:[#allocation3 + $0x18] sm:$0xff] %v7802
        %7835 = vst [vmem:[#allocation3 + $0x20] sm:$0xff] %v7803
        %7836 = vst [vmem:[#allocation3 + $0x28] sm:$0xff] %v7804
        %7837 = vst [vmem:[#allocation3 + $0x30] sm:$0xff] %v7805
        %7838 = vst [vmem:[#allocation3 + $0x38] sm:$0xff] %v7806
        %7839 = vst [vmem:[#allocation3 + $0x40] sm:$0xff] %v7807
        %7840 = vst [vmem:[#allocation3 + $0x48] sm:$0xff] %v7808
        %7841 = vst [vmem:[#allocation3 + $0x50] sm:$0xff] %v7809
        %7842 = vst [vmem:[#allocation3 + $0x58] sm:$0xff] %v7810
        %7843 = vst [vmem:[#allocation3 + $0x60] sm:$0xff] %v7811
        %7844 = vst [vmem:[#allocation3 + $0x68] sm:$0xff] %v7812
        %7845 = vst [vmem:[#allocation3 + $0x70] sm:$0xff] %v7813
        %7846 = vst [vmem:[#allocation3 + $0x78] sm:$0xff] %v7814
        %7847 = vst [vmem:[#allocation3 + $0x80] sm:$0xff] %v7815
        %7848 = vst [vmem:[#allocation3 + $0x88] sm:$0xff] %v7816
        %7849 = vst [vmem:[#allocation3 + $0x90] sm:$0xff] %v7817
        %7850 = vst [vmem:[#allocation3 + $0x98] sm:$0xff] %v7818
        %7851 = vst [vmem:[#allocation3 + $0xa0] sm:$0xff] %v7819
        %7852 = vst [vmem:[#allocation3 + $0xa8] sm:$0xff] %v7820
        %7853 = vst [vmem:[#allocation3 + $0xb0] sm:$0xff] %v7821
        %7854 = vst [vmem:[#allocation3 + $0xb8] sm:$0xff] %v7822
        %7855 = vst [vmem:[#allocation3 + $0xc0] sm:$0xff] %v7823
        %7856 = vst [vmem:[#allocation3 + $0xc8] sm:$0xff] %v7824
        %7857 = vst [vmem:[#allocation3 + $0xd0] sm:$0xff] %v7825
        %7858 = vst [vmem:[#allocation3 + $0xd8] sm:$0xff] %v7826
        %7859 = vst [vmem:[#allocation3 + $0xe0] sm:$0xff] %v7827
        %7860 = vst [vmem:[#allocation3 + $0xe8] sm:$0xff] %v7828
        %7861 = vst [vmem:[#allocation3 + $0xf0] sm:$0xff] %v7829
        %7862 = vst [vmem:[#allocation3 + $0xf8] sm:$0xff] %v7830
        %v7863 = vld [vmem:[#allocation2 + $0x20] sm:$0xfe]
        %v7864 = vld [vmem:[#allocation2 + $0x28] sm:$0xfe]
        %v7865 = vld [vmem:[#allocation2 + $0x30] sm:$0xfe]
        %v7866 = vld [vmem:[#allocation2 + $0x38] sm:$0xfe]
        %v7867 = vld [vmem:[#allocation2 + $0x40] sm:$0xff]
        %v7868 = vld [vmem:[#allocation2 + $0x48] sm:$0xff]
        %v7869 = vld [vmem:[#allocation2 + $0x50] sm:$0xff]
        %v7870 = vld [vmem:[#allocation2 + $0x58] sm:$0xff]
        %v7871 = vld [vmem:[#allocation2 + $0x60] sm:$0xff]
        %v7872 = vld [vmem:[#allocation2 + $0x68] sm:$0xff]
        %v7873 = vld [vmem:[#allocation2 + $0x70] sm:$0xff]
        %v7874 = vld [vmem:[#allocation2 + $0x78] sm:$0xff]
        %v7875 = vld [vmem:[#allocation2 + $0x80] sm:$0xff]
        %v7876 = vld [vmem:[#allocation2 + $0x88] sm:$0xff]
        %v7877 = vld [vmem:[#allocation2 + $0x90] sm:$0xff]
        %v7878 = vld [vmem:[#allocation2 + $0x98] sm:$0xff]
        %v7879 = vld [vmem:[#allocation2 + $0xa0] sm:$0xff]
        %v7880 = vld [vmem:[#allocation2 + $0xa8] sm:$0xff]
        %v7881 = vld [vmem:[#allocation2 + $0xb0] sm:$0xff]
        %v7882 = vld [vmem:[#allocation2 + $0xb8] sm:$0xff]
        %v7883 = vld [vmem:[#allocation2 + $0xc0] sm:$0xff]
        %v7884 = vld [vmem:[#allocation2 + $0xc8] sm:$0xff]
        %v7885 = vld [vmem:[#allocation2 + $0xd0] sm:$0xff]
        %v7886 = vld [vmem:[#allocation2 + $0xd8] sm:$0xff]
        %v7887 = vld [vmem:[#allocation2 + $0xe0] sm:$0xff]
        %v7888 = vld [vmem:[#allocation2 + $0xe8] sm:$0xff]
        %v7889 = vld [vmem:[#allocation2 + $0xf0] sm:$0xff]
        %v7890 = vld [vmem:[#allocation2 + $0xf8] sm:$0xff]
        %v7891 = vld [vmem:[#allocation2 + $0x100] sm:$0xff]
        %v7892 = vld [vmem:[#allocation2 + $0x108] sm:$0xff]
        %v7893 = vld [vmem:[#allocation2 + $0x110] sm:$0xff]
        %v7894 = vld [vmem:[#allocation2 + $0x118] sm:$0xff]
        %v7895 = vld [vmem:[#allocation2 + $0x120] sm:$0x1]
        %v7896 = vld [vmem:[#allocation2 + $0x128] sm:$0x1]
        %v7897 = vld [vmem:[#allocation2 + $0x130] sm:$0x1]
        %v7898 = vld [vmem:[#allocation2 + $0x138] sm:$0x1]
        %7900 = vset.pattern.permute.xlu0 0
        %7901 = vperm.xlu0 %7900, %v404
        %v7902 = vpop.permute.xlu0 %7901
        %7904 = vset.pattern.permute.xlu0 0
        %7905 = vperm.xlu0 %7904, %v405
        %v7906 = vpop.permute.xlu0 %7905
        %7908 = vset.pattern.permute.xlu0 0
        %7909 = vperm.xlu0 %7908, %v406
        %v7910 = vpop.permute.xlu0 %7909
        %7912 = vset.pattern.permute.xlu0 0
        %7913 = vperm.xlu0 %7912, %v407
        %v7914 = vpop.permute.xlu0 %7913
        %7916 = vset.pattern.permute.xlu0 0
        %7917 = vperm.xlu0 %7916, %v408
        %v7918 = vpop.permute.xlu0 %7917
        %7920 = vset.pattern.permute.xlu0 0
        %7921 = vperm.xlu0 %7920, %v409
        %v7922 = vpop.permute.xlu0 %7921
        %7924 = vset.pattern.permute.xlu0 0
        %7925 = vperm.xlu0 %7924, %v410
        %v7926 = vpop.permute.xlu0 %7925
        %7928 = vset.pattern.permute.xlu0 0
        %7929 = vperm.xlu0 %7928, %v411
        %v7930 = vpop.permute.xlu0 %7929
        %vm7931 = vcmask 1040384
        %v7932 = vrot.slane %v7902, 7
        %v7933 = vrot.slane %v7906, 7
        %v7934 = vsel %vm7931, %v7932, %v7933
        %v7935 = vrot.slane %v7910, 7
        %v7936 = vsel %vm7931, %v7933, %v7935
        %v7937 = vrot.slane %v7914, 7
        %v7938 = vsel %vm7931, %v7935, %v7937
        %v7939 = vrot.slane %v7918, 7
        %v7940 = vsel %vm7931, %v7937, %v7939
        %v7941 = vrot.slane %v7922, 7
        %v7942 = vsel %vm7931, %v7939, %v7941
        %v7943 = vrot.slane %v7926, 7
        %v7944 = vsel %vm7931, %v7941, %v7943
        %v7945 = vrot.slane %v7930, 7
        %v7946 = vsel %vm7931, %v7943, %v7945
        %v7956 = vmul.f32 %v7863, %v7932
        %v7957 = vmul.f32 %v7864, %v7932
        %v7958 = vmul.f32 %v7865, %v7932
        %v7959 = vmul.f32 %v7866, %v7932
        %v7960 = vmul.f32 %v7867, %v7934
        %v7961 = vmul.f32 %v7868, %v7934
        %v7962 = vmul.f32 %v7869, %v7934
        %v7963 = vmul.f32 %v7870, %v7934
        %v7964 = vmul.f32 %v7871, %v7936
        %v7965 = vmul.f32 %v7872, %v7936
        %v7966 = vmul.f32 %v7873, %v7936
        %v7967 = vmul.f32 %v7874, %v7936
        %v7968 = vmul.f32 %v7875, %v7938
        %v7969 = vmul.f32 %v7876, %v7938
        %v7970 = vmul.f32 %v7877, %v7938
        %v7971 = vmul.f32 %v7878, %v7938
        %v7972 = vmul.f32 %v7879, %v7940
        %v7973 = vmul.f32 %v7880, %v7940
        %v7974 = vmul.f32 %v7881, %v7940
        %v7975 = vmul.f32 %v7882, %v7940
        %v7976 = vmul.f32 %v7883, %v7942
        %v7977 = vmul.f32 %v7884, %v7942
        %v7978 = vmul.f32 %v7885, %v7942
        %v7979 = vmul.f32 %v7886, %v7942
        %v7980 = vmul.f32 %v7887, %v7944
        %v7981 = vmul.f32 %v7888, %v7944
        %v7982 = vmul.f32 %v7889, %v7944
        %v7983 = vmul.f32 %v7890, %v7944
        %v7984 = vmul.f32 %v7891, %v7946
        %v7985 = vmul.f32 %v7892, %v7946
        %v7986 = vmul.f32 %v7893, %v7946
        %v7987 = vmul.f32 %v7894, %v7946
        %v7988 = vmul.f32 %v7895, %v7945
        %v7989 = vmul.f32 %v7896, %v7945
        %v7990 = vmul.f32 %v7897, %v7945
        %v7991 = vmul.f32 %v7898, %v7945
        %v7992 = vpack.c.bf16 %v7960, %v7956
        %v7993 = vpack.c.bf16 %v7961, %v7957
        %v7994 = vpack.c.bf16 %v7962, %v7958
        %v7995 = vpack.c.bf16 %v7963, %v7959
        %v7996 = vpack.c.bf16 %v7968, %v7964
        %v7997 = vpack.c.bf16 %v7969, %v7965
        %v7998 = vpack.c.bf16 %v7970, %v7966
        %v7999 = vpack.c.bf16 %v7971, %v7967
        %v8000 = vpack.c.bf16 %v7976, %v7972
        %v8001 = vpack.c.bf16 %v7977, %v7973
        %v8002 = vpack.c.bf16 %v7978, %v7974
        %v8003 = vpack.c.bf16 %v7979, %v7975
        %v8004 = vpack.c.bf16 %v7984, %v7980
        %v8005 = vpack.c.bf16 %v7985, %v7981
        %v8006 = vpack.c.bf16 %v7986, %v7982
        %v8007 = vpack.c.bf16 %v7987, %v7983
        %v8008 = vpack.c.bf16 %v7988, %v7988
        %v8009 = vpack.c.bf16 %v7989, %v7989
        %v8010 = vpack.c.bf16 %v7990, %v7990
        %v8011 = vpack.c.bf16 %v7991, %v7991
        %v8012 = vld [vmem:[#allocation2 + $0x40] sm:$0xfe]
        %v8013 = vld [vmem:[#allocation2 + $0x48] sm:$0xfe]
        %v8014 = vld [vmem:[#allocation2 + $0x50] sm:$0xfe]
        %v8015 = vld [vmem:[#allocation2 + $0x58] sm:$0xfe]
        %v8016 = vld [vmem:[#allocation2 + $0x60] sm:$0xff]
        %v8017 = vld [vmem:[#allocation2 + $0x68] sm:$0xff]
        %v8018 = vld [vmem:[#allocation2 + $0x70] sm:$0xff]
        %v8019 = vld [vmem:[#allocation2 + $0x78] sm:$0xff]
        %v8020 = vld [vmem:[#allocation2 + $0x80] sm:$0xff]
        %v8021 = vld [vmem:[#allocation2 + $0x88] sm:$0xff]
        %v8022 = vld [vmem:[#allocation2 + $0x90] sm:$0xff]
        %v8023 = vld [vmem:[#allocation2 + $0x98] sm:$0xff]
        %v8024 = vld [vmem:[#allocation2 + $0xa0] sm:$0xff]
        %v8025 = vld [vmem:[#allocation2 + $0xa8] sm:$0xff]
        %v8026 = vld [vmem:[#allocation2 + $0xb0] sm:$0xff]
        %v8027 = vld [vmem:[#allocation2 + $0xb8] sm:$0xff]
        %v8028 = vld [vmem:[#allocation2 + $0xc0] sm:$0xff]
        %v8029 = vld [vmem:[#allocation2 + $0xc8] sm:$0xff]
        %v8030 = vld [vmem:[#allocation2 + $0xd0] sm:$0xff]
        %v8031 = vld [vmem:[#allocation2 + $0xd8] sm:$0xff]
        %v8032 = vld [vmem:[#allocation2 + $0xe0] sm:$0xff]
        %v8033 = vld [vmem:[#allocation2 + $0xe8] sm:$0xff]
        %v8034 = vld [vmem:[#allocation2 + $0xf0] sm:$0xff]
        %v8035 = vld [vmem:[#allocation2 + $0xf8] sm:$0xff]
        %v8036 = vld [vmem:[#allocation2 + $0x100] sm:$0xff]
        %v8037 = vld [vmem:[#allocation2 + $0x108] sm:$0xff]
        %v8038 = vld [vmem:[#allocation2 + $0x110] sm:$0xff]
        %v8039 = vld [vmem:[#allocation2 + $0x118] sm:$0xff]
        %v8040 = vld [vmem:[#allocation2 + $0x120] sm:$0xff]
        %v8041 = vld [vmem:[#allocation2 + $0x128] sm:$0xff]
        %v8042 = vld [vmem:[#allocation2 + $0x130] sm:$0xff]
        %v8043 = vld [vmem:[#allocation2 + $0x138] sm:$0xff]
        %v8044 = vld [vmem:[#allocation2 + $0x140] sm:$0x1]
        %v8045 = vld [vmem:[#allocation2 + $0x148] sm:$0x1]
        %v8046 = vld [vmem:[#allocation2 + $0x150] sm:$0x1]
        %v8047 = vld [vmem:[#allocation2 + $0x158] sm:$0x1]
        %v8048 = vmul.f32 %v8012, %v7932
        %v8049 = vmul.f32 %v8013, %v7932
        %v8050 = vmul.f32 %v8014, %v7932
        %v8051 = vmul.f32 %v8015, %v7932
        %v8052 = vmul.f32 %v8016, %v7934
        %v8053 = vmul.f32 %v8017, %v7934
        %v8054 = vmul.f32 %v8018, %v7934
        %v8055 = vmul.f32 %v8019, %v7934
        %v8056 = vmul.f32 %v8020, %v7936
        %v8057 = vmul.f32 %v8021, %v7936
        %v8058 = vmul.f32 %v8022, %v7936
        %v8059 = vmul.f32 %v8023, %v7936
        %v8060 = vmul.f32 %v8024, %v7938
        %v8061 = vmul.f32 %v8025, %v7938
        %v8062 = vmul.f32 %v8026, %v7938
        %v8063 = vmul.f32 %v8027, %v7938
        %v8064 = vmul.f32 %v8028, %v7940
        %v8065 = vmul.f32 %v8029, %v7940
        %v8066 = vmul.f32 %v8030, %v7940
        %v8067 = vmul.f32 %v8031, %v7940
        %v8068 = vmul.f32 %v8032, %v7942
        %v8069 = vmul.f32 %v8033, %v7942
        %v8070 = vmul.f32 %v8034, %v7942
        %v8071 = vmul.f32 %v8035, %v7942
        %v8072 = vmul.f32 %v8036, %v7944
        %v8073 = vmul.f32 %v8037, %v7944
        %v8074 = vmul.f32 %v8038, %v7944
        %v8075 = vmul.f32 %v8039, %v7944
        %v8076 = vmul.f32 %v8040, %v7946
        %v8077 = vmul.f32 %v8041, %v7946
        %v8078 = vmul.f32 %v8042, %v7946
        %v8079 = vmul.f32 %v8043, %v7946
        %v8080 = vmul.f32 %v8044, %v7945
        %v8081 = vmul.f32 %v8045, %v7945
        %v8082 = vmul.f32 %v8046, %v7945
        %v8083 = vmul.f32 %v8047, %v7945
        %v8084 = vpack.c.bf16 %v8052, %v8048
        %v8085 = vpack.c.bf16 %v8053, %v8049
        %v8086 = vpack.c.bf16 %v8054, %v8050
        %v8087 = vpack.c.bf16 %v8055, %v8051
        %v8088 = vpack.c.bf16 %v8060, %v8056
        %v8089 = vpack.c.bf16 %v8061, %v8057
        %v8090 = vpack.c.bf16 %v8062, %v8058
        %v8091 = vpack.c.bf16 %v8063, %v8059
        %v8092 = vpack.c.bf16 %v8068, %v8064
        %v8093 = vpack.c.bf16 %v8069, %v8065
        %v8094 = vpack.c.bf16 %v8070, %v8066
        %v8095 = vpack.c.bf16 %v8071, %v8067
        %v8096 = vpack.c.bf16 %v8076, %v8072
        %v8097 = vpack.c.bf16 %v8077, %v8073
        %v8098 = vpack.c.bf16 %v8078, %v8074
        %v8099 = vpack.c.bf16 %v8079, %v8075
        %v8100 = vpack.c.bf16 %v8080, %v8080
        %v8101 = vpack.c.bf16 %v8081, %v8081
        %v8102 = vpack.c.bf16 %v8082, %v8082
        %v8103 = vpack.c.bf16 %v8083, %v8083
        %v8104 = vld [vmem:[#allocation2 + $0x60] sm:$0xfe]
        %v8105 = vld [vmem:[#allocation2 + $0x68] sm:$0xfe]
        %v8106 = vld [vmem:[#allocation2 + $0x70] sm:$0xfe]
        %v8107 = vld [vmem:[#allocation2 + $0x78] sm:$0xfe]
        %v8108 = vld [vmem:[#allocation2 + $0x80] sm:$0xff]
        %v8109 = vld [vmem:[#allocation2 + $0x88] sm:$0xff]
        %v8110 = vld [vmem:[#allocation2 + $0x90] sm:$0xff]
        %v8111 = vld [vmem:[#allocation2 + $0x98] sm:$0xff]
        %v8112 = vld [vmem:[#allocation2 + $0xa0] sm:$0xff]
        %v8113 = vld [vmem:[#allocation2 + $0xa8] sm:$0xff]
        %v8114 = vld [vmem:[#allocation2 + $0xb0] sm:$0xff]
        %v8115 = vld [vmem:[#allocation2 + $0xb8] sm:$0xff]
        %v8116 = vld [vmem:[#allocation2 + $0xc0] sm:$0xff]
        %v8117 = vld [vmem:[#allocation2 + $0xc8] sm:$0xff]
        %v8118 = vld [vmem:[#allocation2 + $0xd0] sm:$0xff]
        %v8119 = vld [vmem:[#allocation2 + $0xd8] sm:$0xff]
        %v8120 = vld [vmem:[#allocation2 + $0xe0] sm:$0xff]
        %v8121 = vld [vmem:[#allocation2 + $0xe8] sm:$0xff]
        %v8122 = vld [vmem:[#allocation2 + $0xf0] sm:$0xff]
        %v8123 = vld [vmem:[#allocation2 + $0xf8] sm:$0xff]
        %v8124 = vld [vmem:[#allocation2 + $0x100] sm:$0xff]
        %v8125 = vld [vmem:[#allocation2 + $0x108] sm:$0xff]
        %v8126 = vld [vmem:[#allocation2 + $0x110] sm:$0xff]
        %v8127 = vld [vmem:[#allocation2 + $0x118] sm:$0xff]
        %v8128 = vld [vmem:[#allocation2 + $0x120] sm:$0xff]
        %v8129 = vld [vmem:[#allocation2 + $0x128] sm:$0xff]
        %v8130 = vld [vmem:[#allocation2 + $0x130] sm:$0xff]
        %v8131 = vld [vmem:[#allocation2 + $0x138] sm:$0xff]
        %v8132 = vld [vmem:[#allocation2 + $0x140] sm:$0xff]
        %v8133 = vld [vmem:[#allocation2 + $0x148] sm:$0xff]
        %v8134 = vld [vmem:[#allocation2 + $0x150] sm:$0xff]
        %v8135 = vld [vmem:[#allocation2 + $0x158] sm:$0xff]
        %v8136 = vld [vmem:[#allocation2 + $0x160] sm:$0x1]
        %v8137 = vld [vmem:[#allocation2 + $0x168] sm:$0x1]
        %v8138 = vld [vmem:[#allocation2 + $0x170] sm:$0x1]
        %v8139 = vld [vmem:[#allocation2 + $0x178] sm:$0x1]
        %v8140 = vmul.f32 %v8104, %v7932
        %v8141 = vmul.f32 %v8105, %v7932
        %v8142 = vmul.f32 %v8106, %v7932
        %v8143 = vmul.f32 %v8107, %v7932
        %v8144 = vmul.f32 %v8108, %v7934
        %v8145 = vmul.f32 %v8109, %v7934
        %v8146 = vmul.f32 %v8110, %v7934
        %v8147 = vmul.f32 %v8111, %v7934
        %v8148 = vmul.f32 %v8112, %v7936
        %v8149 = vmul.f32 %v8113, %v7936
        %v8150 = vmul.f32 %v8114, %v7936
        %v8151 = vmul.f32 %v8115, %v7936
        %v8152 = vmul.f32 %v8116, %v7938
        %v8153 = vmul.f32 %v8117, %v7938
        %v8154 = vmul.f32 %v8118, %v7938
        %v8155 = vmul.f32 %v8119, %v7938
        %v8156 = vmul.f32 %v8120, %v7940
        %v8157 = vmul.f32 %v8121, %v7940
        %v8158 = vmul.f32 %v8122, %v7940
        %v8159 = vmul.f32 %v8123, %v7940
        %v8160 = vmul.f32 %v8124, %v7942
        %v8161 = vmul.f32 %v8125, %v7942
        %v8162 = vmul.f32 %v8126, %v7942
        %v8163 = vmul.f32 %v8127, %v7942
        %v8164 = vmul.f32 %v8128, %v7944
        %v8165 = vmul.f32 %v8129, %v7944
        %v8166 = vmul.f32 %v8130, %v7944
        %v8167 = vmul.f32 %v8131, %v7944
        %v8168 = vmul.f32 %v8132, %v7946
        %v8169 = vmul.f32 %v8133, %v7946
        %v8170 = vmul.f32 %v8134, %v7946
        %v8171 = vmul.f32 %v8135, %v7946
        %v8172 = vmul.f32 %v8136, %v7945
        %v8173 = vmul.f32 %v8137, %v7945
        %v8174 = vmul.f32 %v8138, %v7945
        %v8175 = vmul.f32 %v8139, %v7945
        %v8176 = vpack.c.bf16 %v8144, %v8140
        %v8177 = vpack.c.bf16 %v8145, %v8141
        %v8178 = vpack.c.bf16 %v8146, %v8142
        %v8179 = vpack.c.bf16 %v8147, %v8143
        %v8180 = vpack.c.bf16 %v8152, %v8148
        %v8181 = vpack.c.bf16 %v8153, %v8149
        %v8182 = vpack.c.bf16 %v8154, %v8150
        %v8183 = vpack.c.bf16 %v8155, %v8151
        %v8184 = vpack.c.bf16 %v8160, %v8156
        %v8185 = vpack.c.bf16 %v8161, %v8157
        %v8186 = vpack.c.bf16 %v8162, %v8158
        %v8187 = vpack.c.bf16 %v8163, %v8159
        %v8188 = vpack.c.bf16 %v8168, %v8164
        %v8189 = vpack.c.bf16 %v8169, %v8165
        %v8190 = vpack.c.bf16 %v8170, %v8166
        %v8191 = vpack.c.bf16 %v8171, %v8167
        %v8192 = vpack.c.bf16 %v8172, %v8172
        %v8193 = vpack.c.bf16 %v8173, %v8173
        %v8194 = vpack.c.bf16 %v8174, %v8174
        %v8195 = vpack.c.bf16 %v8175, %v8175
        %s8196 = scalar_lea.vmem [#allocation7], 6144
        %v8197 = vld [vmem:[%s8196] sm:$0xff]
        %v8198 = vld [vmem:[%s8196 + $0x8] sm:$0xff]
        %v8199 = vld [vmem:[%s8196 + $0x10] sm:$0xff]
        %v8200 = vld [vmem:[%s8196 + $0x18] sm:$0xff]
        %v8201 = vld [vmem:[%s8196 + $0x20] sm:$0xff]
        %v8202 = vld [vmem:[%s8196 + $0x28] sm:$0xff]
        %v8203 = vld [vmem:[%s8196 + $0x30] sm:$0xff]
        %v8204 = vld [vmem:[%s8196 + $0x38] sm:$0xff]
        %v8205 = vld [vmem:[%s8196 + $0x40] sm:$0xff]
        %v8206 = vld [vmem:[%s8196 + $0x48] sm:$0xff]
        %v8207 = vld [vmem:[%s8196 + $0x50] sm:$0xff]
        %v8208 = vld [vmem:[%s8196 + $0x58] sm:$0xff]
        %v8209 = vld [vmem:[%s8196 + $0x60] sm:$0xff]
        %v8210 = vld [vmem:[%s8196 + $0x68] sm:$0xff]
        %v8211 = vld [vmem:[%s8196 + $0x70] sm:$0xff]
        %v8212 = vld [vmem:[%s8196 + $0x78] sm:$0xff]
        %v8213 = vld [vmem:[%s8196 + $0x80] sm:$0xff]
        %v8214 = vld [vmem:[%s8196 + $0x88] sm:$0xff]
        %v8215 = vld [vmem:[%s8196 + $0x90] sm:$0xff]
        %v8216 = vld [vmem:[%s8196 + $0x98] sm:$0xff]
        %v8217 = vld [vmem:[%s8196 + $0xa0] sm:$0xff]
        %v8218 = vld [vmem:[%s8196 + $0xa8] sm:$0xff]
        %v8219 = vld [vmem:[%s8196 + $0xb0] sm:$0xff]
        %v8220 = vld [vmem:[%s8196 + $0xb8] sm:$0xff]
        %v8221 = vld [vmem:[%s8196 + $0xc0] sm:$0xff]
        %v8222 = vld [vmem:[%s8196 + $0xc8] sm:$0xff]
        %v8223 = vld [vmem:[%s8196 + $0xd0] sm:$0xff]
        %v8224 = vld [vmem:[%s8196 + $0xd8] sm:$0xff]
        %v8225 = vld [vmem:[%s8196 + $0xe0] sm:$0xff]
        %v8226 = vld [vmem:[%s8196 + $0xe8] sm:$0xff]
        %v8227 = vld [vmem:[%s8196 + $0xf0] sm:$0xff]
        %v8228 = vld [vmem:[%s8196 + $0xf8] sm:$0xff]
        %v8229 = vld [vmem:[%s8196 + $0x100] sm:$0xff]
        %v8230 = vld [vmem:[%s8196 + $0x108] sm:$0xff]
        %v8231 = vld [vmem:[%s8196 + $0x110] sm:$0xff]
        %v8232 = vld [vmem:[%s8196 + $0x118] sm:$0xff]
        %v8233 = vld [vmem:[%s8196 + $0x120] sm:$0xff]
        %v8234 = vld [vmem:[%s8196 + $0x128] sm:$0xff]
        %v8235 = vld [vmem:[%s8196 + $0x130] sm:$0xff]
        %v8236 = vld [vmem:[%s8196 + $0x138] sm:$0xff]
        %v8237 = vld [vmem:[%s8196 + $0x140] sm:$0xff]
        %v8238 = vld [vmem:[%s8196 + $0x148] sm:$0xff]
        %v8239 = vld [vmem:[%s8196 + $0x150] sm:$0xff]
        %v8240 = vld [vmem:[%s8196 + $0x158] sm:$0xff]
        %v8241 = vld [vmem:[%s8196 + $0x160] sm:$0xff]
        %v8242 = vld [vmem:[%s8196 + $0x168] sm:$0xff]
        %v8243 = vld [vmem:[%s8196 + $0x170] sm:$0xff]
        %v8244 = vld [vmem:[%s8196 + $0x178] sm:$0xff]
        %v8245 = vld [vmem:[%s8196 + $0x180] sm:$0xff]
        %v8246 = vld [vmem:[%s8196 + $0x188] sm:$0xff]
        %v8247 = vld [vmem:[%s8196 + $0x190] sm:$0xff]
        %v8248 = vld [vmem:[%s8196 + $0x198] sm:$0xff]
        %v8249 = vld [vmem:[%s8196 + $0x1a0] sm:$0xff]
        %v8250 = vld [vmem:[%s8196 + $0x1a8] sm:$0xff]
        %v8251 = vld [vmem:[%s8196 + $0x1b0] sm:$0xff]
        %v8252 = vld [vmem:[%s8196 + $0x1b8] sm:$0xff]
        %v8253 = vld [vmem:[%s8196 + $0x1c0] sm:$0xff]
        %v8254 = vld [vmem:[%s8196 + $0x1c8] sm:$0xff]
        %v8255 = vld [vmem:[%s8196 + $0x1d0] sm:$0xff]
        %v8256 = vld [vmem:[%s8196 + $0x1d8] sm:$0xff]
        %v8257 = vld [vmem:[%s8196 + $0x1e0] sm:$0xff]
        %v8258 = vld [vmem:[%s8196 + $0x1e8] sm:$0xff]
        %v8259 = vld [vmem:[%s8196 + $0x1f0] sm:$0xff]
        %v8260 = vld [vmem:[%s8196 + $0x1f8] sm:$0xff]
        %v8261 = vld [vmem:[%s8196 + $0x200] sm:$0xff]
        %v8262 = vld [vmem:[%s8196 + $0x208] sm:$0xff]
        %v8263 = vld [vmem:[%s8196 + $0x210] sm:$0xff]
        %v8264 = vld [vmem:[%s8196 + $0x218] sm:$0xff]
        %v8265 = vld [vmem:[%s8196 + $0x220] sm:$0xff]
        %v8266 = vld [vmem:[%s8196 + $0x228] sm:$0xff]
        %v8267 = vld [vmem:[%s8196 + $0x230] sm:$0xff]
        %v8268 = vld [vmem:[%s8196 + $0x238] sm:$0xff]
        %v8269 = vld [vmem:[%s8196 + $0x240] sm:$0xff]
        %v8270 = vld [vmem:[%s8196 + $0x248] sm:$0xff]
        %v8271 = vld [vmem:[%s8196 + $0x250] sm:$0xff]
        %v8272 = vld [vmem:[%s8196 + $0x258] sm:$0xff]
        %v8273 = vld [vmem:[%s8196 + $0x260] sm:$0xff]
        %v8274 = vld [vmem:[%s8196 + $0x268] sm:$0xff]
        %v8275 = vld [vmem:[%s8196 + $0x270] sm:$0xff]
        %v8276 = vld [vmem:[%s8196 + $0x278] sm:$0xff]
        %v8277 = vld [vmem:[%s8196 + $0x280] sm:$0xff]
        %v8278 = vld [vmem:[%s8196 + $0x288] sm:$0xff]
        %v8279 = vld [vmem:[%s8196 + $0x290] sm:$0xff]
        %v8280 = vld [vmem:[%s8196 + $0x298] sm:$0xff]
        %v8281 = vld [vmem:[%s8196 + $0x2a0] sm:$0xff]
        %v8282 = vld [vmem:[%s8196 + $0x2a8] sm:$0xff]
        %v8283 = vld [vmem:[%s8196 + $0x2b0] sm:$0xff]
        %v8284 = vld [vmem:[%s8196 + $0x2b8] sm:$0xff]
        %v8285 = vld [vmem:[%s8196 + $0x2c0] sm:$0xff]
        %v8286 = vld [vmem:[%s8196 + $0x2c8] sm:$0xff]
        %v8287 = vld [vmem:[%s8196 + $0x2d0] sm:$0xff]
        %v8288 = vld [vmem:[%s8196 + $0x2d8] sm:$0xff]
        %v8289 = vld [vmem:[%s8196 + $0x2e0] sm:$0xff]
        %v8290 = vld [vmem:[%s8196 + $0x2e8] sm:$0xff]
        %v8291 = vld [vmem:[%s8196 + $0x2f0] sm:$0xff]
        %v8292 = vld [vmem:[%s8196 + $0x2f8] sm:$0xff]
        %v8293 = vld [vmem:[%s8196 + $0x300] sm:$0xff]
        %v8294 = vld [vmem:[%s8196 + $0x308] sm:$0xff]
        %v8295 = vld [vmem:[%s8196 + $0x310] sm:$0xff]
        %v8296 = vld [vmem:[%s8196 + $0x318] sm:$0xff]
        %v8297 = vld [vmem:[%s8196 + $0x320] sm:$0xff]
        %v8298 = vld [vmem:[%s8196 + $0x328] sm:$0xff]
        %v8299 = vld [vmem:[%s8196 + $0x330] sm:$0xff]
        %v8300 = vld [vmem:[%s8196 + $0x338] sm:$0xff]
        %v8301 = vld [vmem:[%s8196 + $0x340] sm:$0xff]
        %v8302 = vld [vmem:[%s8196 + $0x348] sm:$0xff]
        %v8303 = vld [vmem:[%s8196 + $0x350] sm:$0xff]
        %v8304 = vld [vmem:[%s8196 + $0x358] sm:$0xff]
        %v8305 = vld [vmem:[%s8196 + $0x360] sm:$0xff]
        %v8306 = vld [vmem:[%s8196 + $0x368] sm:$0xff]
        %v8307 = vld [vmem:[%s8196 + $0x370] sm:$0xff]
        %v8308 = vld [vmem:[%s8196 + $0x378] sm:$0xff]
        %v8309 = vld [vmem:[%s8196 + $0x380] sm:$0xff]
        %v8310 = vld [vmem:[%s8196 + $0x388] sm:$0xff]
        %v8311 = vld [vmem:[%s8196 + $0x390] sm:$0xff]
        %v8312 = vld [vmem:[%s8196 + $0x398] sm:$0xff]
        %v8313 = vld [vmem:[%s8196 + $0x3a0] sm:$0xff]
        %v8314 = vld [vmem:[%s8196 + $0x3a8] sm:$0xff]
        %v8315 = vld [vmem:[%s8196 + $0x3b0] sm:$0xff]
        %v8316 = vld [vmem:[%s8196 + $0x3b8] sm:$0xff]
        %v8317 = vld [vmem:[%s8196 + $0x3c0] sm:$0xff]
        %v8318 = vld [vmem:[%s8196 + $0x3c8] sm:$0xff]
        %v8319 = vld [vmem:[%s8196 + $0x3d0] sm:$0xff]
        %v8320 = vld [vmem:[%s8196 + $0x3d8] sm:$0xff]
        %v8321 = vld [vmem:[%s8196 + $0x3e0] sm:$0xff]
        %v8322 = vld [vmem:[%s8196 + $0x3e8] sm:$0xff]
        %v8323 = vld [vmem:[%s8196 + $0x3f0] sm:$0xff]
        %v8324 = vld [vmem:[%s8196 + $0x3f8] sm:$0xff]
        %v8325 = vld [vmem:[%s8196 + $0x400] sm:$0xff]
        %v8326 = vld [vmem:[%s8196 + $0x408] sm:$0xff]
        %v8327 = vld [vmem:[%s8196 + $0x410] sm:$0xff]
        %v8328 = vld [vmem:[%s8196 + $0x418] sm:$0xff]
        %v8329 = vld [vmem:[%s8196 + $0x420] sm:$0xff]
        %v8330 = vld [vmem:[%s8196 + $0x428] sm:$0xff]
        %v8331 = vld [vmem:[%s8196 + $0x430] sm:$0xff]
        %v8332 = vld [vmem:[%s8196 + $0x438] sm:$0xff]
        %v8333 = vld [vmem:[%s8196 + $0x440] sm:$0xff]
        %v8334 = vld [vmem:[%s8196 + $0x448] sm:$0xff]
        %v8335 = vld [vmem:[%s8196 + $0x450] sm:$0xff]
        %v8336 = vld [vmem:[%s8196 + $0x458] sm:$0xff]
        %v8337 = vld [vmem:[%s8196 + $0x460] sm:$0xff]
        %v8338 = vld [vmem:[%s8196 + $0x468] sm:$0xff]
        %v8339 = vld [vmem:[%s8196 + $0x470] sm:$0xff]
        %v8340 = vld [vmem:[%s8196 + $0x478] sm:$0xff]
        %v8341 = vld [vmem:[%s8196 + $0x480] sm:$0xff]
        %v8342 = vld [vmem:[%s8196 + $0x488] sm:$0xff]
        %v8343 = vld [vmem:[%s8196 + $0x490] sm:$0xff]
        %v8344 = vld [vmem:[%s8196 + $0x498] sm:$0xff]
        %v8345 = vld [vmem:[%s8196 + $0x4a0] sm:$0xff]
        %v8346 = vld [vmem:[%s8196 + $0x4a8] sm:$0xff]
        %v8347 = vld [vmem:[%s8196 + $0x4b0] sm:$0xff]
        %v8348 = vld [vmem:[%s8196 + $0x4b8] sm:$0xff]
        %v8349 = vld [vmem:[%s8196 + $0x4c0] sm:$0xff]
        %v8350 = vld [vmem:[%s8196 + $0x4c8] sm:$0xff]
        %v8351 = vld [vmem:[%s8196 + $0x4d0] sm:$0xff]
        %v8352 = vld [vmem:[%s8196 + $0x4d8] sm:$0xff]
        %v8353 = vld [vmem:[%s8196 + $0x4e0] sm:$0xff]
        %v8354 = vld [vmem:[%s8196 + $0x4e8] sm:$0xff]
        %v8355 = vld [vmem:[%s8196 + $0x4f0] sm:$0xff]
        %v8356 = vld [vmem:[%s8196 + $0x4f8] sm:$0xff]
        %v8357 = vld [vmem:[%s8196 + $0x500] sm:$0xff]
        %v8358 = vld [vmem:[%s8196 + $0x508] sm:$0xff]
        %v8359 = vld [vmem:[%s8196 + $0x510] sm:$0xff]
        %v8360 = vld [vmem:[%s8196 + $0x518] sm:$0xff]
        %v8361 = vld [vmem:[%s8196 + $0x520] sm:$0xff]
        %v8362 = vld [vmem:[%s8196 + $0x528] sm:$0xff]
        %v8363 = vld [vmem:[%s8196 + $0x530] sm:$0xff]
        %v8364 = vld [vmem:[%s8196 + $0x538] sm:$0xff]
        %v8365 = vld [vmem:[%s8196 + $0x540] sm:$0xff]
        %v8366 = vld [vmem:[%s8196 + $0x548] sm:$0xff]
        %v8367 = vld [vmem:[%s8196 + $0x550] sm:$0xff]
        %v8368 = vld [vmem:[%s8196 + $0x558] sm:$0xff]
        %v8369 = vld [vmem:[%s8196 + $0x560] sm:$0xff]
        %v8370 = vld [vmem:[%s8196 + $0x568] sm:$0xff]
        %v8371 = vld [vmem:[%s8196 + $0x570] sm:$0xff]
        %v8372 = vld [vmem:[%s8196 + $0x578] sm:$0xff]
        %v8373 = vld [vmem:[%s8196 + $0x580] sm:$0xff]
        %v8374 = vld [vmem:[%s8196 + $0x588] sm:$0xff]
        %v8375 = vld [vmem:[%s8196 + $0x590] sm:$0xff]
        %v8376 = vld [vmem:[%s8196 + $0x598] sm:$0xff]
        %v8377 = vld [vmem:[%s8196 + $0x5a0] sm:$0xff]
        %v8378 = vld [vmem:[%s8196 + $0x5a8] sm:$0xff]
        %v8379 = vld [vmem:[%s8196 + $0x5b0] sm:$0xff]
        %v8380 = vld [vmem:[%s8196 + $0x5b8] sm:$0xff]
        %v8381 = vld [vmem:[%s8196 + $0x5c0] sm:$0xff]
        %v8382 = vld [vmem:[%s8196 + $0x5c8] sm:$0xff]
        %v8383 = vld [vmem:[%s8196 + $0x5d0] sm:$0xff]
        %v8384 = vld [vmem:[%s8196 + $0x5d8] sm:$0xff]
        %v8385 = vld [vmem:[%s8196 + $0x5e0] sm:$0xff]
        %v8386 = vld [vmem:[%s8196 + $0x5e8] sm:$0xff]
        %v8387 = vld [vmem:[%s8196 + $0x5f0] sm:$0xff]
        %v8388 = vld [vmem:[%s8196 + $0x5f8] sm:$0xff]
        %v8389 = vld [vmem:[%s8196 + $0x600] sm:$0xff]
        %v8390 = vld [vmem:[%s8196 + $0x608] sm:$0xff]
        %v8391 = vld [vmem:[%s8196 + $0x610] sm:$0xff]
        %v8392 = vld [vmem:[%s8196 + $0x618] sm:$0xff]
        %v8393 = vld [vmem:[%s8196 + $0x620] sm:$0xff]
        %v8394 = vld [vmem:[%s8196 + $0x628] sm:$0xff]
        %v8395 = vld [vmem:[%s8196 + $0x630] sm:$0xff]
        %v8396 = vld [vmem:[%s8196 + $0x638] sm:$0xff]
        %v8397 = vld [vmem:[%s8196 + $0x640] sm:$0xff]
        %v8398 = vld [vmem:[%s8196 + $0x648] sm:$0xff]
        %v8399 = vld [vmem:[%s8196 + $0x650] sm:$0xff]
        %v8400 = vld [vmem:[%s8196 + $0x658] sm:$0xff]
        %v8401 = vld [vmem:[%s8196 + $0x660] sm:$0xff]
        %v8402 = vld [vmem:[%s8196 + $0x668] sm:$0xff]
        %v8403 = vld [vmem:[%s8196 + $0x670] sm:$0xff]
        %v8404 = vld [vmem:[%s8196 + $0x678] sm:$0xff]
        %v8405 = vld [vmem:[%s8196 + $0x680] sm:$0xff]
        %v8406 = vld [vmem:[%s8196 + $0x688] sm:$0xff]
        %v8407 = vld [vmem:[%s8196 + $0x690] sm:$0xff]
        %v8408 = vld [vmem:[%s8196 + $0x698] sm:$0xff]
        %v8409 = vld [vmem:[%s8196 + $0x6a0] sm:$0xff]
        %v8410 = vld [vmem:[%s8196 + $0x6a8] sm:$0xff]
        %v8411 = vld [vmem:[%s8196 + $0x6b0] sm:$0xff]
        %v8412 = vld [vmem:[%s8196 + $0x6b8] sm:$0xff]
        %v8413 = vld [vmem:[%s8196 + $0x6c0] sm:$0xff]
        %v8414 = vld [vmem:[%s8196 + $0x6c8] sm:$0xff]
        %v8415 = vld [vmem:[%s8196 + $0x6d0] sm:$0xff]
        %v8416 = vld [vmem:[%s8196 + $0x6d8] sm:$0xff]
        %v8417 = vld [vmem:[%s8196 + $0x6e0] sm:$0xff]
        %v8418 = vld [vmem:[%s8196 + $0x6e8] sm:$0xff]
        %v8419 = vld [vmem:[%s8196 + $0x6f0] sm:$0xff]
        %v8420 = vld [vmem:[%s8196 + $0x6f8] sm:$0xff]
        %v8421 = vld [vmem:[%s8196 + $0x700] sm:$0xff]
        %v8422 = vld [vmem:[%s8196 + $0x708] sm:$0xff]
        %v8423 = vld [vmem:[%s8196 + $0x710] sm:$0xff]
        %v8424 = vld [vmem:[%s8196 + $0x718] sm:$0xff]
        %v8425 = vld [vmem:[%s8196 + $0x720] sm:$0xff]
        %v8426 = vld [vmem:[%s8196 + $0x728] sm:$0xff]
        %v8427 = vld [vmem:[%s8196 + $0x730] sm:$0xff]
        %v8428 = vld [vmem:[%s8196 + $0x738] sm:$0xff]
        %v8429 = vld [vmem:[%s8196 + $0x740] sm:$0xff]
        %v8430 = vld [vmem:[%s8196 + $0x748] sm:$0xff]
        %v8431 = vld [vmem:[%s8196 + $0x750] sm:$0xff]
        %v8432 = vld [vmem:[%s8196 + $0x758] sm:$0xff]
        %v8433 = vld [vmem:[%s8196 + $0x760] sm:$0xff]
        %v8434 = vld [vmem:[%s8196 + $0x768] sm:$0xff]
        %v8435 = vld [vmem:[%s8196 + $0x770] sm:$0xff]
        %v8436 = vld [vmem:[%s8196 + $0x778] sm:$0xff]
        %v8437 = vld [vmem:[%s8196 + $0x780] sm:$0xff]
        %v8438 = vld [vmem:[%s8196 + $0x788] sm:$0xff]
        %v8439 = vld [vmem:[%s8196 + $0x790] sm:$0xff]
        %v8440 = vld [vmem:[%s8196 + $0x798] sm:$0xff]
        %v8441 = vld [vmem:[%s8196 + $0x7a0] sm:$0xff]
        %v8442 = vld [vmem:[%s8196 + $0x7a8] sm:$0xff]
        %v8443 = vld [vmem:[%s8196 + $0x7b0] sm:$0xff]
        %v8444 = vld [vmem:[%s8196 + $0x7b8] sm:$0xff]
        %v8445 = vld [vmem:[%s8196 + $0x7c0] sm:$0xff]
        %v8446 = vld [vmem:[%s8196 + $0x7c8] sm:$0xff]
        %v8447 = vld [vmem:[%s8196 + $0x7d0] sm:$0xff]
        %v8448 = vld [vmem:[%s8196 + $0x7d8] sm:$0xff]
        %v8449 = vld [vmem:[%s8196 + $0x7e0] sm:$0xff]
        %v8450 = vld [vmem:[%s8196 + $0x7e8] sm:$0xff]
        %v8451 = vld [vmem:[%s8196 + $0x7f0] sm:$0xff]
        %v8452 = vld [vmem:[%s8196 + $0x7f8] sm:$0xff]
        %v8453 = vld [vmem:[%s8196 + $0x800] sm:$0xff]
        %v8454 = vld [vmem:[%s8196 + $0x808] sm:$0xff]
        %v8455 = vld [vmem:[%s8196 + $0x810] sm:$0xff]
        %v8456 = vld [vmem:[%s8196 + $0x818] sm:$0xff]
        %v8457 = vld [vmem:[%s8196 + $0x820] sm:$0xff]
        %v8458 = vld [vmem:[%s8196 + $0x828] sm:$0xff]
        %v8459 = vld [vmem:[%s8196 + $0x830] sm:$0xff]
        %v8460 = vld [vmem:[%s8196 + $0x838] sm:$0xff]
        %v8461 = vld [vmem:[%s8196 + $0x840] sm:$0xff]
        %v8462 = vld [vmem:[%s8196 + $0x848] sm:$0xff]
        %v8463 = vld [vmem:[%s8196 + $0x850] sm:$0xff]
        %v8464 = vld [vmem:[%s8196 + $0x858] sm:$0xff]
        %v8465 = vld [vmem:[%s8196 + $0x860] sm:$0xff]
        %v8466 = vld [vmem:[%s8196 + $0x868] sm:$0xff]
        %v8467 = vld [vmem:[%s8196 + $0x870] sm:$0xff]
        %v8468 = vld [vmem:[%s8196 + $0x878] sm:$0xff]
        %v8469 = vld [vmem:[%s8196 + $0x880] sm:$0xff]
        %v8470 = vld [vmem:[%s8196 + $0x888] sm:$0xff]
        %v8471 = vld [vmem:[%s8196 + $0x890] sm:$0xff]
        %v8472 = vld [vmem:[%s8196 + $0x898] sm:$0xff]
        %v8473 = vld [vmem:[%s8196 + $0x8a0] sm:$0xff]
        %v8474 = vld [vmem:[%s8196 + $0x8a8] sm:$0xff]
        %v8475 = vld [vmem:[%s8196 + $0x8b0] sm:$0xff]
        %v8476 = vld [vmem:[%s8196 + $0x8b8] sm:$0xff]
        %v8477 = vld [vmem:[%s8196 + $0x8c0] sm:$0xff]
        %v8478 = vld [vmem:[%s8196 + $0x8c8] sm:$0xff]
        %v8479 = vld [vmem:[%s8196 + $0x8d0] sm:$0xff]
        %v8480 = vld [vmem:[%s8196 + $0x8d8] sm:$0xff]
        %v8481 = vld [vmem:[%s8196 + $0x8e0] sm:$0xff]
        %v8482 = vld [vmem:[%s8196 + $0x8e8] sm:$0xff]
        %v8483 = vld [vmem:[%s8196 + $0x8f0] sm:$0xff]
        %v8484 = vld [vmem:[%s8196 + $0x8f8] sm:$0xff]
        %v8485 = vld [vmem:[%s8196 + $0x900] sm:$0xff]
        %v8486 = vld [vmem:[%s8196 + $0x908] sm:$0xff]
        %v8487 = vld [vmem:[%s8196 + $0x910] sm:$0xff]
        %v8488 = vld [vmem:[%s8196 + $0x918] sm:$0xff]
        %v8489 = vld [vmem:[%s8196 + $0x920] sm:$0xff]
        %v8490 = vld [vmem:[%s8196 + $0x928] sm:$0xff]
        %v8491 = vld [vmem:[%s8196 + $0x930] sm:$0xff]
        %v8492 = vld [vmem:[%s8196 + $0x938] sm:$0xff]
        %v8493 = vld [vmem:[%s8196 + $0x940] sm:$0xff]
        %v8494 = vld [vmem:[%s8196 + $0x948] sm:$0xff]
        %v8495 = vld [vmem:[%s8196 + $0x950] sm:$0xff]
        %v8496 = vld [vmem:[%s8196 + $0x958] sm:$0xff]
        %v8497 = vld [vmem:[%s8196 + $0x960] sm:$0xff]
        %v8498 = vld [vmem:[%s8196 + $0x968] sm:$0xff]
        %v8499 = vld [vmem:[%s8196 + $0x970] sm:$0xff]
        %v8500 = vld [vmem:[%s8196 + $0x978] sm:$0xff]
        %v8501 = vld [vmem:[%s8196 + $0x980] sm:$0xff]
        %v8502 = vld [vmem:[%s8196 + $0x988] sm:$0xff]
        %v8503 = vld [vmem:[%s8196 + $0x990] sm:$0xff]
        %v8504 = vld [vmem:[%s8196 + $0x998] sm:$0xff]
        %v8505 = vld [vmem:[%s8196 + $0x9a0] sm:$0xff]
        %v8506 = vld [vmem:[%s8196 + $0x9a8] sm:$0xff]
        %v8507 = vld [vmem:[%s8196 + $0x9b0] sm:$0xff]
        %v8508 = vld [vmem:[%s8196 + $0x9b8] sm:$0xff]
        %v8509 = vld [vmem:[%s8196 + $0x9c0] sm:$0xff]
        %v8510 = vld [vmem:[%s8196 + $0x9c8] sm:$0xff]
        %v8511 = vld [vmem:[%s8196 + $0x9d0] sm:$0xff]
        %v8512 = vld [vmem:[%s8196 + $0x9d8] sm:$0xff]
        %v8513 = vld [vmem:[%s8196 + $0x9e0] sm:$0xff]
        %v8514 = vld [vmem:[%s8196 + $0x9e8] sm:$0xff]
        %v8515 = vld [vmem:[%s8196 + $0x9f0] sm:$0xff]
        %v8516 = vld [vmem:[%s8196 + $0x9f8] sm:$0xff]
        %v8517 = vld [vmem:[%s8196 + $0xa00] sm:$0xff]
        %v8518 = vld [vmem:[%s8196 + $0xa08] sm:$0xff]
        %v8519 = vld [vmem:[%s8196 + $0xa10] sm:$0xff]
        %v8520 = vld [vmem:[%s8196 + $0xa18] sm:$0xff]
        %v8521 = vld [vmem:[%s8196 + $0xa20] sm:$0xff]
        %v8522 = vld [vmem:[%s8196 + $0xa28] sm:$0xff]
        %v8523 = vld [vmem:[%s8196 + $0xa30] sm:$0xff]
        %v8524 = vld [vmem:[%s8196 + $0xa38] sm:$0xff]
        %v8525 = vld [vmem:[%s8196 + $0xa40] sm:$0xff]
        %v8526 = vld [vmem:[%s8196 + $0xa48] sm:$0xff]
        %v8527 = vld [vmem:[%s8196 + $0xa50] sm:$0xff]
        %v8528 = vld [vmem:[%s8196 + $0xa58] sm:$0xff]
        %v8529 = vld [vmem:[%s8196 + $0xa60] sm:$0xff]
        %v8530 = vld [vmem:[%s8196 + $0xa68] sm:$0xff]
        %v8531 = vld [vmem:[%s8196 + $0xa70] sm:$0xff]
        %v8532 = vld [vmem:[%s8196 + $0xa78] sm:$0xff]
        %v8533 = vld [vmem:[%s8196 + $0xa80] sm:$0xff]
        %v8534 = vld [vmem:[%s8196 + $0xa88] sm:$0xff]
        %v8535 = vld [vmem:[%s8196 + $0xa90] sm:$0xff]
        %v8536 = vld [vmem:[%s8196 + $0xa98] sm:$0xff]
        %v8537 = vld [vmem:[%s8196 + $0xaa0] sm:$0xff]
        %v8538 = vld [vmem:[%s8196 + $0xaa8] sm:$0xff]
        %v8539 = vld [vmem:[%s8196 + $0xab0] sm:$0xff]
        %v8540 = vld [vmem:[%s8196 + $0xab8] sm:$0xff]
        %v8541 = vld [vmem:[%s8196 + $0xac0] sm:$0xff]
        %v8542 = vld [vmem:[%s8196 + $0xac8] sm:$0xff]
        %v8543 = vld [vmem:[%s8196 + $0xad0] sm:$0xff]
        %v8544 = vld [vmem:[%s8196 + $0xad8] sm:$0xff]
        %v8545 = vld [vmem:[%s8196 + $0xae0] sm:$0xff]
        %v8546 = vld [vmem:[%s8196 + $0xae8] sm:$0xff]
        %v8547 = vld [vmem:[%s8196 + $0xaf0] sm:$0xff]
        %v8548 = vld [vmem:[%s8196 + $0xaf8] sm:$0xff]
        %v8549 = vld [vmem:[%s8196 + $0xb00] sm:$0xff]
        %v8550 = vld [vmem:[%s8196 + $0xb08] sm:$0xff]
        %v8551 = vld [vmem:[%s8196 + $0xb10] sm:$0xff]
        %v8552 = vld [vmem:[%s8196 + $0xb18] sm:$0xff]
        %v8553 = vld [vmem:[%s8196 + $0xb20] sm:$0xff]
        %v8554 = vld [vmem:[%s8196 + $0xb28] sm:$0xff]
        %v8555 = vld [vmem:[%s8196 + $0xb30] sm:$0xff]
        %v8556 = vld [vmem:[%s8196 + $0xb38] sm:$0xff]
        %v8557 = vld [vmem:[%s8196 + $0xb40] sm:$0xff]
        %v8558 = vld [vmem:[%s8196 + $0xb48] sm:$0xff]
        %v8559 = vld [vmem:[%s8196 + $0xb50] sm:$0xff]
        %v8560 = vld [vmem:[%s8196 + $0xb58] sm:$0xff]
        %v8561 = vld [vmem:[%s8196 + $0xb60] sm:$0xff]
        %v8562 = vld [vmem:[%s8196 + $0xb68] sm:$0xff]
        %v8563 = vld [vmem:[%s8196 + $0xb70] sm:$0xff]
        %v8564 = vld [vmem:[%s8196 + $0xb78] sm:$0xff]
        %v8565 = vld [vmem:[%s8196 + $0xb80] sm:$0xff]
        %v8566 = vld [vmem:[%s8196 + $0xb88] sm:$0xff]
        %v8567 = vld [vmem:[%s8196 + $0xb90] sm:$0xff]
        %v8568 = vld [vmem:[%s8196 + $0xb98] sm:$0xff]
        %v8569 = vld [vmem:[%s8196 + $0xba0] sm:$0xff]
        %v8570 = vld [vmem:[%s8196 + $0xba8] sm:$0xff]
        %v8571 = vld [vmem:[%s8196 + $0xbb0] sm:$0xff]
        %v8572 = vld [vmem:[%s8196 + $0xbb8] sm:$0xff]
        %v8573 = vld [vmem:[%s8196 + $0xbc0] sm:$0xff]
        %v8574 = vld [vmem:[%s8196 + $0xbc8] sm:$0xff]
        %v8575 = vld [vmem:[%s8196 + $0xbd0] sm:$0xff]
        %v8576 = vld [vmem:[%s8196 + $0xbd8] sm:$0xff]
        %v8577 = vld [vmem:[%s8196 + $0xbe0] sm:$0xff]
        %v8578 = vld [vmem:[%s8196 + $0xbe8] sm:$0xff]
        %v8579 = vld [vmem:[%s8196 + $0xbf0] sm:$0xff]
        %v8580 = vld [vmem:[%s8196 + $0xbf8] sm:$0xff]
        %vm8581 = vsmask.f32 7424
        %v8583 = vshrl.u32 %v7992, 16
        %v8585 = vshll.u32 %v7992, 16
        %v8587 = vrot.slane %v8585, 1
        %v8588 = vor.u32 %v8583, %v8587
        %v8590 = vshll.u32 %v7996, 16
        %v8592 = vrot.slane %v8590, 1
        %v8593 = vsel %vm8581, %v8588, %v8592
        %v8595 = vshrl.u32 %v7993, 16
        %v8597 = vshll.u32 %v7993, 16
        %v8599 = vrot.slane %v8597, 1
        %v8600 = vor.u32 %v8595, %v8599
        %v8602 = vshll.u32 %v7997, 16
        %v8604 = vrot.slane %v8602, 1
        %v8605 = vsel %vm8581, %v8600, %v8604
        %v8607 = vshrl.u32 %v7994, 16
        %v8609 = vshll.u32 %v7994, 16
        %v8611 = vrot.slane %v8609, 1
        %v8612 = vor.u32 %v8607, %v8611
        %v8614 = vshll.u32 %v7998, 16
        %v8616 = vrot.slane %v8614, 1
        %v8617 = vsel %vm8581, %v8612, %v8616
        %v8619 = vshrl.u32 %v7995, 16
        %v8621 = vshll.u32 %v7995, 16
        %v8623 = vrot.slane %v8621, 1
        %v8624 = vor.u32 %v8619, %v8623
        %v8626 = vshll.u32 %v7999, 16
        %v8628 = vrot.slane %v8626, 1
        %v8629 = vsel %vm8581, %v8624, %v8628
        %v8631 = vshrl.u32 %v8084, 16
        %v8633 = vshll.u32 %v8084, 16
        %v8635 = vrot.slane %v8633, 1
        %v8636 = vor.u32 %v8631, %v8635
        %v8638 = vshll.u32 %v8088, 16
        %v8640 = vrot.slane %v8638, 1
        %v8641 = vsel %vm8581, %v8636, %v8640
        %v8643 = vshrl.u32 %v8085, 16
        %v8645 = vshll.u32 %v8085, 16
        %v8647 = vrot.slane %v8645, 1
        %v8648 = vor.u32 %v8643, %v8647
        %v8650 = vshll.u32 %v8089, 16
        %v8652 = vrot.slane %v8650, 1
        %v8653 = vsel %vm8581, %v8648, %v8652
        %v8655 = vshrl.u32 %v8086, 16
        %v8657 = vshll.u32 %v8086, 16
        %v8659 = vrot.slane %v8657, 1
        %v8660 = vor.u32 %v8655, %v8659
        %v8662 = vshll.u32 %v8090, 16
        %v8664 = vrot.slane %v8662, 1
        %v8665 = vsel %vm8581, %v8660, %v8664
        %v8667 = vshrl.u32 %v8087, 16
        %v8669 = vshll.u32 %v8087, 16
        %v8671 = vrot.slane %v8669, 1
        %v8672 = vor.u32 %v8667, %v8671
        %v8674 = vshll.u32 %v8091, 16
        %v8676 = vrot.slane %v8674, 1
        %v8677 = vsel %vm8581, %v8672, %v8676
        %v8679 = vshrl.u32 %v8176, 16
        %v8681 = vshll.u32 %v8176, 16
        %v8683 = vrot.slane %v8681, 1
        %v8684 = vor.u32 %v8679, %v8683
        %v8686 = vshll.u32 %v8180, 16
        %v8688 = vrot.slane %v8686, 1
        %v8689 = vsel %vm8581, %v8684, %v8688
        %v8691 = vshrl.u32 %v8177, 16
        %v8693 = vshll.u32 %v8177, 16
        %v8695 = vrot.slane %v8693, 1
        %v8696 = vor.u32 %v8691, %v8695
        %v8698 = vshll.u32 %v8181, 16
        %v8700 = vrot.slane %v8698, 1
        %v8701 = vsel %vm8581, %v8696, %v8700
        %v8703 = vshrl.u32 %v8178, 16
        %v8705 = vshll.u32 %v8178, 16
        %v8707 = vrot.slane %v8705, 1
        %v8708 = vor.u32 %v8703, %v8707
        %v8710 = vshll.u32 %v8182, 16
        %v8712 = vrot.slane %v8710, 1
        %v8713 = vsel %vm8581, %v8708, %v8712
        %v8715 = vshrl.u32 %v8179, 16
        %v8717 = vshll.u32 %v8179, 16
        %v8719 = vrot.slane %v8717, 1
        %v8720 = vor.u32 %v8715, %v8719
        %v8722 = vshll.u32 %v8183, 16
        %v8724 = vrot.slane %v8722, 1
        %v8725 = vsel %vm8581, %v8720, %v8724
        %v8726 = vshrl.u32 %v7996, 16
        %v8728 = vor.u32 %v8726, %v8592
        %v8730 = vshll.u32 %v8000, 16
        %v8732 = vrot.slane %v8730, 1
        %v8733 = vsel %vm8581, %v8728, %v8732
        %v8734 = vshrl.u32 %v7997, 16
        %v8736 = vor.u32 %v8734, %v8604
        %v8738 = vshll.u32 %v8001, 16
        %v8740 = vrot.slane %v8738, 1
        %v8741 = vsel %vm8581, %v8736, %v8740
        %v8742 = vshrl.u32 %v7998, 16
        %v8744 = vor.u32 %v8742, %v8616
        %v8746 = vshll.u32 %v8002, 16
        %v8748 = vrot.slane %v8746, 1
        %v8749 = vsel %vm8581, %v8744, %v8748
        %v8750 = vshrl.u32 %v7999, 16
        %v8752 = vor.u32 %v8750, %v8628
        %v8754 = vshll.u32 %v8003, 16
        %v8756 = vrot.slane %v8754, 1
        %v8757 = vsel %vm8581, %v8752, %v8756
        %v8758 = vshrl.u32 %v8088, 16
        %v8760 = vor.u32 %v8758, %v8640
        %v8762 = vshll.u32 %v8092, 16
        %v8764 = vrot.slane %v8762, 1
        %v8765 = vsel %vm8581, %v8760, %v8764
        %v8766 = vshrl.u32 %v8089, 16
        %v8768 = vor.u32 %v8766, %v8652
        %v8770 = vshll.u32 %v8093, 16
        %v8772 = vrot.slane %v8770, 1
        %v8773 = vsel %vm8581, %v8768, %v8772
        %v8774 = vshrl.u32 %v8090, 16
        %v8776 = vor.u32 %v8774, %v8664
        %v8778 = vshll.u32 %v8094, 16
        %v8780 = vrot.slane %v8778, 1
        %v8781 = vsel %vm8581, %v8776, %v8780
        %v8782 = vshrl.u32 %v8091, 16
        %v8784 = vor.u32 %v8782, %v8676
        %v8786 = vshll.u32 %v8095, 16
        %v8788 = vrot.slane %v8786, 1
        %v8789 = vsel %vm8581, %v8784, %v8788
        %v8790 = vshrl.u32 %v8180, 16
        %v8792 = vor.u32 %v8790, %v8688
        %v8794 = vshll.u32 %v8184, 16
        %v8796 = vrot.slane %v8794, 1
        %v8797 = vsel %vm8581, %v8792, %v8796
        %v8798 = vshrl.u32 %v8181, 16
        %v8800 = vor.u32 %v8798, %v8700
        %v8802 = vshll.u32 %v8185, 16
        %v8804 = vrot.slane %v8802, 1
        %v8805 = vsel %vm8581, %v8800, %v8804
        %v8806 = vshrl.u32 %v8182, 16
        %v8808 = vor.u32 %v8806, %v8712
        %v8810 = vshll.u32 %v8186, 16
        %v8812 = vrot.slane %v8810, 1
        %v8813 = vsel %vm8581, %v8808, %v8812
        %v8814 = vshrl.u32 %v8183, 16
        %v8816 = vor.u32 %v8814, %v8724
        %v8818 = vshll.u32 %v8187, 16
        %v8820 = vrot.slane %v8818, 1
        %v8821 = vsel %vm8581, %v8816, %v8820
        %v8822 = vshrl.u32 %v8000, 16
        %v8824 = vor.u32 %v8822, %v8732
        %v8826 = vshll.u32 %v8004, 16
        %v8828 = vrot.slane %v8826, 1
        %v8829 = vsel %vm8581, %v8824, %v8828
        %v8830 = vshrl.u32 %v8001, 16
        %v8832 = vor.u32 %v8830, %v8740
        %v8834 = vshll.u32 %v8005, 16
        %v8836 = vrot.slane %v8834, 1
        %v8837 = vsel %vm8581, %v8832, %v8836
        %v8838 = vshrl.u32 %v8002, 16
        %v8840 = vor.u32 %v8838, %v8748
        %v8842 = vshll.u32 %v8006, 16
        %v8844 = vrot.slane %v8842, 1
        %v8845 = vsel %vm8581, %v8840, %v8844
        %v8846 = vshrl.u32 %v8003, 16
        %v8848 = vor.u32 %v8846, %v8756
        %v8850 = vshll.u32 %v8007, 16
        %v8852 = vrot.slane %v8850, 1
        %v8853 = vsel %vm8581, %v8848, %v8852
        %v8854 = vshrl.u32 %v8092, 16
        %v8856 = vor.u32 %v8854, %v8764
        %v8858 = vshll.u32 %v8096, 16
        %v8860 = vrot.slane %v8858, 1
        %v8861 = vsel %vm8581, %v8856, %v8860
        %v8862 = vshrl.u32 %v8093, 16
        %v8864 = vor.u32 %v8862, %v8772
        %v8866 = vshll.u32 %v8097, 16
        %v8868 = vrot.slane %v8866, 1
        %v8869 = vsel %vm8581, %v8864, %v8868
        %v8870 = vshrl.u32 %v8094, 16
        %v8872 = vor.u32 %v8870, %v8780
        %v8874 = vshll.u32 %v8098, 16
        %v8876 = vrot.slane %v8874, 1
        %v8877 = vsel %vm8581, %v8872, %v8876
        %v8878 = vshrl.u32 %v8095, 16
        %v8880 = vor.u32 %v8878, %v8788
        %v8882 = vshll.u32 %v8099, 16
        %v8884 = vrot.slane %v8882, 1
        %v8885 = vsel %vm8581, %v8880, %v8884
        %v8886 = vshrl.u32 %v8184, 16
        %v8888 = vor.u32 %v8886, %v8796
        %v8890 = vshll.u32 %v8188, 16
        %v8892 = vrot.slane %v8890, 1
        %v8893 = vsel %vm8581, %v8888, %v8892
        %v8894 = vshrl.u32 %v8185, 16
        %v8896 = vor.u32 %v8894, %v8804
        %v8898 = vshll.u32 %v8189, 16
        %v8900 = vrot.slane %v8898, 1
        %v8901 = vsel %vm8581, %v8896, %v8900
        %v8902 = vshrl.u32 %v8186, 16
        %v8904 = vor.u32 %v8902, %v8812
        %v8906 = vshll.u32 %v8190, 16
        %v8908 = vrot.slane %v8906, 1
        %v8909 = vsel %vm8581, %v8904, %v8908
        %v8910 = vshrl.u32 %v8187, 16
        %v8912 = vor.u32 %v8910, %v8820
        %v8914 = vshll.u32 %v8191, 16
        %v8916 = vrot.slane %v8914, 1
        %v8917 = vsel %vm8581, %v8912, %v8916
        %v8918 = vshrl.u32 %v8004, 16
        %v8920 = vor.u32 %v8918, %v8828
        %v8922 = vshll.u32 %v8008, 16
        %v8924 = vrot.slane %v8922, 1
        %v8925 = vsel %vm8581, %v8920, %v8924
        %v8926 = vshrl.u32 %v8005, 16
        %v8928 = vor.u32 %v8926, %v8836
        %v8930 = vshll.u32 %v8009, 16
        %v8932 = vrot.slane %v8930, 1
        %v8933 = vsel %vm8581, %v8928, %v8932
        %v8934 = vshrl.u32 %v8006, 16
        %v8936 = vor.u32 %v8934, %v8844
        %v8938 = vshll.u32 %v8010, 16
        %v8940 = vrot.slane %v8938, 1
        %v8941 = vsel %vm8581, %v8936, %v8940
        %v8942 = vshrl.u32 %v8007, 16
        %v8944 = vor.u32 %v8942, %v8852
        %v8946 = vshll.u32 %v8011, 16
        %v8948 = vrot.slane %v8946, 1
        %v8949 = vsel %vm8581, %v8944, %v8948
        %v8950 = vshrl.u32 %v8096, 16
        %v8952 = vor.u32 %v8950, %v8860
        %v8954 = vshll.u32 %v8100, 16
        %v8956 = vrot.slane %v8954, 1
        %v8957 = vsel %vm8581, %v8952, %v8956
        %v8958 = vshrl.u32 %v8097, 16
        %v8960 = vor.u32 %v8958, %v8868
        %v8962 = vshll.u32 %v8101, 16
        %v8964 = vrot.slane %v8962, 1
        %v8965 = vsel %vm8581, %v8960, %v8964
        %v8966 = vshrl.u32 %v8098, 16
        %v8968 = vor.u32 %v8966, %v8876
        %v8970 = vshll.u32 %v8102, 16
        %v8972 = vrot.slane %v8970, 1
        %v8973 = vsel %vm8581, %v8968, %v8972
        %v8974 = vshrl.u32 %v8099, 16
        %v8976 = vor.u32 %v8974, %v8884
        %v8978 = vshll.u32 %v8103, 16
        %v8980 = vrot.slane %v8978, 1
        %v8981 = vsel %vm8581, %v8976, %v8980
        %v8982 = vshrl.u32 %v8188, 16
        %v8984 = vor.u32 %v8982, %v8892
        %v8986 = vshll.u32 %v8192, 16
        %v8988 = vrot.slane %v8986, 1
        %v8989 = vsel %vm8581, %v8984, %v8988
        %v8990 = vshrl.u32 %v8189, 16
        %v8992 = vor.u32 %v8990, %v8900
        %v8994 = vshll.u32 %v8193, 16
        %v8996 = vrot.slane %v8994, 1
        %v8997 = vsel %vm8581, %v8992, %v8996
        %v8998 = vshrl.u32 %v8190, 16
        %v9000 = vor.u32 %v8998, %v8908
        %v9002 = vshll.u32 %v8194, 16
        %v9004 = vrot.slane %v9002, 1
        %v9005 = vsel %vm8581, %v9000, %v9004
        %v9006 = vshrl.u32 %v8191, 16
        %v9008 = vor.u32 %v9006, %v8916
        %v9010 = vshll.u32 %v8195, 16
        %v9012 = vrot.slane %v9010, 1
        %v9013 = vsel %vm8581, %v9008, %v9012
        %v9446 = vunpack.c.l.b16 %v8197
        %v9447 = vunpack.c.h.b16 %v8197
        %v9448 = vunpack.c.l.b16 %v8198
        %v9449 = vunpack.c.h.b16 %v8198
        %v9450 = vunpack.c.l.b16 %v8199
        %v9451 = vunpack.c.h.b16 %v8199
        %v9452 = vunpack.c.l.b16 %v8200
        %v9453 = vunpack.c.h.b16 %v8200
        %v9454 = vunpack.c.l.b16 %v8201
        %v9455 = vunpack.c.h.b16 %v8201
        %v9456 = vunpack.c.l.b16 %v8202
        %v9457 = vunpack.c.h.b16 %v8202
        %v9458 = vunpack.c.l.b16 %v8203
        %v9459 = vunpack.c.h.b16 %v8203
        %v9460 = vunpack.c.l.b16 %v8204
        %v9461 = vunpack.c.h.b16 %v8204
        %v9462 = vunpack.c.l.b16 %v8205
        %v9463 = vunpack.c.h.b16 %v8205
        %v9464 = vunpack.c.l.b16 %v8206
        %v9465 = vunpack.c.h.b16 %v8206
        %v9466 = vunpack.c.l.b16 %v8207
        %v9467 = vunpack.c.h.b16 %v8207
        %v9468 = vunpack.c.l.b16 %v8208
        %v9469 = vunpack.c.h.b16 %v8208
        %v9470 = vunpack.c.l.b16 %v8209
        %v9471 = vunpack.c.h.b16 %v8209
        %v9472 = vunpack.c.l.b16 %v8210
        %v9473 = vunpack.c.h.b16 %v8210
        %v9474 = vunpack.c.l.b16 %v8211
        %v9475 = vunpack.c.h.b16 %v8211
        %v9476 = vunpack.c.l.b16 %v8212
        %v9477 = vunpack.c.h.b16 %v8212
        %v9478 = vunpack.c.l.b16 %v8213
        %v9479 = vunpack.c.h.b16 %v8213
        %v9480 = vunpack.c.l.b16 %v8214
        %v9481 = vunpack.c.h.b16 %v8214
        %v9482 = vunpack.c.l.b16 %v8215
        %v9483 = vunpack.c.h.b16 %v8215
        %v9484 = vunpack.c.l.b16 %v8216
        %v9485 = vunpack.c.h.b16 %v8216
        %v9486 = vunpack.c.l.b16 %v8217
        %v9487 = vunpack.c.h.b16 %v8217
        %v9488 = vunpack.c.l.b16 %v8218
        %v9489 = vunpack.c.h.b16 %v8218
        %v9490 = vunpack.c.l.b16 %v8219
        %v9491 = vunpack.c.h.b16 %v8219
        %v9492 = vunpack.c.l.b16 %v8220
        %v9493 = vunpack.c.h.b16 %v8220
        %v9494 = vunpack.c.l.b16 %v8221
        %v9495 = vunpack.c.h.b16 %v8221
        %v9496 = vunpack.c.l.b16 %v8222
        %v9497 = vunpack.c.h.b16 %v8222
        %v9498 = vunpack.c.l.b16 %v8223
        %v9499 = vunpack.c.h.b16 %v8223
        %v9500 = vunpack.c.l.b16 %v8224
        %v9501 = vunpack.c.h.b16 %v8224
        %v9502 = vunpack.c.l.b16 %v8225
        %v9503 = vunpack.c.h.b16 %v8225
        %v9504 = vunpack.c.l.b16 %v8226
        %v9505 = vunpack.c.h.b16 %v8226
        %v9506 = vunpack.c.l.b16 %v8227
        %v9507 = vunpack.c.h.b16 %v8227
        %v9508 = vunpack.c.l.b16 %v8228
        %v9509 = vunpack.c.h.b16 %v8228
        %v9510 = vunpack.c.l.b16 %v8229
        %v9511 = vunpack.c.h.b16 %v8229
        %v9512 = vunpack.c.l.b16 %v8230
        %v9513 = vunpack.c.h.b16 %v8230
        %v9514 = vunpack.c.l.b16 %v8231
        %v9515 = vunpack.c.h.b16 %v8231
        %v9516 = vunpack.c.l.b16 %v8232
        %v9517 = vunpack.c.h.b16 %v8232
        %v9518 = vunpack.c.l.b16 %v8233
        %v9519 = vunpack.c.h.b16 %v8233
        %v9520 = vunpack.c.l.b16 %v8234
        %v9521 = vunpack.c.h.b16 %v8234
        %v9522 = vunpack.c.l.b16 %v8235
        %v9523 = vunpack.c.h.b16 %v8235
        %v9524 = vunpack.c.l.b16 %v8236
        %v9525 = vunpack.c.h.b16 %v8236
        %v9526 = vunpack.c.l.b16 %v8237
        %v9527 = vunpack.c.h.b16 %v8237
        %v9528 = vunpack.c.l.b16 %v8238
        %v9529 = vunpack.c.h.b16 %v8238
        %v9530 = vunpack.c.l.b16 %v8239
        %v9531 = vunpack.c.h.b16 %v8239
        %v9532 = vunpack.c.l.b16 %v8240
        %v9533 = vunpack.c.h.b16 %v8240
        %v9534 = vunpack.c.l.b16 %v8241
        %v9535 = vunpack.c.h.b16 %v8241
        %v9536 = vunpack.c.l.b16 %v8242
        %v9537 = vunpack.c.h.b16 %v8242
        %v9538 = vunpack.c.l.b16 %v8243
        %v9539 = vunpack.c.h.b16 %v8243
        %v9540 = vunpack.c.l.b16 %v8244
        %v9541 = vunpack.c.h.b16 %v8244
        %v9542 = vunpack.c.l.b16 %v8245
        %v9543 = vunpack.c.h.b16 %v8245
        %v9544 = vunpack.c.l.b16 %v8246
        %v9545 = vunpack.c.h.b16 %v8246
        %v9546 = vunpack.c.l.b16 %v8247
        %v9547 = vunpack.c.h.b16 %v8247
        %v9548 = vunpack.c.l.b16 %v8248
        %v9549 = vunpack.c.h.b16 %v8248
        %v9550 = vunpack.c.l.b16 %v8249
        %v9551 = vunpack.c.h.b16 %v8249
        %v9552 = vunpack.c.l.b16 %v8250
        %v9553 = vunpack.c.h.b16 %v8250
        %v9554 = vunpack.c.l.b16 %v8251
        %v9555 = vunpack.c.h.b16 %v8251
        %v9556 = vunpack.c.l.b16 %v8252
        %v9557 = vunpack.c.h.b16 %v8252
        %v9558 = vunpack.c.l.b16 %v8253
        %v9559 = vunpack.c.h.b16 %v8253
        %v9560 = vunpack.c.l.b16 %v8254
        %v9561 = vunpack.c.h.b16 %v8254
        %v9562 = vunpack.c.l.b16 %v8255
        %v9563 = vunpack.c.h.b16 %v8255
        %v9564 = vunpack.c.l.b16 %v8256
        %v9565 = vunpack.c.h.b16 %v8256
        %v9566 = vunpack.c.l.b16 %v8257
        %v9567 = vunpack.c.h.b16 %v8257
        %v9568 = vunpack.c.l.b16 %v8258
        %v9569 = vunpack.c.h.b16 %v8258
        %v9570 = vunpack.c.l.b16 %v8259
        %v9571 = vunpack.c.h.b16 %v8259
        %v9572 = vunpack.c.l.b16 %v8260
        %v9573 = vunpack.c.h.b16 %v8260
        %v9574 = vunpack.c.l.b16 %v8261
        %v9575 = vunpack.c.h.b16 %v8261
        %v9576 = vunpack.c.l.b16 %v8262
        %v9577 = vunpack.c.h.b16 %v8262
        %v9578 = vunpack.c.l.b16 %v8263
        %v9579 = vunpack.c.h.b16 %v8263
        %v9580 = vunpack.c.l.b16 %v8264
        %v9581 = vunpack.c.h.b16 %v8264
        %v9582 = vunpack.c.l.b16 %v8265
        %v9583 = vunpack.c.h.b16 %v8265
        %v9584 = vunpack.c.l.b16 %v8266
        %v9585 = vunpack.c.h.b16 %v8266
        %v9586 = vunpack.c.l.b16 %v8267
        %v9587 = vunpack.c.h.b16 %v8267
        %v9588 = vunpack.c.l.b16 %v8268
        %v9589 = vunpack.c.h.b16 %v8268
        %v9590 = vunpack.c.l.b16 %v8269
        %v9591 = vunpack.c.h.b16 %v8269
        %v9592 = vunpack.c.l.b16 %v8270
        %v9593 = vunpack.c.h.b16 %v8270
        %v9594 = vunpack.c.l.b16 %v8271
        %v9595 = vunpack.c.h.b16 %v8271
        %v9596 = vunpack.c.l.b16 %v8272
        %v9597 = vunpack.c.h.b16 %v8272
        %v9598 = vunpack.c.l.b16 %v8273
        %v9599 = vunpack.c.h.b16 %v8273
        %v9600 = vunpack.c.l.b16 %v8274
        %v9601 = vunpack.c.h.b16 %v8274
        %v9602 = vunpack.c.l.b16 %v8275
        %v9603 = vunpack.c.h.b16 %v8275
        %v9604 = vunpack.c.l.b16 %v8276
        %v9605 = vunpack.c.h.b16 %v8276
        %v9606 = vunpack.c.l.b16 %v8277
        %v9607 = vunpack.c.h.b16 %v8277
        %v9608 = vunpack.c.l.b16 %v8278
        %v9609 = vunpack.c.h.b16 %v8278
        %v9610 = vunpack.c.l.b16 %v8279
        %v9611 = vunpack.c.h.b16 %v8279
        %v9612 = vunpack.c.l.b16 %v8280
        %v9613 = vunpack.c.h.b16 %v8280
        %v9614 = vunpack.c.l.b16 %v8281
        %v9615 = vunpack.c.h.b16 %v8281
        %v9616 = vunpack.c.l.b16 %v8282
        %v9617 = vunpack.c.h.b16 %v8282
        %v9618 = vunpack.c.l.b16 %v8283
        %v9619 = vunpack.c.h.b16 %v8283
        %v9620 = vunpack.c.l.b16 %v8284
        %v9621 = vunpack.c.h.b16 %v8284
        %v9622 = vunpack.c.l.b16 %v8285
        %v9623 = vunpack.c.h.b16 %v8285
        %v9624 = vunpack.c.l.b16 %v8286
        %v9625 = vunpack.c.h.b16 %v8286
        %v9626 = vunpack.c.l.b16 %v8287
        %v9627 = vunpack.c.h.b16 %v8287
        %v9628 = vunpack.c.l.b16 %v8288
        %v9629 = vunpack.c.h.b16 %v8288
        %v9630 = vunpack.c.l.b16 %v8289
        %v9631 = vunpack.c.h.b16 %v8289
        %v9632 = vunpack.c.l.b16 %v8290
        %v9633 = vunpack.c.h.b16 %v8290
        %v9634 = vunpack.c.l.b16 %v8291
        %v9635 = vunpack.c.h.b16 %v8291
        %v9636 = vunpack.c.l.b16 %v8292
        %v9637 = vunpack.c.h.b16 %v8292
        %v9638 = vunpack.c.l.b16 %v8293
        %v9639 = vunpack.c.h.b16 %v8293
        %v9640 = vunpack.c.l.b16 %v8294
        %v9641 = vunpack.c.h.b16 %v8294
        %v9642 = vunpack.c.l.b16 %v8295
        %v9643 = vunpack.c.h.b16 %v8295
        %v9644 = vunpack.c.l.b16 %v8296
        %v9645 = vunpack.c.h.b16 %v8296
        %v9646 = vunpack.c.l.b16 %v8297
        %v9647 = vunpack.c.h.b16 %v8297
        %v9648 = vunpack.c.l.b16 %v8298
        %v9649 = vunpack.c.h.b16 %v8298
        %v9650 = vunpack.c.l.b16 %v8299
        %v9651 = vunpack.c.h.b16 %v8299
        %v9652 = vunpack.c.l.b16 %v8300
        %v9653 = vunpack.c.h.b16 %v8300
        %v9654 = vunpack.c.l.b16 %v8301
        %v9655 = vunpack.c.h.b16 %v8301
        %v9656 = vunpack.c.l.b16 %v8302
        %v9657 = vunpack.c.h.b16 %v8302
        %v9658 = vunpack.c.l.b16 %v8303
        %v9659 = vunpack.c.h.b16 %v8303
        %v9660 = vunpack.c.l.b16 %v8304
        %v9661 = vunpack.c.h.b16 %v8304
        %v9662 = vunpack.c.l.b16 %v8305
        %v9663 = vunpack.c.h.b16 %v8305
        %v9664 = vunpack.c.l.b16 %v8306
        %v9665 = vunpack.c.h.b16 %v8306
        %v9666 = vunpack.c.l.b16 %v8307
        %v9667 = vunpack.c.h.b16 %v8307
        %v9668 = vunpack.c.l.b16 %v8308
        %v9669 = vunpack.c.h.b16 %v8308
        %v9670 = vunpack.c.l.b16 %v8309
        %v9671 = vunpack.c.h.b16 %v8309
        %v9672 = vunpack.c.l.b16 %v8310
        %v9673 = vunpack.c.h.b16 %v8310
        %v9674 = vunpack.c.l.b16 %v8311
        %v9675 = vunpack.c.h.b16 %v8311
        %v9676 = vunpack.c.l.b16 %v8312
        %v9677 = vunpack.c.h.b16 %v8312
        %v9678 = vunpack.c.l.b16 %v8313
        %v9679 = vunpack.c.h.b16 %v8313
        %v9680 = vunpack.c.l.b16 %v8314
        %v9681 = vunpack.c.h.b16 %v8314
        %v9682 = vunpack.c.l.b16 %v8315
        %v9683 = vunpack.c.h.b16 %v8315
        %v9684 = vunpack.c.l.b16 %v8316
        %v9685 = vunpack.c.h.b16 %v8316
        %v9686 = vunpack.c.l.b16 %v8317
        %v9687 = vunpack.c.h.b16 %v8317
        %v9688 = vunpack.c.l.b16 %v8318
        %v9689 = vunpack.c.h.b16 %v8318
        %v9690 = vunpack.c.l.b16 %v8319
        %v9691 = vunpack.c.h.b16 %v8319
        %v9692 = vunpack.c.l.b16 %v8320
        %v9693 = vunpack.c.h.b16 %v8320
        %v9694 = vunpack.c.l.b16 %v8321
        %v9695 = vunpack.c.h.b16 %v8321
        %v9696 = vunpack.c.l.b16 %v8322
        %v9697 = vunpack.c.h.b16 %v8322
        %v9698 = vunpack.c.l.b16 %v8323
        %v9699 = vunpack.c.h.b16 %v8323
        %v9700 = vunpack.c.l.b16 %v8324
        %v9701 = vunpack.c.h.b16 %v8324
        %v9702 = vunpack.c.l.b16 %v8325
        %v9703 = vunpack.c.h.b16 %v8325
        %v9704 = vunpack.c.l.b16 %v8326
        %v9705 = vunpack.c.h.b16 %v8326
        %v9706 = vunpack.c.l.b16 %v8327
        %v9707 = vunpack.c.h.b16 %v8327
        %v9708 = vunpack.c.l.b16 %v8328
        %v9709 = vunpack.c.h.b16 %v8328
        %v9710 = vunpack.c.l.b16 %v8329
        %v9711 = vunpack.c.h.b16 %v8329
        %v9712 = vunpack.c.l.b16 %v8330
        %v9713 = vunpack.c.h.b16 %v8330
        %v9714 = vunpack.c.l.b16 %v8331
        %v9715 = vunpack.c.h.b16 %v8331
        %v9716 = vunpack.c.l.b16 %v8332
        %v9717 = vunpack.c.h.b16 %v8332
        %v9718 = vunpack.c.l.b16 %v8333
        %v9719 = vunpack.c.h.b16 %v8333
        %v9720 = vunpack.c.l.b16 %v8334
        %v9721 = vunpack.c.h.b16 %v8334
        %v9722 = vunpack.c.l.b16 %v8335
        %v9723 = vunpack.c.h.b16 %v8335
        %v9724 = vunpack.c.l.b16 %v8336
        %v9725 = vunpack.c.h.b16 %v8336
        %v9726 = vunpack.c.l.b16 %v8337
        %v9727 = vunpack.c.h.b16 %v8337
        %v9728 = vunpack.c.l.b16 %v8338
        %v9729 = vunpack.c.h.b16 %v8338
        %v9730 = vunpack.c.l.b16 %v8339
        %v9731 = vunpack.c.h.b16 %v8339
        %v9732 = vunpack.c.l.b16 %v8340
        %v9733 = vunpack.c.h.b16 %v8340
        %v9734 = vunpack.c.l.b16 %v8341
        %v9735 = vunpack.c.h.b16 %v8341
        %v9736 = vunpack.c.l.b16 %v8342
        %v9737 = vunpack.c.h.b16 %v8342
        %v9738 = vunpack.c.l.b16 %v8343
        %v9739 = vunpack.c.h.b16 %v8343
        %v9740 = vunpack.c.l.b16 %v8344
        %v9741 = vunpack.c.h.b16 %v8344
        %v9742 = vunpack.c.l.b16 %v8345
        %v9743 = vunpack.c.h.b16 %v8345
        %v9744 = vunpack.c.l.b16 %v8346
        %v9745 = vunpack.c.h.b16 %v8346
        %v9746 = vunpack.c.l.b16 %v8347
        %v9747 = vunpack.c.h.b16 %v8347
        %v9748 = vunpack.c.l.b16 %v8348
        %v9749 = vunpack.c.h.b16 %v8348
        %v9750 = vunpack.c.l.b16 %v8349
        %v9751 = vunpack.c.h.b16 %v8349
        %v9752 = vunpack.c.l.b16 %v8350
        %v9753 = vunpack.c.h.b16 %v8350
        %v9754 = vunpack.c.l.b16 %v8351
        %v9755 = vunpack.c.h.b16 %v8351
        %v9756 = vunpack.c.l.b16 %v8352
        %v9757 = vunpack.c.h.b16 %v8352
        %v9758 = vunpack.c.l.b16 %v8353
        %v9759 = vunpack.c.h.b16 %v8353
        %v9760 = vunpack.c.l.b16 %v8354
        %v9761 = vunpack.c.h.b16 %v8354
        %v9762 = vunpack.c.l.b16 %v8355
        %v9763 = vunpack.c.h.b16 %v8355
        %v9764 = vunpack.c.l.b16 %v8356
        %v9765 = vunpack.c.h.b16 %v8356
        %v9766 = vunpack.c.l.b16 %v8357
        %v9767 = vunpack.c.h.b16 %v8357
        %v9768 = vunpack.c.l.b16 %v8358
        %v9769 = vunpack.c.h.b16 %v8358
        %v9770 = vunpack.c.l.b16 %v8359
        %v9771 = vunpack.c.h.b16 %v8359
        %v9772 = vunpack.c.l.b16 %v8360
        %v9773 = vunpack.c.h.b16 %v8360
        %v9774 = vunpack.c.l.b16 %v8361
        %v9775 = vunpack.c.h.b16 %v8361
        %v9776 = vunpack.c.l.b16 %v8362
        %v9777 = vunpack.c.h.b16 %v8362
        %v9778 = vunpack.c.l.b16 %v8363
        %v9779 = vunpack.c.h.b16 %v8363
        %v9780 = vunpack.c.l.b16 %v8364
        %v9781 = vunpack.c.h.b16 %v8364
        %v9782 = vunpack.c.l.b16 %v8365
        %v9783 = vunpack.c.h.b16 %v8365
        %v9784 = vunpack.c.l.b16 %v8366
        %v9785 = vunpack.c.h.b16 %v8366
        %v9786 = vunpack.c.l.b16 %v8367
        %v9787 = vunpack.c.h.b16 %v8367
        %v9788 = vunpack.c.l.b16 %v8368
        %v9789 = vunpack.c.h.b16 %v8368
        %v9790 = vunpack.c.l.b16 %v8369
        %v9791 = vunpack.c.h.b16 %v8369
        %v9792 = vunpack.c.l.b16 %v8370
        %v9793 = vunpack.c.h.b16 %v8370
        %v9794 = vunpack.c.l.b16 %v8371
        %v9795 = vunpack.c.h.b16 %v8371
        %v9796 = vunpack.c.l.b16 %v8372
        %v9797 = vunpack.c.h.b16 %v8372
        %v9798 = vunpack.c.l.b16 %v8373
        %v9799 = vunpack.c.h.b16 %v8373
        %v9800 = vunpack.c.l.b16 %v8374
        %v9801 = vunpack.c.h.b16 %v8374
        %v9802 = vunpack.c.l.b16 %v8375
        %v9803 = vunpack.c.h.b16 %v8375
        %v9804 = vunpack.c.l.b16 %v8376
        %v9805 = vunpack.c.h.b16 %v8376
        %v9806 = vunpack.c.l.b16 %v8377
        %v9807 = vunpack.c.h.b16 %v8377
        %v9808 = vunpack.c.l.b16 %v8378
        %v9809 = vunpack.c.h.b16 %v8378
        %v9810 = vunpack.c.l.b16 %v8379
        %v9811 = vunpack.c.h.b16 %v8379
        %v9812 = vunpack.c.l.b16 %v8380
        %v9813 = vunpack.c.h.b16 %v8380
        %v9814 = vunpack.c.l.b16 %v8381
        %v9815 = vunpack.c.h.b16 %v8381
        %v9816 = vunpack.c.l.b16 %v8382
        %v9817 = vunpack.c.h.b16 %v8382
        %v9818 = vunpack.c.l.b16 %v8383
        %v9819 = vunpack.c.h.b16 %v8383
        %v9820 = vunpack.c.l.b16 %v8384
        %v9821 = vunpack.c.h.b16 %v8384
        %v9822 = vunpack.c.l.b16 %v8385
        %v9823 = vunpack.c.h.b16 %v8385
        %v9824 = vunpack.c.l.b16 %v8386
        %v9825 = vunpack.c.h.b16 %v8386
        %v9826 = vunpack.c.l.b16 %v8387
        %v9827 = vunpack.c.h.b16 %v8387
        %v9828 = vunpack.c.l.b16 %v8388
        %v9829 = vunpack.c.h.b16 %v8388
        %v9830 = vunpack.c.l.b16 %v8389
        %v9831 = vunpack.c.h.b16 %v8389
        %v9832 = vunpack.c.l.b16 %v8390
        %v9833 = vunpack.c.h.b16 %v8390
        %v9834 = vunpack.c.l.b16 %v8391
        %v9835 = vunpack.c.h.b16 %v8391
        %v9836 = vunpack.c.l.b16 %v8392
        %v9837 = vunpack.c.h.b16 %v8392
        %v9838 = vunpack.c.l.b16 %v8393
        %v9839 = vunpack.c.h.b16 %v8393
        %v9840 = vunpack.c.l.b16 %v8394
        %v9841 = vunpack.c.h.b16 %v8394
        %v9842 = vunpack.c.l.b16 %v8395
        %v9843 = vunpack.c.h.b16 %v8395
        %v9844 = vunpack.c.l.b16 %v8396
        %v9845 = vunpack.c.h.b16 %v8396
        %v9846 = vunpack.c.l.b16 %v8397
        %v9847 = vunpack.c.h.b16 %v8397
        %v9848 = vunpack.c.l.b16 %v8398
        %v9849 = vunpack.c.h.b16 %v8398
        %v9850 = vunpack.c.l.b16 %v8399
        %v9851 = vunpack.c.h.b16 %v8399
        %v9852 = vunpack.c.l.b16 %v8400
        %v9853 = vunpack.c.h.b16 %v8400
        %v9854 = vunpack.c.l.b16 %v8401
        %v9855 = vunpack.c.h.b16 %v8401
        %v9856 = vunpack.c.l.b16 %v8402
        %v9857 = vunpack.c.h.b16 %v8402
        %v9858 = vunpack.c.l.b16 %v8403
        %v9859 = vunpack.c.h.b16 %v8403
        %v9860 = vunpack.c.l.b16 %v8404
        %v9861 = vunpack.c.h.b16 %v8404
        %v9862 = vunpack.c.l.b16 %v8405
        %v9863 = vunpack.c.h.b16 %v8405
        %v9864 = vunpack.c.l.b16 %v8406
        %v9865 = vunpack.c.h.b16 %v8406
        %v9866 = vunpack.c.l.b16 %v8407
        %v9867 = vunpack.c.h.b16 %v8407
        %v9868 = vunpack.c.l.b16 %v8408
        %v9869 = vunpack.c.h.b16 %v8408
        %v9870 = vunpack.c.l.b16 %v8409
        %v9871 = vunpack.c.h.b16 %v8409
        %v9872 = vunpack.c.l.b16 %v8410
        %v9873 = vunpack.c.h.b16 %v8410
        %v9874 = vunpack.c.l.b16 %v8411
        %v9875 = vunpack.c.h.b16 %v8411
        %v9876 = vunpack.c.l.b16 %v8412
        %v9877 = vunpack.c.h.b16 %v8412
        %v9878 = vunpack.c.l.b16 %v8413
        %v9879 = vunpack.c.h.b16 %v8413
        %v9880 = vunpack.c.l.b16 %v8414
        %v9881 = vunpack.c.h.b16 %v8414
        %v9882 = vunpack.c.l.b16 %v8415
        %v9883 = vunpack.c.h.b16 %v8415
        %v9884 = vunpack.c.l.b16 %v8416
        %v9885 = vunpack.c.h.b16 %v8416
        %v9886 = vunpack.c.l.b16 %v8417
        %v9887 = vunpack.c.h.b16 %v8417
        %v9888 = vunpack.c.l.b16 %v8418
        %v9889 = vunpack.c.h.b16 %v8418
        %v9890 = vunpack.c.l.b16 %v8419
        %v9891 = vunpack.c.h.b16 %v8419
        %v9892 = vunpack.c.l.b16 %v8420
        %v9893 = vunpack.c.h.b16 %v8420
        %v9894 = vunpack.c.l.b16 %v8421
        %v9895 = vunpack.c.h.b16 %v8421
        %v9896 = vunpack.c.l.b16 %v8422
        %v9897 = vunpack.c.h.b16 %v8422
        %v9898 = vunpack.c.l.b16 %v8423
        %v9899 = vunpack.c.h.b16 %v8423
        %v9900 = vunpack.c.l.b16 %v8424
        %v9901 = vunpack.c.h.b16 %v8424
        %v9902 = vunpack.c.l.b16 %v8425
        %v9903 = vunpack.c.h.b16 %v8425
        %v9904 = vunpack.c.l.b16 %v8426
        %v9905 = vunpack.c.h.b16 %v8426
        %v9906 = vunpack.c.l.b16 %v8427
        %v9907 = vunpack.c.h.b16 %v8427
        %v9908 = vunpack.c.l.b16 %v8428
        %v9909 = vunpack.c.h.b16 %v8428
        %v9910 = vunpack.c.l.b16 %v8429
        %v9911 = vunpack.c.h.b16 %v8429
        %v9912 = vunpack.c.l.b16 %v8430
        %v9913 = vunpack.c.h.b16 %v8430
        %v9914 = vunpack.c.l.b16 %v8431
        %v9915 = vunpack.c.h.b16 %v8431
        %v9916 = vunpack.c.l.b16 %v8432
        %v9917 = vunpack.c.h.b16 %v8432
        %v9918 = vunpack.c.l.b16 %v8433
        %v9919 = vunpack.c.h.b16 %v8433
        %v9920 = vunpack.c.l.b16 %v8434
        %v9921 = vunpack.c.h.b16 %v8434
        %v9922 = vunpack.c.l.b16 %v8435
        %v9923 = vunpack.c.h.b16 %v8435
        %v9924 = vunpack.c.l.b16 %v8436
        %v9925 = vunpack.c.h.b16 %v8436
        %v9926 = vunpack.c.l.b16 %v8437
        %v9927 = vunpack.c.h.b16 %v8437
        %v9928 = vunpack.c.l.b16 %v8438
        %v9929 = vunpack.c.h.b16 %v8438
        %v9930 = vunpack.c.l.b16 %v8439
        %v9931 = vunpack.c.h.b16 %v8439
        %v9932 = vunpack.c.l.b16 %v8440
        %v9933 = vunpack.c.h.b16 %v8440
        %v9934 = vunpack.c.l.b16 %v8441
        %v9935 = vunpack.c.h.b16 %v8441
        %v9936 = vunpack.c.l.b16 %v8442
        %v9937 = vunpack.c.h.b16 %v8442
        %v9938 = vunpack.c.l.b16 %v8443
        %v9939 = vunpack.c.h.b16 %v8443
        %v9940 = vunpack.c.l.b16 %v8444
        %v9941 = vunpack.c.h.b16 %v8444
        %v9942 = vunpack.c.l.b16 %v8445
        %v9943 = vunpack.c.h.b16 %v8445
        %v9944 = vunpack.c.l.b16 %v8446
        %v9945 = vunpack.c.h.b16 %v8446
        %v9946 = vunpack.c.l.b16 %v8447
        %v9947 = vunpack.c.h.b16 %v8447
        %v9948 = vunpack.c.l.b16 %v8448
        %v9949 = vunpack.c.h.b16 %v8448
        %v9950 = vunpack.c.l.b16 %v8449
        %v9951 = vunpack.c.h.b16 %v8449
        %v9952 = vunpack.c.l.b16 %v8450
        %v9953 = vunpack.c.h.b16 %v8450
        %v9954 = vunpack.c.l.b16 %v8451
        %v9955 = vunpack.c.h.b16 %v8451
        %v9956 = vunpack.c.l.b16 %v8452
        %v9957 = vunpack.c.h.b16 %v8452
        %v9958 = vunpack.c.l.b16 %v8453
        %v9959 = vunpack.c.h.b16 %v8453
        %v9960 = vunpack.c.l.b16 %v8454
        %v9961 = vunpack.c.h.b16 %v8454
        %v9962 = vunpack.c.l.b16 %v8455
        %v9963 = vunpack.c.h.b16 %v8455
        %v9964 = vunpack.c.l.b16 %v8456
        %v9965 = vunpack.c.h.b16 %v8456
        %v9966 = vunpack.c.l.b16 %v8457
        %v9967 = vunpack.c.h.b16 %v8457
        %v9968 = vunpack.c.l.b16 %v8458
        %v9969 = vunpack.c.h.b16 %v8458
        %v9970 = vunpack.c.l.b16 %v8459
        %v9971 = vunpack.c.h.b16 %v8459
        %v9972 = vunpack.c.l.b16 %v8460
        %v9973 = vunpack.c.h.b16 %v8460
        %v9974 = vunpack.c.l.b16 %v8461
        %v9975 = vunpack.c.h.b16 %v8461
        %v9976 = vunpack.c.l.b16 %v8462
        %v9977 = vunpack.c.h.b16 %v8462
        %v9978 = vunpack.c.l.b16 %v8463
        %v9979 = vunpack.c.h.b16 %v8463
        %v9980 = vunpack.c.l.b16 %v8464
        %v9981 = vunpack.c.h.b16 %v8464
        %v9982 = vunpack.c.l.b16 %v8465
        %v9983 = vunpack.c.h.b16 %v8465
        %v9984 = vunpack.c.l.b16 %v8466
        %v9985 = vunpack.c.h.b16 %v8466
        %v9986 = vunpack.c.l.b16 %v8467
        %v9987 = vunpack.c.h.b16 %v8467
        %v9988 = vunpack.c.l.b16 %v8468
        %v9989 = vunpack.c.h.b16 %v8468
        %v9990 = vunpack.c.l.b16 %v8469
        %v9991 = vunpack.c.h.b16 %v8469
        %v9992 = vunpack.c.l.b16 %v8470
        %v9993 = vunpack.c.h.b16 %v8470
        %v9994 = vunpack.c.l.b16 %v8471
        %v9995 = vunpack.c.h.b16 %v8471
        %v9996 = vunpack.c.l.b16 %v8472
        %v9997 = vunpack.c.h.b16 %v8472
        %v9998 = vunpack.c.l.b16 %v8473
        %v9999 = vunpack.c.h.b16 %v8473
        %v10000 = vunpack.c.l.b16 %v8474
        %v10001 = vunpack.c.h.b16 %v8474
        %v10002 = vunpack.c.l.b16 %v8475
        %v10003 = vunpack.c.h.b16 %v8475
        %v10004 = vunpack.c.l.b16 %v8476
        %v10005 = vunpack.c.h.b16 %v8476
        %v10006 = vunpack.c.l.b16 %v8477
        %v10007 = vunpack.c.h.b16 %v8477
        %v10008 = vunpack.c.l.b16 %v8478
        %v10009 = vunpack.c.h.b16 %v8478
        %v10010 = vunpack.c.l.b16 %v8479
        %v10011 = vunpack.c.h.b16 %v8479
        %v10012 = vunpack.c.l.b16 %v8480
        %v10013 = vunpack.c.h.b16 %v8480
        %v10014 = vunpack.c.l.b16 %v8481
        %v10015 = vunpack.c.h.b16 %v8481
        %v10016 = vunpack.c.l.b16 %v8482
        %v10017 = vunpack.c.h.b16 %v8482
        %v10018 = vunpack.c.l.b16 %v8483
        %v10019 = vunpack.c.h.b16 %v8483
        %v10020 = vunpack.c.l.b16 %v8484
        %v10021 = vunpack.c.h.b16 %v8484
        %v10022 = vunpack.c.l.b16 %v8485
        %v10023 = vunpack.c.h.b16 %v8485
        %v10024 = vunpack.c.l.b16 %v8486
        %v10025 = vunpack.c.h.b16 %v8486
        %v10026 = vunpack.c.l.b16 %v8487
        %v10027 = vunpack.c.h.b16 %v8487
        %v10028 = vunpack.c.l.b16 %v8488
        %v10029 = vunpack.c.h.b16 %v8488
        %v10030 = vunpack.c.l.b16 %v8489
        %v10031 = vunpack.c.h.b16 %v8489
        %v10032 = vunpack.c.l.b16 %v8490
        %v10033 = vunpack.c.h.b16 %v8490
        %v10034 = vunpack.c.l.b16 %v8491
        %v10035 = vunpack.c.h.b16 %v8491
        %v10036 = vunpack.c.l.b16 %v8492
        %v10037 = vunpack.c.h.b16 %v8492
        %v10038 = vunpack.c.l.b16 %v8493
        %v10039 = vunpack.c.h.b16 %v8493
        %v10040 = vunpack.c.l.b16 %v8494
        %v10041 = vunpack.c.h.b16 %v8494
        %v10042 = vunpack.c.l.b16 %v8495
        %v10043 = vunpack.c.h.b16 %v8495
        %v10044 = vunpack.c.l.b16 %v8496
        %v10045 = vunpack.c.h.b16 %v8496
        %v10046 = vunpack.c.l.b16 %v8497
        %v10047 = vunpack.c.h.b16 %v8497
        %v10048 = vunpack.c.l.b16 %v8498
        %v10049 = vunpack.c.h.b16 %v8498
        %v10050 = vunpack.c.l.b16 %v8499
        %v10051 = vunpack.c.h.b16 %v8499
        %v10052 = vunpack.c.l.b16 %v8500
        %v10053 = vunpack.c.h.b16 %v8500
        %v10054 = vunpack.c.l.b16 %v8501
        %v10055 = vunpack.c.h.b16 %v8501
        %v10056 = vunpack.c.l.b16 %v8502
        %v10057 = vunpack.c.h.b16 %v8502
        %v10058 = vunpack.c.l.b16 %v8503
        %v10059 = vunpack.c.h.b16 %v8503
        %v10060 = vunpack.c.l.b16 %v8504
        %v10061 = vunpack.c.h.b16 %v8504
        %v10062 = vunpack.c.l.b16 %v8505
        %v10063 = vunpack.c.h.b16 %v8505
        %v10064 = vunpack.c.l.b16 %v8506
        %v10065 = vunpack.c.h.b16 %v8506
        %v10066 = vunpack.c.l.b16 %v8507
        %v10067 = vunpack.c.h.b16 %v8507
        %v10068 = vunpack.c.l.b16 %v8508
        %v10069 = vunpack.c.h.b16 %v8508
        %v10070 = vunpack.c.l.b16 %v8509
        %v10071 = vunpack.c.h.b16 %v8509
        %v10072 = vunpack.c.l.b16 %v8510
        %v10073 = vunpack.c.h.b16 %v8510
        %v10074 = vunpack.c.l.b16 %v8511
        %v10075 = vunpack.c.h.b16 %v8511
        %v10076 = vunpack.c.l.b16 %v8512
        %v10077 = vunpack.c.h.b16 %v8512
        %v10078 = vunpack.c.l.b16 %v8513
        %v10079 = vunpack.c.h.b16 %v8513
        %v10080 = vunpack.c.l.b16 %v8514
        %v10081 = vunpack.c.h.b16 %v8514
        %v10082 = vunpack.c.l.b16 %v8515
        %v10083 = vunpack.c.h.b16 %v8515
        %v10084 = vunpack.c.l.b16 %v8516
        %v10085 = vunpack.c.h.b16 %v8516
        %v10086 = vunpack.c.l.b16 %v8517
        %v10087 = vunpack.c.h.b16 %v8517
        %v10088 = vunpack.c.l.b16 %v8518
        %v10089 = vunpack.c.h.b16 %v8518
        %v10090 = vunpack.c.l.b16 %v8519
        %v10091 = vunpack.c.h.b16 %v8519
        %v10092 = vunpack.c.l.b16 %v8520
        %v10093 = vunpack.c.h.b16 %v8520
        %v10094 = vunpack.c.l.b16 %v8521
        %v10095 = vunpack.c.h.b16 %v8521
        %v10096 = vunpack.c.l.b16 %v8522
        %v10097 = vunpack.c.h.b16 %v8522
        %v10098 = vunpack.c.l.b16 %v8523
        %v10099 = vunpack.c.h.b16 %v8523
        %v10100 = vunpack.c.l.b16 %v8524
        %v10101 = vunpack.c.h.b16 %v8524
        %v10102 = vunpack.c.l.b16 %v8525
        %v10103 = vunpack.c.h.b16 %v8525
        %v10104 = vunpack.c.l.b16 %v8526
        %v10105 = vunpack.c.h.b16 %v8526
        %v10106 = vunpack.c.l.b16 %v8527
        %v10107 = vunpack.c.h.b16 %v8527
        %v10108 = vunpack.c.l.b16 %v8528
        %v10109 = vunpack.c.h.b16 %v8528
        %v10110 = vunpack.c.l.b16 %v8529
        %v10111 = vunpack.c.h.b16 %v8529
        %v10112 = vunpack.c.l.b16 %v8530
        %v10113 = vunpack.c.h.b16 %v8530
        %v10114 = vunpack.c.l.b16 %v8531
        %v10115 = vunpack.c.h.b16 %v8531
        %v10116 = vunpack.c.l.b16 %v8532
        %v10117 = vunpack.c.h.b16 %v8532
        %v10118 = vunpack.c.l.b16 %v8533
        %v10119 = vunpack.c.h.b16 %v8533
        %v10120 = vunpack.c.l.b16 %v8534
        %v10121 = vunpack.c.h.b16 %v8534
        %v10122 = vunpack.c.l.b16 %v8535
        %v10123 = vunpack.c.h.b16 %v8535
        %v10124 = vunpack.c.l.b16 %v8536
        %v10125 = vunpack.c.h.b16 %v8536
        %v10126 = vunpack.c.l.b16 %v8537
        %v10127 = vunpack.c.h.b16 %v8537
        %v10128 = vunpack.c.l.b16 %v8538
        %v10129 = vunpack.c.h.b16 %v8538
        %v10130 = vunpack.c.l.b16 %v8539
        %v10131 = vunpack.c.h.b16 %v8539
        %v10132 = vunpack.c.l.b16 %v8540
        %v10133 = vunpack.c.h.b16 %v8540
        %v10134 = vunpack.c.l.b16 %v8541
        %v10135 = vunpack.c.h.b16 %v8541
        %v10136 = vunpack.c.l.b16 %v8542
        %v10137 = vunpack.c.h.b16 %v8542
        %v10138 = vunpack.c.l.b16 %v8543
        %v10139 = vunpack.c.h.b16 %v8543
        %v10140 = vunpack.c.l.b16 %v8544
        %v10141 = vunpack.c.h.b16 %v8544
        %v10142 = vunpack.c.l.b16 %v8545
        %v10143 = vunpack.c.h.b16 %v8545
        %v10144 = vunpack.c.l.b16 %v8546
        %v10145 = vunpack.c.h.b16 %v8546
        %v10146 = vunpack.c.l.b16 %v8547
        %v10147 = vunpack.c.h.b16 %v8547
        %v10148 = vunpack.c.l.b16 %v8548
        %v10149 = vunpack.c.h.b16 %v8548
        %v10150 = vunpack.c.l.b16 %v8549
        %v10151 = vunpack.c.h.b16 %v8549
        %v10152 = vunpack.c.l.b16 %v8550
        %v10153 = vunpack.c.h.b16 %v8550
        %v10154 = vunpack.c.l.b16 %v8551
        %v10155 = vunpack.c.h.b16 %v8551
        %v10156 = vunpack.c.l.b16 %v8552
        %v10157 = vunpack.c.h.b16 %v8552
        %v10158 = vunpack.c.l.b16 %v8553
        %v10159 = vunpack.c.h.b16 %v8553
        %v10160 = vunpack.c.l.b16 %v8554
        %v10161 = vunpack.c.h.b16 %v8554
        %v10162 = vunpack.c.l.b16 %v8555
        %v10163 = vunpack.c.h.b16 %v8555
        %v10164 = vunpack.c.l.b16 %v8556
        %v10165 = vunpack.c.h.b16 %v8556
        %v10166 = vunpack.c.l.b16 %v8557
        %v10167 = vunpack.c.h.b16 %v8557
        %v10168 = vunpack.c.l.b16 %v8558
        %v10169 = vunpack.c.h.b16 %v8558
        %v10170 = vunpack.c.l.b16 %v8559
        %v10171 = vunpack.c.h.b16 %v8559
        %v10172 = vunpack.c.l.b16 %v8560
        %v10173 = vunpack.c.h.b16 %v8560
        %v10174 = vunpack.c.l.b16 %v8561
        %v10175 = vunpack.c.h.b16 %v8561
        %v10176 = vunpack.c.l.b16 %v8562
        %v10177 = vunpack.c.h.b16 %v8562
        %v10178 = vunpack.c.l.b16 %v8563
        %v10179 = vunpack.c.h.b16 %v8563
        %v10180 = vunpack.c.l.b16 %v8564
        %v10181 = vunpack.c.h.b16 %v8564
        %v10182 = vunpack.c.l.b16 %v8565
        %v10183 = vunpack.c.h.b16 %v8565
        %v10184 = vunpack.c.l.b16 %v8566
        %v10185 = vunpack.c.h.b16 %v8566
        %v10186 = vunpack.c.l.b16 %v8567
        %v10187 = vunpack.c.h.b16 %v8567
        %v10188 = vunpack.c.l.b16 %v8568
        %v10189 = vunpack.c.h.b16 %v8568
        %v10190 = vunpack.c.l.b16 %v8569
        %v10191 = vunpack.c.h.b16 %v8569
        %v10192 = vunpack.c.l.b16 %v8570
        %v10193 = vunpack.c.h.b16 %v8570
        %v10194 = vunpack.c.l.b16 %v8571
        %v10195 = vunpack.c.h.b16 %v8571
        %v10196 = vunpack.c.l.b16 %v8572
        %v10197 = vunpack.c.h.b16 %v8572
        %v10198 = vunpack.c.l.b16 %v8573
        %v10199 = vunpack.c.h.b16 %v8573
        %v10200 = vunpack.c.l.b16 %v8574
        %v10201 = vunpack.c.h.b16 %v8574
        %v10202 = vunpack.c.l.b16 %v8575
        %v10203 = vunpack.c.h.b16 %v8575
        %v10204 = vunpack.c.l.b16 %v8576
        %v10205 = vunpack.c.h.b16 %v8576
        %v10206 = vunpack.c.l.b16 %v8577
        %v10207 = vunpack.c.h.b16 %v8577
        %v10208 = vunpack.c.l.b16 %v8578
        %v10209 = vunpack.c.h.b16 %v8578
        %v10210 = vunpack.c.l.b16 %v8579
        %v10211 = vunpack.c.h.b16 %v8579
        %v10212 = vunpack.c.l.b16 %v8580
        %v10213 = vunpack.c.h.b16 %v8580
        %v10214 = vpack.c.b16 %v9450, %v9446
        %v10215 = vpack.c.b16 %v9451, %v9447
        %v10216 = vpack.c.b16 %v9452, %v9448
        %v10217 = vpack.c.b16 %v9453, %v9449
        %v10218 = vpack.c.b16 %v9458, %v9454
        %v10219 = vpack.c.b16 %v9459, %v9455
        %v10220 = vpack.c.b16 %v9460, %v9456
        %v10221 = vpack.c.b16 %v9461, %v9457
        %v10222 = vpack.c.b16 %v9466, %v9462
        %v10223 = vpack.c.b16 %v9467, %v9463
        %v10224 = vpack.c.b16 %v9468, %v9464
        %v10225 = vpack.c.b16 %v9469, %v9465
        %v10226 = vpack.c.b16 %v9474, %v9470
        %v10227 = vpack.c.b16 %v9475, %v9471
        %v10228 = vpack.c.b16 %v9476, %v9472
        %v10229 = vpack.c.b16 %v9477, %v9473
        %v10230 = vpack.c.b16 %v9482, %v9478
        %v10231 = vpack.c.b16 %v9483, %v9479
        %v10232 = vpack.c.b16 %v9484, %v9480
        %v10233 = vpack.c.b16 %v9485, %v9481
        %v10234 = vpack.c.b16 %v9490, %v9486
        %v10235 = vpack.c.b16 %v9491, %v9487
        %v10236 = vpack.c.b16 %v9492, %v9488
        %v10237 = vpack.c.b16 %v9493, %v9489
        %v10238 = vpack.c.b16 %v9498, %v9494
        %v10239 = vpack.c.b16 %v9499, %v9495
        %v10240 = vpack.c.b16 %v9500, %v9496
        %v10241 = vpack.c.b16 %v9501, %v9497
        %v10242 = vpack.c.b16 %v9506, %v9502
        %v10243 = vpack.c.b16 %v9507, %v9503
        %v10244 = vpack.c.b16 %v9508, %v9504
        %v10245 = vpack.c.b16 %v9509, %v9505
        %v10246 = vpack.c.b16 %v9514, %v9510
        %v10247 = vpack.c.b16 %v9515, %v9511
        %v10248 = vpack.c.b16 %v9516, %v9512
        %v10249 = vpack.c.b16 %v9517, %v9513
        %v10250 = vpack.c.b16 %v9522, %v9518
        %v10251 = vpack.c.b16 %v9523, %v9519
        %v10252 = vpack.c.b16 %v9524, %v9520
        %v10253 = vpack.c.b16 %v9525, %v9521
        %v10254 = vpack.c.b16 %v9530, %v9526
        %v10255 = vpack.c.b16 %v9531, %v9527
        %v10256 = vpack.c.b16 %v9532, %v9528
        %v10257 = vpack.c.b16 %v9533, %v9529
        %v10258 = vpack.c.b16 %v9538, %v9534
        %v10259 = vpack.c.b16 %v9539, %v9535
        %v10260 = vpack.c.b16 %v9540, %v9536
        %v10261 = vpack.c.b16 %v9541, %v9537
        %v10262 = vpack.c.b16 %v9546, %v9542
        %v10263 = vpack.c.b16 %v9547, %v9543
        %v10264 = vpack.c.b16 %v9548, %v9544
        %v10265 = vpack.c.b16 %v9549, %v9545
        %v10266 = vpack.c.b16 %v9554, %v9550
        %v10267 = vpack.c.b16 %v9555, %v9551
        %v10268 = vpack.c.b16 %v9556, %v9552
        %v10269 = vpack.c.b16 %v9557, %v9553
        %v10270 = vpack.c.b16 %v9562, %v9558
        %v10271 = vpack.c.b16 %v9563, %v9559
        %v10272 = vpack.c.b16 %v9564, %v9560
        %v10273 = vpack.c.b16 %v9565, %v9561
        %v10274 = vpack.c.b16 %v9570, %v9566
        %v10275 = vpack.c.b16 %v9571, %v9567
        %v10276 = vpack.c.b16 %v9572, %v9568
        %v10277 = vpack.c.b16 %v9573, %v9569
        %v10278 = vpack.c.b16 %v9578, %v9574
        %v10279 = vpack.c.b16 %v9579, %v9575
        %v10280 = vpack.c.b16 %v9580, %v9576
        %v10281 = vpack.c.b16 %v9581, %v9577
        %v10282 = vpack.c.b16 %v9586, %v9582
        %v10283 = vpack.c.b16 %v9587, %v9583
        %v10284 = vpack.c.b16 %v9588, %v9584
        %v10285 = vpack.c.b16 %v9589, %v9585
        %v10286 = vpack.c.b16 %v9594, %v9590
        %v10287 = vpack.c.b16 %v9595, %v9591
        %v10288 = vpack.c.b16 %v9596, %v9592
        %v10289 = vpack.c.b16 %v9597, %v9593
        %v10290 = vpack.c.b16 %v9602, %v9598
        %v10291 = vpack.c.b16 %v9603, %v9599
        %v10292 = vpack.c.b16 %v9604, %v9600
        %v10293 = vpack.c.b16 %v9605, %v9601
        %v10294 = vpack.c.b16 %v9610, %v9606
        %v10295 = vpack.c.b16 %v9611, %v9607
        %v10296 = vpack.c.b16 %v9612, %v9608
        %v10297 = vpack.c.b16 %v9613, %v9609
        %v10298 = vpack.c.b16 %v9618, %v9614
        %v10299 = vpack.c.b16 %v9619, %v9615
        %v10300 = vpack.c.b16 %v9620, %v9616
        %v10301 = vpack.c.b16 %v9621, %v9617
        %v10302 = vpack.c.b16 %v9626, %v9622
        %v10303 = vpack.c.b16 %v9627, %v9623
        %v10304 = vpack.c.b16 %v9628, %v9624
        %v10305 = vpack.c.b16 %v9629, %v9625
        %v10306 = vpack.c.b16 %v9634, %v9630
        %v10307 = vpack.c.b16 %v9635, %v9631
        %v10308 = vpack.c.b16 %v9636, %v9632
        %v10309 = vpack.c.b16 %v9637, %v9633
        %v10310 = vpack.c.b16 %v9642, %v9638
        %v10311 = vpack.c.b16 %v9643, %v9639
        %v10312 = vpack.c.b16 %v9644, %v9640
        %v10313 = vpack.c.b16 %v9645, %v9641
        %v10314 = vpack.c.b16 %v9650, %v9646
        %v10315 = vpack.c.b16 %v9651, %v9647
        %v10316 = vpack.c.b16 %v9652, %v9648
        %v10317 = vpack.c.b16 %v9653, %v9649
        %v10318 = vpack.c.b16 %v9658, %v9654
        %v10319 = vpack.c.b16 %v9659, %v9655
        %v10320 = vpack.c.b16 %v9660, %v9656
        %v10321 = vpack.c.b16 %v9661, %v9657
        %v10322 = vpack.c.b16 %v9666, %v9662
        %v10323 = vpack.c.b16 %v9667, %v9663
        %v10324 = vpack.c.b16 %v9668, %v9664
        %v10325 = vpack.c.b16 %v9669, %v9665
        %v10326 = vpack.c.b16 %v9674, %v9670
        %v10327 = vpack.c.b16 %v9675, %v9671
        %v10328 = vpack.c.b16 %v9676, %v9672
        %v10329 = vpack.c.b16 %v9677, %v9673
        %v10330 = vpack.c.b16 %v9682, %v9678
        %v10331 = vpack.c.b16 %v9683, %v9679
        %v10332 = vpack.c.b16 %v9684, %v9680
        %v10333 = vpack.c.b16 %v9685, %v9681
        %v10334 = vpack.c.b16 %v9690, %v9686
        %v10335 = vpack.c.b16 %v9691, %v9687
        %v10336 = vpack.c.b16 %v9692, %v9688
        %v10337 = vpack.c.b16 %v9693, %v9689
        %v10338 = vpack.c.b16 %v9698, %v9694
        %v10339 = vpack.c.b16 %v9699, %v9695
        %v10340 = vpack.c.b16 %v9700, %v9696
        %v10341 = vpack.c.b16 %v9701, %v9697
        %v10342 = vpack.c.b16 %v9706, %v9702
        %v10343 = vpack.c.b16 %v9707, %v9703
        %v10344 = vpack.c.b16 %v9708, %v9704
        %v10345 = vpack.c.b16 %v9709, %v9705
        %v10346 = vpack.c.b16 %v9714, %v9710
        %v10347 = vpack.c.b16 %v9715, %v9711
        %v10348 = vpack.c.b16 %v9716, %v9712
        %v10349 = vpack.c.b16 %v9717, %v9713
        %v10350 = vpack.c.b16 %v9722, %v9718
        %v10351 = vpack.c.b16 %v9723, %v9719
        %v10352 = vpack.c.b16 %v9724, %v9720
        %v10353 = vpack.c.b16 %v9725, %v9721
        %v10354 = vpack.c.b16 %v9730, %v9726
        %v10355 = vpack.c.b16 %v9731, %v9727
        %v10356 = vpack.c.b16 %v9732, %v9728
        %v10357 = vpack.c.b16 %v9733, %v9729
        %v10358 = vpack.c.b16 %v9738, %v9734
        %v10359 = vpack.c.b16 %v9739, %v9735
        %v10360 = vpack.c.b16 %v9740, %v9736
        %v10361 = vpack.c.b16 %v9741, %v9737
        %v10362 = vpack.c.b16 %v9746, %v9742
        %v10363 = vpack.c.b16 %v9747, %v9743
        %v10364 = vpack.c.b16 %v9748, %v9744
        %v10365 = vpack.c.b16 %v9749, %v9745
        %v10366 = vpack.c.b16 %v9754, %v9750
        %v10367 = vpack.c.b16 %v9755, %v9751
        %v10368 = vpack.c.b16 %v9756, %v9752
        %v10369 = vpack.c.b16 %v9757, %v9753
        %v10370 = vpack.c.b16 %v9762, %v9758
        %v10371 = vpack.c.b16 %v9763, %v9759
        %v10372 = vpack.c.b16 %v9764, %v9760
        %v10373 = vpack.c.b16 %v9765, %v9761
        %v10374 = vpack.c.b16 %v9770, %v9766
        %v10375 = vpack.c.b16 %v9771, %v9767
        %v10376 = vpack.c.b16 %v9772, %v9768
        %v10377 = vpack.c.b16 %v9773, %v9769
        %v10378 = vpack.c.b16 %v9778, %v9774
        %v10379 = vpack.c.b16 %v9779, %v9775
        %v10380 = vpack.c.b16 %v9780, %v9776
        %v10381 = vpack.c.b16 %v9781, %v9777
        %v10382 = vpack.c.b16 %v9786, %v9782
        %v10383 = vpack.c.b16 %v9787, %v9783
        %v10384 = vpack.c.b16 %v9788, %v9784
        %v10385 = vpack.c.b16 %v9789, %v9785
        %v10386 = vpack.c.b16 %v9794, %v9790
        %v10387 = vpack.c.b16 %v9795, %v9791
        %v10388 = vpack.c.b16 %v9796, %v9792
        %v10389 = vpack.c.b16 %v9797, %v9793
        %v10390 = vpack.c.b16 %v9802, %v9798
        %v10391 = vpack.c.b16 %v9803, %v9799
        %v10392 = vpack.c.b16 %v9804, %v9800
        %v10393 = vpack.c.b16 %v9805, %v9801
        %v10394 = vpack.c.b16 %v9810, %v9806
        %v10395 = vpack.c.b16 %v9811, %v9807
        %v10396 = vpack.c.b16 %v9812, %v9808
        %v10397 = vpack.c.b16 %v9813, %v9809
        %v10398 = vpack.c.b16 %v9818, %v9814
        %v10399 = vpack.c.b16 %v9819, %v9815
        %v10400 = vpack.c.b16 %v9820, %v9816
        %v10401 = vpack.c.b16 %v9821, %v9817
        %v10402 = vpack.c.b16 %v9826, %v9822
        %v10403 = vpack.c.b16 %v9827, %v9823
        %v10404 = vpack.c.b16 %v9828, %v9824
        %v10405 = vpack.c.b16 %v9829, %v9825
        %v10406 = vpack.c.b16 %v9834, %v9830
        %v10407 = vpack.c.b16 %v9835, %v9831
        %v10408 = vpack.c.b16 %v9836, %v9832
        %v10409 = vpack.c.b16 %v9837, %v9833
        %v10410 = vpack.c.b16 %v9842, %v9838
        %v10411 = vpack.c.b16 %v9843, %v9839
        %v10412 = vpack.c.b16 %v9844, %v9840
        %v10413 = vpack.c.b16 %v9845, %v9841
        %v10414 = vpack.c.b16 %v9850, %v9846
        %v10415 = vpack.c.b16 %v9851, %v9847
        %v10416 = vpack.c.b16 %v9852, %v9848
        %v10417 = vpack.c.b16 %v9853, %v9849
        %v10418 = vpack.c.b16 %v9858, %v9854
        %v10419 = vpack.c.b16 %v9859, %v9855
        %v10420 = vpack.c.b16 %v9860, %v9856
        %v10421 = vpack.c.b16 %v9861, %v9857
        %v10422 = vpack.c.b16 %v9866, %v9862
        %v10423 = vpack.c.b16 %v9867, %v9863
        %v10424 = vpack.c.b16 %v9868, %v9864
        %v10425 = vpack.c.b16 %v9869, %v9865
        %v10426 = vpack.c.b16 %v9874, %v9870
        %v10427 = vpack.c.b16 %v9875, %v9871
        %v10428 = vpack.c.b16 %v9876, %v9872
        %v10429 = vpack.c.b16 %v9877, %v9873
        %v10430 = vpack.c.b16 %v9882, %v9878
        %v10431 = vpack.c.b16 %v9883, %v9879
        %v10432 = vpack.c.b16 %v9884, %v9880
        %v10433 = vpack.c.b16 %v9885, %v9881
        %v10434 = vpack.c.b16 %v9890, %v9886
        %v10435 = vpack.c.b16 %v9891, %v9887
        %v10436 = vpack.c.b16 %v9892, %v9888
        %v10437 = vpack.c.b16 %v9893, %v9889
        %v10438 = vpack.c.b16 %v9898, %v9894
        %v10439 = vpack.c.b16 %v9899, %v9895
        %v10440 = vpack.c.b16 %v9900, %v9896
        %v10441 = vpack.c.b16 %v9901, %v9897
        %v10442 = vpack.c.b16 %v9906, %v9902
        %v10443 = vpack.c.b16 %v9907, %v9903
        %v10444 = vpack.c.b16 %v9908, %v9904
        %v10445 = vpack.c.b16 %v9909, %v9905
        %v10446 = vpack.c.b16 %v9914, %v9910
        %v10447 = vpack.c.b16 %v9915, %v9911
        %v10448 = vpack.c.b16 %v9916, %v9912
        %v10449 = vpack.c.b16 %v9917, %v9913
        %v10450 = vpack.c.b16 %v9922, %v9918
        %v10451 = vpack.c.b16 %v9923, %v9919
        %v10452 = vpack.c.b16 %v9924, %v9920
        %v10453 = vpack.c.b16 %v9925, %v9921
        %v10454 = vpack.c.b16 %v9930, %v9926
        %v10455 = vpack.c.b16 %v9931, %v9927
        %v10456 = vpack.c.b16 %v9932, %v9928
        %v10457 = vpack.c.b16 %v9933, %v9929
        %v10458 = vpack.c.b16 %v9938, %v9934
        %v10459 = vpack.c.b16 %v9939, %v9935
        %v10460 = vpack.c.b16 %v9940, %v9936
        %v10461 = vpack.c.b16 %v9941, %v9937
        %v10462 = vpack.c.b16 %v9946, %v9942
        %v10463 = vpack.c.b16 %v9947, %v9943
        %v10464 = vpack.c.b16 %v9948, %v9944
        %v10465 = vpack.c.b16 %v9949, %v9945
        %v10466 = vpack.c.b16 %v9954, %v9950
        %v10467 = vpack.c.b16 %v9955, %v9951
        %v10468 = vpack.c.b16 %v9956, %v9952
        %v10469 = vpack.c.b16 %v9957, %v9953
        %v10470 = vpack.c.b16 %v9962, %v9958
        %v10471 = vpack.c.b16 %v9963, %v9959
        %v10472 = vpack.c.b16 %v9964, %v9960
        %v10473 = vpack.c.b16 %v9965, %v9961
        %v10474 = vpack.c.b16 %v9970, %v9966
        %v10475 = vpack.c.b16 %v9971, %v9967
        %v10476 = vpack.c.b16 %v9972, %v9968
        %v10477 = vpack.c.b16 %v9973, %v9969
        %v10478 = vpack.c.b16 %v9978, %v9974
        %v10479 = vpack.c.b16 %v9979, %v9975
        %v10480 = vpack.c.b16 %v9980, %v9976
        %v10481 = vpack.c.b16 %v9981, %v9977
        %v10482 = vpack.c.b16 %v9986, %v9982
        %v10483 = vpack.c.b16 %v9987, %v9983
        %v10484 = vpack.c.b16 %v9988, %v9984
        %v10485 = vpack.c.b16 %v9989, %v9985
        %v10486 = vpack.c.b16 %v9994, %v9990
        %v10487 = vpack.c.b16 %v9995, %v9991
        %v10488 = vpack.c.b16 %v9996, %v9992
        %v10489 = vpack.c.b16 %v9997, %v9993
        %v10490 = vpack.c.b16 %v10002, %v9998
        %v10491 = vpack.c.b16 %v10003, %v9999
        %v10492 = vpack.c.b16 %v10004, %v10000
        %v10493 = vpack.c.b16 %v10005, %v10001
        %v10494 = vpack.c.b16 %v10010, %v10006
        %v10495 = vpack.c.b16 %v10011, %v10007
        %v10496 = vpack.c.b16 %v10012, %v10008
        %v10497 = vpack.c.b16 %v10013, %v10009
        %v10498 = vpack.c.b16 %v10018, %v10014
        %v10499 = vpack.c.b16 %v10019, %v10015
        %v10500 = vpack.c.b16 %v10020, %v10016
        %v10501 = vpack.c.b16 %v10021, %v10017
        %v10502 = vpack.c.b16 %v10026, %v10022
        %v10503 = vpack.c.b16 %v10027, %v10023
        %v10504 = vpack.c.b16 %v10028, %v10024
        %v10505 = vpack.c.b16 %v10029, %v10025
        %v10506 = vpack.c.b16 %v10034, %v10030
        %v10507 = vpack.c.b16 %v10035, %v10031
        %v10508 = vpack.c.b16 %v10036, %v10032
        %v10509 = vpack.c.b16 %v10037, %v10033
        %v10510 = vpack.c.b16 %v10042, %v10038
        %v10511 = vpack.c.b16 %v10043, %v10039
        %v10512 = vpack.c.b16 %v10044, %v10040
        %v10513 = vpack.c.b16 %v10045, %v10041
        %v10514 = vpack.c.b16 %v10050, %v10046
        %v10515 = vpack.c.b16 %v10051, %v10047
        %v10516 = vpack.c.b16 %v10052, %v10048
        %v10517 = vpack.c.b16 %v10053, %v10049
        %v10518 = vpack.c.b16 %v10058, %v10054
        %v10519 = vpack.c.b16 %v10059, %v10055
        %v10520 = vpack.c.b16 %v10060, %v10056
        %v10521 = vpack.c.b16 %v10061, %v10057
        %v10522 = vpack.c.b16 %v10066, %v10062
        %v10523 = vpack.c.b16 %v10067, %v10063
        %v10524 = vpack.c.b16 %v10068, %v10064
        %v10525 = vpack.c.b16 %v10069, %v10065
        %v10526 = vpack.c.b16 %v10074, %v10070
        %v10527 = vpack.c.b16 %v10075, %v10071
        %v10528 = vpack.c.b16 %v10076, %v10072
        %v10529 = vpack.c.b16 %v10077, %v10073
        %v10530 = vpack.c.b16 %v10082, %v10078
        %v10531 = vpack.c.b16 %v10083, %v10079
        %v10532 = vpack.c.b16 %v10084, %v10080
        %v10533 = vpack.c.b16 %v10085, %v10081
        %v10534 = vpack.c.b16 %v10090, %v10086
        %v10535 = vpack.c.b16 %v10091, %v10087
        %v10536 = vpack.c.b16 %v10092, %v10088
        %v10537 = vpack.c.b16 %v10093, %v10089
        %v10538 = vpack.c.b16 %v10098, %v10094
        %v10539 = vpack.c.b16 %v10099, %v10095
        %v10540 = vpack.c.b16 %v10100, %v10096
        %v10541 = vpack.c.b16 %v10101, %v10097
        %v10542 = vpack.c.b16 %v10106, %v10102
        %v10543 = vpack.c.b16 %v10107, %v10103
        %v10544 = vpack.c.b16 %v10108, %v10104
        %v10545 = vpack.c.b16 %v10109, %v10105
        %v10546 = vpack.c.b16 %v10114, %v10110
        %v10547 = vpack.c.b16 %v10115, %v10111
        %v10548 = vpack.c.b16 %v10116, %v10112
        %v10549 = vpack.c.b16 %v10117, %v10113
        %v10550 = vpack.c.b16 %v10122, %v10118
        %v10551 = vpack.c.b16 %v10123, %v10119
        %v10552 = vpack.c.b16 %v10124, %v10120
        %v10553 = vpack.c.b16 %v10125, %v10121
        %v10554 = vpack.c.b16 %v10130, %v10126
        %v10555 = vpack.c.b16 %v10131, %v10127
        %v10556 = vpack.c.b16 %v10132, %v10128
        %v10557 = vpack.c.b16 %v10133, %v10129
        %v10558 = vpack.c.b16 %v10138, %v10134
        %v10559 = vpack.c.b16 %v10139, %v10135
        %v10560 = vpack.c.b16 %v10140, %v10136
        %v10561 = vpack.c.b16 %v10141, %v10137
        %v10562 = vpack.c.b16 %v10146, %v10142
        %v10563 = vpack.c.b16 %v10147, %v10143
        %v10564 = vpack.c.b16 %v10148, %v10144
        %v10565 = vpack.c.b16 %v10149, %v10145
        %v10566 = vpack.c.b16 %v10154, %v10150
        %v10567 = vpack.c.b16 %v10155, %v10151
        %v10568 = vpack.c.b16 %v10156, %v10152
        %v10569 = vpack.c.b16 %v10157, %v10153
        %v10570 = vpack.c.b16 %v10162, %v10158
        %v10571 = vpack.c.b16 %v10163, %v10159
        %v10572 = vpack.c.b16 %v10164, %v10160
        %v10573 = vpack.c.b16 %v10165, %v10161
        %v10574 = vpack.c.b16 %v10170, %v10166
        %v10575 = vpack.c.b16 %v10171, %v10167
        %v10576 = vpack.c.b16 %v10172, %v10168
        %v10577 = vpack.c.b16 %v10173, %v10169
        %v10578 = vpack.c.b16 %v10178, %v10174
        %v10579 = vpack.c.b16 %v10179, %v10175
        %v10580 = vpack.c.b16 %v10180, %v10176
        %v10581 = vpack.c.b16 %v10181, %v10177
        %v10582 = vpack.c.b16 %v10186, %v10182
        %v10583 = vpack.c.b16 %v10187, %v10183
        %v10584 = vpack.c.b16 %v10188, %v10184
        %v10585 = vpack.c.b16 %v10189, %v10185
        %v10586 = vpack.c.b16 %v10194, %v10190
        %v10587 = vpack.c.b16 %v10195, %v10191
        %v10588 = vpack.c.b16 %v10196, %v10192
        %v10589 = vpack.c.b16 %v10197, %v10193
        %v10590 = vpack.c.b16 %v10202, %v10198
        %v10591 = vpack.c.b16 %v10203, %v10199
        %v10592 = vpack.c.b16 %v10204, %v10200
        %v10593 = vpack.c.b16 %v10205, %v10201
        %v10594 = vpack.c.b16 %v10210, %v10206
        %v10595 = vpack.c.b16 %v10211, %v10207
        %v10596 = vpack.c.b16 %v10212, %v10208
        %v10597 = vpack.c.b16 %v10213, %v10209
        %10982 = vmatprep.subr.bf16.mxu0 %v10215
        %10983 = vmatpush1.bf16.msra.mxu0 %v10214
        %10984 = vmatprep.subr.bf16.mxu0 %v10219
        %10985 = vmatpush1.bf16.msra.mxu0 %v10218
        %10986 = vmatprep.subr.bf16.mxu0 %v10223
        %10987 = vmatpush1.bf16.msra.mxu0 %v10222
        %10988 = vmatprep.subr.bf16.mxu0 %v10227
        %10989 = vmatpush1.bf16.msra.mxu0 %v10226
        %10990 = vmatprep.subr.bf16.mxu0 %v10231
        %10991 = vmatpush1.bf16.msra.mxu0 %v10230
        %10992 = vmatprep.subr.bf16.mxu0 %v10235
        %10993 = vmatpush1.bf16.msra.mxu0 %v10234
        %10994 = vmatprep.subr.bf16.mxu0 %v10239
        %10995 = vmatpush1.bf16.msra.mxu0 %v10238
        %10996 = vmatprep.subr.bf16.mxu0 %v10243
        %10997 = vmatpush1.bf16.msra.mxu0 %v10242
        %10998 = vmatprep.subr.bf16.mxu0 %v10247
        %10999 = vmatpush1.bf16.msra.mxu0 %v10246
        %11000 = vmatprep.subr.bf16.mxu0 %v10251
        %11001 = vmatpush1.bf16.msra.mxu0 %v10250
        %11002 = vmatprep.subr.bf16.mxu0 %v10255
        %11003 = vmatpush1.bf16.msra.mxu0 %v10254
        %11004 = vmatprep.subr.bf16.mxu0 %v10259
        %11005 = vmatpush1.bf16.msra.mxu0 %v10258
        %11006 = vmatprep.subr.bf16.mxu0 %v10263
        %11007 = vmatpush1.bf16.msra.mxu0 %v10262
        %11008 = vmatprep.subr.bf16.mxu0 %v10267
        %11009 = vmatpush1.bf16.msra.mxu0 %v10266
        %11010 = vmatprep.subr.bf16.mxu0 %v10271
        %11011 = vmatpush1.bf16.msra.mxu0 %v10270
        %11012 = vmatprep.subr.bf16.mxu0 %v10275
        %11013 = vmatpush1.bf16.msra.mxu0 %v10274
        %11014 = vmatprep.mubr.bf16.mxu0 %v8605
        %11015 = vmatmul.mubr.bf16.gmra.mrb[0].mxu0 %v8593
        %v11016 = vpop.f32.mrb[0].mxu0
        %v11017 = vadd.f32 0.0, %v11016
        %v11018 = vpop.f32.mrb[0].mxu0
        %v11019 = vadd.f32 0.0, %v11018
        %v11020 = vpop.f32.mrb[0].mxu0
        %v11021 = vadd.f32 0.0, %v11020
        %v11022 = vpop.f32.mrb[0].mxu0
        %v11023 = vadd.f32 0.0, %v11022
        %11024 = vmatprep.mubr.bf16.mxu0 %v8741
        %11025 = vmatmul.mubr.bf16.gmra.mrb[0].mxu0 %v8733
        %v11026 = vpop.f32.mrb[0].mxu0
        %v11027 = vadd.f32 0.0, %v11026
        %v11028 = vpop.f32.mrb[0].mxu0
        %v11029 = vadd.f32 0.0, %v11028
        %v11030 = vpop.f32.mrb[0].mxu0
        %v11031 = vadd.f32 0.0, %v11030
        %v11032 = vpop.f32.mrb[0].mxu0
        %v11033 = vadd.f32 0.0, %v11032
        %11034 = vmatprep.mubr.bf16.mxu0 %v8837
        %11035 = vmatmul.mubr.bf16.gmra.mrb[0].mxu0 %v8829
        %v11036 = vpop.f32.mrb[0].mxu0
        %v11037 = vadd.f32 0.0, %v11036
        %v11038 = vpop.f32.mrb[0].mxu0
        %v11039 = vadd.f32 0.0, %v11038
        %v11040 = vpop.f32.mrb[0].mxu0
        %v11041 = vadd.f32 0.0, %v11040
        %v11042 = vpop.f32.mrb[0].mxu0
        %v11043 = vadd.f32 0.0, %v11042
        %11044 = vmatprep.mubr.bf16.mxu0 %v8933
        %11045 = vmatmul.mubr.bf16.gmra.mrb[0].mxu0 %v8925
        %v11046 = vpop.f32.mrb[0].mxu0
        %v11047 = vadd.f32 0.0, %v11046
        %v11048 = vpop.f32.mrb[0].mxu0
        %v11049 = vadd.f32 0.0, %v11048
        %v11050 = vpop.f32.mrb[0].mxu0
        %v11051 = vadd.f32 0.0, %v11050
        %v11052 = vpop.f32.mrb[0].mxu0
        %v11053 = vadd.f32 0.0, %v11052
        %11054 = vdwg.mxu0
        %11055 = vmatprep.subr.bf16.mxu0 %v10279
        %11056 = vmatpush1.bf16.msra.mxu0 %v10278
        %11057 = vmatprep.subr.bf16.mxu0 %v10283
        %11058 = vmatpush1.bf16.msra.mxu0 %v10282
        %11059 = vmatprep.subr.bf16.mxu0 %v10287
        %11060 = vmatpush1.bf16.msra.mxu0 %v10286
        %11061 = vmatprep.subr.bf16.mxu0 %v10291
        %11062 = vmatpush1.bf16.msra.mxu0 %v10290
        %11063 = vmatprep.subr.bf16.mxu0 %v10295
        %11064 = vmatpush1.bf16.msra.mxu0 %v10294
        %11065 = vmatprep.subr.bf16.mxu0 %v10299
        %11066 = vmatpush1.bf16.msra.mxu0 %v10298
        %11067 = vmatprep.subr.bf16.mxu0 %v10303
        %11068 = vmatpush1.bf16.msra.mxu0 %v10302
        %11069 = vmatprep.subr.bf16.mxu0 %v10307
        %11070 = vmatpush1.bf16.msra.mxu0 %v10306
        %11071 = vmatprep.subr.bf16.mxu0 %v10311
        %11072 = vmatpush1.bf16.msra.mxu0 %v10310
        %11073 = vmatprep.subr.bf16.mxu0 %v10315
        %11074 = vmatpush1.bf16.msra.mxu0 %v10314
        %11075 = vmatprep.subr.bf16.mxu0 %v10319
        %11076 = vmatpush1.bf16.msra.mxu0 %v10318
        %11077 = vmatprep.subr.bf16.mxu0 %v10323
        %11078 = vmatpush1.bf16.msra.mxu0 %v10322
        %11079 = vmatprep.subr.bf16.mxu0 %v10327
        %11080 = vmatpush1.bf16.msra.mxu0 %v10326
        %11081 = vmatprep.subr.bf16.mxu0 %v10331
        %11082 = vmatpush1.bf16.msra.mxu0 %v10330
        %11083 = vmatprep.subr.bf16.mxu0 %v10335
        %11084 = vmatpush1.bf16.msra.mxu0 %v10334
        %11085 = vmatprep.subr.bf16.mxu0 %v10339
        %11086 = vmatpush1.bf16.msra.mxu0 %v10338
        %11087 = vmatprep.mubr.bf16.mxu0 %v8629
        %11088 = vmatmul.mubr.bf16.gmra.mrb[0].mxu0 %v8617
        %v11089 = vpop.f32.mrb[0].mxu0
        %v11090 = vadd.f32 %v11017, %v11089
        %v11091 = vpop.f32.mrb[0].mxu0
        %v11092 = vadd.f32 %v11019, %v11091
        %v11093 = vpop.f32.mrb[0].mxu0
        %v11094 = vadd.f32 %v11021, %v11093
        %v11095 = vpop.f32.mrb[0].mxu0
        %v11096 = vadd.f32 %v11023, %v11095
        %11097 = vmatprep.mubr.bf16.mxu0 %v8757
        %11098 = vmatmul.mubr.bf16.gmra.mrb[0].mxu0 %v8749
        %v11099 = vpop.f32.mrb[0].mxu0
        %v11100 = vadd.f32 %v11027, %v11099
        %v11101 = vpop.f32.mrb[0].mxu0
        %v11102 = vadd.f32 %v11029, %v11101
        %v11103 = vpop.f32.mrb[0].mxu0
        %v11104 = vadd.f32 %v11031, %v11103
        %v11105 = vpop.f32.mrb[0].mxu0
        %v11106 = vadd.f32 %v11033, %v11105
        %11107 = vmatprep.mubr.bf16.mxu0 %v8853
        %11108 = vmatmul.mubr.bf16.gmra.mrb[0].mxu0 %v8845
        %v11109 = vpop.f32.mrb[0].mxu0
        %v11110 = vadd.f32 %v11037, %v11109
        %v11111 = vpop.f32.mrb[0].mxu0
        %v11112 = vadd.f32 %v11039, %v11111
        %v11113 = vpop.f32.mrb[0].mxu0
        %v11114 = vadd.f32 %v11041, %v11113
        %v11115 = vpop.f32.mrb[0].mxu0
        %v11116 = vadd.f32 %v11043, %v11115
        %11117 = vmatprep.mubr.bf16.mxu0 %v8949
        %11118 = vmatmul.mubr.bf16.gmra.mrb[0].mxu0 %v8941
        %v11119 = vpop.f32.mrb[0].mxu0
        %v11120 = vadd.f32 %v11047, %v11119
        %v11121 = vpop.f32.mrb[0].mxu0
        %v11122 = vadd.f32 %v11049, %v11121
        %v11123 = vpop.f32.mrb[0].mxu0
        %v11124 = vadd.f32 %v11051, %v11123
        %v11125 = vpop.f32.mrb[0].mxu0
        %v11126 = vadd.f32 %v11053, %v11125
        %11127 = vdwg.mxu0
        %11128 = vmatprep.subr.bf16.mxu0 %v10343
        %11129 = vmatpush1.bf16.msra.mxu0 %v10342
        %11130 = vmatprep.subr.bf16.mxu0 %v10347
        %11131 = vmatpush1.bf16.msra.mxu0 %v10346
        %11132 = vmatprep.subr.bf16.mxu0 %v10351
        %11133 = vmatpush1.bf16.msra.mxu0 %v10350
        %11134 = vmatprep.subr.bf16.mxu0 %v10355
        %11135 = vmatpush1.bf16.msra.mxu0 %v10354
        %11136 = vmatprep.subr.bf16.mxu0 %v10359
        %11137 = vmatpush1.bf16.msra.mxu0 %v10358
        %11138 = vmatprep.subr.bf16.mxu0 %v10363
        %11139 = vmatpush1.bf16.msra.mxu0 %v10362
        %11140 = vmatprep.subr.bf16.mxu0 %v10367
        %11141 = vmatpush1.bf16.msra.mxu0 %v10366
        %11142 = vmatprep.subr.bf16.mxu0 %v10371
        %11143 = vmatpush1.bf16.msra.mxu0 %v10370
        %11144 = vmatprep.subr.bf16.mxu0 %v10375
        %11145 = vmatpush1.bf16.msra.mxu0 %v10374
        %11146 = vmatprep.subr.bf16.mxu0 %v10379
        %11147 = vmatpush1.bf16.msra.mxu0 %v10378
        %11148 = vmatprep.subr.bf16.mxu0 %v10383
        %11149 = vmatpush1.bf16.msra.mxu0 %v10382
        %11150 = vmatprep.subr.bf16.mxu0 %v10387
        %11151 = vmatpush1.bf16.msra.mxu0 %v10386
        %11152 = vmatprep.subr.bf16.mxu0 %v10391
        %11153 = vmatpush1.bf16.msra.mxu0 %v10390
        %11154 = vmatprep.subr.bf16.mxu0 %v10395
        %11155 = vmatpush1.bf16.msra.mxu0 %v10394
        %11156 = vmatprep.subr.bf16.mxu0 %v10399
        %11157 = vmatpush1.bf16.msra.mxu0 %v10398
        %11158 = vmatprep.subr.bf16.mxu0 %v10403
        %11159 = vmatpush1.bf16.msra.mxu0 %v10402
        %11160 = vmatprep.mubr.bf16.mxu0 %v8653
        %11161 = vmatmul.mubr.bf16.gmra.mrb[0].mxu0 %v8641
        %v11162 = vpop.f32.mrb[0].mxu0
        %v11163 = vadd.f32 %v11090, %v11162
        %v11164 = vpop.f32.mrb[0].mxu0
        %v11165 = vadd.f32 %v11092, %v11164
        %v11166 = vpop.f32.mrb[0].mxu0
        %v11167 = vadd.f32 %v11094, %v11166
        %v11168 = vpop.f32.mrb[0].mxu0
        %v11169 = vadd.f32 %v11096, %v11168
        %11170 = vmatprep.mubr.bf16.mxu0 %v8773
        %11171 = vmatmul.mubr.bf16.gmra.mrb[0].mxu0 %v8765
        %v11172 = vpop.f32.mrb[0].mxu0
        %v11173 = vadd.f32 %v11100, %v11172
        %v11174 = vpop.f32.mrb[0].mxu0
        %v11175 = vadd.f32 %v11102, %v11174
        %v11176 = vpop.f32.mrb[0].mxu0
        %v11177 = vadd.f32 %v11104, %v11176
        %v11178 = vpop.f32.mrb[0].mxu0
        %v11179 = vadd.f32 %v11106, %v11178
        %11180 = vmatprep.mubr.bf16.mxu0 %v8869
        %11181 = vmatmul.mubr.bf16.gmra.mrb[0].mxu0 %v8861
        %v11182 = vpop.f32.mrb[0].mxu0
        %v11183 = vadd.f32 %v11110, %v11182
        %v11184 = vpop.f32.mrb[0].mxu0
        %v11185 = vadd.f32 %v11112, %v11184
        %v11186 = vpop.f32.mrb[0].mxu0
        %v11187 = vadd.f32 %v11114, %v11186
        %v11188 = vpop.f32.mrb[0].mxu0
        %v11189 = vadd.f32 %v11116, %v11188
        %11190 = vmatprep.mubr.bf16.mxu0 %v8965
        %11191 = vmatmul.mubr.bf16.gmra.mrb[0].mxu0 %v8957
        %v11192 = vpop.f32.mrb[0].mxu0
        %v11193 = vadd.f32 %v11120, %v11192
        %v11194 = vpop.f32.mrb[0].mxu0
        %v11195 = vadd.f32 %v11122, %v11194
        %v11196 = vpop.f32.mrb[0].mxu0
        %v11197 = vadd.f32 %v11124, %v11196
        %v11198 = vpop.f32.mrb[0].mxu0
        %v11199 = vadd.f32 %v11126, %v11198
        %11200 = vdwg.mxu0
        %11201 = vmatprep.subr.bf16.mxu0 %v10407
        %11202 = vmatpush1.bf16.msra.mxu0 %v10406
        %11203 = vmatprep.subr.bf16.mxu0 %v10411
        %11204 = vmatpush1.bf16.msra.mxu0 %v10410
        %11205 = vmatprep.subr.bf16.mxu0 %v10415
        %11206 = vmatpush1.bf16.msra.mxu0 %v10414
        %11207 = vmatprep.subr.bf16.mxu0 %v10419
        %11208 = vmatpush1.bf16.msra.mxu0 %v10418
        %11209 = vmatprep.subr.bf16.mxu0 %v10423
        %11210 = vmatpush1.bf16.msra.mxu0 %v10422
        %11211 = vmatprep.subr.bf16.mxu0 %v10427
        %11212 = vmatpush1.bf16.msra.mxu0 %v10426
        %11213 = vmatprep.subr.bf16.mxu0 %v10431
        %11214 = vmatpush1.bf16.msra.mxu0 %v10430
        %11215 = vmatprep.subr.bf16.mxu0 %v10435
        %11216 = vmatpush1.bf16.msra.mxu0 %v10434
        %11217 = vmatprep.subr.bf16.mxu0 %v10439
        %11218 = vmatpush1.bf16.msra.mxu0 %v10438
        %11219 = vmatprep.subr.bf16.mxu0 %v10443
        %11220 = vmatpush1.bf16.msra.mxu0 %v10442
        %11221 = vmatprep.subr.bf16.mxu0 %v10447
        %11222 = vmatpush1.bf16.msra.mxu0 %v10446
        %11223 = vmatprep.subr.bf16.mxu0 %v10451
        %11224 = vmatpush1.bf16.msra.mxu0 %v10450
        %11225 = vmatprep.subr.bf16.mxu0 %v10455
        %11226 = vmatpush1.bf16.msra.mxu0 %v10454
        %11227 = vmatprep.subr.bf16.mxu0 %v10459
        %11228 = vmatpush1.bf16.msra.mxu0 %v10458
        %11229 = vmatprep.subr.bf16.mxu0 %v10463
        %11230 = vmatpush1.bf16.msra.mxu0 %v10462
        %11231 = vmatprep.subr.bf16.mxu0 %v10467
        %11232 = vmatpush1.bf16.msra.mxu0 %v10466
        %11233 = vmatprep.mubr.bf16.mxu0 %v8677
        %11234 = vmatmul.mubr.bf16.gmra.mrb[0].mxu0 %v8665
        %v11235 = vpop.f32.mrb[0].mxu0
        %v11236 = vadd.f32 %v11163, %v11235
        %v11237 = vpop.f32.mrb[0].mxu0
        %v11238 = vadd.f32 %v11165, %v11237
        %v11239 = vpop.f32.mrb[0].mxu0
        %v11240 = vadd.f32 %v11167, %v11239
        %v11241 = vpop.f32.mrb[0].mxu0
        %v11242 = vadd.f32 %v11169, %v11241
        %11243 = vmatprep.mubr.bf16.mxu0 %v8789
        %11244 = vmatmul.mubr.bf16.gmra.mrb[0].mxu0 %v8781
        %v11245 = vpop.f32.mrb[0].mxu0
        %v11246 = vadd.f32 %v11173, %v11245
        %v11247 = vpop.f32.mrb[0].mxu0
        %v11248 = vadd.f32 %v11175, %v11247
        %v11249 = vpop.f32.mrb[0].mxu0
        %v11250 = vadd.f32 %v11177, %v11249
        %v11251 = vpop.f32.mrb[0].mxu0
        %v11252 = vadd.f32 %v11179, %v11251
        %11253 = vmatprep.mubr.bf16.mxu0 %v8885
        %11254 = vmatmul.mubr.bf16.gmra.mrb[0].mxu0 %v8877
        %v11255 = vpop.f32.mrb[0].mxu0
        %v11256 = vadd.f32 %v11183, %v11255
        %v11257 = vpop.f32.mrb[0].mxu0
        %v11258 = vadd.f32 %v11185, %v11257
        %v11259 = vpop.f32.mrb[0].mxu0
        %v11260 = vadd.f32 %v11187, %v11259
        %v11261 = vpop.f32.mrb[0].mxu0
        %v11262 = vadd.f32 %v11189, %v11261
        %11263 = vmatprep.mubr.bf16.mxu0 %v8981
        %11264 = vmatmul.mubr.bf16.gmra.mrb[0].mxu0 %v8973
        %v11265 = vpop.f32.mrb[0].mxu0
        %v11266 = vadd.f32 %v11193, %v11265
        %v11267 = vpop.f32.mrb[0].mxu0
        %v11268 = vadd.f32 %v11195, %v11267
        %v11269 = vpop.f32.mrb[0].mxu0
        %v11270 = vadd.f32 %v11197, %v11269
        %v11271 = vpop.f32.mrb[0].mxu0
        %v11272 = vadd.f32 %v11199, %v11271
        %11273 = vdwg.mxu0
        %11274 = vmatprep.subr.bf16.mxu0 %v10471
        %11275 = vmatpush1.bf16.msra.mxu0 %v10470
        %11276 = vmatprep.subr.bf16.mxu0 %v10475
        %11277 = vmatpush1.bf16.msra.mxu0 %v10474
        %11278 = vmatprep.subr.bf16.mxu0 %v10479
        %11279 = vmatpush1.bf16.msra.mxu0 %v10478
        %11280 = vmatprep.subr.bf16.mxu0 %v10483
        %11281 = vmatpush1.bf16.msra.mxu0 %v10482
        %11282 = vmatprep.subr.bf16.mxu0 %v10487
        %11283 = vmatpush1.bf16.msra.mxu0 %v10486
        %11284 = vmatprep.subr.bf16.mxu0 %v10491
        %11285 = vmatpush1.bf16.msra.mxu0 %v10490
        %11286 = vmatprep.subr.bf16.mxu0 %v10495
        %11287 = vmatpush1.bf16.msra.mxu0 %v10494
        %11288 = vmatprep.subr.bf16.mxu0 %v10499
        %11289 = vmatpush1.bf16.msra.mxu0 %v10498
        %11290 = vmatprep.subr.bf16.mxu0 %v10503
        %11291 = vmatpush1.bf16.msra.mxu0 %v10502
        %11292 = vmatprep.subr.bf16.mxu0 %v10507
        %11293 = vmatpush1.bf16.msra.mxu0 %v10506
        %11294 = vmatprep.subr.bf16.mxu0 %v10511
        %11295 = vmatpush1.bf16.msra.mxu0 %v10510
        %11296 = vmatprep.subr.bf16.mxu0 %v10515
        %11297 = vmatpush1.bf16.msra.mxu0 %v10514
        %11298 = vmatprep.subr.bf16.mxu0 %v10519
        %11299 = vmatpush1.bf16.msra.mxu0 %v10518
        %11300 = vmatprep.subr.bf16.mxu0 %v10523
        %11301 = vmatpush1.bf16.msra.mxu0 %v10522
        %11302 = vmatprep.subr.bf16.mxu0 %v10527
        %11303 = vmatpush1.bf16.msra.mxu0 %v10526
        %11304 = vmatprep.subr.bf16.mxu0 %v10531
        %11305 = vmatpush1.bf16.msra.mxu0 %v10530
        %11306 = vmatprep.mubr.bf16.mxu0 %v8701
        %11307 = vmatmul.mubr.bf16.gmra.mrb[0].mxu0 %v8689
        %v11308 = vpop.f32.mrb[0].mxu0
        %v11309 = vadd.f32 %v11236, %v11308
        %v11310 = vpop.f32.mrb[0].mxu0
        %v11311 = vadd.f32 %v11238, %v11310
        %v11312 = vpop.f32.mrb[0].mxu0
        %v11313 = vadd.f32 %v11240, %v11312
        %v11314 = vpop.f32.mrb[0].mxu0
        %v11315 = vadd.f32 %v11242, %v11314
        %11316 = vmatprep.mubr.bf16.mxu0 %v8805
        %11317 = vmatmul.mubr.bf16.gmra.mrb[0].mxu0 %v8797
        %v11318 = vpop.f32.mrb[0].mxu0
        %v11319 = vadd.f32 %v11246, %v11318
        %v11320 = vpop.f32.mrb[0].mxu0
        %v11321 = vadd.f32 %v11248, %v11320
        %v11322 = vpop.f32.mrb[0].mxu0
        %v11323 = vadd.f32 %v11250, %v11322
        %v11324 = vpop.f32.mrb[0].mxu0
        %v11325 = vadd.f32 %v11252, %v11324
        %11326 = vmatprep.mubr.bf16.mxu0 %v8901
        %11327 = vmatmul.mubr.bf16.gmra.mrb[0].mxu0 %v8893
        %v11328 = vpop.f32.mrb[0].mxu0
        %v11329 = vadd.f32 %v11256, %v11328
        %v11330 = vpop.f32.mrb[0].mxu0
        %v11331 = vadd.f32 %v11258, %v11330
        %v11332 = vpop.f32.mrb[0].mxu0
        %v11333 = vadd.f32 %v11260, %v11332
        %v11334 = vpop.f32.mrb[0].mxu0
        %v11335 = vadd.f32 %v11262, %v11334
        %11336 = vmatprep.mubr.bf16.mxu0 %v8997
        %11337 = vmatmul.mubr.bf16.gmra.mrb[0].mxu0 %v8989
        %v11338 = vpop.f32.mrb[0].mxu0
        %v11339 = vadd.f32 %v11266, %v11338
        %v11340 = vpop.f32.mrb[0].mxu0
        %v11341 = vadd.f32 %v11268, %v11340
        %v11342 = vpop.f32.mrb[0].mxu0
        %v11343 = vadd.f32 %v11270, %v11342
        %v11344 = vpop.f32.mrb[0].mxu0
        %v11345 = vadd.f32 %v11272, %v11344
        %11346 = vdwg.mxu0
        %11347 = vmatprep.subr.bf16.mxu0 %v10535
        %11348 = vmatpush1.bf16.msra.mxu0 %v10534
        %11349 = vmatprep.subr.bf16.mxu0 %v10539
        %11350 = vmatpush1.bf16.msra.mxu0 %v10538
        %11351 = vmatprep.subr.bf16.mxu0 %v10543
        %11352 = vmatpush1.bf16.msra.mxu0 %v10542
        %11353 = vmatprep.subr.bf16.mxu0 %v10547
        %11354 = vmatpush1.bf16.msra.mxu0 %v10546
        %11355 = vmatprep.subr.bf16.mxu0 %v10551
        %11356 = vmatpush1.bf16.msra.mxu0 %v10550
        %11357 = vmatprep.subr.bf16.mxu0 %v10555
        %11358 = vmatpush1.bf16.msra.mxu0 %v10554
        %11359 = vmatprep.subr.bf16.mxu0 %v10559
        %11360 = vmatpush1.bf16.msra.mxu0 %v10558
        %11361 = vmatprep.subr.bf16.mxu0 %v10563
        %11362 = vmatpush1.bf16.msra.mxu0 %v10562
        %11363 = vmatprep.subr.bf16.mxu0 %v10567
        %11364 = vmatpush1.bf16.msra.mxu0 %v10566
        %11365 = vmatprep.subr.bf16.mxu0 %v10571
        %11366 = vmatpush1.bf16.msra.mxu0 %v10570
        %11367 = vmatprep.subr.bf16.mxu0 %v10575
        %11368 = vmatpush1.bf16.msra.mxu0 %v10574
        %11369 = vmatprep.subr.bf16.mxu0 %v10579
        %11370 = vmatpush1.bf16.msra.mxu0 %v10578
        %11371 = vmatprep.subr.bf16.mxu0 %v10583
        %11372 = vmatpush1.bf16.msra.mxu0 %v10582
        %11373 = vmatprep.subr.bf16.mxu0 %v10587
        %11374 = vmatpush1.bf16.msra.mxu0 %v10586
        %11375 = vmatprep.subr.bf16.mxu0 %v10591
        %11376 = vmatpush1.bf16.msra.mxu0 %v10590
        %11377 = vmatprep.subr.bf16.mxu0 %v10595
        %11378 = vmatpush1.bf16.msra.mxu0 %v10594
        %11379 = vmatprep.mubr.bf16.mxu0 %v8725
        %11380 = vmatmul.mubr.bf16.gmra.mrb[0].mxu0 %v8713
        %v11381 = vpop.f32.mrb[0].mxu0
        %v11382 = vadd.f32 %v11309, %v11381
        %v11383 = vpop.f32.mrb[0].mxu0
        %v11384 = vadd.f32 %v11311, %v11383
        %v11385 = vpop.f32.mrb[0].mxu0
        %v11386 = vadd.f32 %v11313, %v11385
        %v11387 = vpop.f32.mrb[0].mxu0
        %v11388 = vadd.f32 %v11315, %v11387
        %11389 = vmatprep.mubr.bf16.mxu0 %v8821
        %11390 = vmatmul.mubr.bf16.gmra.mrb[0].mxu0 %v8813
        %v11391 = vpop.f32.mrb[0].mxu0
        %v11392 = vadd.f32 %v11319, %v11391
        %v11393 = vpop.f32.mrb[0].mxu0
        %v11394 = vadd.f32 %v11321, %v11393
        %v11395 = vpop.f32.mrb[0].mxu0
        %v11396 = vadd.f32 %v11323, %v11395
        %v11397 = vpop.f32.mrb[0].mxu0
        %v11398 = vadd.f32 %v11325, %v11397
        %11399 = vmatprep.mubr.bf16.mxu0 %v8917
        %11400 = vmatmul.mubr.bf16.gmra.mrb[0].mxu0 %v8909
        %v11401 = vpop.f32.mrb[0].mxu0
        %v11402 = vadd.f32 %v11329, %v11401
        %v11403 = vpop.f32.mrb[0].mxu0
        %v11404 = vadd.f32 %v11331, %v11403
        %v11405 = vpop.f32.mrb[0].mxu0
        %v11406 = vadd.f32 %v11333, %v11405
        %v11407 = vpop.f32.mrb[0].mxu0
        %v11408 = vadd.f32 %v11335, %v11407
        %11409 = vmatprep.mubr.bf16.mxu0 %v9013
        %11410 = vmatmul.mubr.bf16.gmra.mrb[0].mxu0 %v9005
        %v11411 = vpop.f32.mrb[0].mxu0
        %v11412 = vadd.f32 %v11339, %v11411
        %v11413 = vpop.f32.mrb[0].mxu0
        %v11414 = vadd.f32 %v11341, %v11413
        %v11415 = vpop.f32.mrb[0].mxu0
        %v11416 = vadd.f32 %v11343, %v11415
        %v11417 = vpop.f32.mrb[0].mxu0
        %v11418 = vadd.f32 %v11345, %v11417
        %11419 = vdwg.mxu0
        %11420 = vmatprep.subr.bf16.mxu0 %v10217
        %11421 = vmatpush1.bf16.msra.mxu0 %v10216
        %11422 = vmatprep.subr.bf16.mxu0 %v10221
        %11423 = vmatpush1.bf16.msra.mxu0 %v10220
        %11424 = vmatprep.subr.bf16.mxu0 %v10225
        %11425 = vmatpush1.bf16.msra.mxu0 %v10224
        %11426 = vmatprep.subr.bf16.mxu0 %v10229
        %11427 = vmatpush1.bf16.msra.mxu0 %v10228
        %11428 = vmatprep.subr.bf16.mxu0 %v10233
        %11429 = vmatpush1.bf16.msra.mxu0 %v10232
        %11430 = vmatprep.subr.bf16.mxu0 %v10237
        %11431 = vmatpush1.bf16.msra.mxu0 %v10236
        %11432 = vmatprep.subr.bf16.mxu0 %v10241
        %11433 = vmatpush1.bf16.msra.mxu0 %v10240
        %11434 = vmatprep.subr.bf16.mxu0 %v10245
        %11435 = vmatpush1.bf16.msra.mxu0 %v10244
        %11436 = vmatprep.subr.bf16.mxu0 %v10249
        %11437 = vmatpush1.bf16.msra.mxu0 %v10248
        %11438 = vmatprep.subr.bf16.mxu0 %v10253
        %11439 = vmatpush1.bf16.msra.mxu0 %v10252
        %11440 = vmatprep.subr.bf16.mxu0 %v10257
        %11441 = vmatpush1.bf16.msra.mxu0 %v10256
        %11442 = vmatprep.subr.bf16.mxu0 %v10261
        %11443 = vmatpush1.bf16.msra.mxu0 %v10260
        %11444 = vmatprep.subr.bf16.mxu0 %v10265
        %11445 = vmatpush1.bf16.msra.mxu0 %v10264
        %11446 = vmatprep.subr.bf16.mxu0 %v10269
        %11447 = vmatpush1.bf16.msra.mxu0 %v10268
        %11448 = vmatprep.subr.bf16.mxu0 %v10273
        %11449 = vmatpush1.bf16.msra.mxu0 %v10272
        %11450 = vmatprep.subr.bf16.mxu0 %v10277
        %11451 = vmatpush1.bf16.msra.mxu0 %v10276
        %11452 = vmatprep.mubr.bf16.mxu0 %v8605
        %11453 = vmatmul.mubr.bf16.gmra.mrb[0].mxu0 %v8593
        %v11454 = vpop.f32.mrb[0].mxu0
        %v11455 = vadd.f32 0.0, %v11454
        %v11456 = vpop.f32.mrb[0].mxu0
        %v11457 = vadd.f32 0.0, %v11456
        %v11458 = vpop.f32.mrb[0].mxu0
        %v11459 = vadd.f32 0.0, %v11458
        %v11460 = vpop.f32.mrb[0].mxu0
        %v11461 = vadd.f32 0.0, %v11460
        %11462 = vmatprep.mubr.bf16.mxu0 %v8741
        %11463 = vmatmul.mubr.bf16.gmra.mrb[0].mxu0 %v8733
        %v11464 = vpop.f32.mrb[0].mxu0
        %v11465 = vadd.f32 0.0, %v11464
        %v11466 = vpop.f32.mrb[0].mxu0
        %v11467 = vadd.f32 0.0, %v11466
        %v11468 = vpop.f32.mrb[0].mxu0
        %v11469 = vadd.f32 0.0, %v11468
        %v11470 = vpop.f32.mrb[0].mxu0
        %v11471 = vadd.f32 0.0, %v11470
        %11472 = vmatprep.mubr.bf16.mxu0 %v8837
        %11473 = vmatmul.mubr.bf16.gmra.mrb[0].mxu0 %v8829
        %v11474 = vpop.f32.mrb[0].mxu0
        %v11475 = vadd.f32 0.0, %v11474
        %v11476 = vpop.f32.mrb[0].mxu0
        %v11477 = vadd.f32 0.0, %v11476
        %v11478 = vpop.f32.mrb[0].mxu0
        %v11479 = vadd.f32 0.0, %v11478
        %v11480 = vpop.f32.mrb[0].mxu0
        %v11481 = vadd.f32 0.0, %v11480
        %11482 = vmatprep.mubr.bf16.mxu0 %v8933
        %11483 = vmatmul.mubr.bf16.gmra.mrb[0].mxu0 %v8925
        %v11484 = vpop.f32.mrb[0].mxu0
        %v11485 = vadd.f32 0.0, %v11484
        %v11486 = vpop.f32.mrb[0].mxu0
        %v11487 = vadd.f32 0.0, %v11486
        %v11488 = vpop.f32.mrb[0].mxu0
        %v11489 = vadd.f32 0.0, %v11488
        %v11490 = vpop.f32.mrb[0].mxu0
        %v11491 = vadd.f32 0.0, %v11490
        %11492 = vdwg.mxu0
        %11493 = vmatprep.subr.bf16.mxu0 %v10281
        %11494 = vmatpush1.bf16.msra.mxu0 %v10280
        %11495 = vmatprep.subr.bf16.mxu0 %v10285
        %11496 = vmatpush1.bf16.msra.mxu0 %v10284
        %11497 = vmatprep.subr.bf16.mxu0 %v10289
        %11498 = vmatpush1.bf16.msra.mxu0 %v10288
        %11499 = vmatprep.subr.bf16.mxu0 %v10293
        %11500 = vmatpush1.bf16.msra.mxu0 %v10292
        %11501 = vmatprep.subr.bf16.mxu0 %v10297
        %11502 = vmatpush1.bf16.msra.mxu0 %v10296
        %11503 = vmatprep.subr.bf16.mxu0 %v10301
        %11504 = vmatpush1.bf16.msra.mxu0 %v10300
        %11505 = vmatprep.subr.bf16.mxu0 %v10305
        %11506 = vmatpush1.bf16.msra.mxu0 %v10304
        %11507 = vmatprep.subr.bf16.mxu0 %v10309
        %11508 = vmatpush1.bf16.msra.mxu0 %v10308
        %11509 = vmatprep.subr.bf16.mxu0 %v10313
        %11510 = vmatpush1.bf16.msra.mxu0 %v10312
        %11511 = vmatprep.subr.bf16.mxu0 %v10317
        %11512 = vmatpush1.bf16.msra.mxu0 %v10316
        %11513 = vmatprep.subr.bf16.mxu0 %v10321
        %11514 = vmatpush1.bf16.msra.mxu0 %v10320
        %11515 = vmatprep.subr.bf16.mxu0 %v10325
        %11516 = vmatpush1.bf16.msra.mxu0 %v10324
        %11517 = vmatprep.subr.bf16.mxu0 %v10329
        %11518 = vmatpush1.bf16.msra.mxu0 %v10328
        %11519 = vmatprep.subr.bf16.mxu0 %v10333
        %11520 = vmatpush1.bf16.msra.mxu0 %v10332
        %11521 = vmatprep.subr.bf16.mxu0 %v10337
        %11522 = vmatpush1.bf16.msra.mxu0 %v10336
        %11523 = vmatprep.subr.bf16.mxu0 %v10341
        %11524 = vmatpush1.bf16.msra.mxu0 %v10340
        %11525 = vmatprep.mubr.bf16.mxu0 %v8629
        %11526 = vmatmul.mubr.bf16.gmra.mrb[0].mxu0 %v8617
        %v11527 = vpop.f32.mrb[0].mxu0
        %v11528 = vadd.f32 %v11455, %v11527
        %v11529 = vpop.f32.mrb[0].mxu0
        %v11530 = vadd.f32 %v11457, %v11529
        %v11531 = vpop.f32.mrb[0].mxu0
        %v11532 = vadd.f32 %v11459, %v11531
        %v11533 = vpop.f32.mrb[0].mxu0
        %v11534 = vadd.f32 %v11461, %v11533
        %11535 = vmatprep.mubr.bf16.mxu0 %v8757
        %11536 = vmatmul.mubr.bf16.gmra.mrb[0].mxu0 %v8749
        %v11537 = vpop.f32.mrb[0].mxu0
        %v11538 = vadd.f32 %v11465, %v11537
        %v11539 = vpop.f32.mrb[0].mxu0
        %v11540 = vadd.f32 %v11467, %v11539
        %v11541 = vpop.f32.mrb[0].mxu0
        %v11542 = vadd.f32 %v11469, %v11541
        %v11543 = vpop.f32.mrb[0].mxu0
        %v11544 = vadd.f32 %v11471, %v11543
        %11545 = vmatprep.mubr.bf16.mxu0 %v8853
        %11546 = vmatmul.mubr.bf16.gmra.mrb[0].mxu0 %v8845
        %v11547 = vpop.f32.mrb[0].mxu0
        %v11548 = vadd.f32 %v11475, %v11547
        %v11549 = vpop.f32.mrb[0].mxu0
        %v11550 = vadd.f32 %v11477, %v11549
        %v11551 = vpop.f32.mrb[0].mxu0
        %v11552 = vadd.f32 %v11479, %v11551
        %v11553 = vpop.f32.mrb[0].mxu0
        %v11554 = vadd.f32 %v11481, %v11553
        %11555 = vmatprep.mubr.bf16.mxu0 %v8949
        %11556 = vmatmul.mubr.bf16.gmra.mrb[0].mxu0 %v8941
        %v11557 = vpop.f32.mrb[0].mxu0
        %v11558 = vadd.f32 %v11485, %v11557
        %v11559 = vpop.f32.mrb[0].mxu0
        %v11560 = vadd.f32 %v11487, %v11559
        %v11561 = vpop.f32.mrb[0].mxu0
        %v11562 = vadd.f32 %v11489, %v11561
        %v11563 = vpop.f32.mrb[0].mxu0
        %v11564 = vadd.f32 %v11491, %v11563
        %11565 = vdwg.mxu0
        %11566 = vmatprep.subr.bf16.mxu0 %v10345
        %11567 = vmatpush1.bf16.msra.mxu0 %v10344
        %11568 = vmatprep.subr.bf16.mxu0 %v10349
        %11569 = vmatpush1.bf16.msra.mxu0 %v10348
        %11570 = vmatprep.subr.bf16.mxu0 %v10353
        %11571 = vmatpush1.bf16.msra.mxu0 %v10352
        %11572 = vmatprep.subr.bf16.mxu0 %v10357
        %11573 = vmatpush1.bf16.msra.mxu0 %v10356
        %11574 = vmatprep.subr.bf16.mxu0 %v10361
        %11575 = vmatpush1.bf16.msra.mxu0 %v10360
        %11576 = vmatprep.subr.bf16.mxu0 %v10365
        %11577 = vmatpush1.bf16.msra.mxu0 %v10364
        %11578 = vmatprep.subr.bf16.mxu0 %v10369
        %11579 = vmatpush1.bf16.msra.mxu0 %v10368
        %11580 = vmatprep.subr.bf16.mxu0 %v10373
        %11581 = vmatpush1.bf16.msra.mxu0 %v10372
        %11582 = vmatprep.subr.bf16.mxu0 %v10377
        %11583 = vmatpush1.bf16.msra.mxu0 %v10376
        %11584 = vmatprep.subr.bf16.mxu0 %v10381
        %11585 = vmatpush1.bf16.msra.mxu0 %v10380
        %11586 = vmatprep.subr.bf16.mxu0 %v10385
        %11587 = vmatpush1.bf16.msra.mxu0 %v10384
        %11588 = vmatprep.subr.bf16.mxu0 %v10389
        %11589 = vmatpush1.bf16.msra.mxu0 %v10388
        %11590 = vmatprep.subr.bf16.mxu0 %v10393
        %11591 = vmatpush1.bf16.msra.mxu0 %v10392
        %11592 = vmatprep.subr.bf16.mxu0 %v10397
        %11593 = vmatpush1.bf16.msra.mxu0 %v10396
        %11594 = vmatprep.subr.bf16.mxu0 %v10401
        %11595 = vmatpush1.bf16.msra.mxu0 %v10400
        %11596 = vmatprep.subr.bf16.mxu0 %v10405
        %11597 = vmatpush1.bf16.msra.mxu0 %v10404
        %11598 = vmatprep.mubr.bf16.mxu0 %v8653
        %11599 = vmatmul.mubr.bf16.gmra.mrb[0].mxu0 %v8641
        %v11600 = vpop.f32.mrb[0].mxu0
        %v11601 = vadd.f32 %v11528, %v11600
        %v11602 = vpop.f32.mrb[0].mxu0
        %v11603 = vadd.f32 %v11530, %v11602
        %v11604 = vpop.f32.mrb[0].mxu0
        %v11605 = vadd.f32 %v11532, %v11604
        %v11606 = vpop.f32.mrb[0].mxu0
        %v11607 = vadd.f32 %v11534, %v11606
        %11608 = vmatprep.mubr.bf16.mxu0 %v8773
        %11609 = vmatmul.mubr.bf16.gmra.mrb[0].mxu0 %v8765
        %v11610 = vpop.f32.mrb[0].mxu0
        %v11611 = vadd.f32 %v11538, %v11610
        %v11612 = vpop.f32.mrb[0].mxu0
        %v11613 = vadd.f32 %v11540, %v11612
        %v11614 = vpop.f32.mrb[0].mxu0
        %v11615 = vadd.f32 %v11542, %v11614
        %v11616 = vpop.f32.mrb[0].mxu0
        %v11617 = vadd.f32 %v11544, %v11616
        %11618 = vmatprep.mubr.bf16.mxu0 %v8869
        %11619 = vmatmul.mubr.bf16.gmra.mrb[0].mxu0 %v8861
        %v11620 = vpop.f32.mrb[0].mxu0
        %v11621 = vadd.f32 %v11548, %v11620
        %v11622 = vpop.f32.mrb[0].mxu0
        %v11623 = vadd.f32 %v11550, %v11622
        %v11624 = vpop.f32.mrb[0].mxu0
        %v11625 = vadd.f32 %v11552, %v11624
        %v11626 = vpop.f32.mrb[0].mxu0
        %v11627 = vadd.f32 %v11554, %v11626
        %11628 = vmatprep.mubr.bf16.mxu0 %v8965
        %11629 = vmatmul.mubr.bf16.gmra.mrb[0].mxu0 %v8957
        %v11630 = vpop.f32.mrb[0].mxu0
        %v11631 = vadd.f32 %v11558, %v11630
        %v11632 = vpop.f32.mrb[0].mxu0
        %v11633 = vadd.f32 %v11560, %v11632
        %v11634 = vpop.f32.mrb[0].mxu0
        %v11635 = vadd.f32 %v11562, %v11634
        %v11636 = vpop.f32.mrb[0].mxu0
        %v11637 = vadd.f32 %v11564, %v11636
        %11638 = vdwg.mxu0
        %11639 = vmatprep.subr.bf16.mxu0 %v10409
        %11640 = vmatpush1.bf16.msra.mxu0 %v10408
        %11641 = vmatprep.subr.bf16.mxu0 %v10413
        %11642 = vmatpush1.bf16.msra.mxu0 %v10412
        %11643 = vmatprep.subr.bf16.mxu0 %v10417
        %11644 = vmatpush1.bf16.msra.mxu0 %v10416
        %11645 = vmatprep.subr.bf16.mxu0 %v10421
        %11646 = vmatpush1.bf16.msra.mxu0 %v10420
        %11647 = vmatprep.subr.bf16.mxu0 %v10425
        %11648 = vmatpush1.bf16.msra.mxu0 %v10424
        %11649 = vmatprep.subr.bf16.mxu0 %v10429
        %11650 = vmatpush1.bf16.msra.mxu0 %v10428
        %11651 = vmatprep.subr.bf16.mxu0 %v10433
        %11652 = vmatpush1.bf16.msra.mxu0 %v10432
        %11653 = vmatprep.subr.bf16.mxu0 %v10437
        %11654 = vmatpush1.bf16.msra.mxu0 %v10436
        %11655 = vmatprep.subr.bf16.mxu0 %v10441
        %11656 = vmatpush1.bf16.msra.mxu0 %v10440
        %11657 = vmatprep.subr.bf16.mxu0 %v10445
        %11658 = vmatpush1.bf16.msra.mxu0 %v10444
        %11659 = vmatprep.subr.bf16.mxu0 %v10449
        %11660 = vmatpush1.bf16.msra.mxu0 %v10448
        %11661 = vmatprep.subr.bf16.mxu0 %v10453
        %11662 = vmatpush1.bf16.msra.mxu0 %v10452
        %11663 = vmatprep.subr.bf16.mxu0 %v10457
        %11664 = vmatpush1.bf16.msra.mxu0 %v10456
        %11665 = vmatprep.subr.bf16.mxu0 %v10461
        %11666 = vmatpush1.bf16.msra.mxu0 %v10460
        %11667 = vmatprep.subr.bf16.mxu0 %v10465
        %11668 = vmatpush1.bf16.msra.mxu0 %v10464
        %11669 = vmatprep.subr.bf16.mxu0 %v10469
        %11670 = vmatpush1.bf16.msra.mxu0 %v10468
        %11671 = vmatprep.mubr.bf16.mxu0 %v8677
        %11672 = vmatmul.mubr.bf16.gmra.mrb[0].mxu0 %v8665
        %v11673 = vpop.f32.mrb[0].mxu0
        %v11674 = vadd.f32 %v11601, %v11673
        %v11675 = vpop.f32.mrb[0].mxu0
        %v11676 = vadd.f32 %v11603, %v11675
        %v11677 = vpop.f32.mrb[0].mxu0
        %v11678 = vadd.f32 %v11605, %v11677
        %v11679 = vpop.f32.mrb[0].mxu0
        %v11680 = vadd.f32 %v11607, %v11679
        %11681 = vmatprep.mubr.bf16.mxu0 %v8789
        %11682 = vmatmul.mubr.bf16.gmra.mrb[0].mxu0 %v8781
        %v11683 = vpop.f32.mrb[0].mxu0
        %v11684 = vadd.f32 %v11611, %v11683
        %v11685 = vpop.f32.mrb[0].mxu0
        %v11686 = vadd.f32 %v11613, %v11685
        %v11687 = vpop.f32.mrb[0].mxu0
        %v11688 = vadd.f32 %v11615, %v11687
        %v11689 = vpop.f32.mrb[0].mxu0
        %v11690 = vadd.f32 %v11617, %v11689
        %11691 = vmatprep.mubr.bf16.mxu0 %v8885
        %11692 = vmatmul.mubr.bf16.gmra.mrb[0].mxu0 %v8877
        %v11693 = vpop.f32.mrb[0].mxu0
        %v11694 = vadd.f32 %v11621, %v11693
        %v11695 = vpop.f32.mrb[0].mxu0
        %v11696 = vadd.f32 %v11623, %v11695
        %v11697 = vpop.f32.mrb[0].mxu0
        %v11698 = vadd.f32 %v11625, %v11697
        %v11699 = vpop.f32.mrb[0].mxu0
        %v11700 = vadd.f32 %v11627, %v11699
        %11701 = vmatprep.mubr.bf16.mxu0 %v8981
        %11702 = vmatmul.mubr.bf16.gmra.mrb[0].mxu0 %v8973
        %v11703 = vpop.f32.mrb[0].mxu0
        %v11704 = vadd.f32 %v11631, %v11703
        %v11705 = vpop.f32.mrb[0].mxu0
        %v11706 = vadd.f32 %v11633, %v11705
        %v11707 = vpop.f32.mrb[0].mxu0
        %v11708 = vadd.f32 %v11635, %v11707
        %v11709 = vpop.f32.mrb[0].mxu0
        %v11710 = vadd.f32 %v11637, %v11709
        %11711 = vdwg.mxu0
        %11712 = vmatprep.subr.bf16.mxu0 %v10473
        %11713 = vmatpush1.bf16.msra.mxu0 %v10472
        %11714 = vmatprep.subr.bf16.mxu0 %v10477
        %11715 = vmatpush1.bf16.msra.mxu0 %v10476
        %11716 = vmatprep.subr.bf16.mxu0 %v10481
        %11717 = vmatpush1.bf16.msra.mxu0 %v10480
        %11718 = vmatprep.subr.bf16.mxu0 %v10485
        %11719 = vmatpush1.bf16.msra.mxu0 %v10484
        %11720 = vmatprep.subr.bf16.mxu0 %v10489
        %11721 = vmatpush1.bf16.msra.mxu0 %v10488
        %11722 = vmatprep.subr.bf16.mxu0 %v10493
        %11723 = vmatpush1.bf16.msra.mxu0 %v10492
        %11724 = vmatprep.subr.bf16.mxu0 %v10497
        %11725 = vmatpush1.bf16.msra.mxu0 %v10496
        %11726 = vmatprep.subr.bf16.mxu0 %v10501
        %11727 = vmatpush1.bf16.msra.mxu0 %v10500
        %11728 = vmatprep.subr.bf16.mxu0 %v10505
        %11729 = vmatpush1.bf16.msra.mxu0 %v10504
        %11730 = vmatprep.subr.bf16.mxu0 %v10509
        %11731 = vmatpush1.bf16.msra.mxu0 %v10508
        %11732 = vmatprep.subr.bf16.mxu0 %v10513
        %11733 = vmatpush1.bf16.msra.mxu0 %v10512
        %11734 = vmatprep.subr.bf16.mxu0 %v10517
        %11735 = vmatpush1.bf16.msra.mxu0 %v10516
        %11736 = vmatprep.subr.bf16.mxu0 %v10521
        %11737 = vmatpush1.bf16.msra.mxu0 %v10520
        %11738 = vmatprep.subr.bf16.mxu0 %v10525
        %11739 = vmatpush1.bf16.msra.mxu0 %v10524
        %11740 = vmatprep.subr.bf16.mxu0 %v10529
        %11741 = vmatpush1.bf16.msra.mxu0 %v10528
        %11742 = vmatprep.subr.bf16.mxu0 %v10533
        %11743 = vmatpush1.bf16.msra.mxu0 %v10532
        %11744 = vmatprep.mubr.bf16.mxu0 %v8701
        %11745 = vmatmul.mubr.bf16.gmra.mrb[0].mxu0 %v8689
        %v11746 = vpop.f32.mrb[0].mxu0
        %v11747 = vadd.f32 %v11674, %v11746
        %v11748 = vpop.f32.mrb[0].mxu0
        %v11749 = vadd.f32 %v11676, %v11748
        %v11750 = vpop.f32.mrb[0].mxu0
        %v11751 = vadd.f32 %v11678, %v11750
        %v11752 = vpop.f32.mrb[0].mxu0
        %v11753 = vadd.f32 %v11680, %v11752
        %11754 = vmatprep.mubr.bf16.mxu0 %v8805
        %11755 = vmatmul.mubr.bf16.gmra.mrb[0].mxu0 %v8797
        %v11756 = vpop.f32.mrb[0].mxu0
        %v11757 = vadd.f32 %v11684, %v11756
        %v11758 = vpop.f32.mrb[0].mxu0
        %v11759 = vadd.f32 %v11686, %v11758
        %v11760 = vpop.f32.mrb[0].mxu0
        %v11761 = vadd.f32 %v11688, %v11760
        %v11762 = vpop.f32.mrb[0].mxu0
        %v11763 = vadd.f32 %v11690, %v11762
        %11764 = vmatprep.mubr.bf16.mxu0 %v8901
        %11765 = vmatmul.mubr.bf16.gmra.mrb[0].mxu0 %v8893
        %v11766 = vpop.f32.mrb[0].mxu0
        %v11767 = vadd.f32 %v11694, %v11766
        %v11768 = vpop.f32.mrb[0].mxu0
        %v11769 = vadd.f32 %v11696, %v11768
        %v11770 = vpop.f32.mrb[0].mxu0
        %v11771 = vadd.f32 %v11698, %v11770
        %v11772 = vpop.f32.mrb[0].mxu0
        %v11773 = vadd.f32 %v11700, %v11772
        %11774 = vmatprep.mubr.bf16.mxu0 %v8997
        %11775 = vmatmul.mubr.bf16.gmra.mrb[0].mxu0 %v8989
        %v11776 = vpop.f32.mrb[0].mxu0
        %v11777 = vadd.f32 %v11704, %v11776
        %v11778 = vpop.f32.mrb[0].mxu0
        %v11779 = vadd.f32 %v11706, %v11778
        %v11780 = vpop.f32.mrb[0].mxu0
        %v11781 = vadd.f32 %v11708, %v11780
        %v11782 = vpop.f32.mrb[0].mxu0
        %v11783 = vadd.f32 %v11710, %v11782
        %11784 = vdwg.mxu0
        %11785 = vmatprep.subr.bf16.mxu0 %v10537
        %11786 = vmatpush1.bf16.msra.mxu0 %v10536
        %11787 = vmatprep.subr.bf16.mxu0 %v10541
        %11788 = vmatpush1.bf16.msra.mxu0 %v10540
        %11789 = vmatprep.subr.bf16.mxu0 %v10545
        %11790 = vmatpush1.bf16.msra.mxu0 %v10544
        %11791 = vmatprep.subr.bf16.mxu0 %v10549
        %11792 = vmatpush1.bf16.msra.mxu0 %v10548
        %11793 = vmatprep.subr.bf16.mxu0 %v10553
        %11794 = vmatpush1.bf16.msra.mxu0 %v10552
        %11795 = vmatprep.subr.bf16.mxu0 %v10557
        %11796 = vmatpush1.bf16.msra.mxu0 %v10556
        %11797 = vmatprep.subr.bf16.mxu0 %v10561
        %11798 = vmatpush1.bf16.msra.mxu0 %v10560
        %11799 = vmatprep.subr.bf16.mxu0 %v10565
        %11800 = vmatpush1.bf16.msra.mxu0 %v10564
        %11801 = vmatprep.subr.bf16.mxu0 %v10569
        %11802 = vmatpush1.bf16.msra.mxu0 %v10568
        %11803 = vmatprep.subr.bf16.mxu0 %v10573
        %11804 = vmatpush1.bf16.msra.mxu0 %v10572
        %11805 = vmatprep.subr.bf16.mxu0 %v10577
        %11806 = vmatpush1.bf16.msra.mxu0 %v10576
        %11807 = vmatprep.subr.bf16.mxu0 %v10581
        %11808 = vmatpush1.bf16.msra.mxu0 %v10580
        %11809 = vmatprep.subr.bf16.mxu0 %v10585
        %11810 = vmatpush1.bf16.msra.mxu0 %v10584
        %11811 = vmatprep.subr.bf16.mxu0 %v10589
        %11812 = vmatpush1.bf16.msra.mxu0 %v10588
        %11813 = vmatprep.subr.bf16.mxu0 %v10593
        %11814 = vmatpush1.bf16.msra.mxu0 %v10592
        %11815 = vmatprep.subr.bf16.mxu0 %v10597
        %11816 = vmatpush1.bf16.msra.mxu0 %v10596
        %11817 = vmatprep.mubr.bf16.mxu0 %v8725
        %11818 = vmatmul.mubr.bf16.gmra.mrb[0].mxu0 %v8713
        %v11819 = vpop.f32.mrb[0].mxu0
        %v11820 = vadd.f32 %v11747, %v11819
        %v11821 = vpop.f32.mrb[0].mxu0
        %v11822 = vadd.f32 %v11749, %v11821
        %v11823 = vpop.f32.mrb[0].mxu0
        %v11824 = vadd.f32 %v11751, %v11823
        %v11825 = vpop.f32.mrb[0].mxu0
        %v11826 = vadd.f32 %v11753, %v11825
        %11827 = vmatprep.mubr.bf16.mxu0 %v8821
        %11828 = vmatmul.mubr.bf16.gmra.mrb[0].mxu0 %v8813
        %v11829 = vpop.f32.mrb[0].mxu0
        %v11830 = vadd.f32 %v11757, %v11829
        %v11831 = vpop.f32.mrb[0].mxu0
        %v11832 = vadd.f32 %v11759, %v11831
        %v11833 = vpop.f32.mrb[0].mxu0
        %v11834 = vadd.f32 %v11761, %v11833
        %v11835 = vpop.f32.mrb[0].mxu0
        %v11836 = vadd.f32 %v11763, %v11835
        %11837 = vmatprep.mubr.bf16.mxu0 %v8917
        %11838 = vmatmul.mubr.bf16.gmra.mrb[0].mxu0 %v8909
        %v11839 = vpop.f32.mrb[0].mxu0
        %v11840 = vadd.f32 %v11767, %v11839
        %v11841 = vpop.f32.mrb[0].mxu0
        %v11842 = vadd.f32 %v11769, %v11841
        %v11843 = vpop.f32.mrb[0].mxu0
        %v11844 = vadd.f32 %v11771, %v11843
        %v11845 = vpop.f32.mrb[0].mxu0
        %v11846 = vadd.f32 %v11773, %v11845
        %11847 = vmatprep.mubr.bf16.mxu0 %v9013
        %11848 = vmatmul.mubr.bf16.gmra.mrb[0].mxu0 %v9005
        %v11849 = vpop.f32.mrb[0].mxu0
        %v11850 = vadd.f32 %v11777, %v11849
        %v11851 = vpop.f32.mrb[0].mxu0
        %v11852 = vadd.f32 %v11779, %v11851
        %v11853 = vpop.f32.mrb[0].mxu0
        %v11854 = vadd.f32 %v11781, %v11853
        %v11855 = vpop.f32.mrb[0].mxu0
        %v11856 = vadd.f32 %v11783, %v11855
        %11857 = vdwg.mxu0
        %v11858 = vld [vmem:[#allocation3] sm:$0xff]
        %v11859 = vld [vmem:[#allocation3 + $0x8] sm:$0xff]
        %v11860 = vld [vmem:[#allocation3 + $0x10] sm:$0xff]
        %v11861 = vld [vmem:[#allocation3 + $0x18] sm:$0xff]
        %v11862 = vld [vmem:[#allocation3 + $0x20] sm:$0xff]
        %v11863 = vld [vmem:[#allocation3 + $0x28] sm:$0xff]
        %v11864 = vld [vmem:[#allocation3 + $0x30] sm:$0xff]
        %v11865 = vld [vmem:[#allocation3 + $0x38] sm:$0xff]
        %v11866 = vld [vmem:[#allocation3 + $0x40] sm:$0xff]
        %v11867 = vld [vmem:[#allocation3 + $0x48] sm:$0xff]
        %v11868 = vld [vmem:[#allocation3 + $0x50] sm:$0xff]
        %v11869 = vld [vmem:[#allocation3 + $0x58] sm:$0xff]
        %v11870 = vld [vmem:[#allocation3 + $0x60] sm:$0xff]
        %v11871 = vld [vmem:[#allocation3 + $0x68] sm:$0xff]
        %v11872 = vld [vmem:[#allocation3 + $0x70] sm:$0xff]
        %v11873 = vld [vmem:[#allocation3 + $0x78] sm:$0xff]
        %v11874 = vld [vmem:[#allocation3 + $0x80] sm:$0xff]
        %v11875 = vld [vmem:[#allocation3 + $0x88] sm:$0xff]
        %v11876 = vld [vmem:[#allocation3 + $0x90] sm:$0xff]
        %v11877 = vld [vmem:[#allocation3 + $0x98] sm:$0xff]
        %v11878 = vld [vmem:[#allocation3 + $0xa0] sm:$0xff]
        %v11879 = vld [vmem:[#allocation3 + $0xa8] sm:$0xff]
        %v11880 = vld [vmem:[#allocation3 + $0xb0] sm:$0xff]
        %v11881 = vld [vmem:[#allocation3 + $0xb8] sm:$0xff]
        %v11882 = vld [vmem:[#allocation3 + $0xc0] sm:$0xff]
        %v11883 = vld [vmem:[#allocation3 + $0xc8] sm:$0xff]
        %v11884 = vld [vmem:[#allocation3 + $0xd0] sm:$0xff]
        %v11885 = vld [vmem:[#allocation3 + $0xd8] sm:$0xff]
        %v11886 = vld [vmem:[#allocation3 + $0xe0] sm:$0xff]
        %v11887 = vld [vmem:[#allocation3 + $0xe8] sm:$0xff]
        %v11888 = vld [vmem:[#allocation3 + $0xf0] sm:$0xff]
        %v11889 = vld [vmem:[#allocation3 + $0xf8] sm:$0xff]
        %v11890 = vadd.f32 %v11858, %v11382
        %v11891 = vadd.f32 %v11859, %v11384
        %v11892 = vadd.f32 %v11860, %v11820
        %v11893 = vadd.f32 %v11861, %v11822
        %v11894 = vadd.f32 %v11862, %v11386
        %v11895 = vadd.f32 %v11863, %v11388
        %v11896 = vadd.f32 %v11864, %v11824
        %v11897 = vadd.f32 %v11865, %v11826
        %v11898 = vadd.f32 %v11866, %v11392
        %v11899 = vadd.f32 %v11867, %v11394
        %v11900 = vadd.f32 %v11868, %v11830
        %v11901 = vadd.f32 %v11869, %v11832
        %v11902 = vadd.f32 %v11870, %v11396
        %v11903 = vadd.f32 %v11871, %v11398
        %v11904 = vadd.f32 %v11872, %v11834
        %v11905 = vadd.f32 %v11873, %v11836
        %v11906 = vadd.f32 %v11874, %v11402
        %v11907 = vadd.f32 %v11875, %v11404
        %v11908 = vadd.f32 %v11876, %v11840
        %v11909 = vadd.f32 %v11877, %v11842
        %v11910 = vadd.f32 %v11878, %v11406
        %v11911 = vadd.f32 %v11879, %v11408
        %v11912 = vadd.f32 %v11880, %v11844
        %v11913 = vadd.f32 %v11881, %v11846
        %v11914 = vadd.f32 %v11882, %v11412
        %v11915 = vadd.f32 %v11883, %v11414
        %v11916 = vadd.f32 %v11884, %v11850
        %v11917 = vadd.f32 %v11885, %v11852
        %v11918 = vadd.f32 %v11886, %v11416
        %v11919 = vadd.f32 %v11887, %v11418
        %v11920 = vadd.f32 %v11888, %v11854
        %v11921 = vadd.f32 %v11889, %v11856
        %11922 = vst [vmem:[#allocation3] sm:$0xff] %v11890
        %11923 = vst [vmem:[#allocation3 + $0x8] sm:$0xff] %v11891
        %11924 = vst [vmem:[#allocation3 + $0x10] sm:$0xff] %v11892
        %11925 = vst [vmem:[#allocation3 + $0x18] sm:$0xff] %v11893
        %11926 = vst [vmem:[#allocation3 + $0x20] sm:$0xff] %v11894
        %11927 = vst [vmem:[#allocation3 + $0x28] sm:$0xff] %v11895
        %11928 = vst [vmem:[#allocation3 + $0x30] sm:$0xff] %v11896
        %11929 = vst [vmem:[#allocation3 + $0x38] sm:$0xff] %v11897
        %11930 = vst [vmem:[#allocation3 + $0x40] sm:$0xff] %v11898
        %11931 = vst [vmem:[#allocation3 + $0x48] sm:$0xff] %v11899
        %11932 = vst [vmem:[#allocation3 + $0x50] sm:$0xff] %v11900
        %11933 = vst [vmem:[#allocation3 + $0x58] sm:$0xff] %v11901
        %11934 = vst [vmem:[#allocation3 + $0x60] sm:$0xff] %v11902
        %11935 = vst [vmem:[#allocation3 + $0x68] sm:$0xff] %v11903
        %11936 = vst [vmem:[#allocation3 + $0x70] sm:$0xff] %v11904
        %11937 = vst [vmem:[#allocation3 + $0x78] sm:$0xff] %v11905
        %11938 = vst [vmem:[#allocation3 + $0x80] sm:$0xff] %v11906
        %11939 = vst [vmem:[#allocation3 + $0x88] sm:$0xff] %v11907
        %11940 = vst [vmem:[#allocation3 + $0x90] sm:$0xff] %v11908
        %11941 = vst [vmem:[#allocation3 + $0x98] sm:$0xff] %v11909
        %11942 = vst [vmem:[#allocation3 + $0xa0] sm:$0xff] %v11910
        %11943 = vst [vmem:[#allocation3 + $0xa8] sm:$0xff] %v11911
        %11944 = vst [vmem:[#allocation3 + $0xb0] sm:$0xff] %v11912
        %11945 = vst [vmem:[#allocation3 + $0xb8] sm:$0xff] %v11913
        %11946 = vst [vmem:[#allocation3 + $0xc0] sm:$0xff] %v11914
        %11947 = vst [vmem:[#allocation3 + $0xc8] sm:$0xff] %v11915
        %11948 = vst [vmem:[#allocation3 + $0xd0] sm:$0xff] %v11916
        %11949 = vst [vmem:[#allocation3 + $0xd8] sm:$0xff] %v11917
        %11950 = vst [vmem:[#allocation3 + $0xe0] sm:$0xff] %v11918
        %11951 = vst [vmem:[#allocation3 + $0xe8] sm:$0xff] %v11919
        %11952 = vst [vmem:[#allocation3 + $0xf0] sm:$0xff] %v11920
        %11953 = vst [vmem:[#allocation3 + $0xf8] sm:$0xff] %v11921
        %v11954 = vld [vmem:[#allocation3] sm:$0xff]
        %v11955 = vld [vmem:[#allocation3 + $0x8] sm:$0xff]
        %v11956 = vld [vmem:[#allocation3 + $0x10] sm:$0xff]
        %v11957 = vld [vmem:[#allocation3 + $0x18] sm:$0xff]
        %v11958 = vld [vmem:[#allocation3 + $0x20] sm:$0xff]
        %v11959 = vld [vmem:[#allocation3 + $0x28] sm:$0xff]
        %v11960 = vld [vmem:[#allocation3 + $0x30] sm:$0xff]
        %v11961 = vld [vmem:[#allocation3 + $0x38] sm:$0xff]
        %v11962 = vld [vmem:[#allocation3 + $0x40] sm:$0xff]
        %v11963 = vld [vmem:[#allocation3 + $0x48] sm:$0xff]
        %v11964 = vld [vmem:[#allocation3 + $0x50] sm:$0xff]
        %v11965 = vld [vmem:[#allocation3 + $0x58] sm:$0xff]
        %v11966 = vld [vmem:[#allocation3 + $0x60] sm:$0xff]
        %v11967 = vld [vmem:[#allocation3 + $0x68] sm:$0xff]
        %v11968 = vld [vmem:[#allocation3 + $0x70] sm:$0xff]
        %v11969 = vld [vmem:[#allocation3 + $0x78] sm:$0xff]
        %v11970 = vld [vmem:[#allocation3 + $0x80] sm:$0xff]
        %v11971 = vld [vmem:[#allocation3 + $0x88] sm:$0xff]
        %v11972 = vld [vmem:[#allocation3 + $0x90] sm:$0xff]
        %v11973 = vld [vmem:[#allocation3 + $0x98] sm:$0xff]
        %v11974 = vld [vmem:[#allocation3 + $0xa0] sm:$0xff]
        %v11975 = vld [vmem:[#allocation3 + $0xa8] sm:$0xff]
        %v11976 = vld [vmem:[#allocation3 + $0xb0] sm:$0xff]
        %v11977 = vld [vmem:[#allocation3 + $0xb8] sm:$0xff]
        %v11978 = vld [vmem:[#allocation3 + $0xc0] sm:$0xff]
        %v11979 = vld [vmem:[#allocation3 + $0xc8] sm:$0xff]
        %v11980 = vld [vmem:[#allocation3 + $0xd0] sm:$0xff]
        %v11981 = vld [vmem:[#allocation3 + $0xd8] sm:$0xff]
        %v11982 = vld [vmem:[#allocation3 + $0xe0] sm:$0xff]
        %v11983 = vld [vmem:[#allocation3 + $0xe8] sm:$0xff]
        %v11984 = vld [vmem:[#allocation3 + $0xf0] sm:$0xff]
        %v11985 = vld [vmem:[#allocation3 + $0xf8] sm:$0xff]
        %v11986 = vld [vmem:[#allocation9] sm:$0xf]
        %v11988 = vlaneseq
        %v11989 = vshrl.u32 %v11988, 7
        %v11990 = vsub.s32 0, %v11989
        %v11991 = vrot.slane %v11986, %v11990
        %v11992 = vlaneseq
        %v11993 = vshrl.u32 %v11992, 7
        %v11994 = vsub.s32 1, %v11993
        %v11995 = vrot.slane %v11986, %v11994
        %v11996 = vlaneseq
        %v11997 = vshrl.u32 %v11996, 7
        %v11998 = vsub.s32 2, %v11997
        %v11999 = vrot.slane %v11986, %v11998
        %v12000 = vlaneseq
        %v12001 = vshrl.u32 %v12000, 7
        %v12002 = vsub.s32 3, %v12001
        %v12003 = vrot.slane %v11986, %v12002
        %v12008 = vadd.f32 %v11954, %v11991
        %v12009 = vadd.f32 %v11955, %v11995
        %v12010 = vadd.f32 %v11956, %v11999
        %v12011 = vadd.f32 %v11957, %v12003
        %v12012 = vadd.f32 %v11958, %v11991
        %v12013 = vadd.f32 %v11959, %v11995
        %v12014 = vadd.f32 %v11960, %v11999
        %v12015 = vadd.f32 %v11961, %v12003
        %v12016 = vadd.f32 %v11962, %v11991
        %v12017 = vadd.f32 %v11963, %v11995
        %v12018 = vadd.f32 %v11964, %v11999
        %v12019 = vadd.f32 %v11965, %v12003
        %v12020 = vadd.f32 %v11966, %v11991
        %v12021 = vadd.f32 %v11967, %v11995
        %v12022 = vadd.f32 %v11968, %v11999
        %v12023 = vadd.f32 %v11969, %v12003
        %v12024 = vadd.f32 %v11970, %v11991
        %v12025 = vadd.f32 %v11971, %v11995
        %v12026 = vadd.f32 %v11972, %v11999
        %v12027 = vadd.f32 %v11973, %v12003
        %v12028 = vadd.f32 %v11974, %v11991
        %v12029 = vadd.f32 %v11975, %v11995
        %v12030 = vadd.f32 %v11976, %v11999
        %v12031 = vadd.f32 %v11977, %v12003
        %v12032 = vadd.f32 %v11978, %v11991
        %v12033 = vadd.f32 %v11979, %v11995
        %v12034 = vadd.f32 %v11980, %v11999
        %v12035 = vadd.f32 %v11981, %v12003
        %v12036 = vadd.f32 %v11982, %v11991
        %v12037 = vadd.f32 %v11983, %v11995
        %v12038 = vadd.f32 %v11984, %v11999
        %v12039 = vadd.f32 %v11985, %v12003
        %v12040 = vpack.c.bf16 %v12012, %v12008
        %v12041 = vpack.c.bf16 %v12013, %v12009
        %v12042 = vpack.c.bf16 %v12014, %v12010
        %v12043 = vpack.c.bf16 %v12015, %v12011
        %v12044 = vpack.c.bf16 %v12020, %v12016
        %v12045 = vpack.c.bf16 %v12021, %v12017
        %v12046 = vpack.c.bf16 %v12022, %v12018
        %v12047 = vpack.c.bf16 %v12023, %v12019
        %v12048 = vpack.c.bf16 %v12028, %v12024
        %v12049 = vpack.c.bf16 %v12029, %v12025
        %v12050 = vpack.c.bf16 %v12030, %v12026
        %v12051 = vpack.c.bf16 %v12031, %v12027
        %v12052 = vpack.c.bf16 %v12036, %v12032
        %v12053 = vpack.c.bf16 %v12037, %v12033
        %v12054 = vpack.c.bf16 %v12038, %v12034
        %v12055 = vpack.c.bf16 %v12039, %v12035
        %v12072 = vunpack.c.l.b16 %v12040
        %v12073 = vunpack.c.l.b16 %v12041
        %v12074 = vunpack.c.l.b16 %v12042
        %v12075 = vunpack.c.l.b16 %v12043
        %v12076 = vunpack.c.h.b16 %v12040
        %v12077 = vunpack.c.h.b16 %v12041
        %v12078 = vunpack.c.h.b16 %v12042
        %v12079 = vunpack.c.h.b16 %v12043
        %v12080 = vunpack.c.l.b16 %v12044
        %v12081 = vunpack.c.l.b16 %v12045
        %v12082 = vunpack.c.l.b16 %v12046
        %v12083 = vunpack.c.l.b16 %v12047
        %v12084 = vunpack.c.h.b16 %v12044
        %v12085 = vunpack.c.h.b16 %v12045
        %v12086 = vunpack.c.h.b16 %v12046
        %v12087 = vunpack.c.h.b16 %v12047
        %v12088 = vunpack.c.l.b16 %v12048
        %v12089 = vunpack.c.l.b16 %v12049
        %v12090 = vunpack.c.l.b16 %v12050
        %v12091 = vunpack.c.l.b16 %v12051
        %v12092 = vunpack.c.h.b16 %v12048
        %v12093 = vunpack.c.h.b16 %v12049
        %v12094 = vunpack.c.h.b16 %v12050
        %v12095 = vunpack.c.h.b16 %v12051
        %v12096 = vunpack.c.l.b16 %v12052
        %v12097 = vunpack.c.l.b16 %v12053
        %v12098 = vunpack.c.l.b16 %v12054
        %v12099 = vunpack.c.l.b16 %v12055
        %v12100 = vunpack.c.h.b16 %v12052
        %v12101 = vunpack.c.h.b16 %v12053
        %v12102 = vunpack.c.h.b16 %v12054
        %v12103 = vunpack.c.h.b16 %v12055
        %v12104 = vpack.c.b16 %v12073, %v12072
        %v12105 = vpack.c.b16 %v12075, %v12074
        %v12106 = vpack.c.b16 %v12077, %v12076
        %v12107 = vpack.c.b16 %v12079, %v12078
        %v12108 = vpack.c.b16 %v12081, %v12080
        %v12109 = vpack.c.b16 %v12083, %v12082
        %v12110 = vpack.c.b16 %v12085, %v12084
        %v12111 = vpack.c.b16 %v12087, %v12086
        %v12112 = vpack.c.b16 %v12089, %v12088
        %v12113 = vpack.c.b16 %v12091, %v12090
        %v12114 = vpack.c.b16 %v12093, %v12092
        %v12115 = vpack.c.b16 %v12095, %v12094
        %v12116 = vpack.c.b16 %v12097, %v12096
        %v12117 = vpack.c.b16 %v12099, %v12098
        %v12118 = vpack.c.b16 %v12101, %v12100
        %v12119 = vpack.c.b16 %v12103, %v12102
        %12136 = vst [vmem:[%s300] sm:$0xff] %v12104
        %12137 = vst [vmem:[%s300 + $0x8] sm:$0xff] %v12105
        %12138 = vst [vmem:[%s300 + $0x10] sm:$0xff] %v12106
        %12139 = vst [vmem:[%s300 + $0x18] sm:$0xff] %v12107
        %12140 = vst [vmem:[%s300 + $0x20] sm:$0xff] %v12108
        %12141 = vst [vmem:[%s300 + $0x28] sm:$0xff] %v12109
        %12142 = vst [vmem:[%s300 + $0x30] sm:$0xff] %v12110
        %12143 = vst [vmem:[%s300 + $0x38] sm:$0xff] %v12111
        %12144 = vst [vmem:[%s300 + $0x40] sm:$0xff] %v12112
        %12145 = vst [vmem:[%s300 + $0x48] sm:$0xff] %v12113
        %12146 = vst [vmem:[%s300 + $0x50] sm:$0xff] %v12114
        %12147 = vst [vmem:[%s300 + $0x58] sm:$0xff] %v12115
        %12148 = vst [vmem:[%s300 + $0x60] sm:$0xff] %v12116
        %12149 = vst [vmem:[%s300 + $0x68] sm:$0xff] %v12117
        %12150 = vst [vmem:[%s300 + $0x70] sm:$0xff] %v12118
        %12151 = vst [vmem:[%s300 + $0x78] sm:$0xff] %v12119
        %v12152 = vadd.f32 %v12008, %v12012
        %v12153 = vadd.f32 %v12152, %v12016
        %v12154 = vadd.f32 %v12153, %v12020
        %v12155 = vadd.f32 %v12154, %v12024
        %v12156 = vadd.f32 %v12155, %v12028
        %v12157 = vadd.f32 %v12156, %v12032
        %v12158 = vadd.f32 %v12157, %v12036
        %v12159 = vrot.slane %v12158, 4
        %v12160 = vadd.f32 %v12158, %v12159
        %v12161 = vrot.slane %v12160, 2
        %v12162 = vadd.f32 %v12160, %v12161
        %v12163 = vrot.slane %v12162, 1
        %v12164 = vadd.f32 %v12162, %v12163
        %v12165 = vadd.f32 %v12009, %v12013
        %v12166 = vadd.f32 %v12165, %v12017
        %v12167 = vadd.f32 %v12166, %v12021
        %v12168 = vadd.f32 %v12167, %v12025
        %v12169 = vadd.f32 %v12168, %v12029
        %v12170 = vadd.f32 %v12169, %v12033
        %v12171 = vadd.f32 %v12170, %v12037
        %v12172 = vrot.slane %v12171, 4
        %v12173 = vadd.f32 %v12171, %v12172
        %v12174 = vrot.slane %v12173, 2
        %v12175 = vadd.f32 %v12173, %v12174
        %v12176 = vrot.slane %v12175, 1
        %v12177 = vadd.f32 %v12175, %v12176
        %v12178 = vadd.f32 %v12010, %v12014
        %v12179 = vadd.f32 %v12178, %v12018
        %v12180 = vadd.f32 %v12179, %v12022
        %v12181 = vadd.f32 %v12180, %v12026
        %v12182 = vadd.f32 %v12181, %v12030
        %v12183 = vadd.f32 %v12182, %v12034
        %v12184 = vadd.f32 %v12183, %v12038
        %v12185 = vrot.slane %v12184, 4
        %v12186 = vadd.f32 %v12184, %v12185
        %v12187 = vrot.slane %v12186, 2
        %v12188 = vadd.f32 %v12186, %v12187
        %v12189 = vrot.slane %v12188, 1
        %v12190 = vadd.f32 %v12188, %v12189
        %v12191 = vadd.f32 %v12011, %v12015
        %v12192 = vadd.f32 %v12191, %v12019
        %v12193 = vadd.f32 %v12192, %v12023
        %v12194 = vadd.f32 %v12193, %v12027
        %v12195 = vadd.f32 %v12194, %v12031
        %v12196 = vadd.f32 %v12195, %v12035
        %v12197 = vadd.f32 %v12196, %v12039
        %v12198 = vrot.slane %v12197, 4
        %v12199 = vadd.f32 %v12197, %v12198
        %v12200 = vrot.slane %v12199, 2
        %v12201 = vadd.f32 %v12199, %v12200
        %v12202 = vrot.slane %v12201, 1
        %v12203 = vadd.f32 %v12201, %v12202
        %v12208 = vcombine.low %v12164, %v12177
        %v12209 = vcombine.low %v12190, %v12203
        %v12211 = vunpack.c.l.s4 1966171168
        %v12212 = vunpack.c.0.s8 %v12211
        %v12213 = vlaneseq
        %v12214 = vshrl.u32 %v12213, 7
        %v12215 = vsub.s32 %v12212, %v12214
        %v12216 = vrot.slane %v12208, %v12215
        %v12218 = vunpack.c.l.s4 1966171168
        %v12219 = vunpack.c.0.s8 %v12218
        %v12220 = vlaneseq
        %v12221 = vshrl.u32 %v12220, 7
        %v12222 = vsub.s32 %v12219, %v12221
        %v12223 = vrot.slane %v12209, %v12222
        %v12224 = vcombine.low %v12216, %v12223
        %v12226 = vunpack.c.l.s4 1966171168
        %v12227 = vunpack.c.0.s8 %v12226
        %v12228 = vlaneseq
        %v12229 = vshrl.u32 %v12228, 7
        %v12230 = vsub.s32 %v12227, %v12229
        %v12231 = vrot.slane %v12224, %v12230
        %v12233 = vlaneseq
        %vm12234 = vcmp.ge.s32.totalorder %v12233, 0
        %vm12235 = vcmp.lt.s32.totalorder %v12233, 512
        %vm12236 = vmand %vm12234, %vm12235
        %12237 = vst.msk [vmem:[%s307] sm:$0xf] %vm12236, %v12231
        %v12238 = vmul.f32 %v12008, %v12008
        %v12239 = vmul.f32 %v12009, %v12009
        %v12240 = vmul.f32 %v12010, %v12010
        %v12241 = vmul.f32 %v12011, %v12011
        %v12242 = vmul.f32 %v12012, %v12012
        %v12243 = vmul.f32 %v12013, %v12013
        %v12244 = vmul.f32 %v12014, %v12014
        %v12245 = vmul.f32 %v12015, %v12015
        %v12246 = vmul.f32 %v12016, %v12016
        %v12247 = vmul.f32 %v12017, %v12017
        %v12248 = vmul.f32 %v12018, %v12018
        %v12249 = vmul.f32 %v12019, %v12019
        %v12250 = vmul.f32 %v12020, %v12020
        %v12251 = vmul.f32 %v12021, %v12021
        %v12252 = vmul.f32 %v12022, %v12022
        %v12253 = vmul.f32 %v12023, %v12023
        %v12254 = vmul.f32 %v12024, %v12024
        %v12255 = vmul.f32 %v12025, %v12025
        %v12256 = vmul.f32 %v12026, %v12026
        %v12257 = vmul.f32 %v12027, %v12027
        %v12258 = vmul.f32 %v12028, %v12028
        %v12259 = vmul.f32 %v12029, %v12029
        %v12260 = vmul.f32 %v12030, %v12030
        %v12261 = vmul.f32 %v12031, %v12031
        %v12262 = vmul.f32 %v12032, %v12032
        %v12263 = vmul.f32 %v12033, %v12033
        %v12264 = vmul.f32 %v12034, %v12034
        %v12265 = vmul.f32 %v12035, %v12035
        %v12266 = vmul.f32 %v12036, %v12036
        %v12267 = vmul.f32 %v12037, %v12037
        %v12268 = vmul.f32 %v12038, %v12038
        %v12269 = vmul.f32 %v12039, %v12039
        %v12270 = vadd.f32 %v12238, %v12242
        %v12271 = vadd.f32 %v12270, %v12246
        %v12272 = vadd.f32 %v12271, %v12250
        %v12273 = vadd.f32 %v12272, %v12254
        %v12274 = vadd.f32 %v12273, %v12258
        %v12275 = vadd.f32 %v12274, %v12262
        %v12276 = vadd.f32 %v12275, %v12266
        %v12277 = vrot.slane %v12276, 4
        %v12278 = vadd.f32 %v12276, %v12277
        %v12279 = vrot.slane %v12278, 2
        %v12280 = vadd.f32 %v12278, %v12279
        %v12281 = vrot.slane %v12280, 1
        %v12282 = vadd.f32 %v12280, %v12281
        %v12283 = vadd.f32 %v12239, %v12243
        %v12284 = vadd.f32 %v12283, %v12247
        %v12285 = vadd.f32 %v12284, %v12251
        %v12286 = vadd.f32 %v12285, %v12255
        %v12287 = vadd.f32 %v12286, %v12259
        %v12288 = vadd.f32 %v12287, %v12263
        %v12289 = vadd.f32 %v12288, %v12267
        %v12290 = vrot.slane %v12289, 4
        %v12291 = vadd.f32 %v12289, %v12290
        %v12292 = vrot.slane %v12291, 2
        %v12293 = vadd.f32 %v12291, %v12292
        %v12294 = vrot.slane %v12293, 1
        %v12295 = vadd.f32 %v12293, %v12294
        %v12296 = vadd.f32 %v12240, %v12244
        %v12297 = vadd.f32 %v12296, %v12248
        %v12298 = vadd.f32 %v12297, %v12252
        %v12299 = vadd.f32 %v12298, %v12256
        %v12300 = vadd.f32 %v12299, %v12260
        %v12301 = vadd.f32 %v12300, %v12264
        %v12302 = vadd.f32 %v12301, %v12268
        %v12303 = vrot.slane %v12302, 4
        %v12304 = vadd.f32 %v12302, %v12303
        %v12305 = vrot.slane %v12304, 2
        %v12306 = vadd.f32 %v12304, %v12305
        %v12307 = vrot.slane %v12306, 1
        %v12308 = vadd.f32 %v12306, %v12307
        %v12309 = vadd.f32 %v12241, %v12245
        %v12310 = vadd.f32 %v12309, %v12249
        %v12311 = vadd.f32 %v12310, %v12253
        %v12312 = vadd.f32 %v12311, %v12257
        %v12313 = vadd.f32 %v12312, %v12261
        %v12314 = vadd.f32 %v12313, %v12265
        %v12315 = vadd.f32 %v12314, %v12269
        %v12316 = vrot.slane %v12315, 4
        %v12317 = vadd.f32 %v12315, %v12316
        %v12318 = vrot.slane %v12317, 2
        %v12319 = vadd.f32 %v12317, %v12318
        %v12320 = vrot.slane %v12319, 1
        %v12321 = vadd.f32 %v12319, %v12320
        %v12326 = vcombine.low %v12282, %v12295
        %v12327 = vcombine.low %v12308, %v12321
        %v12329 = vunpack.c.l.s4 1966171168
        %v12330 = vunpack.c.0.s8 %v12329
        %v12331 = vlaneseq
        %v12332 = vshrl.u32 %v12331, 7
        %v12333 = vsub.s32 %v12330, %v12332
        %v12334 = vrot.slane %v12326, %v12333
        %v12336 = vunpack.c.l.s4 1966171168
        %v12337 = vunpack.c.0.s8 %v12336
        %v12338 = vlaneseq
        %v12339 = vshrl.u32 %v12338, 7
        %v12340 = vsub.s32 %v12337, %v12339
        %v12341 = vrot.slane %v12327, %v12340
        %v12342 = vcombine.low %v12334, %v12341
        %v12344 = vunpack.c.l.s4 1966171168
        %v12345 = vunpack.c.0.s8 %v12344
        %v12346 = vlaneseq
        %v12347 = vshrl.u32 %v12346, 7
        %v12348 = vsub.s32 %v12345, %v12347
        %v12349 = vrot.slane %v12342, %v12348
        %12351 = vst.msk [vmem:[%s314] sm:$0xf] %vm12236, %v12349
        %s12352 = sand.u32 %s125, 1
        %s12353 = scalar_lea.sflag [#allocation6], %s12352
        %s12354 = sand.u32 %s125, 1
        %s12355 = smul.addr %s12354, 128
        %s12356 = scalar_lea.vmem [#allocation10], %s12355
        %s12357 = sand.u32 %s28, 1
        %s12358 = scalar_lea.sflag [#allocation12], %s12357
        %s12359 = sand.u32 %s151, 1
        %s12360 = smul.addr %s12359, 4
        %s12361 = scalar_lea.vmem [#allocation11], %s12360
        %s12362 = sand.u32 %s28, 1
        %s12363 = scalar_lea.sflag [#allocation12], %s12362
        %s12364 = sand.u32 %s177, 1
        %s12365 = smul.addr %s12364, 4
        %s12366 = scalar_lea.vmem [#allocation13], %s12365
        // Predicated region
        $region49: #{tpu_custom_call.1} parent=35 // pred_check
          %p12367 = pneg %p135
        $region50: #{tpu_custom_call.1} parent=35 // pred_check_branch
          %12369 = sbr.rel (%p12367) target = $region52
        $region51: #{tpu_custom_call.1} parent=35 // pred_region
          %s12371 = ssub.s32 2048, 2048
          %12372 = vsyncadd %s12353, %s12371
          %s12373 = smul.addr %s28, 32
          %s12374 = smul.addr %s12373, 64
          %s12375 = scalar_lea.hbm %s4, %s12374
          %s12376 = sshll.u32 %s12356, 4
          %s12377 = int_to_ptr.vmem [resolvable:$true] %s12376
          %12382 = dma.vmem_to_hbm [thread:$0]  %s12377, 2048, %s12375, %s12353, 256, 256, 16
        $region52: #{tpu_custom_call.1} parent=35 // pred_fallthru
          _
        // Predicated region
        $region53: #{tpu_custom_call.1} parent=35 // pred_check
          %p12383 = pneg %p161
        $region54: #{tpu_custom_call.1} parent=35 // pred_check_branch
          %12385 = sbr.rel (%p12383) target = $region56
        $region55: #{tpu_custom_call.1} parent=35 // pred_region
          %s12387 = ssub.s32 64, 64
          %12388 = vsyncadd %s12358, %s12387
          %s12389 = smul.addr %s28, 4
          %s12390 = smul.addr %s12389, 16
          %s12391 = scalar_lea.hbm %s5, %s12390
          %s12393 = sshll.u32 %s12361, 4
          %s12394 = int_to_ptr.vmem [resolvable:$true] %s12393
          %12396 = dma.vmem_to_hbm [thread:$0]  %s12394, 64, %s12391, %s12358
        $region56: #{tpu_custom_call.1} parent=35 // pred_fallthru
          _
        // Predicated region
        $region57: #{tpu_custom_call.1} parent=35 // pred_check
          %p12397 = pneg %p187
        $region58: #{tpu_custom_call.1} parent=35 // pred_check_branch
          %12399 = sbr.rel (%p12397) target = $region60
        $region59: #{tpu_custom_call.1} parent=35 // pred_region
          %s12401 = ssub.s32 64, 64
          %12402 = vsyncadd %s12363, %s12401
          %s12403 = smul.addr %s28, 4
          %s12404 = smul.addr %s12403, 16
          %s12405 = scalar_lea.hbm %s6, %s12404
          %s12407 = sshll.u32 %s12366, 4
          %s12408 = int_to_ptr.vmem [resolvable:$true] %s12407
          %12410 = dma.vmem_to_hbm [thread:$0]  %s12408, 64, %s12405, %s12363
        $region60: #{tpu_custom_call.1} parent=35 // pred_fallthru
          _
      $region36: #{tpu_custom_call.1} parent=5 // pred_fallthru
        _
      %p12411 = scmp.le.s32.totalorder 2, %s23
      // Predicated region
      $region61: #{tpu_custom_call.1} parent=5 // pred_check
        %p12412 = pneg %p12411
      $region62: #{tpu_custom_call.1} parent=5 // pred_check_branch
        %12414 = sbr.rel (%p12412) target = $region64
      $region63: #{tpu_custom_call.1} parent=5 // pred_region
        %s12415 = ssub.s32 %s23, 2
        // Predicated region
        $region65: #{tpu_custom_call.1} parent=63 // pred_check
          %p12416 = pneg %p141
        $region66: #{tpu_custom_call.1} parent=63 // pred_check_branch
          %12418 = sbr.rel (%p12416) target = $region68
        $region67: #{tpu_custom_call.1} parent=63 // pred_region
          %s12419 = sand.u32 %s126, 1
          %s12420 = scalar_lea.sflag [#allocation6], %s12419
          %s12421 = sand.u32 %s126, 1
          %s12422 = smul.addr %s12421, 128
          %s12423 = scalar_lea.vmem [#allocation10], %s12422
          %12424 = dma.done %s12420, 2048
        $region68: #{tpu_custom_call.1} parent=63 // pred_fallthru
          _
        // Predicated region
        $region69: #{tpu_custom_call.1} parent=63 // pred_check
          %p12425 = pneg %p167
        $region70: #{tpu_custom_call.1} parent=63 // pred_check_branch
          %12427 = sbr.rel (%p12425) target = $region72
        $region71: #{tpu_custom_call.1} parent=63 // pred_region
          %s12428 = sand.u32 %s29, 1
          %s12429 = scalar_lea.sflag [#allocation12], %s12428
          %s12430 = sand.u32 %s152, 1
          %s12431 = smul.addr %s12430, 4
          %s12432 = scalar_lea.vmem [#allocation11], %s12431
          %12433 = dma.done %s12429, 64
        $region72: #{tpu_custom_call.1} parent=63 // pred_fallthru
          _
        // Predicated region
        $region73: #{tpu_custom_call.1} parent=63 // pred_check
          %p12434 = pneg %p193
        $region74: #{tpu_custom_call.1} parent=63 // pred_check_branch
          %12436 = sbr.rel (%p12434) target = $region76
        $region75: #{tpu_custom_call.1} parent=63 // pred_region
          %s12437 = sand.u32 %s29, 1
          %s12438 = scalar_lea.sflag [#allocation12], %s12437
          %s12439 = sand.u32 %s178, 1
          %s12440 = smul.addr %s12439, 4
          %s12441 = scalar_lea.vmem [#allocation13], %s12440
          %12442 = dma.done %s12438, 64
        $region76: #{tpu_custom_call.1} parent=63 // pred_fallthru
          _
      $region64: #{tpu_custom_call.1} parent=5 // pred_fallthru
        _
    $region6: #{tpu_custom_call.1} parent=1 // loop_footer
      %s27 = sadd.s32 1, %s23
    $region7: #{tpu_custom_call.1} parent=1 // loop_footer_branch
      %22 = sbr.rel target = $region3
    $region8: #{tpu_custom_call.1} parent=1 // loop_exit
      _
    %12443 = vsyncpa [#allocation5], 1
    %s12444 = scalar_lea.sflag [#allocation5], 1
    %12445 = vsyncpa %s12444, 1
    %12446 = vsyncpa [#allocation8], 1
    %12447 = vsyncpa [#allocation6], 1
    %s12448 = scalar_lea.sflag [#allocation6], 1
    %12449 = vsyncpa %s12448, 1
    %12450 = vsyncpa [#allocation12], 1
    %s12451 = scalar_lea.sflag [#allocation12], 1
    %12452 = vsyncpa %s12451, 1

</llo_original>
